<compile_context>
chip_gen: v6e
topology: v6e:2x2x1
jax: 0.10.0
libtpu: 0.0.40
codegen_flags: <defaults>
</compile_context>

<pallas_src>
import functools

import numpy as np

import jax
import jax.numpy as jnp
from jax import lax
from jax.experimental import pallas as pl
from jax.experimental.pallas import tpu as pltpu


def _round_up(n, m):
    return ((n + m - 1) // m) * m


# ----------------------------------------------------------------------------
# Pallas kernel: fused (block-diagonal) LSTM recurrence + output Linear.
# ----------------------------------------------------------------------------
def _fused_lstm_kernel(x_ref, wih_ref, whh_ref, b_ref, wlin_ref, blin_ref,
                       out_ref, xg_scr, hs_scr, h_scr, c_scr, *, seq_len):
    """Fused two-branch LSTM, batch=1, time-major.

    x_ref    : (Tp, Ip)    bf16  padded input sequence
    wih_ref  : (Ip, 4*Hp)  bf16  input->gates (gate-major blocks i,f,g,o)
    whh_ref  : (Hp, 4*Hp)  bf16  hidden->gates (block-diag across branches)
    b_ref    : (1, 4*Hp)   f32   b_ih + b_hh
    wlin_ref : (Hp, Op)    bf16  output Linear (branch1 -> lane 0, branch2 -> lane 1)
    blin_ref : (1, Op)     f32
    out_ref  : (Tp, Op)    f32   per-timestep predictions of both branches
    xg_scr   : (Tp, 4*Hp)  f32   precomputed x@Wih + b
    hs_scr   : (Tp, Hp)    f32   h_t history
    h_scr/c_scr : (1, Hp)  f32   recurrent state
    """
    Hp = whh_ref.shape[0]

    # Hoisted input-to-gates contribution (one full-sublane MXU matmul).
    xg_scr[...] = (jnp.dot(x_ref[...], wih_ref[...],
                           preferred_element_type=jnp.float32)
                   + b_ref[...])

    hs_scr[...] = jnp.zeros_like(hs_scr)
    h_scr[...] = jnp.zeros_like(h_scr)
    c_scr[...] = jnp.zeros_like(c_scr)

    def step(t, carry):
        gates = (xg_scr[pl.ds(t, 1), :]
                 + jnp.dot(h_scr[...].astype(whh_ref.dtype), whh_ref[...],
                           preferred_element_type=jnp.float32))      # (1, 4Hp)

        i_g = jax.nn.sigmoid(gates[:, 0 * Hp:1 * Hp])
        f_g = jax.nn.sigmoid(gates[:, 1 * Hp:2 * Hp])
        g_g = jnp.tanh(gates[:, 2 * Hp:3 * Hp])
        o_g = jax.nn.sigmoid(gates[:, 3 * Hp:4 * Hp])

        c_new = f_g * c_scr[...] + i_g * g_g
        h_new = o_g * jnp.tanh(c_new)
        c_scr[...] = c_new
        h_scr[...] = h_new
        hs_scr[pl.ds(t, 1), :] = h_new
        return carry

    # Only iterate over real timesteps (padded rows never computed).
    lax.fori_loop(0, seq_len, step, 0, unroll=True)

    # Hoisted output projection: one matmul + one lane-dense store.
    out_ref[...] = (jnp.dot(hs_scr[...].astype(wlin_ref.dtype), wlin_ref[...],
                            preferred_element_type=jnp.float32)
                    + blin_ref[...])


# ----------------------------------------------------------------------------
# One-time host-side construction of the fused / padded parameters.
# ----------------------------------------------------------------------------
def build_fused_params(p1, p2):
    """Fuse branch1 (H1) and branch2 (H2) into one block-diagonal LSTM."""
    w_ih1 = np.asarray(p1["w_ih"], np.float32)
    w_hh1 = np.asarray(p1["w_hh"], np.float32)
    w_ih2 = np.asarray(p2["w_ih"], np.float32)
    w_hh2 = np.asarray(p2["w_hh"], np.float32)
    b1 = np.asarray(p1["b_ih"], np.float32) + np.asarray(p1["b_hh"], np.float32)
    b2 = np.asarray(p2["b_ih"], np.float32) + np.asarray(p2["b_hh"], np.float32)
    w_lin1 = np.asarray(p1["w_lin"], np.float32)
    w_lin2 = np.asarray(p2["w_lin"], np.float32)
    b_lin1 = np.asarray(p1["b_lin"], np.float32)
    b_lin2 = np.asarray(p2["b_lin"], np.float32)

    H1 = w_hh1.shape[1]
    H2 = w_hh2.shape[1]
    I = w_ih1.shape[1]
    O = w_lin1.shape[0]

    Hp = _round_up(H1 + H2, 128)
    Ip = _round_up(max(I, 1), 128)
    Op = _round_up(max(2 * O, 1), 128)

    wih = np.zeros((Ip, 4 * Hp), np.float32)
    whh = np.zeros((Hp, 4 * Hp), np.float32)
    b = np.zeros((1, 4 * Hp), np.float32)
    wlin = np.zeros((Hp, Op), np.float32)
    blin = np.zeros((1, Op), np.float32)

    for k in range(4):
        c0 = k * Hp
        # branch 1 occupies lanes [0, H1), branch 2 lanes [H1, H1+H2) per gate.
        wih[:I, c0:c0 + H1] = w_ih1[k * H1:(k + 1) * H1, :].T
        wih[:I, c0 + H1:c0 + H1 + H2] = w_ih2[k * H2:(k + 1) * H2, :].T
        whh[:H1, c0:c0 + H1] = w_hh1[k * H1:(k + 1) * H1, :].T
        whh[H1:H1 + H2, c0 + H1:c0 + H1 + H2] = w_hh2[k * H2:(k + 1) * H2, :].T
        b[0, c0:c0 + H1] = b1[k * H1:(k + 1) * H1]
        b[0, c0 + H1:c0 + H1 + H2] = b2[k * H2:(k + 1) * H2]

    wlin[:H1, 0:O] = w_lin1.T                    # branch1 -> output lanes [0, O)
    wlin[H1:H1 + H2, O:2 * O] = w_lin2.T         # branch2 -> output lanes [O, 2O)
    blin[0, 0:O] = b_lin1
    blin[0, O:2 * O] = b_lin2

    return dict(
        wih=jnp.asarray(wih, jnp.bfloat16),
        whh=jnp.asarray(whh, jnp.bfloat16),
        b=jnp.asarray(b, jnp.float32),
        wlin=jnp.asarray(wlin, jnp.bfloat16),
        blin=jnp.asarray(blin, jnp.float32),
        dims=dict(H1=H1, H2=H2, I=I, O=O, Hp=Hp, Ip=Ip, Op=Op),
    )


# ----------------------------------------------------------------------------
# Jitted forward: pad x, call the fused kernel, slice out both branches.
# ----------------------------------------------------------------------------
@functools.partial(jax.jit, static_argnames=("o_size", "hp", "ip", "op"))
def _fused_forward_impl(x_seq, wih, whh, b, wlin, blin, *, o_size, hp, ip, op):
    T, I = x_seq.shape
    Tp = _round_up(max(T, 1), 8)

    x_p = jnp.zeros((Tp, ip), jnp.bfloat16).at[:T, :I].set(
        x_seq.astype(jnp.bfloat16))

    kernel = functools.partial(_fused_lstm_kernel, seq_len=T)
    out = pl.pallas_call(
        kernel,
        out_shape=jax.ShapeDtypeStruct((Tp, op), jnp.float32),
        grid=(1,),
        in_specs=[
            pl.BlockSpec((Tp, ip), lambda i: (0, 0)),
            pl.BlockSpec((ip, 4 * hp), lambda i: (0, 0)),
            pl.BlockSpec((hp, 4 * hp), lambda i: (0, 0)),
            pl.BlockSpec((1, 4 * hp), lambda i: (0, 0)),
            pl.BlockSpec((hp, op), lambda i: (0, 0)),
            pl.BlockSpec((1, op), lambda i: (0, 0)),
        ],
        out_specs=pl.BlockSpec((Tp, op), lambda i: (0, 0)),
        scratch_shapes=[
            pltpu.VMEM((Tp, 4 * hp), jnp.float32),   # xg  (x@Wih + b)
            pltpu.VMEM((Tp, hp), jnp.float32),       # h history
            pltpu.VMEM((1, hp), jnp.float32),        # h
            pltpu.VMEM((1, hp), jnp.float32),        # c
        ],
        compiler_params=pltpu.CompilerParams(
            dimension_semantics=("arbitrary",)),
    )(x_p, wih, whh, b, wlin, blin)

    preds1 = out[:T, 0:o_size]
    preds2 = out[:T, o_size:2 * o_size]
    return preds1, preds2


def lstm_fused_predictions(x_seq, fused):
    d = fused["dims"]
    return _fused_forward_impl(
        x_seq, fused["wih"], fused["whh"], fused["b"], fused["wlin"],
        fused["blin"], o_size=d["O"], hp=d["Hp"], ip=d["Ip"], op=d["Op"])


def lstm_module_forward(input_seq, fused):
    """Mirrors the PyTorch module forward: returns (preds1[-1], preds2[-1])."""
    T = input_seq.shape[0]
    x = input_seq.reshape(T, -1)   # == input_seq.view(len(input_seq), 1, -1), batch=1
    preds1, preds2 = lstm_fused_predictions(x, fused)
    return preds1[-1], preds2[-1]  # each shape (output_size,) == (1,)


# ----------------------------------------------------------------------------
# Parameter construction (deterministic, PyTorch-style uniform init).
# ----------------------------------------------------------------------------
def init_lstm_params(key, input_size, hidden_size, output_size):
    ks = jax.random.split(key, 6)
    klstm = 1.0 / jnp.sqrt(hidden_size)
    klin = 1.0 / jnp.sqrt(hidden_size)
    u = lambda k, shape, s: jax.random.uniform(k, shape, jnp.float32, -s, s)
    return dict(
        w_ih=u(ks[0], (4 * hidden_size, input_size), klstm),
        w_hh=u(ks[1], (4 * hidden_size, hidden_size), klstm),
        b_ih=u(ks[2], (4 * hidden_size,), klstm),
        b_hh=u(ks[3], (4 * hidden_size,), klstm),
        w_lin=u(ks[4], (output_size, hidden_size), klin),
        b_lin=u(ks[5], (output_size,), klin),
    )


# ----------------------------------------------------------------------------
# Pure-JAX per-branch reference (f32 exact, or bf16-matmul emulation).
# ----------------------------------------------------------------------------
def lstm_branch_ref(x_seq, p, *, emulate_bf16=False):
    H = p["w_hh"].shape[1]
    cast = (lambda a: a.astype(jnp.bfloat16)) if emulate_bf16 else (lambda a: a)
    wih_t = cast(p["w_ih"]).T
    whh_t = cast(p["w_hh"]).T
    wlin_t = cast(p["w_lin"]).T
    b = (p["b_ih"] + p["b_hh"]).astype(jnp.float32)

    def step(carry, x_t):
        h, c = carry
        gates = (jnp.dot(cast(x_t), wih_t, preferred_element_type=jnp.float32)
                 + jnp.dot(cast(h), whh_t, preferred_element_type=jnp.float32)
                 + b)
        i = jax.nn.sigmoid(gates[0:H])
        f = jax.nn.sigmoid(gates[H:2 * H])
        g = jnp.tanh(gates[2 * H:3 * H])
        o = jax.nn.sigmoid(gates[3 * H:4 * H])
        c = f * c + i * g
        h = o * jnp.tanh(c)
        return (h, c), h

    (_, _), hs = lax.scan(
        step, (jnp.zeros(H, jnp.float32), jnp.zeros(H, jnp.float32)), x_seq)
    return (jnp.dot(cast(hs), wlin_t, preferred_element_type=jnp.float32)
            + p["b_lin"])


# ----------------------------------------------------------------------------
if __name__ == "__main__":
    key = jax.random.PRNGKey(0)
    k_x, k_p1, k_p2 = jax.random.split(key, 3)

    # Module hyperparameters (PyTorch __init__ defaults).
    input_size = 1
    hidden_layer_size1 = 200
    hidden_layer_size2 = 1
    output_size = 1

    seq_len = 8
    input_seq = jax.random.normal(k_x, (seq_len,), jnp.float32)

    params1 = init_lstm_params(k_p1, input_size, hidden_layer_size1, output_size)
    params2 = init_lstm_params(k_p2, input_size, hidden_layer_size2, output_size)

    # One-time fusion/padding of the weights (host-side, numpy).
    fused = build_fused_params(params1, params2)

    pred1, pred2 = lstm_module_forward(input_seq, fused)
    jax.block_until_ready((pred1, pred2))

    # Correctness checks.
    x2d = input_seq.reshape(seq_len, -1)
    preds1, preds2 = lstm_fused_predictions(x2d, fused)

    # (a) tight check against a reference using the same bf16 matmul inputs.
    ref1_bf = lstm_branch_ref(x2d, params1, emulate_bf16=True)
    ref2_bf = lstm_branch_ref(x2d, params2, emulate_bf16=True)
    assert jnp.allclose(preds1, ref1_bf, rtol=2e-3, atol=2e-3), (preds1, ref1_bf)
    assert jnp.allclose(preds2, ref2_bf, rtol=2e-3, atol=2e-3), (preds2, ref2_bf)

    # (b) looser check against the exact f32 reference (bf16 weight rounding).
    ref1_f32 = lstm_branch_ref(x2d, params1)
    ref2_f32 = lstm_branch_ref(x2d, params2)
    assert jnp.allclose(preds1, ref1_f32, rtol=3e-2, atol=3e-2), (preds1, ref1_f32)
    assert jnp.allclose(preds2, ref2_f32, rtol=3e-2, atol=3e-2), (preds2, ref2_f32)

    assert pred1.shape == (1,) and pred2.shape == (1,)
    assert jnp.allclose(pred1, ref1_f32[-1], rtol=3e-2, atol=3e-2)
    assert jnp.allclose(pred2, ref2_f32[-1], rtol=3e-2, atol=3e-2)

    print("KERNEL_OK")
</pallas_src>

<mosaic_0001>
module attributes {stable_mosaic.version = 11 : i64} {
  func.func @_fused_lstm_kernel(%arg0: i32, %arg1: memref<8x128xbf16, #tpu.memory_space<vmem>>, %arg2: memref<128x1024xbf16, #tpu.memory_space<vmem>>, %arg3: memref<256x1024xbf16, #tpu.memory_space<vmem>>, %arg4: memref<1x1024xf32, #tpu.memory_space<vmem>>, %arg5: memref<256x128xbf16, #tpu.memory_space<vmem>>, %arg6: memref<1x128xf32, #tpu.memory_space<vmem>>, %arg7: memref<8x128xf32, #tpu.memory_space<vmem>>, %arg8: memref<8x1024xf32, #tpu.memory_space<vmem>>, %arg9: memref<8x256xf32, #tpu.memory_space<vmem>>, %arg10: memref<1x256xf32, #tpu.memory_space<vmem>>, %arg11: memref<1x256xf32, #tpu.memory_space<vmem>>) attributes {dimension_semantics = [#tpu.dimension_semantics<arbitrary>], iteration_bounds = array<i64: 1>, scalar_prefetch = 0 : i64, scratch_operands = 4 : i64, tpu.core_type = #tpu.core_type<tc>, window_params = [{pipeline_mode = #tpu.pipeline_mode<synchronous>, transform_indices = @transform_0, window_bounds = array<i64: 8, 128>}, {pipeline_mode = #tpu.pipeline_mode<synchronous>, transform_indices = @transform_1, window_bounds = array<i64: 128, 1024>}, {pipeline_mode = #tpu.pipeline_mode<synchronous>, transform_indices = @transform_2, window_bounds = array<i64: 256, 1024>}, {pipeline_mode = #tpu.pipeline_mode<synchronous>, transform_indices = @transform_3, window_bounds = array<i64: 1, 1024>}, {pipeline_mode = #tpu.pipeline_mode<synchronous>, transform_indices = @transform_4, window_bounds = array<i64: 256, 128>}, {pipeline_mode = #tpu.pipeline_mode<synchronous>, transform_indices = @transform_5, window_bounds = array<i64: 1, 128>}, {pipeline_mode = #tpu.pipeline_mode<synchronous>, transform_indices = @transform_6, window_bounds = array<i64: 8, 128>}]} {
    %c0 = arith.constant 0 : index
    %c0_0 = arith.constant 0 : index
    %0 = vector.load %arg1[%c0, %c0_0] : memref<8x128xbf16, #tpu.memory_space<vmem>>, vector<8x128xbf16>
    %c0_1 = arith.constant 0 : index
    %c0_2 = arith.constant 0 : index
    %1 = vector.load %arg2[%c0_1, %c0_2] : memref<128x1024xbf16, #tpu.memory_space<vmem>>, vector<128x1024xbf16>
    %cst = arith.constant dense<0.000000e+00> : vector<8x1024xf32>
    %2 = tpu.matmul %0, %1, %cst {dimension_numbers = #tpu.dot_dimension_numbers<[1], [0], [0], [1], [0, 0, 1, 1], [], []>} : vector<8x128xbf16>, vector<128x1024xbf16>, vector<8x1024xf32> -> vector<8x1024xf32>
    %c0_3 = arith.constant 0 : index
    %c0_4 = arith.constant 0 : index
    %3 = vector.load %arg4[%c0_3, %c0_4] : memref<1x1024xf32, #tpu.memory_space<vmem>>, vector<1x1024xf32>
    %4 = vector.broadcast %3 : vector<1x1024xf32> to vector<8x1024xf32>
    %5 = arith.addf %2, %4 : vector<8x1024xf32>
    %c0_5 = arith.constant 0 : index
    %c0_6 = arith.constant 0 : index
    %6 = vector.load %arg8[%c0_5, %c0_6] : memref<8x1024xf32, #tpu.memory_space<vmem>>, vector<8x1024xf32>
    tpu.vector_store %arg8[%c0_5, %c0_6], %5 {strides = array<i32>} : memref<8x1024xf32, #tpu.memory_space<vmem>>, vector<8x1024xf32>,
    %cst_7 = arith.constant 0.000000e+00 : f32
    %7 = vector.broadcast %cst_7 : f32 to vector<8x256xf32>
    %c0_8 = arith.constant 0 : index
    %c0_9 = arith.constant 0 : index
    %8 = vector.load %arg9[%c0_8, %c0_9] : memref<8x256xf32, #tpu.memory_space<vmem>>, vector<8x256xf32>
    tpu.vector_store %arg9[%c0_8, %c0_9], %7 {strides = array<i32>} : memref<8x256xf32, #tpu.memory_space<vmem>>, vector<8x256xf32>,
    %cst_10 = arith.constant 0.000000e+00 : f32
    %9 = vector.broadcast %cst_10 : f32 to vector<1x256xf32>
    %c0_11 = arith.constant 0 : index
    %c0_12 = arith.constant 0 : index
    %10 = vector.load %arg10[%c0_11, %c0_12] : memref<1x256xf32, #tpu.memory_space<vmem>>, vector<1x256xf32>
    tpu.vector_store %arg10[%c0_11, %c0_12], %9 {strides = array<i32>} : memref<1x256xf32, #tpu.memory_space<vmem>>, vector<1x256xf32>,
    %cst_13 = arith.constant 0.000000e+00 : f32
    %11 = vector.broadcast %cst_13 : f32 to vector<1x256xf32>
    %c0_14 = arith.constant 0 : index
    %c0_15 = arith.constant 0 : index
    %12 = vector.load %arg11[%c0_14, %c0_15] : memref<1x256xf32, #tpu.memory_space<vmem>>, vector<1x256xf32>
    tpu.vector_store %arg11[%c0_14, %c0_15], %11 {strides = array<i32>} : memref<1x256xf32, #tpu.memory_space<vmem>>, vector<1x256xf32>,
    %c0_i32 = arith.constant 0 : i32
    %13 = arith.index_cast %c0_i32 : i32 to index
    %c0_16 = arith.constant 0 : index
    %14 = vector.load %arg8[%13, %c0_16] : memref<8x1024xf32, #tpu.memory_space<vmem>>, vector<1x1024xf32>
    %c0_17 = arith.constant 0 : index
    %c0_18 = arith.constant 0 : index
    %15 = vector.load %arg10[%c0_17, %c0_18] : memref<1x256xf32, #tpu.memory_space<vmem>>, vector<1x256xf32>
    %16 = arith.truncf %15 : vector<1x256xf32> to vector<1x256xbf16>
    %c0_19 = arith.constant 0 : index
    %c0_20 = arith.constant 0 : index
    %17 = vector.load %arg3[%c0_19, %c0_20] : memref<256x1024xbf16, #tpu.memory_space<vmem>>, vector<256x1024xbf16>
    %cst_21 = arith.constant dense<0.000000e+00> : vector<1x1024xf32>
    %18 = tpu.matmul %16, %17, %cst_21 {dimension_numbers = #tpu.dot_dimension_numbers<[1], [0], [0], [1], [0, 0, 1, 1], [], []>} : vector<1x256xbf16>, vector<256x1024xbf16>, vector<1x1024xf32> -> vector<1x1024xf32>
    %19 = arith.addf %14, %18 : vector<1x1024xf32>
    %20 = vector.extract_strided_slice %19 {offsets = [0, 0], sizes = [1, 256], strides = [1, 1]} : vector<1x1024xf32> to vector<1x256xf32>
    %21 = arith.negf %20 : vector<1x256xf32>
    %22 = math.exp %21 : vector<1x256xf32>
    %cst_22 = arith.constant 1.000000e+00 : f32
    %23 = vector.broadcast %cst_22 : f32 to vector<1x256xf32>
    %24 = arith.addf %23, %22 : vector<1x256xf32>
    %25 = arith.divf %23, %24 : vector<1x256xf32>
    %26 = vector.extract_strided_slice %19 {offsets = [0, 256], sizes = [1, 256], strides = [1, 1]} : vector<1x1024xf32> to vector<1x256xf32>
    %27 = arith.negf %26 : vector<1x256xf32>
    %28 = math.exp %27 : vector<1x256xf32>
    %cst_23 = arith.constant 1.000000e+00 : f32
    %29 = vector.broadcast %cst_23 : f32 to vector<1x256xf32>
    %30 = arith.addf %29, %28 : vector<1x256xf32>
    %31 = arith.divf %29, %30 : vector<1x256xf32>
    %32 = vector.extract_strided_slice %19 {offsets = [0, 512], sizes = [1, 256], strides = [1, 1]} : vector<1x1024xf32> to vector<1x256xf32>
    %33 = math.tanh %32 : vector<1x256xf32>
    %34 = vector.extract_strided_slice %19 {offsets = [0, 768], sizes = [1, 256], strides = [1, 1]} : vector<1x1024xf32> to vector<1x256xf32>
    %35 = arith.negf %34 : vector<1x256xf32>
    %36 = math.exp %35 : vector<1x256xf32>
    %cst_24 = arith.constant 1.000000e+00 : f32
    %37 = vector.broadcast %cst_24 : f32 to vector<1x256xf32>
    %38 = arith.addf %37, %36 : vector<1x256xf32>
    %39 = arith.divf %37, %38 : vector<1x256xf32>
    %c0_25 = arith.constant 0 : index
    %c0_26 = arith.constant 0 : index
    %40 = vector.load %arg11[%c0_25, %c0_26] : memref<1x256xf32, #tpu.memory_space<vmem>>, vector<1x256xf32>
    %41 = arith.mulf %31, %40 : vector<1x256xf32>
    %42 = arith.mulf %25, %33 : vector<1x256xf32>
    %43 = arith.addf %41, %42 : vector<1x256xf32>
    %44 = math.tanh %43 : vector<1x256xf32>
    %45 = arith.mulf %39, %44 : vector<1x256xf32>
    %c0_27 = arith.constant 0 : index
    %c0_28 = arith.constant 0 : index
    %46 = vector.load %arg11[%c0_27, %c0_28] : memref<1x256xf32, #tpu.memory_space<vmem>>, vector<1x256xf32>
    tpu.vector_store %arg11[%c0_27, %c0_28], %43 {strides = array<i32>} : memref<1x256xf32, #tpu.memory_space<vmem>>, vector<1x256xf32>,
    %c0_29 = arith.constant 0 : index
    %c0_30 = arith.constant 0 : index
    %47 = vector.load %arg10[%c0_29, %c0_30] : memref<1x256xf32, #tpu.memory_space<vmem>>, vector<1x256xf32>
    tpu.vector_store %arg10[%c0_29, %c0_30], %45 {strides = array<i32>} : memref<1x256xf32, #tpu.memory_space<vmem>>, vector<1x256xf32>,
    %48 = arith.index_cast %c0_i32 : i32 to index
    %c0_31 = arith.constant 0 : index
    %49 = vector.load %arg9[%48, %c0_31] : memref<8x256xf32, #tpu.memory_space<vmem>>, vector<1x256xf32>
    tpu.vector_store %arg9[%48, %c0_31], %45 {strides = array<i32>} : memref<8x256xf32, #tpu.memory_space<vmem>>, vector<1x256xf32>,
    %c1_i32 = arith.constant 1 : i32
    %50 = arith.index_cast %c1_i32 : i32 to index
    %c0_32 = arith.constant 0 : index
    %51 = vector.load %arg8[%50, %c0_32] : memref<8x1024xf32, #tpu.memory_space<vmem>>, vector<1x1024xf32>
    %c0_33 = arith.constant 0 : index
    %c0_34 = arith.constant 0 : index
    %52 = vector.load %arg10[%c0_33, %c0_34] : memref<1x256xf32, #tpu.memory_space<vmem>>, vector<1x256xf32>
    %53 = arith.truncf %52 : vector<1x256xf32> to vector<1x256xbf16>
    %c0_35 = arith.constant 0 : index
    %c0_36 = arith.constant 0 : index
    %54 = vector.load %arg3[%c0_35, %c0_36] : memref<256x1024xbf16, #tpu.memory_space<vmem>>, vector<256x1024xbf16>
    %cst_37 = arith.constant dense<0.000000e+00> : vector<1x1024xf32>
    %55 = tpu.matmul %53, %54, %cst_37 {dimension_numbers = #tpu.dot_dimension_numbers<[1], [0], [0], [1], [0, 0, 1, 1], [], []>} : vector<1x256xbf16>, vector<256x1024xbf16>, vector<1x1024xf32> -> vector<1x1024xf32>
    %56 = arith.addf %51, %55 : vector<1x1024xf32>
    %57 = vector.extract_strided_slice %56 {offsets = [0, 0], sizes = [1, 256], strides = [1, 1]} : vector<1x1024xf32> to vector<1x256xf32>
    %58 = arith.negf %57 : vector<1x256xf32>
    %59 = math.exp %58 : vector<1x256xf32>
    %cst_38 = arith.constant 1.000000e+00 : f32
    %60 = vector.broadcast %cst_38 : f32 to vector<1x256xf32>
    %61 = arith.addf %60, %59 : vector<1x256xf32>
    %62 = arith.divf %60, %61 : vector<1x256xf32>
    %63 = vector.extract_strided_slice %56 {offsets = [0, 256], sizes = [1, 256], strides = [1, 1]} : vector<1x1024xf32> to vector<1x256xf32>
    %64 = arith.negf %63 : vector<1x256xf32>
    %65 = math.exp %64 : vector<1x256xf32>
    %cst_39 = arith.constant 1.000000e+00 : f32
    %66 = vector.broadcast %cst_39 : f32 to vector<1x256xf32>
    %67 = arith.addf %66, %65 : vector<1x256xf32>
    %68 = arith.divf %66, %67 : vector<1x256xf32>
    %69 = vector.extract_strided_slice %56 {offsets = [0, 512], sizes = [1, 256], strides = [1, 1]} : vector<1x1024xf32> to vector<1x256xf32>
    %70 = math.tanh %69 : vector<1x256xf32>
    %71 = vector.extract_strided_slice %56 {offsets = [0, 768], sizes = [1, 256], strides = [1, 1]} : vector<1x1024xf32> to vector<1x256xf32>
    %72 = arith.negf %71 : vector<1x256xf32>
    %73 = math.exp %72 : vector<1x256xf32>
    %cst_40 = arith.constant 1.000000e+00 : f32
    %74 = vector.broadcast %cst_40 : f32 to vector<1x256xf32>
    %75 = arith.addf %74, %73 : vector<1x256xf32>
    %76 = arith.divf %74, %75 : vector<1x256xf32>
    %c0_41 = arith.constant 0 : index
    %c0_42 = arith.constant 0 : index
    %77 = vector.load %arg11[%c0_41, %c0_42] : memref<1x256xf32, #tpu.memory_space<vmem>>, vector<1x256xf32>
    %78 = arith.mulf %68, %77 : vector<1x256xf32>
    %79 = arith.mulf %62, %70 : vector<1x256xf32>
    %80 = arith.addf %78, %79 : vector<1x256xf32>
    %81 = math.tanh %80 : vector<1x256xf32>
    %82 = arith.mulf %76, %81 : vector<1x256xf32>
    %c0_43 = arith.constant 0 : index
    %c0_44 = arith.constant 0 : index
    %83 = vector.load %arg11[%c0_43, %c0_44] : memref<1x256xf32, #tpu.memory_space<vmem>>, vector<1x256xf32>
    tpu.vector_store %arg11[%c0_43, %c0_44], %80 {strides = array<i32>} : memref<1x256xf32, #tpu.memory_space<vmem>>, vector<1x256xf32>,
    %c0_45 = arith.constant 0 : index
    %c0_46 = arith.constant 0 : index
    %84 = vector.load %arg10[%c0_45, %c0_46] : memref<1x256xf32, #tpu.memory_space<vmem>>, vector<1x256xf32>
    tpu.vector_store %arg10[%c0_45, %c0_46], %82 {strides = array<i32>} : memref<1x256xf32, #tpu.memory_space<vmem>>, vector<1x256xf32>,
    %85 = arith.index_cast %c1_i32 : i32 to index
    %c0_47 = arith.constant 0 : index
    %86 = vector.load %arg9[%85, %c0_47] : memref<8x256xf32, #tpu.memory_space<vmem>>, vector<1x256xf32>
    tpu.vector_store %arg9[%85, %c0_47], %82 {strides = array<i32>} : memref<8x256xf32, #tpu.memory_space<vmem>>, vector<1x256xf32>,
    %c2_i32 = arith.constant 2 : i32
    %87 = arith.index_cast %c2_i32 : i32 to index
    %c0_48 = arith.constant 0 : index
    %88 = vector.load %arg8[%87, %c0_48] : memref<8x1024xf32, #tpu.memory_space<vmem>>, vector<1x1024xf32>
    %c0_49 = arith.constant 0 : index
    %c0_50 = arith.constant 0 : index
    %89 = vector.load %arg10[%c0_49, %c0_50] : memref<1x256xf32, #tpu.memory_space<vmem>>, vector<1x256xf32>
    %90 = arith.truncf %89 : vector<1x256xf32> to vector<1x256xbf16>
    %c0_51 = arith.constant 0 : index
    %c0_52 = arith.constant 0 : index
    %91 = vector.load %arg3[%c0_51, %c0_52] : memref<256x1024xbf16, #tpu.memory_space<vmem>>, vector<256x1024xbf16>
    %cst_53 = arith.constant dense<0.000000e+00> : vector<1x1024xf32>
    %92 = tpu.matmul %90, %91, %cst_53 {dimension_numbers = #tpu.dot_dimension_numbers<[1], [0], [0], [1], [0, 0, 1, 1], [], []>} : vector<1x256xbf16>, vector<256x1024xbf16>, vector<1x1024xf32> -> vector<1x1024xf32>
    %93 = arith.addf %88, %92 : vector<1x1024xf32>
    %94 = vector.extract_strided_slice %93 {offsets = [0, 0], sizes = [1, 256], strides = [1, 1]} : vector<1x1024xf32> to vector<1x256xf32>
    %95 = arith.negf %94 : vector<1x256xf32>
    %96 = math.exp %95 : vector<1x256xf32>
    %cst_54 = arith.constant 1.000000e+00 : f32
    %97 = vector.broadcast %cst_54 : f32 to vector<1x256xf32>
    %98 = arith.addf %97, %96 : vector<1x256xf32>
    %99 = arith.divf %97, %98 : vector<1x256xf32>
    %100 = vector.extract_strided_slice %93 {offsets = [0, 256], sizes = [1, 256], strides = [1, 1]} : vector<1x1024xf32> to vector<1x256xf32>
    %101 = arith.negf %100 : vector<1x256xf32>
    %102 = math.exp %101 : vector<1x256xf32>
    %cst_55 = arith.constant 1.000000e+00 : f32
    %103 = vector.broadcast %cst_55 : f32 to vector<1x256xf32>
    %104 = arith.addf %103, %102 : vector<1x256xf32>
    %105 = arith.divf %103, %104 : vector<1x256xf32>
    %106 = vector.extract_strided_slice %93 {offsets = [0, 512], sizes = [1, 256], strides = [1, 1]} : vector<1x1024xf32> to vector<1x256xf32>
    %107 = math.tanh %106 : vector<1x256xf32>
    %108 = vector.extract_strided_slice %93 {offsets = [0, 768], sizes = [1, 256], strides = [1, 1]} : vector<1x1024xf32> to vector<1x256xf32>
    %109 = arith.negf %108 : vector<1x256xf32>
    %110 = math.exp %109 : vector<1x256xf32>
    %cst_56 = arith.constant 1.000000e+00 : f32
    %111 = vector.broadcast %cst_56 : f32 to vector<1x256xf32>
    %112 = arith.addf %111, %110 : vector<1x256xf32>
    %113 = arith.divf %111, %112 : vector<1x256xf32>
    %c0_57 = arith.constant 0 : index
    %c0_58 = arith.constant 0 : index
    %114 = vector.load %arg11[%c0_57, %c0_58] : memref<1x256xf32, #tpu.memory_space<vmem>>, vector<1x256xf32>
    %115 = arith.mulf %105, %114 : vector<1x256xf32>
    %116 = arith.mulf %99, %107 : vector<1x256xf32>
    %117 = arith.addf %115, %116 : vector<1x256xf32>
    %118 = math.tanh %117 : vector<1x256xf32>
    %119 = arith.mulf %113, %118 : vector<1x256xf32>
    %c0_59 = arith.constant 0 : index
    %c0_60 = arith.constant 0 : index
    %120 = vector.load %arg11[%c0_59, %c0_60] : memref<1x256xf32, #tpu.memory_space<vmem>>, vector<1x256xf32>
    tpu.vector_store %arg11[%c0_59, %c0_60], %117 {strides = array<i32>} : memref<1x256xf32, #tpu.memory_space<vmem>>, vector<1x256xf32>,
    %c0_61 = arith.constant 0 : index
    %c0_62 = arith.constant 0 : index
    %121 = vector.load %arg10[%c0_61, %c0_62] : memref<1x256xf32, #tpu.memory_space<vmem>>, vector<1x256xf32>
    tpu.vector_store %arg10[%c0_61, %c0_62], %119 {strides = array<i32>} : memref<1x256xf32, #tpu.memory_space<vmem>>, vector<1x256xf32>,
    %122 = arith.index_cast %c2_i32 : i32 to index
    %c0_63 = arith.constant 0 : index
    %123 = vector.load %arg9[%122, %c0_63] : memref<8x256xf32, #tpu.memory_space<vmem>>, vector<1x256xf32>
    tpu.vector_store %arg9[%122, %c0_63], %119 {strides = array<i32>} : memref<8x256xf32, #tpu.memory_space<vmem>>, vector<1x256xf32>,
    %c3_i32 = arith.constant 3 : i32
    %124 = arith.index_cast %c3_i32 : i32 to index
    %c0_64 = arith.constant 0 : index
    %125 = vector.load %arg8[%124, %c0_64] : memref<8x1024xf32, #tpu.memory_space<vmem>>, vector<1x1024xf32>
    %c0_65 = arith.constant 0 : index
    %c0_66 = arith.constant 0 : index
    %126 = vector.load %arg10[%c0_65, %c0_66] : memref<1x256xf32, #tpu.memory_space<vmem>>, vector<1x256xf32>
    %127 = arith.truncf %126 : vector<1x256xf32> to vector<1x256xbf16>
    %c0_67 = arith.constant 0 : index
    %c0_68 = arith.constant 0 : index
    %128 = vector.load %arg3[%c0_67, %c0_68] : memref<256x1024xbf16, #tpu.memory_space<vmem>>, vector<256x1024xbf16>
    %cst_69 = arith.constant dense<0.000000e+00> : vector<1x1024xf32>
    %129 = tpu.matmul %127, %128, %cst_69 {dimension_numbers = #tpu.dot_dimension_numbers<[1], [0], [0], [1], [0, 0, 1, 1], [], []>} : vector<1x256xbf16>, vector<256x1024xbf16>, vector<1x1024xf32> -> vector<1x1024xf32>
    %130 = arith.addf %125, %129 : vector<1x1024xf32>
    %131 = vector.extract_strided_slice %130 {offsets = [0, 0], sizes = [1, 256], strides = [1, 1]} : vector<1x1024xf32> to vector<1x256xf32>
    %132 = arith.negf %131 : vector<1x256xf32>
    %133 = math.exp %132 : vector<1x256xf32>
    %cst_70 = arith.constant 1.000000e+00 : f32
    %134 = vector.broadcast %cst_70 : f32 to vector<1x256xf32>
    %135 = arith.addf %134, %133 : vector<1x256xf32>
    %136 = arith.divf %134, %135 : vector<1x256xf32>
    %137 = vector.extract_strided_slice %130 {offsets = [0, 256], sizes = [1, 256], strides = [1, 1]} : vector<1x1024xf32> to vector<1x256xf32>
    %138 = arith.negf %137 : vector<1x256xf32>
    %139 = math.exp %138 : vector<1x256xf32>
    %cst_71 = arith.constant 1.000000e+00 : f32
    %140 = vector.broadcast %cst_71 : f32 to vector<1x256xf32>
    %141 = arith.addf %140, %139 : vector<1x256xf32>
    %142 = arith.divf %140, %141 : vector<1x256xf32>
    %143 = vector.extract_strided_slice %130 {offsets = [0, 512], sizes = [1, 256], strides = [1, 1]} : vector<1x1024xf32> to vector<1x256xf32>
    %144 = math.tanh %143 : vector<1x256xf32>
    %145 = vector.extract_strided_slice %130 {offsets = [0, 768], sizes = [1, 256], strides = [1, 1]} : vector<1x1024xf32> to vector<1x256xf32>
    %146 = arith.negf %145 : vector<1x256xf32>
    %147 = math.exp %146 : vector<1x256xf32>
    %cst_72 = arith.constant 1.000000e+00 : f32
    %148 = vector.broadcast %cst_72 : f32 to vector<1x256xf32>
    %149 = arith.addf %148, %147 : vector<1x256xf32>
    %150 = arith.divf %148, %149 : vector<1x256xf32>
    %c0_73 = arith.constant 0 : index
    %c0_74 = arith.constant 0 : index
    %151 = vector.load %arg11[%c0_73, %c0_74] : memref<1x256xf32, #tpu.memory_space<vmem>>, vector<1x256xf32>
    %152 = arith.mulf %142, %151 : vector<1x256xf32>
    %153 = arith.mulf %136, %144 : vector<1x256xf32>
    %154 = arith.addf %152, %153 : vector<1x256xf32>
    %155 = math.tanh %154 : vector<1x256xf32>
    %156 = arith.mulf %150, %155 : vector<1x256xf32>
    %c0_75 = arith.constant 0 : index
    %c0_76 = arith.constant 0 : index
    %157 = vector.load %arg11[%c0_75, %c0_76] : memref<1x256xf32, #tpu.memory_space<vmem>>, vector<1x256xf32>
    tpu.vector_store %arg11[%c0_75, %c0_76], %154 {strides = array<i32>} : memref<1x256xf32, #tpu.memory_space<vmem>>, vector<1x256xf32>,
    %c0_77 = arith.constant 0 : index
    %c0_78 = arith.constant 0 : index
    %158 = vector.load %arg10[%c0_77, %c0_78] : memref<1x256xf32, #tpu.memory_space<vmem>>, vector<1x256xf32>
    tpu.vector_store %arg10[%c0_77, %c0_78], %156 {strides = array<i32>} : memref<1x256xf32, #tpu.memory_space<vmem>>, vector<1x256xf32>,
    %159 = arith.index_cast %c3_i32 : i32 to index
    %c0_79 = arith.constant 0 : index
    %160 = vector.load %arg9[%159, %c0_79] : memref<8x256xf32, #tpu.memory_space<vmem>>, vector<1x256xf32>
    tpu.vector_store %arg9[%159, %c0_79], %156 {strides = array<i32>} : memref<8x256xf32, #tpu.memory_space<vmem>>, vector<1x256xf32>,
    %c4_i32 = arith.constant 4 : i32
    %161 = arith.index_cast %c4_i32 : i32 to index
    %c0_80 = arith.constant 0 : index
    %162 = vector.load %arg8[%161, %c0_80] : memref<8x1024xf32, #tpu.memory_space<vmem>>, vector<1x1024xf32>
    %c0_81 = arith.constant 0 : index
    %c0_82 = arith.constant 0 : index
    %163 = vector.load %arg10[%c0_81, %c0_82] : memref<1x256xf32, #tpu.memory_space<vmem>>, vector<1x256xf32>
    %164 = arith.truncf %163 : vector<1x256xf32> to vector<1x256xbf16>
    %c0_83 = arith.constant 0 : index
    %c0_84 = arith.constant 0 : index
    %165 = vector.load %arg3[%c0_83, %c0_84] : memref<256x1024xbf16, #tpu.memory_space<vmem>>, vector<256x1024xbf16>
    %cst_85 = arith.constant dense<0.000000e+00> : vector<1x1024xf32>
    %166 = tpu.matmul %164, %165, %cst_85 {dimension_numbers = #tpu.dot_dimension_numbers<[1], [0], [0], [1], [0, 0, 1, 1], [], []>} : vector<1x256xbf16>, vector<256x1024xbf16>, vector<1x1024xf32> -> vector<1x1024xf32>
    %167 = arith.addf %162, %166 : vector<1x1024xf32>
    %168 = vector.extract_strided_slice %167 {offsets = [0, 0], sizes = [1, 256], strides = [1, 1]} : vector<1x1024xf32> to vector<1x256xf32>
    %169 = arith.negf %168 : vector<1x256xf32>
    %170 = math.exp %169 : vector<1x256xf32>
    %cst_86 = arith.constant 1.000000e+00 : f32
    %171 = vector.broadcast %cst_86 : f32 to vector<1x256xf32>
    %172 = arith.addf %171, %170 : vector<1x256xf32>
    %173 = arith.divf %171, %172 : vector<1x256xf32>
    %174 = vector.extract_strided_slice %167 {offsets = [0, 256], sizes = [1, 256], strides = [1, 1]} : vector<1x1024xf32> to vector<1x256xf32>
    %175 = arith.negf %174 : vector<1x256xf32>
    %176 = math.exp %175 : vector<1x256xf32>
    %cst_87 = arith.constant 1.000000e+00 : f32
    %177 = vector.broadcast %cst_87 : f32 to vector<1x256xf32>
    %178 = arith.addf %177, %176 : vector<1x256xf32>
    %179 = arith.divf %177, %178 : vector<1x256xf32>
    %180 = vector.extract_strided_slice %167 {offsets = [0, 512], sizes = [1, 256], strides = [1, 1]} : vector<1x1024xf32> to vector<1x256xf32>
    %181 = math.tanh %180 : vector<1x256xf32>
    %182 = vector.extract_strided_slice %167 {offsets = [0, 768], sizes = [1, 256], strides = [1, 1]} : vector<1x1024xf32> to vector<1x256xf32>
    %183 = arith.negf %182 : vector<1x256xf32>
    %184 = math.exp %183 : vector<1x256xf32>
    %cst_88 = arith.constant 1.000000e+00 : f32
    %185 = vector.broadcast %cst_88 : f32 to vector<1x256xf32>
    %186 = arith.addf %185, %184 : vector<1x256xf32>
    %187 = arith.divf %185, %186 : vector<1x256xf32>
    %c0_89 = arith.constant 0 : index
    %c0_90 = arith.constant 0 : index
    %188 = vector.load %arg11[%c0_89, %c0_90] : memref<1x256xf32, #tpu.memory_space<vmem>>, vector<1x256xf32>
    %189 = arith.mulf %179, %188 : vector<1x256xf32>
    %190 = arith.mulf %173, %181 : vector<1x256xf32>
    %191 = arith.addf %189, %190 : vector<1x256xf32>
    %192 = math.tanh %191 : vector<1x256xf32>
    %193 = arith.mulf %187, %192 : vector<1x256xf32>
    %c0_91 = arith.constant 0 : index
    %c0_92 = arith.constant 0 : index
    %194 = vector.load %arg11[%c0_91, %c0_92] : memref<1x256xf32, #tpu.memory_space<vmem>>, vector<1x256xf32>
    tpu.vector_store %arg11[%c0_91, %c0_92], %191 {strides = array<i32>} : memref<1x256xf32, #tpu.memory_space<vmem>>, vector<1x256xf32>,
    %c0_93 = arith.constant 0 : index
    %c0_94 = arith.constant 0 : index
    %195 = vector.load %arg10[%c0_93, %c0_94] : memref<1x256xf32, #tpu.memory_space<vmem>>, vector<1x256xf32>
    tpu.vector_store %arg10[%c0_93, %c0_94], %193 {strides = array<i32>} : memref<1x256xf32, #tpu.memory_space<vmem>>, vector<1x256xf32>,
    %196 = arith.index_cast %c4_i32 : i32 to index
    %c0_95 = arith.constant 0 : index
    %197 = vector.load %arg9[%196, %c0_95] : memref<8x256xf32, #tpu.memory_space<vmem>>, vector<1x256xf32>
    tpu.vector_store %arg9[%196, %c0_95], %193 {strides = array<i32>} : memref<8x256xf32, #tpu.memory_space<vmem>>, vector<1x256xf32>,
    %c5_i32 = arith.constant 5 : i32
    %198 = arith.index_cast %c5_i32 : i32 to index
    %c0_96 = arith.constant 0 : index
    %199 = vector.load %arg8[%198, %c0_96] : memref<8x1024xf32, #tpu.memory_space<vmem>>, vector<1x1024xf32>
    %c0_97 = arith.constant 0 : index
    %c0_98 = arith.constant 0 : index
    %200 = vector.load %arg10[%c0_97, %c0_98] : memref<1x256xf32, #tpu.memory_space<vmem>>, vector<1x256xf32>
    %201 = arith.truncf %200 : vector<1x256xf32> to vector<1x256xbf16>
    %c0_99 = arith.constant 0 : index
    %c0_100 = arith.constant 0 : index
    %202 = vector.load %arg3[%c0_99, %c0_100] : memref<256x1024xbf16, #tpu.memory_space<vmem>>, vector<256x1024xbf16>
    %cst_101 = arith.constant dense<0.000000e+00> : vector<1x1024xf32>
    %203 = tpu.matmul %201, %202, %cst_101 {dimension_numbers = #tpu.dot_dimension_numbers<[1], [0], [0], [1], [0, 0, 1, 1], [], []>} : vector<1x256xbf16>, vector<256x1024xbf16>, vector<1x1024xf32> -> vector<1x1024xf32>
    %204 = arith.addf %199, %203 : vector<1x1024xf32>
    %205 = vector.extract_strided_slice %204 {offsets = [0, 0], sizes = [1, 256], strides = [1, 1]} : vector<1x1024xf32> to vector<1x256xf32>
    %206 = arith.negf %205 : vector<1x256xf32>
    %207 = math.exp %206 : vector<1x256xf32>
    %cst_102 = arith.constant 1.000000e+00 : f32
    %208 = vector.broadcast %cst_102 : f32 to vector<1x256xf32>
    %209 = arith.addf %208, %207 : vector<1x256xf32>
    %210 = arith.divf %208, %209 : vector<1x256xf32>
    %211 = vector.extract_strided_slice %204 {offsets = [0, 256], sizes = [1, 256], strides = [1, 1]} : vector<1x1024xf32> to vector<1x256xf32>
    %212 = arith.negf %211 : vector<1x256xf32>
    %213 = math.exp %212 : vector<1x256xf32>
    %cst_103 = arith.constant 1.000000e+00 : f32
    %214 = vector.broadcast %cst_103 : f32 to vector<1x256xf32>
    %215 = arith.addf %214, %213 : vector<1x256xf32>
    %216 = arith.divf %214, %215 : vector<1x256xf32>
    %217 = vector.extract_strided_slice %204 {offsets = [0, 512], sizes = [1, 256], strides = [1, 1]} : vector<1x1024xf32> to vector<1x256xf32>
    %218 = math.tanh %217 : vector<1x256xf32>
    %219 = vector.extract_strided_slice %204 {offsets = [0, 768], sizes = [1, 256], strides = [1, 1]} : vector<1x1024xf32> to vector<1x256xf32>
    %220 = arith.negf %219 : vector<1x256xf32>
    %221 = math.exp %220 : vector<1x256xf32>
    %cst_104 = arith.constant 1.000000e+00 : f32
    %222 = vector.broadcast %cst_104 : f32 to vector<1x256xf32>
    %223 = arith.addf %222, %221 : vector<1x256xf32>
    %224 = arith.divf %222, %223 : vector<1x256xf32>
    %c0_105 = arith.constant 0 : index
    %c0_106 = arith.constant 0 : index
    %225 = vector.load %arg11[%c0_105, %c0_106] : memref<1x256xf32, #tpu.memory_space<vmem>>, vector<1x256xf32>
    %226 = arith.mulf %216, %225 : vector<1x256xf32>
    %227 = arith.mulf %210, %218 : vector<1x256xf32>
    %228 = arith.addf %226, %227 : vector<1x256xf32>
    %229 = math.tanh %228 : vector<1x256xf32>
    %230 = arith.mulf %224, %229 : vector<1x256xf32>
    %c0_107 = arith.constant 0 : index
    %c0_108 = arith.constant 0 : index
    %231 = vector.load %arg11[%c0_107, %c0_108] : memref<1x256xf32, #tpu.memory_space<vmem>>, vector<1x256xf32>
    tpu.vector_store %arg11[%c0_107, %c0_108], %228 {strides = array<i32>} : memref<1x256xf32, #tpu.memory_space<vmem>>, vector<1x256xf32>,
    %c0_109 = arith.constant 0 : index
    %c0_110 = arith.constant 0 : index
    %232 = vector.load %arg10[%c0_109, %c0_110] : memref<1x256xf32, #tpu.memory_space<vmem>>, vector<1x256xf32>
    tpu.vector_store %arg10[%c0_109, %c0_110], %230 {strides = array<i32>} : memref<1x256xf32, #tpu.memory_space<vmem>>, vector<1x256xf32>,
    %233 = arith.index_cast %c5_i32 : i32 to index
    %c0_111 = arith.constant 0 : index
    %234 = vector.load %arg9[%233, %c0_111] : memref<8x256xf32, #tpu.memory_space<vmem>>, vector<1x256xf32>
    tpu.vector_store %arg9[%233, %c0_111], %230 {strides = array<i32>} : memref<8x256xf32, #tpu.memory_space<vmem>>, vector<1x256xf32>,
    %c6_i32 = arith.constant 6 : i32
    %235 = arith.index_cast %c6_i32 : i32 to index
    %c0_112 = arith.constant 0 : index
    %236 = vector.load %arg8[%235, %c0_112] : memref<8x1024xf32, #tpu.memory_space<vmem>>, vector<1x1024xf32>
    %c0_113 = arith.constant 0 : index
    %c0_114 = arith.constant 0 : index
    %237 = vector.load %arg10[%c0_113, %c0_114] : memref<1x256xf32, #tpu.memory_space<vmem>>, vector<1x256xf32>
    %238 = arith.truncf %237 : vector<1x256xf32> to vector<1x256xbf16>
    %c0_115 = arith.constant 0 : index
    %c0_116 = arith.constant 0 : index
    %239 = vector.load %arg3[%c0_115, %c0_116] : memref<256x1024xbf16, #tpu.memory_space<vmem>>, vector<256x1024xbf16>
    %cst_117 = arith.constant dense<0.000000e+00> : vector<1x1024xf32>
    %240 = tpu.matmul %238, %239, %cst_117 {dimension_numbers = #tpu.dot_dimension_numbers<[1], [0], [0], [1], [0, 0, 1, 1], [], []>} : vector<1x256xbf16>, vector<256x1024xbf16>, vector<1x1024xf32> -> vector<1x1024xf32>
    %241 = arith.addf %236, %240 : vector<1x1024xf32>
    %242 = vector.extract_strided_slice %241 {offsets = [0, 0], sizes = [1, 256], strides = [1, 1]} : vector<1x1024xf32> to vector<1x256xf32>
    %243 = arith.negf %242 : vector<1x256xf32>
    %244 = math.exp %243 : vector<1x256xf32>
    %cst_118 = arith.constant 1.000000e+00 : f32
    %245 = vector.broadcast %cst_118 : f32 to vector<1x256xf32>
    %246 = arith.addf %245, %244 : vector<1x256xf32>
    %247 = arith.divf %245, %246 : vector<1x256xf32>
    %248 = vector.extract_strided_slice %241 {offsets = [0, 256], sizes = [1, 256], strides = [1, 1]} : vector<1x1024xf32> to vector<1x256xf32>
    %249 = arith.negf %248 : vector<1x256xf32>
    %250 = math.exp %249 : vector<1x256xf32>
    %cst_119 = arith.constant 1.000000e+00 : f32
    %251 = vector.broadcast %cst_119 : f32 to vector<1x256xf32>
    %252 = arith.addf %251, %250 : vector<1x256xf32>
    %253 = arith.divf %251, %252 : vector<1x256xf32>
    %254 = vector.extract_strided_slice %241 {offsets = [0, 512], sizes = [1, 256], strides = [1, 1]} : vector<1x1024xf32> to vector<1x256xf32>
    %255 = math.tanh %254 : vector<1x256xf32>
    %256 = vector.extract_strided_slice %241 {offsets = [0, 768], sizes = [1, 256], strides = [1, 1]} : vector<1x1024xf32> to vector<1x256xf32>
    %257 = arith.negf %256 : vector<1x256xf32>
    %258 = math.exp %257 : vector<1x256xf32>
    %cst_120 = arith.constant 1.000000e+00 : f32
    %259 = vector.broadcast %cst_120 : f32 to vector<1x256xf32>
    %260 = arith.addf %259, %258 : vector<1x256xf32>
    %261 = arith.divf %259, %260 : vector<1x256xf32>
    %c0_121 = arith.constant 0 : index
    %c0_122 = arith.constant 0 : index
    %262 = vector.load %arg11[%c0_121, %c0_122] : memref<1x256xf32, #tpu.memory_space<vmem>>, vector<1x256xf32>
    %263 = arith.mulf %253, %262 : vector<1x256xf32>
    %264 = arith.mulf %247, %255 : vector<1x256xf32>
    %265 = arith.addf %263, %264 : vector<1x256xf32>
    %266 = math.tanh %265 : vector<1x256xf32>
    %267 = arith.mulf %261, %266 : vector<1x256xf32>
    %c0_123 = arith.constant 0 : index
    %c0_124 = arith.constant 0 : index
    %268 = vector.load %arg11[%c0_123, %c0_124] : memref<1x256xf32, #tpu.memory_space<vmem>>, vector<1x256xf32>
    tpu.vector_store %arg11[%c0_123, %c0_124], %265 {strides = array<i32>} : memref<1x256xf32, #tpu.memory_space<vmem>>, vector<1x256xf32>,
    %c0_125 = arith.constant 0 : index
    %c0_126 = arith.constant 0 : index
    %269 = vector.load %arg10[%c0_125, %c0_126] : memref<1x256xf32, #tpu.memory_space<vmem>>, vector<1x256xf32>
    tpu.vector_store %arg10[%c0_125, %c0_126], %267 {strides = array<i32>} : memref<1x256xf32, #tpu.memory_space<vmem>>, vector<1x256xf32>,
    %270 = arith.index_cast %c6_i32 : i32 to index
    %c0_127 = arith.constant 0 : index
    %271 = vector.load %arg9[%270, %c0_127] : memref<8x256xf32, #tpu.memory_space<vmem>>, vector<1x256xf32>
    tpu.vector_store %arg9[%270, %c0_127], %267 {strides = array<i32>} : memref<8x256xf32, #tpu.memory_space<vmem>>, vector<1x256xf32>,
    %c7_i32 = arith.constant 7 : i32
    %272 = arith.index_cast %c7_i32 : i32 to index
    %c0_128 = arith.constant 0 : index
    %273 = vector.load %arg8[%272, %c0_128] : memref<8x1024xf32, #tpu.memory_space<vmem>>, vector<1x1024xf32>
    %c0_129 = arith.constant 0 : index
    %c0_130 = arith.constant 0 : index
    %274 = vector.load %arg10[%c0_129, %c0_130] : memref<1x256xf32, #tpu.memory_space<vmem>>, vector<1x256xf32>
    %275 = arith.truncf %274 : vector<1x256xf32> to vector<1x256xbf16>
    %c0_131 = arith.constant 0 : index
    %c0_132 = arith.constant 0 : index
    %276 = vector.load %arg3[%c0_131, %c0_132] : memref<256x1024xbf16, #tpu.memory_space<vmem>>, vector<256x1024xbf16>
    %cst_133 = arith.constant dense<0.000000e+00> : vector<1x1024xf32>
    %277 = tpu.matmul %275, %276, %cst_133 {dimension_numbers = #tpu.dot_dimension_numbers<[1], [0], [0], [1], [0, 0, 1, 1], [], []>} : vector<1x256xbf16>, vector<256x1024xbf16>, vector<1x1024xf32> -> vector<1x1024xf32>
    %278 = arith.addf %273, %277 : vector<1x1024xf32>
    %279 = vector.extract_strided_slice %278 {offsets = [0, 0], sizes = [1, 256], strides = [1, 1]} : vector<1x1024xf32> to vector<1x256xf32>
    %280 = arith.negf %279 : vector<1x256xf32>
    %281 = math.exp %280 : vector<1x256xf32>
    %cst_134 = arith.constant 1.000000e+00 : f32
    %282 = vector.broadcast %cst_134 : f32 to vector<1x256xf32>
    %283 = arith.addf %282, %281 : vector<1x256xf32>
    %284 = arith.divf %282, %283 : vector<1x256xf32>
    %285 = vector.extract_strided_slice %278 {offsets = [0, 256], sizes = [1, 256], strides = [1, 1]} : vector<1x1024xf32> to vector<1x256xf32>
    %286 = arith.negf %285 : vector<1x256xf32>
    %287 = math.exp %286 : vector<1x256xf32>
    %cst_135 = arith.constant 1.000000e+00 : f32
    %288 = vector.broadcast %cst_135 : f32 to vector<1x256xf32>
    %289 = arith.addf %288, %287 : vector<1x256xf32>
    %290 = arith.divf %288, %289 : vector<1x256xf32>
    %291 = vector.extract_strided_slice %278 {offsets = [0, 512], sizes = [1, 256], strides = [1, 1]} : vector<1x1024xf32> to vector<1x256xf32>
    %292 = math.tanh %291 : vector<1x256xf32>
    %293 = vector.extract_strided_slice %278 {offsets = [0, 768], sizes = [1, 256], strides = [1, 1]} : vector<1x1024xf32> to vector<1x256xf32>
    %294 = arith.negf %293 : vector<1x256xf32>
    %295 = math.exp %294 : vector<1x256xf32>
    %cst_136 = arith.constant 1.000000e+00 : f32
    %296 = vector.broadcast %cst_136 : f32 to vector<1x256xf32>
    %297 = arith.addf %296, %295 : vector<1x256xf32>
    %298 = arith.divf %296, %297 : vector<1x256xf32>
    %c0_137 = arith.constant 0 : index
    %c0_138 = arith.constant 0 : index
    %299 = vector.load %arg11[%c0_137, %c0_138] : memref<1x256xf32, #tpu.memory_space<vmem>>, vector<1x256xf32>
    %300 = arith.mulf %290, %299 : vector<1x256xf32>
    %301 = arith.mulf %284, %292 : vector<1x256xf32>
    %302 = arith.addf %300, %301 : vector<1x256xf32>
    %303 = math.tanh %302 : vector<1x256xf32>
    %304 = arith.mulf %298, %303 : vector<1x256xf32>
    %c0_139 = arith.constant 0 : index
    %c0_140 = arith.constant 0 : index
    %305 = vector.load %arg11[%c0_139, %c0_140] : memref<1x256xf32, #tpu.memory_space<vmem>>, vector<1x256xf32>
    tpu.vector_store %arg11[%c0_139, %c0_140], %302 {strides = array<i32>} : memref<1x256xf32, #tpu.memory_space<vmem>>, vector<1x256xf32>,
    %c0_141 = arith.constant 0 : index
    %c0_142 = arith.constant 0 : index
    %306 = vector.load %arg10[%c0_141, %c0_142] : memref<1x256xf32, #tpu.memory_space<vmem>>, vector<1x256xf32>
    tpu.vector_store %arg10[%c0_141, %c0_142], %304 {strides = array<i32>} : memref<1x256xf32, #tpu.memory_space<vmem>>, vector<1x256xf32>,
    %307 = arith.index_cast %c7_i32 : i32 to index
    %c0_143 = arith.constant 0 : index
    %308 = vector.load %arg9[%307, %c0_143] : memref<8x256xf32, #tpu.memory_space<vmem>>, vector<1x256xf32>
    tpu.vector_store %arg9[%307, %c0_143], %304 {strides = array<i32>} : memref<8x256xf32, #tpu.memory_space<vmem>>, vector<1x256xf32>,
    %c8_i32 = arith.constant 8 : i32
    %c0_144 = arith.constant 0 : index
    %c0_145 = arith.constant 0 : index
    %309 = vector.load %arg9[%c0_144, %c0_145] : memref<8x256xf32, #tpu.memory_space<vmem>>, vector<8x256xf32>
    %310 = arith.truncf %309 : vector<8x256xf32> to vector<8x256xbf16>
    %c0_146 = arith.constant 0 : index
    %c0_147 = arith.constant 0 : index
    %311 = vector.load %arg5[%c0_146, %c0_147] : memref<256x128xbf16, #tpu.memory_space<vmem>>, vector<256x128xbf16>
    %cst_148 = arith.constant dense<0.000000e+00> : vector<8x128xf32>
    %312 = tpu.matmul %310, %311, %cst_148 {dimension_numbers = #tpu.dot_dimension_numbers<[1], [0], [0], [1], [0, 0, 1, 1], [], []>} : vector<8x256xbf16>, vector<256x128xbf16>, vector<8x128xf32> -> vector<8x128xf32>
    %c0_149 = arith.constant 0 : index
    %c0_150 = arith.constant 0 : index
    %313 = vector.load %arg6[%c0_149, %c0_150] : memref<1x128xf32, #tpu.memory_space<vmem>>, vector<1x128xf32>
    %314 = vector.broadcast %313 : vector<1x128xf32> to vector<8x128xf32>
    %315 = arith.addf %312, %314 : vector<8x128xf32>
    %c0_151 = arith.constant 0 : index
    %c0_152 = arith.constant 0 : index
    %316 = vector.load %arg7[%c0_151, %c0_152] : memref<8x128xf32, #tpu.memory_space<vmem>>, vector<8x128xf32>
    tpu.vector_store %arg7[%c0_151, %c0_152], %315 {strides = array<i32>} : memref<8x128xf32, #tpu.memory_space<vmem>>, vector<8x128xf32>,
    return
  }
  func.func @transform_0(%arg0: i32) -> (i32, i32) {
    %c0_i32 = arith.constant 0 : i32
    %c0_i32_0 = arith.constant 0 : i32
    %c0_i32_1 = arith.constant 0 : i32
    return %c0_i32, %c0_i32_0 : i32, i32
  }
  func.func @transform_1(%arg0: i32) -> (i32, i32) {
    %c0_i32 = arith.constant 0 : i32
    %c0_i32_0 = arith.constant 0 : i32
    %c0_i32_1 = arith.constant 0 : i32
    return %c0_i32, %c0_i32_0 : i32, i32
  }
  func.func @transform_2(%arg0: i32) -> (i32, i32) {
    %c0_i32 = arith.constant 0 : i32
    %c0_i32_0 = arith.constant 0 : i32
    %c0_i32_1 = arith.constant 0 : i32
    return %c0_i32, %c0_i32_0 : i32, i32
  }
  func.func @transform_3(%arg0: i32) -> (i32, i32) {
    %c0_i32 = arith.constant 0 : i32
    %c0_i32_0 = arith.constant 0 : i32
    %c0_i32_1 = arith.constant 0 : i32
    return %c0_i32, %c0_i32_0 : i32, i32
  }
  func.func @transform_4(%arg0: i32) -> (i32, i32) {
    %c0_i32 = arith.constant 0 : i32
    %c0_i32_0 = arith.constant 0 : i32
    %c0_i32_1 = arith.constant 0 : i32
    return %c0_i32, %c0_i32_0 : i32, i32
  }
  func.func @transform_5(%arg0: i32) -> (i32, i32) {
    %c0_i32 = arith.constant 0 : i32
    %c0_i32_0 = arith.constant 0 : i32
    %c0_i32_1 = arith.constant 0 : i32
    return %c0_i32, %c0_i32_0 : i32, i32
  }
  func.func @transform_6(%arg0: i32) -> (i32, i32) {
    %c0_i32 = arith.constant 0 : i32
    %c0_i32_0 = arith.constant 0 : i32
    %c0_i32_1 = arith.constant 0 : i32
    return %c0_i32, %c0_i32_0 : i32, i32
  }
}

</mosaic_0001>

<llo_original>
// kernel: _fused_forward_impl.1
$region0: #{_fused_forward_impl.1}
  #allocation0 [shape = 'u32[]', space=smem, size = 0x4, offset = 0x4, fixed_abs, tag = 'smem constant byte address 0x4 - core index']
  #allocation1 [shape = 'u32[144,128]{1,0:T(1,128)}', space=vmem, size = 0x12000, scoped, tag = 'internal scratch']
  #allocation2 [shape = 'f32[8,1024]{1,0:T(8,128)}', space=vmem, size = 0x8000, scoped, tag = 'scratch operand']
  #allocation3 [shape = 'f32[8,256]{1,0:T(8,128)}', space=vmem, size = 0x2000, scoped, tag = 'scratch operand']
  #allocation4 [shape = 'f32[1,256]{1,0:T(1,128)}', space=vmem, size = 0x400, scoped, tag = 'scratch operand']
  #allocation5 [shape = 'f32[1,256]{1,0:T(1,128)}', space=vmem, size = 0x400, scoped, tag = 'scratch operand']
  %s0 = inlined_call_operand.vmem [shape: bf16[8,128], index: 0, kind: input, shape index: {}]
  %s1 = inlined_call_operand.hbm [shape: bf16[128,1024], index: 1, kind: input, shape index: {}]
  %s2 = inlined_call_operand.hbm [shape: bf16[256,1024], index: 2, kind: input, shape index: {}]
  %s3 = inlined_call_operand.vmem [shape: f32[1,1024], index: 3, kind: input, shape index: {}]
  %s4 = inlined_call_operand.hbm [shape: bf16[256,128], index: 4, kind: input, shape index: {}]
  %s5 = inlined_call_operand.vmem [shape: f32[1,128], index: 5, kind: input, shape index: {}]
  %s6 = inlined_call_operand.vmem [shape: f32[8,128], index: 6, kind: output, shape index: {}]
  %s7 = sld [smem:[#allocation0]]
  $region46: #{_fused_forward_impl.1} parent=0
    _
  %s9 = ssub.s32 1, %s7
  %s10 = scalar_select 0, %s9, %s7
  $region1: #{_fused_forward_impl.1} parent=0
    #allocation6 [shape = 'u8[262144]{0}', space=vmem, size = 0x40000, scoped, tag = 'input window, operand 1, single buffered']
    #allocation7 [shape = 's32[1]{0}', space=sflag, size = 0x4, scoped, tag = 'scoped memory for _fused_forward_impl.1']
    #allocation8 [shape = 'u8[524288]{0}', space=vmem, size = 0x80000, scoped, tag = 'input window, operand 2, single buffered']
    #allocation9 [shape = 's32[1]{0}', space=sflag, size = 0x4, scoped, tag = 'scoped memory for _fused_forward_impl.1']
    #allocation10 [shape = 'u8[65536]{0}', space=vmem, size = 0x10000, scoped, tag = 'input window, operand 4, single buffered']
    %11 = vsyncpa [#allocation7], 0
    %12 = vsyncpa [#allocation9], 0
    // Predicated region
    $region2: #{_fused_forward_impl.1} parent=1 // pred_check
      _
    $region3: #{_fused_forward_impl.1} parent=1 // pred_check_branch
      %14 = sbr.rel (0) target = $region5
    $region4: #{_fused_forward_impl.1} parent=1 // pred_region
      _
    $region5: #{_fused_forward_impl.1} parent=1 // pred_fallthru
      _
    // Predicated region
    $region6: #{_fused_forward_impl.1} parent=1 // pred_check
      _
    $region7: #{_fused_forward_impl.1} parent=1 // pred_check_branch
      %16 = sbr.rel (0) target = $region9
    $region8: #{_fused_forward_impl.1} parent=1 // pred_region
      %s18 = ssub.s32 8192, 8192
      %19 = vsyncadd [#allocation7], %s18
      %s20 = sshll.u32 [#allocation6], 4
      %s21 = int_to_ptr.vmem [resolvable:$true] %s20
      %26 = dma.hbm_to_vmem [thread:$0]  %s1, 8192, %s21, [#allocation7], 512, 512, 32
    $region9: #{_fused_forward_impl.1} parent=1 // pred_fallthru
      _
    // Predicated region
    $region10: #{_fused_forward_impl.1} parent=1 // pred_check
      _
    $region11: #{_fused_forward_impl.1} parent=1 // pred_check_branch
      %28 = sbr.rel (0) target = $region13
    $region12: #{_fused_forward_impl.1} parent=1 // pred_region
      %s30 = ssub.s32 16384, 16384
      %31 = vsyncadd [#allocation9], %s30
      %s32 = sshll.u32 [#allocation8], 4
      %s33 = int_to_ptr.vmem [resolvable:$true] %s32
      %38 = dma.hbm_to_vmem [thread:$0]  %s2, 16384, %s33, [#allocation9], 512, 512, 32
    $region13: #{_fused_forward_impl.1} parent=1 // pred_fallthru
      _
    // Predicated region
    $region14: #{_fused_forward_impl.1} parent=1 // pred_check
      _
    $region15: #{_fused_forward_impl.1} parent=1 // pred_check_branch
      %40 = sbr.rel (0) target = $region17
    $region16: #{_fused_forward_impl.1} parent=1 // pred_region
      _
    $region17: #{_fused_forward_impl.1} parent=1 // pred_fallthru
      _
    // Predicated region
    $region18: #{_fused_forward_impl.1} parent=1 // pred_check
      _
    $region19: #{_fused_forward_impl.1} parent=1 // pred_check_branch
      %42 = sbr.rel (0) target = $region21
    $region20: #{_fused_forward_impl.1} parent=1 // pred_region
      %s44 = ssub.s32 2048, 2048
      %45 = vsyncadd [#allocation9], %s44
      %s46 = sshll.u32 [#allocation10], 4
      %s47 = int_to_ptr.vmem [resolvable:$true] %s46
      %52 = dma.hbm_to_vmem [thread:$0]  %s4, 2048, %s47, [#allocation9], 64, 64, 4
    $region21: #{_fused_forward_impl.1} parent=1 // pred_fallthru
      _
    // Predicated region
    $region22: #{_fused_forward_impl.1} parent=1 // pred_check
      _
    $region23: #{_fused_forward_impl.1} parent=1 // pred_check_branch
      %54 = sbr.rel (0) target = $region25
    $region24: #{_fused_forward_impl.1} parent=1 // pred_region
      _
    $region25: #{_fused_forward_impl.1} parent=1 // pred_fallthru
      _
    // Predicated region
    $region26: #{_fused_forward_impl.1} parent=1 // pred_check
      _
    $region27: #{_fused_forward_impl.1} parent=1 // pred_check_branch
      %56 = sbr.rel (0) target = $region29
    $region28: #{_fused_forward_impl.1} parent=1 // pred_region
      %57 = dma.done [#allocation7], 8192
    $region29: #{_fused_forward_impl.1} parent=1 // pred_fallthru
      _
    // Predicated region
    $region30: #{_fused_forward_impl.1} parent=1 // pred_check
      _
    $region31: #{_fused_forward_impl.1} parent=1 // pred_check_branch
      %59 = sbr.rel (0) target = $region33
    $region32: #{_fused_forward_impl.1} parent=1 // pred_region
      %60 = dma.done [#allocation9], 16384
    $region33: #{_fused_forward_impl.1} parent=1 // pred_fallthru
      _
    // Predicated region
    $region34: #{_fused_forward_impl.1} parent=1 // pred_check
      _
    $region35: #{_fused_forward_impl.1} parent=1 // pred_check_branch
      %62 = sbr.rel (0) target = $region37
    $region36: #{_fused_forward_impl.1} parent=1 // pred_region
      %63 = dma.done [#allocation9], 2048
    $region37: #{_fused_forward_impl.1} parent=1 // pred_fallthru
      _
    %v65 = vld [vmem:[%s0] sm:$0xf]
    %v66 = vld [vmem:[#allocation6] sm:$0xff]
    %v67 = vld [vmem:[#allocation6 + $0x8] sm:$0xff]
    %v68 = vld [vmem:[#allocation6 + $0x10] sm:$0xff]
    %v69 = vld [vmem:[#allocation6 + $0x18] sm:$0xff]
    %v70 = vld [vmem:[#allocation6 + $0x20] sm:$0xff]
    %v71 = vld [vmem:[#allocation6 + $0x28] sm:$0xff]
    %v72 = vld [vmem:[#allocation6 + $0x30] sm:$0xff]
    %v73 = vld [vmem:[#allocation6 + $0x38] sm:$0xff]
    %v74 = vld [vmem:[#allocation6 + $0x40] sm:$0xff]
    %v75 = vld [vmem:[#allocation6 + $0x48] sm:$0xff]
    %v76 = vld [vmem:[#allocation6 + $0x50] sm:$0xff]
    %v77 = vld [vmem:[#allocation6 + $0x58] sm:$0xff]
    %v78 = vld [vmem:[#allocation6 + $0x60] sm:$0xff]
    %v79 = vld [vmem:[#allocation6 + $0x68] sm:$0xff]
    %v80 = vld [vmem:[#allocation6 + $0x70] sm:$0xff]
    %v81 = vld [vmem:[#allocation6 + $0x78] sm:$0xff]
    %v82 = vld [vmem:[#allocation6 + $0x80] sm:$0xff]
    %v83 = vld [vmem:[#allocation6 + $0x88] sm:$0xff]
    %v84 = vld [vmem:[#allocation6 + $0x90] sm:$0xff]
    %v85 = vld [vmem:[#allocation6 + $0x98] sm:$0xff]
    %v86 = vld [vmem:[#allocation6 + $0xa0] sm:$0xff]
    %v87 = vld [vmem:[#allocation6 + $0xa8] sm:$0xff]
    %v88 = vld [vmem:[#allocation6 + $0xb0] sm:$0xff]
    %v89 = vld [vmem:[#allocation6 + $0xb8] sm:$0xff]
    %v90 = vld [vmem:[#allocation6 + $0xc0] sm:$0xff]
    %v91 = vld [vmem:[#allocation6 + $0xc8] sm:$0xff]
    %v92 = vld [vmem:[#allocation6 + $0xd0] sm:$0xff]
    %v93 = vld [vmem:[#allocation6 + $0xd8] sm:$0xff]
    %v94 = vld [vmem:[#allocation6 + $0xe0] sm:$0xff]
    %v95 = vld [vmem:[#allocation6 + $0xe8] sm:$0xff]
    %v96 = vld [vmem:[#allocation6 + $0xf0] sm:$0xff]
    %v97 = vld [vmem:[#allocation6 + $0xf8] sm:$0xff]
    %v98 = vld [vmem:[#allocation6 + $0x100] sm:$0xff]
    %v99 = vld [vmem:[#allocation6 + $0x108] sm:$0xff]
    %v100 = vld [vmem:[#allocation6 + $0x110] sm:$0xff]
    %v101 = vld [vmem:[#allocation6 + $0x118] sm:$0xff]
    %v102 = vld [vmem:[#allocation6 + $0x120] sm:$0xff]
    %v103 = vld [vmem:[#allocation6 + $0x128] sm:$0xff]
    %v104 = vld [vmem:[#allocation6 + $0x130] sm:$0xff]
    %v105 = vld [vmem:[#allocation6 + $0x138] sm:$0xff]
    %v106 = vld [vmem:[#allocation6 + $0x140] sm:$0xff]
    %v107 = vld [vmem:[#allocation6 + $0x148] sm:$0xff]
    %v108 = vld [vmem:[#allocation6 + $0x150] sm:$0xff]
    %v109 = vld [vmem:[#allocation6 + $0x158] sm:$0xff]
    %v110 = vld [vmem:[#allocation6 + $0x160] sm:$0xff]
    %v111 = vld [vmem:[#allocation6 + $0x168] sm:$0xff]
    %v112 = vld [vmem:[#allocation6 + $0x170] sm:$0xff]
    %v113 = vld [vmem:[#allocation6 + $0x178] sm:$0xff]
    %v114 = vld [vmem:[#allocation6 + $0x180] sm:$0xff]
    %v115 = vld [vmem:[#allocation6 + $0x188] sm:$0xff]
    %v116 = vld [vmem:[#allocation6 + $0x190] sm:$0xff]
    %v117 = vld [vmem:[#allocation6 + $0x198] sm:$0xff]
    %v118 = vld [vmem:[#allocation6 + $0x1a0] sm:$0xff]
    %v119 = vld [vmem:[#allocation6 + $0x1a8] sm:$0xff]
    %v120 = vld [vmem:[#allocation6 + $0x1b0] sm:$0xff]
    %v121 = vld [vmem:[#allocation6 + $0x1b8] sm:$0xff]
    %v122 = vld [vmem:[#allocation6 + $0x1c0] sm:$0xff]
    %v123 = vld [vmem:[#allocation6 + $0x1c8] sm:$0xff]
    %v124 = vld [vmem:[#allocation6 + $0x1d0] sm:$0xff]
    %v125 = vld [vmem:[#allocation6 + $0x1d8] sm:$0xff]
    %v126 = vld [vmem:[#allocation6 + $0x1e0] sm:$0xff]
    %v127 = vld [vmem:[#allocation6 + $0x1e8] sm:$0xff]
    %v128 = vld [vmem:[#allocation6 + $0x1f0] sm:$0xff]
    %v129 = vld [vmem:[#allocation6 + $0x1f8] sm:$0xff]
    %v130 = vld [vmem:[%s3] sm:$0xff]
    %v132 = vlaneseq
    %v133 = vshrl.u32 %v132, 7
    %v134 = vsub.s32 0, %v133
    %v135 = vrot.slane %v130, %v134
    %v136 = vlaneseq
    %v137 = vshrl.u32 %v136, 7
    %v138 = vsub.s32 1, %v137
    %v139 = vrot.slane %v130, %v138
    %v140 = vlaneseq
    %v141 = vshrl.u32 %v140, 7
    %v142 = vsub.s32 2, %v141
    %v143 = vrot.slane %v130, %v142
    %v144 = vlaneseq
    %v145 = vshrl.u32 %v144, 7
    %v146 = vsub.s32 3, %v145
    %v147 = vrot.slane %v130, %v146
    %v148 = vlaneseq
    %v149 = vshrl.u32 %v148, 7
    %v150 = vsub.s32 4, %v149
    %v151 = vrot.slane %v130, %v150
    %v152 = vlaneseq
    %v153 = vshrl.u32 %v152, 7
    %v154 = vsub.s32 5, %v153
    %v155 = vrot.slane %v130, %v154
    %v156 = vlaneseq
    %v157 = vshrl.u32 %v156, 7
    %v158 = vsub.s32 6, %v157
    %v159 = vrot.slane %v130, %v158
    %v160 = vlaneseq
    %v161 = vshrl.u32 %v160, 7
    %v162 = vsub.s32 7, %v161
    %v163 = vrot.slane %v130, %v162
    %v236 = vunpack.c.l.b16 %v66
    %v237 = vunpack.c.h.b16 %v66
    %v238 = vunpack.c.l.b16 %v67
    %v239 = vunpack.c.h.b16 %v67
    %v240 = vunpack.c.l.b16 %v68
    %v241 = vunpack.c.h.b16 %v68
    %v242 = vunpack.c.l.b16 %v69
    %v243 = vunpack.c.h.b16 %v69
    %v244 = vunpack.c.l.b16 %v70
    %v245 = vunpack.c.h.b16 %v70
    %v246 = vunpack.c.l.b16 %v71
    %v247 = vunpack.c.h.b16 %v71
    %v248 = vunpack.c.l.b16 %v72
    %v249 = vunpack.c.h.b16 %v72
    %v250 = vunpack.c.l.b16 %v73
    %v251 = vunpack.c.h.b16 %v73
    %v252 = vunpack.c.l.b16 %v74
    %v253 = vunpack.c.h.b16 %v74
    %v254 = vunpack.c.l.b16 %v75
    %v255 = vunpack.c.h.b16 %v75
    %v256 = vunpack.c.l.b16 %v76
    %v257 = vunpack.c.h.b16 %v76
    %v258 = vunpack.c.l.b16 %v77
    %v259 = vunpack.c.h.b16 %v77
    %v260 = vunpack.c.l.b16 %v78
    %v261 = vunpack.c.h.b16 %v78
    %v262 = vunpack.c.l.b16 %v79
    %v263 = vunpack.c.h.b16 %v79
    %v264 = vunpack.c.l.b16 %v80
    %v265 = vunpack.c.h.b16 %v80
    %v266 = vunpack.c.l.b16 %v81
    %v267 = vunpack.c.h.b16 %v81
    %v268 = vunpack.c.l.b16 %v82
    %v269 = vunpack.c.h.b16 %v82
    %v270 = vunpack.c.l.b16 %v83
    %v271 = vunpack.c.h.b16 %v83
    %v272 = vunpack.c.l.b16 %v84
    %v273 = vunpack.c.h.b16 %v84
    %v274 = vunpack.c.l.b16 %v85
    %v275 = vunpack.c.h.b16 %v85
    %v276 = vunpack.c.l.b16 %v86
    %v277 = vunpack.c.h.b16 %v86
    %v278 = vunpack.c.l.b16 %v87
    %v279 = vunpack.c.h.b16 %v87
    %v280 = vunpack.c.l.b16 %v88
    %v281 = vunpack.c.h.b16 %v88
    %v282 = vunpack.c.l.b16 %v89
    %v283 = vunpack.c.h.b16 %v89
    %v284 = vunpack.c.l.b16 %v90
    %v285 = vunpack.c.h.b16 %v90
    %v286 = vunpack.c.l.b16 %v91
    %v287 = vunpack.c.h.b16 %v91
    %v288 = vunpack.c.l.b16 %v92
    %v289 = vunpack.c.h.b16 %v92
    %v290 = vunpack.c.l.b16 %v93
    %v291 = vunpack.c.h.b16 %v93
    %v292 = vunpack.c.l.b16 %v94
    %v293 = vunpack.c.h.b16 %v94
    %v294 = vunpack.c.l.b16 %v95
    %v295 = vunpack.c.h.b16 %v95
    %v296 = vunpack.c.l.b16 %v96
    %v297 = vunpack.c.h.b16 %v96
    %v298 = vunpack.c.l.b16 %v97
    %v299 = vunpack.c.h.b16 %v97
    %v300 = vunpack.c.l.b16 %v98
    %v301 = vunpack.c.h.b16 %v98
    %v302 = vunpack.c.l.b16 %v99
    %v303 = vunpack.c.h.b16 %v99
    %v304 = vunpack.c.l.b16 %v100
    %v305 = vunpack.c.h.b16 %v100
    %v306 = vunpack.c.l.b16 %v101
    %v307 = vunpack.c.h.b16 %v101
    %v308 = vunpack.c.l.b16 %v102
    %v309 = vunpack.c.h.b16 %v102
    %v310 = vunpack.c.l.b16 %v103
    %v311 = vunpack.c.h.b16 %v103
    %v312 = vunpack.c.l.b16 %v104
    %v313 = vunpack.c.h.b16 %v104
    %v314 = vunpack.c.l.b16 %v105
    %v315 = vunpack.c.h.b16 %v105
    %v316 = vunpack.c.l.b16 %v106
    %v317 = vunpack.c.h.b16 %v106
    %v318 = vunpack.c.l.b16 %v107
    %v319 = vunpack.c.h.b16 %v107
    %v320 = vunpack.c.l.b16 %v108
    %v321 = vunpack.c.h.b16 %v108
    %v322 = vunpack.c.l.b16 %v109
    %v323 = vunpack.c.h.b16 %v109
    %v324 = vunpack.c.l.b16 %v110
    %v325 = vunpack.c.h.b16 %v110
    %v326 = vunpack.c.l.b16 %v111
    %v327 = vunpack.c.h.b16 %v111
    %v328 = vunpack.c.l.b16 %v112
    %v329 = vunpack.c.h.b16 %v112
    %v330 = vunpack.c.l.b16 %v113
    %v331 = vunpack.c.h.b16 %v113
    %v332 = vunpack.c.l.b16 %v114
    %v333 = vunpack.c.h.b16 %v114
    %v334 = vunpack.c.l.b16 %v115
    %v335 = vunpack.c.h.b16 %v115
    %v336 = vunpack.c.l.b16 %v116
    %v337 = vunpack.c.h.b16 %v116
    %v338 = vunpack.c.l.b16 %v117
    %v339 = vunpack.c.h.b16 %v117
    %v340 = vunpack.c.l.b16 %v118
    %v341 = vunpack.c.h.b16 %v118
    %v342 = vunpack.c.l.b16 %v119
    %v343 = vunpack.c.h.b16 %v119
    %v344 = vunpack.c.l.b16 %v120
    %v345 = vunpack.c.h.b16 %v120
    %v346 = vunpack.c.l.b16 %v121
    %v347 = vunpack.c.h.b16 %v121
    %v348 = vunpack.c.l.b16 %v122
    %v349 = vunpack.c.h.b16 %v122
    %v350 = vunpack.c.l.b16 %v123
    %v351 = vunpack.c.h.b16 %v123
    %v352 = vunpack.c.l.b16 %v124
    %v353 = vunpack.c.h.b16 %v124
    %v354 = vunpack.c.l.b16 %v125
    %v355 = vunpack.c.h.b16 %v125
    %v356 = vunpack.c.l.b16 %v126
    %v357 = vunpack.c.h.b16 %v126
    %v358 = vunpack.c.l.b16 %v127
    %v359 = vunpack.c.h.b16 %v127
    %v360 = vunpack.c.l.b16 %v128
    %v361 = vunpack.c.h.b16 %v128
    %v362 = vunpack.c.l.b16 %v129
    %v363 = vunpack.c.h.b16 %v129
    %v364 = vpack.c.b16 %v244, %v236
    %v365 = vpack.c.b16 %v245, %v237
    %v366 = vpack.c.b16 %v246, %v238
    %v367 = vpack.c.b16 %v247, %v239
    %v368 = vpack.c.b16 %v248, %v240
    %v369 = vpack.c.b16 %v249, %v241
    %v370 = vpack.c.b16 %v250, %v242
    %v371 = vpack.c.b16 %v251, %v243
    %v372 = vpack.c.b16 %v260, %v252
    %v373 = vpack.c.b16 %v261, %v253
    %v374 = vpack.c.b16 %v262, %v254
    %v375 = vpack.c.b16 %v263, %v255
    %v376 = vpack.c.b16 %v264, %v256
    %v377 = vpack.c.b16 %v265, %v257
    %v378 = vpack.c.b16 %v266, %v258
    %v379 = vpack.c.b16 %v267, %v259
    %v380 = vpack.c.b16 %v276, %v268
    %v381 = vpack.c.b16 %v277, %v269
    %v382 = vpack.c.b16 %v278, %v270
    %v383 = vpack.c.b16 %v279, %v271
    %v384 = vpack.c.b16 %v280, %v272
    %v385 = vpack.c.b16 %v281, %v273
    %v386 = vpack.c.b16 %v282, %v274
    %v387 = vpack.c.b16 %v283, %v275
    %v388 = vpack.c.b16 %v292, %v284
    %v389 = vpack.c.b16 %v293, %v285
    %v390 = vpack.c.b16 %v294, %v286
    %v391 = vpack.c.b16 %v295, %v287
    %v392 = vpack.c.b16 %v296, %v288
    %v393 = vpack.c.b16 %v297, %v289
    %v394 = vpack.c.b16 %v298, %v290
    %v395 = vpack.c.b16 %v299, %v291
    %v396 = vpack.c.b16 %v308, %v300
    %v397 = vpack.c.b16 %v309, %v301
    %v398 = vpack.c.b16 %v310, %v302
    %v399 = vpack.c.b16 %v311, %v303
    %v400 = vpack.c.b16 %v312, %v304
    %v401 = vpack.c.b16 %v313, %v305
    %v402 = vpack.c.b16 %v314, %v306
    %v403 = vpack.c.b16 %v315, %v307
    %v404 = vpack.c.b16 %v324, %v316
    %v405 = vpack.c.b16 %v325, %v317
    %v406 = vpack.c.b16 %v326, %v318
    %v407 = vpack.c.b16 %v327, %v319
    %v408 = vpack.c.b16 %v328, %v320
    %v409 = vpack.c.b16 %v329, %v321
    %v410 = vpack.c.b16 %v330, %v322
    %v411 = vpack.c.b16 %v331, %v323
    %v412 = vpack.c.b16 %v340, %v332
    %v413 = vpack.c.b16 %v341, %v333
    %v414 = vpack.c.b16 %v342, %v334
    %v415 = vpack.c.b16 %v343, %v335
    %v416 = vpack.c.b16 %v344, %v336
    %v417 = vpack.c.b16 %v345, %v337
    %v418 = vpack.c.b16 %v346, %v338
    %v419 = vpack.c.b16 %v347, %v339
    %v420 = vpack.c.b16 %v356, %v348
    %v421 = vpack.c.b16 %v357, %v349
    %v422 = vpack.c.b16 %v358, %v350
    %v423 = vpack.c.b16 %v359, %v351
    %v424 = vpack.c.b16 %v360, %v352
    %v425 = vpack.c.b16 %v361, %v353
    %v426 = vpack.c.b16 %v362, %v354
    %v427 = vpack.c.b16 %v363, %v355
    %492 = vmatprep.subr.bf16.mxu0 %v421
    %493 = vmatpush1.bf16.msra.mxu0 %v420
    %494 = vmatprep.subr.bf16.mxu0 %v413
    %495 = vmatpush1.bf16.msra.mxu0 %v412
    %496 = vmatprep.subr.bf16.mxu0 %v405
    %497 = vmatpush1.bf16.msra.mxu0 %v404
    %498 = vmatprep.subr.bf16.mxu0 %v397
    %499 = vmatpush1.bf16.msra.mxu0 %v396
    %500 = vmatprep.subr.bf16.mxu0 %v389
    %501 = vmatpush1.bf16.msra.mxu0 %v388
    %502 = vmatprep.subr.bf16.mxu0 %v381
    %503 = vmatpush1.bf16.msra.mxu0 %v380
    %504 = vmatprep.subr.bf16.mxu0 %v373
    %505 = vmatpush1.bf16.msra.mxu0 %v372
    %506 = vmatprep.subr.bf16.mxu0 %v365
    %507 = vmatpush1.bf16.msra.mxu0 %v364
    %508 = vmatprep.subr.bf16.mxu0 0
    %509 = vmatpush2.bf16.msra.mxu0 0
    %510 = vmatprep.subr.bf16.mxu0 0
    %511 = vmatpush2.bf16.msra.mxu0 0
    %512 = vmatprep.subr.bf16.mxu0 0
    %513 = vmatpush2.bf16.msra.mxu0 0
    %514 = vmatprep.subr.bf16.mxu0 0
    %515 = vmatpush2.bf16.msra.mxu0 0
    %516 = vmatprep.subr.bf16.mxu0 0
    %517 = vmatpush2.bf16.msra.mxu0 0
    %518 = vmatprep.subr.bf16.mxu0 0
    %519 = vmatpush2.bf16.msra.mxu0 0
    %520 = vmatprep.subr.bf16.mxu0 0
    %521 = vmatpush2.bf16.msra.mxu0 0
    %522 = vmatprep.subr.bf16.mxu0 0
    %523 = vmatpush2.bf16.msra.mxu0 0
    %524 = vmatprep.mubr.bf16.mxu0 0
    %525 = vmatmul.mubr.bf16.gmra.mxu0 %v65
    %v526 = vpop.f32.mrf.mxu0
    %v527 = vadd.f32 %v135, %v526
    %v528 = vpop.f32.mrf.mxu0
    %v529 = vadd.f32 %v139, %v528
    %v530 = vpop.f32.mrf.mxu0
    %v531 = vpop.f32.mrf.mxu0
    %532 = vdwg.mxu0
    %533 = vmatprep.subr.bf16.mxu0 %v423
    %534 = vmatpush1.bf16.msra.mxu0 %v422
    %535 = vmatprep.subr.bf16.mxu0 %v415
    %536 = vmatpush1.bf16.msra.mxu0 %v414
    %537 = vmatprep.subr.bf16.mxu0 %v407
    %538 = vmatpush1.bf16.msra.mxu0 %v406
    %539 = vmatprep.subr.bf16.mxu0 %v399
    %540 = vmatpush1.bf16.msra.mxu0 %v398
    %541 = vmatprep.subr.bf16.mxu0 %v391
    %542 = vmatpush1.bf16.msra.mxu0 %v390
    %543 = vmatprep.subr.bf16.mxu0 %v383
    %544 = vmatpush1.bf16.msra.mxu0 %v382
    %545 = vmatprep.subr.bf16.mxu0 %v375
    %546 = vmatpush1.bf16.msra.mxu0 %v374
    %547 = vmatprep.subr.bf16.mxu0 %v367
    %548 = vmatpush1.bf16.msra.mxu0 %v366
    %549 = vmatprep.subr.bf16.mxu0 0
    %550 = vmatpush2.bf16.msra.mxu0 0
    %551 = vmatprep.subr.bf16.mxu0 0
    %552 = vmatpush2.bf16.msra.mxu0 0
    %553 = vmatprep.subr.bf16.mxu0 0
    %554 = vmatpush2.bf16.msra.mxu0 0
    %555 = vmatprep.subr.bf16.mxu0 0
    %556 = vmatpush2.bf16.msra.mxu0 0
    %557 = vmatprep.subr.bf16.mxu0 0
    %558 = vmatpush2.bf16.msra.mxu0 0
    %559 = vmatprep.subr.bf16.mxu0 0
    %560 = vmatpush2.bf16.msra.mxu0 0
    %561 = vmatprep.subr.bf16.mxu0 0
    %562 = vmatpush2.bf16.msra.mxu0 0
    %563 = vmatprep.subr.bf16.mxu0 0
    %564 = vmatpush2.bf16.msra.mxu0 0
    %565 = vmatprep.mubr.bf16.mxu0 0
    %566 = vmatmul.mubr.bf16.gmra.mxu0 %v65
    %v567 = vpop.f32.mrf.mxu0
    %v568 = vadd.f32 %v143, %v567
    %v569 = vpop.f32.mrf.mxu0
    %v570 = vadd.f32 %v147, %v569
    %v571 = vpop.f32.mrf.mxu0
    %v572 = vpop.f32.mrf.mxu0
    %573 = vdwg.mxu0
    %574 = vmatprep.subr.bf16.mxu0 %v425
    %575 = vmatpush1.bf16.msra.mxu0 %v424
    %576 = vmatprep.subr.bf16.mxu0 %v417
    %577 = vmatpush1.bf16.msra.mxu0 %v416
    %578 = vmatprep.subr.bf16.mxu0 %v409
    %579 = vmatpush1.bf16.msra.mxu0 %v408
    %580 = vmatprep.subr.bf16.mxu0 %v401
    %581 = vmatpush1.bf16.msra.mxu0 %v400
    %582 = vmatprep.subr.bf16.mxu0 %v393
    %583 = vmatpush1.bf16.msra.mxu0 %v392
    %584 = vmatprep.subr.bf16.mxu0 %v385
    %585 = vmatpush1.bf16.msra.mxu0 %v384
    %586 = vmatprep.subr.bf16.mxu0 %v377
    %587 = vmatpush1.bf16.msra.mxu0 %v376
    %588 = vmatprep.subr.bf16.mxu0 %v369
    %589 = vmatpush1.bf16.msra.mxu0 %v368
    %590 = vmatprep.subr.bf16.mxu0 0
    %591 = vmatpush2.bf16.msra.mxu0 0
    %592 = vmatprep.subr.bf16.mxu0 0
    %593 = vmatpush2.bf16.msra.mxu0 0
    %594 = vmatprep.subr.bf16.mxu0 0
    %595 = vmatpush2.bf16.msra.mxu0 0
    %596 = vmatprep.subr.bf16.mxu0 0
    %597 = vmatpush2.bf16.msra.mxu0 0
    %598 = vmatprep.subr.bf16.mxu0 0
    %599 = vmatpush2.bf16.msra.mxu0 0
    %600 = vmatprep.subr.bf16.mxu0 0
    %601 = vmatpush2.bf16.msra.mxu0 0
    %602 = vmatprep.subr.bf16.mxu0 0
    %603 = vmatpush2.bf16.msra.mxu0 0
    %604 = vmatprep.subr.bf16.mxu0 0
    %605 = vmatpush2.bf16.msra.mxu0 0
    %606 = vmatprep.mubr.bf16.mxu0 0
    %607 = vmatmul.mubr.bf16.gmra.mxu0 %v65
    %v608 = vpop.f32.mrf.mxu0
    %v609 = vadd.f32 %v151, %v608
    %v610 = vpop.f32.mrf.mxu0
    %v611 = vadd.f32 %v155, %v610
    %v612 = vpop.f32.mrf.mxu0
    %v613 = vpop.f32.mrf.mxu0
    %614 = vdwg.mxu0
    %615 = vmatprep.subr.bf16.mxu0 %v427
    %616 = vmatpush1.bf16.msra.mxu0 %v426
    %617 = vmatprep.subr.bf16.mxu0 %v419
    %618 = vmatpush1.bf16.msra.mxu0 %v418
    %619 = vmatprep.subr.bf16.mxu0 %v411
    %620 = vmatpush1.bf16.msra.mxu0 %v410
    %621 = vmatprep.subr.bf16.mxu0 %v403
    %622 = vmatpush1.bf16.msra.mxu0 %v402
    %623 = vmatprep.subr.bf16.mxu0 %v395
    %624 = vmatpush1.bf16.msra.mxu0 %v394
    %625 = vmatprep.subr.bf16.mxu0 %v387
    %626 = vmatpush1.bf16.msra.mxu0 %v386
    %627 = vmatprep.subr.bf16.mxu0 %v379
    %628 = vmatpush1.bf16.msra.mxu0 %v378
    %629 = vmatprep.subr.bf16.mxu0 %v371
    %630 = vmatpush1.bf16.msra.mxu0 %v370
    %631 = vmatprep.subr.bf16.mxu0 0
    %632 = vmatpush2.bf16.msra.mxu0 0
    %633 = vmatprep.subr.bf16.mxu0 0
    %634 = vmatpush2.bf16.msra.mxu0 0
    %635 = vmatprep.subr.bf16.mxu0 0
    %636 = vmatpush2.bf16.msra.mxu0 0
    %637 = vmatprep.subr.bf16.mxu0 0
    %638 = vmatpush2.bf16.msra.mxu0 0
    %639 = vmatprep.subr.bf16.mxu0 0
    %640 = vmatpush2.bf16.msra.mxu0 0
    %641 = vmatprep.subr.bf16.mxu0 0
    %642 = vmatpush2.bf16.msra.mxu0 0
    %643 = vmatprep.subr.bf16.mxu0 0
    %644 = vmatpush2.bf16.msra.mxu0 0
    %645 = vmatprep.subr.bf16.mxu0 0
    %646 = vmatpush2.bf16.msra.mxu0 0
    %647 = vmatprep.mubr.bf16.mxu0 0
    %648 = vmatmul.mubr.bf16.gmra.mxu0 %v65
    %v649 = vpop.f32.mrf.mxu0
    %v650 = vadd.f32 %v159, %v649
    %v651 = vpop.f32.mrf.mxu0
    %v652 = vadd.f32 %v163, %v651
    %v653 = vpop.f32.mrf.mxu0
    %v654 = vpop.f32.mrf.mxu0
    %655 = vdwg.mxu0
    %656 = vst [vmem:[#allocation2] sm:$0xff] %v527
    %657 = vst [vmem:[#allocation2 + $0x8] sm:$0xff] %v529
    %658 = vst [vmem:[#allocation2 + $0x10] sm:$0xff] %v568
    %659 = vst [vmem:[#allocation2 + $0x18] sm:$0xff] %v570
    %660 = vst [vmem:[#allocation2 + $0x20] sm:$0xff] %v609
    %661 = vst [vmem:[#allocation2 + $0x28] sm:$0xff] %v611
    %662 = vst [vmem:[#allocation2 + $0x30] sm:$0xff] %v650
    %663 = vst [vmem:[#allocation2 + $0x38] sm:$0xff] %v652
    %664 = vst [vmem:[#allocation3] sm:$0xff] 0.0
    %665 = vst [vmem:[#allocation3 + $0x8] sm:$0xff] 0.0
    %v666 = vlaneseq
    %vm667 = vcmp.ge.s32.totalorder %v666, 0
    %vm668 = vcmp.lt.s32.totalorder %v666, 256
    %vm669 = vmand %vm667, %vm668
    %670 = vst.msk [vmem:[#allocation4] sm:$0x3] %vm669, 0.0
    %671 = vst.msk [vmem:[#allocation5] sm:$0x3] %vm669, 0.0
    %v672 = vld [vmem:[#allocation2] ss:$8 sm:$0xf]
    %v673 = vld [vmem:[#allocation2] ss:$8 sm:$0xf0]
    %v674 = vor.u32 %v672, %v673
    %v675 = vld [vmem:[#allocation4] sm:$0x3]
    %v677 = vlaneseq
    %v678 = vshrl.u32 %v677, 7
    %v679 = vsub.s32 0, %v678
    %v680 = vrot.slane %v675, %v679
    %v681 = vlaneseq
    %v682 = vshrl.u32 %v681, 7
    %v683 = vsub.s32 1, %v682
    %v684 = vrot.slane %v675, %v683
    %v687 = vpack.c.bf16 %v680, %v680
    %v688 = vpack.c.bf16 %v684, %v684
    %v689 = vld [vmem:[#allocation8] sm:$0xff]
    %v690 = vld [vmem:[#allocation8 + $0x8] sm:$0xff]
    %v691 = vld [vmem:[#allocation8 + $0x10] sm:$0xff]
    %v692 = vld [vmem:[#allocation8 + $0x18] sm:$0xff]
    %v693 = vld [vmem:[#allocation8 + $0x20] sm:$0xff]
    %v694 = vld [vmem:[#allocation8 + $0x28] sm:$0xff]
    %v695 = vld [vmem:[#allocation8 + $0x30] sm:$0xff]
    %v696 = vld [vmem:[#allocation8 + $0x38] sm:$0xff]
    %v697 = vld [vmem:[#allocation8 + $0x40] sm:$0xff]
    %v698 = vld [vmem:[#allocation8 + $0x48] sm:$0xff]
    %v699 = vld [vmem:[#allocation8 + $0x50] sm:$0xff]
    %v700 = vld [vmem:[#allocation8 + $0x58] sm:$0xff]
    %v701 = vld [vmem:[#allocation8 + $0x60] sm:$0xff]
    %v702 = vld [vmem:[#allocation8 + $0x68] sm:$0xff]
    %v703 = vld [vmem:[#allocation8 + $0x70] sm:$0xff]
    %v704 = vld [vmem:[#allocation8 + $0x78] sm:$0xff]
    %v705 = vld [vmem:[#allocation8 + $0x80] sm:$0xff]
    %v706 = vld [vmem:[#allocation8 + $0x88] sm:$0xff]
    %v707 = vld [vmem:[#allocation8 + $0x90] sm:$0xff]
    %v708 = vld [vmem:[#allocation8 + $0x98] sm:$0xff]
    %v709 = vld [vmem:[#allocation8 + $0xa0] sm:$0xff]
    %v710 = vld [vmem:[#allocation8 + $0xa8] sm:$0xff]
    %v711 = vld [vmem:[#allocation8 + $0xb0] sm:$0xff]
    %v712 = vld [vmem:[#allocation8 + $0xb8] sm:$0xff]
    %v713 = vld [vmem:[#allocation8 + $0xc0] sm:$0xff]
    %v714 = vld [vmem:[#allocation8 + $0xc8] sm:$0xff]
    %v715 = vld [vmem:[#allocation8 + $0xd0] sm:$0xff]
    %v716 = vld [vmem:[#allocation8 + $0xd8] sm:$0xff]
    %v717 = vld [vmem:[#allocation8 + $0xe0] sm:$0xff]
    %v718 = vld [vmem:[#allocation8 + $0xe8] sm:$0xff]
    %v719 = vld [vmem:[#allocation8 + $0xf0] sm:$0xff]
    %v720 = vld [vmem:[#allocation8 + $0xf8] sm:$0xff]
    %v721 = vld [vmem:[#allocation8 + $0x100] sm:$0xff]
    %v722 = vld [vmem:[#allocation8 + $0x108] sm:$0xff]
    %v723 = vld [vmem:[#allocation8 + $0x110] sm:$0xff]
    %v724 = vld [vmem:[#allocation8 + $0x118] sm:$0xff]
    %v725 = vld [vmem:[#allocation8 + $0x120] sm:$0xff]
    %v726 = vld [vmem:[#allocation8 + $0x128] sm:$0xff]
    %v727 = vld [vmem:[#allocation8 + $0x130] sm:$0xff]
    %v728 = vld [vmem:[#allocation8 + $0x138] sm:$0xff]
    %v729 = vld [vmem:[#allocation8 + $0x140] sm:$0xff]
    %v730 = vld [vmem:[#allocation8 + $0x148] sm:$0xff]
    %v731 = vld [vmem:[#allocation8 + $0x150] sm:$0xff]
    %v732 = vld [vmem:[#allocation8 + $0x158] sm:$0xff]
    %v733 = vld [vmem:[#allocation8 + $0x160] sm:$0xff]
    %v734 = vld [vmem:[#allocation8 + $0x168] sm:$0xff]
    %v735 = vld [vmem:[#allocation8 + $0x170] sm:$0xff]
    %v736 = vld [vmem:[#allocation8 + $0x178] sm:$0xff]
    %v737 = vld [vmem:[#allocation8 + $0x180] sm:$0xff]
    %v738 = vld [vmem:[#allocation8 + $0x188] sm:$0xff]
    %v739 = vld [vmem:[#allocation8 + $0x190] sm:$0xff]
    %v740 = vld [vmem:[#allocation8 + $0x198] sm:$0xff]
    %v741 = vld [vmem:[#allocation8 + $0x1a0] sm:$0xff]
    %v742 = vld [vmem:[#allocation8 + $0x1a8] sm:$0xff]
    %v743 = vld [vmem:[#allocation8 + $0x1b0] sm:$0xff]
    %v744 = vld [vmem:[#allocation8 + $0x1b8] sm:$0xff]
    %v745 = vld [vmem:[#allocation8 + $0x1c0] sm:$0xff]
    %v746 = vld [vmem:[#allocation8 + $0x1c8] sm:$0xff]
    %v747 = vld [vmem:[#allocation8 + $0x1d0] sm:$0xff]
    %v748 = vld [vmem:[#allocation8 + $0x1d8] sm:$0xff]
    %v749 = vld [vmem:[#allocation8 + $0x1e0] sm:$0xff]
    %v750 = vld [vmem:[#allocation8 + $0x1e8] sm:$0xff]
    %v751 = vld [vmem:[#allocation8 + $0x1f0] sm:$0xff]
    %v752 = vld [vmem:[#allocation8 + $0x1f8] sm:$0xff]
    %v753 = vld [vmem:[#allocation8 + $0x200] sm:$0xff]
    %v754 = vld [vmem:[#allocation8 + $0x208] sm:$0xff]
    %v755 = vld [vmem:[#allocation8 + $0x210] sm:$0xff]
    %v756 = vld [vmem:[#allocation8 + $0x218] sm:$0xff]
    %v757 = vld [vmem:[#allocation8 + $0x220] sm:$0xff]
    %v758 = vld [vmem:[#allocation8 + $0x228] sm:$0xff]
    %v759 = vld [vmem:[#allocation8 + $0x230] sm:$0xff]
    %v760 = vld [vmem:[#allocation8 + $0x238] sm:$0xff]
    %v761 = vld [vmem:[#allocation8 + $0x240] sm:$0xff]
    %v762 = vld [vmem:[#allocation8 + $0x248] sm:$0xff]
    %v763 = vld [vmem:[#allocation8 + $0x250] sm:$0xff]
    %v764 = vld [vmem:[#allocation8 + $0x258] sm:$0xff]
    %v765 = vld [vmem:[#allocation8 + $0x260] sm:$0xff]
    %v766 = vld [vmem:[#allocation8 + $0x268] sm:$0xff]
    %v767 = vld [vmem:[#allocation8 + $0x270] sm:$0xff]
    %v768 = vld [vmem:[#allocation8 + $0x278] sm:$0xff]
    %v769 = vld [vmem:[#allocation8 + $0x280] sm:$0xff]
    %v770 = vld [vmem:[#allocation8 + $0x288] sm:$0xff]
    %v771 = vld [vmem:[#allocation8 + $0x290] sm:$0xff]
    %v772 = vld [vmem:[#allocation8 + $0x298] sm:$0xff]
    %v773 = vld [vmem:[#allocation8 + $0x2a0] sm:$0xff]
    %v774 = vld [vmem:[#allocation8 + $0x2a8] sm:$0xff]
    %v775 = vld [vmem:[#allocation8 + $0x2b0] sm:$0xff]
    %v776 = vld [vmem:[#allocation8 + $0x2b8] sm:$0xff]
    %v777 = vld [vmem:[#allocation8 + $0x2c0] sm:$0xff]
    %v778 = vld [vmem:[#allocation8 + $0x2c8] sm:$0xff]
    %v779 = vld [vmem:[#allocation8 + $0x2d0] sm:$0xff]
    %v780 = vld [vmem:[#allocation8 + $0x2d8] sm:$0xff]
    %v781 = vld [vmem:[#allocation8 + $0x2e0] sm:$0xff]
    %v782 = vld [vmem:[#allocation8 + $0x2e8] sm:$0xff]
    %v783 = vld [vmem:[#allocation8 + $0x2f0] sm:$0xff]
    %v784 = vld [vmem:[#allocation8 + $0x2f8] sm:$0xff]
    %v785 = vld [vmem:[#allocation8 + $0x300] sm:$0xff]
    %v786 = vld [vmem:[#allocation8 + $0x308] sm:$0xff]
    %v787 = vld [vmem:[#allocation8 + $0x310] sm:$0xff]
    %v788 = vld [vmem:[#allocation8 + $0x318] sm:$0xff]
    %v789 = vld [vmem:[#allocation8 + $0x320] sm:$0xff]
    %v790 = vld [vmem:[#allocation8 + $0x328] sm:$0xff]
    %v791 = vld [vmem:[#allocation8 + $0x330] sm:$0xff]
    %v792 = vld [vmem:[#allocation8 + $0x338] sm:$0xff]
    %v793 = vld [vmem:[#allocation8 + $0x340] sm:$0xff]
    %v794 = vld [vmem:[#allocation8 + $0x348] sm:$0xff]
    %v795 = vld [vmem:[#allocation8 + $0x350] sm:$0xff]
    %v796 = vld [vmem:[#allocation8 + $0x358] sm:$0xff]
    %v797 = vld [vmem:[#allocation8 + $0x360] sm:$0xff]
    %v798 = vld [vmem:[#allocation8 + $0x368] sm:$0xff]
    %v799 = vld [vmem:[#allocation8 + $0x370] sm:$0xff]
    %v800 = vld [vmem:[#allocation8 + $0x378] sm:$0xff]
    %v801 = vld [vmem:[#allocation8 + $0x380] sm:$0xff]
    %v802 = vld [vmem:[#allocation8 + $0x388] sm:$0xff]
    %v803 = vld [vmem:[#allocation8 + $0x390] sm:$0xff]
    %v804 = vld [vmem:[#allocation8 + $0x398] sm:$0xff]
    %v805 = vld [vmem:[#allocation8 + $0x3a0] sm:$0xff]
    %v806 = vld [vmem:[#allocation8 + $0x3a8] sm:$0xff]
    %v807 = vld [vmem:[#allocation8 + $0x3b0] sm:$0xff]
    %v808 = vld [vmem:[#allocation8 + $0x3b8] sm:$0xff]
    %v809 = vld [vmem:[#allocation8 + $0x3c0] sm:$0xff]
    %v810 = vld [vmem:[#allocation8 + $0x3c8] sm:$0xff]
    %v811 = vld [vmem:[#allocation8 + $0x3d0] sm:$0xff]
    %v812 = vld [vmem:[#allocation8 + $0x3d8] sm:$0xff]
    %v813 = vld [vmem:[#allocation8 + $0x3e0] sm:$0xff]
    %v814 = vld [vmem:[#allocation8 + $0x3e8] sm:$0xff]
    %v815 = vld [vmem:[#allocation8 + $0x3f0] sm:$0xff]
    %v816 = vld [vmem:[#allocation8 + $0x3f8] sm:$0xff]
    %v945 = vunpack.c.l.b16 %v689
    %v946 = vunpack.c.h.b16 %v689
    %v947 = vunpack.c.l.b16 %v690
    %v948 = vunpack.c.h.b16 %v690
    %v949 = vunpack.c.l.b16 %v691
    %v950 = vunpack.c.h.b16 %v691
    %v951 = vunpack.c.l.b16 %v692
    %v952 = vunpack.c.h.b16 %v692
    %v953 = vunpack.c.l.b16 %v693
    %v954 = vunpack.c.h.b16 %v693
    %v955 = vunpack.c.l.b16 %v694
    %v956 = vunpack.c.h.b16 %v694
    %v957 = vunpack.c.l.b16 %v695
    %v958 = vunpack.c.h.b16 %v695
    %v959 = vunpack.c.l.b16 %v696
    %v960 = vunpack.c.h.b16 %v696
    %v961 = vunpack.c.l.b16 %v697
    %v962 = vunpack.c.h.b16 %v697
    %v963 = vunpack.c.l.b16 %v698
    %v964 = vunpack.c.h.b16 %v698
    %v965 = vunpack.c.l.b16 %v699
    %v966 = vunpack.c.h.b16 %v699
    %v967 = vunpack.c.l.b16 %v700
    %v968 = vunpack.c.h.b16 %v700
    %v969 = vunpack.c.l.b16 %v701
    %v970 = vunpack.c.h.b16 %v701
    %v971 = vunpack.c.l.b16 %v702
    %v972 = vunpack.c.h.b16 %v702
    %v973 = vunpack.c.l.b16 %v703
    %v974 = vunpack.c.h.b16 %v703
    %v975 = vunpack.c.l.b16 %v704
    %v976 = vunpack.c.h.b16 %v704
    %v977 = vunpack.c.l.b16 %v705
    %v978 = vunpack.c.h.b16 %v705
    %v979 = vunpack.c.l.b16 %v706
    %v980 = vunpack.c.h.b16 %v706
    %v981 = vunpack.c.l.b16 %v707
    %v982 = vunpack.c.h.b16 %v707
    %v983 = vunpack.c.l.b16 %v708
    %v984 = vunpack.c.h.b16 %v708
    %v985 = vunpack.c.l.b16 %v709
    %v986 = vunpack.c.h.b16 %v709
    %v987 = vunpack.c.l.b16 %v710
    %v988 = vunpack.c.h.b16 %v710
    %v989 = vunpack.c.l.b16 %v711
    %v990 = vunpack.c.h.b16 %v711
    %v991 = vunpack.c.l.b16 %v712
    %v992 = vunpack.c.h.b16 %v712
    %v993 = vunpack.c.l.b16 %v713
    %v994 = vunpack.c.h.b16 %v713
    %v995 = vunpack.c.l.b16 %v714
    %v996 = vunpack.c.h.b16 %v714
    %v997 = vunpack.c.l.b16 %v715
    %v998 = vunpack.c.h.b16 %v715
    %v999 = vunpack.c.l.b16 %v716
    %v1000 = vunpack.c.h.b16 %v716
    %v1001 = vunpack.c.l.b16 %v717
    %v1002 = vunpack.c.h.b16 %v717
    %v1003 = vunpack.c.l.b16 %v718
    %v1004 = vunpack.c.h.b16 %v718
    %v1005 = vunpack.c.l.b16 %v719
    %v1006 = vunpack.c.h.b16 %v719
    %v1007 = vunpack.c.l.b16 %v720
    %v1008 = vunpack.c.h.b16 %v720
    %v1009 = vunpack.c.l.b16 %v721
    %v1010 = vunpack.c.h.b16 %v721
    %v1011 = vunpack.c.l.b16 %v722
    %v1012 = vunpack.c.h.b16 %v722
    %v1013 = vunpack.c.l.b16 %v723
    %v1014 = vunpack.c.h.b16 %v723
    %v1015 = vunpack.c.l.b16 %v724
    %v1016 = vunpack.c.h.b16 %v724
    %v1017 = vunpack.c.l.b16 %v725
    %v1018 = vunpack.c.h.b16 %v725
    %v1019 = vunpack.c.l.b16 %v726
    %v1020 = vunpack.c.h.b16 %v726
    %v1021 = vunpack.c.l.b16 %v727
    %v1022 = vunpack.c.h.b16 %v727
    %v1023 = vunpack.c.l.b16 %v728
    %v1024 = vunpack.c.h.b16 %v728
    %v1025 = vunpack.c.l.b16 %v729
    %v1026 = vunpack.c.h.b16 %v729
    %v1027 = vunpack.c.l.b16 %v730
    %v1028 = vunpack.c.h.b16 %v730
    %v1029 = vunpack.c.l.b16 %v731
    %v1030 = vunpack.c.h.b16 %v731
    %v1031 = vunpack.c.l.b16 %v732
    %v1032 = vunpack.c.h.b16 %v732
    %v1033 = vunpack.c.l.b16 %v733
    %v1034 = vunpack.c.h.b16 %v733
    %v1035 = vunpack.c.l.b16 %v734
    %v1036 = vunpack.c.h.b16 %v734
    %v1037 = vunpack.c.l.b16 %v735
    %v1038 = vunpack.c.h.b16 %v735
    %v1039 = vunpack.c.l.b16 %v736
    %v1040 = vunpack.c.h.b16 %v736
    %v1041 = vunpack.c.l.b16 %v737
    %v1042 = vunpack.c.h.b16 %v737
    %v1043 = vunpack.c.l.b16 %v738
    %v1044 = vunpack.c.h.b16 %v738
    %v1045 = vunpack.c.l.b16 %v739
    %v1046 = vunpack.c.h.b16 %v739
    %v1047 = vunpack.c.l.b16 %v740
    %v1048 = vunpack.c.h.b16 %v740
    %v1049 = vunpack.c.l.b16 %v741
    %v1050 = vunpack.c.h.b16 %v741
    %v1051 = vunpack.c.l.b16 %v742
    %v1052 = vunpack.c.h.b16 %v742
    %v1053 = vunpack.c.l.b16 %v743
    %v1054 = vunpack.c.h.b16 %v743
    %v1055 = vunpack.c.l.b16 %v744
    %v1056 = vunpack.c.h.b16 %v744
    %v1057 = vunpack.c.l.b16 %v745
    %v1058 = vunpack.c.h.b16 %v745
    %v1059 = vunpack.c.l.b16 %v746
    %v1060 = vunpack.c.h.b16 %v746
    %v1061 = vunpack.c.l.b16 %v747
    %v1062 = vunpack.c.h.b16 %v747
    %v1063 = vunpack.c.l.b16 %v748
    %v1064 = vunpack.c.h.b16 %v748
    %v1065 = vunpack.c.l.b16 %v749
    %v1066 = vunpack.c.h.b16 %v749
    %v1067 = vunpack.c.l.b16 %v750
    %v1068 = vunpack.c.h.b16 %v750
    %v1069 = vunpack.c.l.b16 %v751
    %v1070 = vunpack.c.h.b16 %v751
    %v1071 = vunpack.c.l.b16 %v752
    %v1072 = vunpack.c.h.b16 %v752
    %v1073 = vunpack.c.l.b16 %v753
    %v1074 = vunpack.c.h.b16 %v753
    %v1075 = vunpack.c.l.b16 %v754
    %v1076 = vunpack.c.h.b16 %v754
    %v1077 = vunpack.c.l.b16 %v755
    %v1078 = vunpack.c.h.b16 %v755
    %v1079 = vunpack.c.l.b16 %v756
    %v1080 = vunpack.c.h.b16 %v756
    %v1081 = vunpack.c.l.b16 %v757
    %v1082 = vunpack.c.h.b16 %v757
    %v1083 = vunpack.c.l.b16 %v758
    %v1084 = vunpack.c.h.b16 %v758
    %v1085 = vunpack.c.l.b16 %v759
    %v1086 = vunpack.c.h.b16 %v759
    %v1087 = vunpack.c.l.b16 %v760
    %v1088 = vunpack.c.h.b16 %v760
    %v1089 = vunpack.c.l.b16 %v761
    %v1090 = vunpack.c.h.b16 %v761
    %v1091 = vunpack.c.l.b16 %v762
    %v1092 = vunpack.c.h.b16 %v762
    %v1093 = vunpack.c.l.b16 %v763
    %v1094 = vunpack.c.h.b16 %v763
    %v1095 = vunpack.c.l.b16 %v764
    %v1096 = vunpack.c.h.b16 %v764
    %v1097 = vunpack.c.l.b16 %v765
    %v1098 = vunpack.c.h.b16 %v765
    %v1099 = vunpack.c.l.b16 %v766
    %v1100 = vunpack.c.h.b16 %v766
    %v1101 = vunpack.c.l.b16 %v767
    %v1102 = vunpack.c.h.b16 %v767
    %v1103 = vunpack.c.l.b16 %v768
    %v1104 = vunpack.c.h.b16 %v768
    %v1105 = vunpack.c.l.b16 %v769
    %v1106 = vunpack.c.h.b16 %v769
    %v1107 = vunpack.c.l.b16 %v770
    %v1108 = vunpack.c.h.b16 %v770
    %v1109 = vunpack.c.l.b16 %v771
    %v1110 = vunpack.c.h.b16 %v771
    %v1111 = vunpack.c.l.b16 %v772
    %v1112 = vunpack.c.h.b16 %v772
    %v1113 = vunpack.c.l.b16 %v773
    %v1114 = vunpack.c.h.b16 %v773
    %v1115 = vunpack.c.l.b16 %v774
    %v1116 = vunpack.c.h.b16 %v774
    %v1117 = vunpack.c.l.b16 %v775
    %v1118 = vunpack.c.h.b16 %v775
    %v1119 = vunpack.c.l.b16 %v776
    %v1120 = vunpack.c.h.b16 %v776
    %v1121 = vunpack.c.l.b16 %v777
    %v1122 = vunpack.c.h.b16 %v777
    %v1123 = vunpack.c.l.b16 %v778
    %v1124 = vunpack.c.h.b16 %v778
    %v1125 = vunpack.c.l.b16 %v779
    %v1126 = vunpack.c.h.b16 %v779
    %v1127 = vunpack.c.l.b16 %v780
    %v1128 = vunpack.c.h.b16 %v780
    %v1129 = vunpack.c.l.b16 %v781
    %v1130 = vunpack.c.h.b16 %v781
    %v1131 = vunpack.c.l.b16 %v782
    %v1132 = vunpack.c.h.b16 %v782
    %v1133 = vunpack.c.l.b16 %v783
    %v1134 = vunpack.c.h.b16 %v783
    %v1135 = vunpack.c.l.b16 %v784
    %v1136 = vunpack.c.h.b16 %v784
    %v1137 = vunpack.c.l.b16 %v785
    %v1138 = vunpack.c.h.b16 %v785
    %v1139 = vunpack.c.l.b16 %v786
    %v1140 = vunpack.c.h.b16 %v786
    %v1141 = vunpack.c.l.b16 %v787
    %v1142 = vunpack.c.h.b16 %v787
    %v1143 = vunpack.c.l.b16 %v788
    %v1144 = vunpack.c.h.b16 %v788
    %v1145 = vunpack.c.l.b16 %v789
    %v1146 = vunpack.c.h.b16 %v789
    %v1147 = vunpack.c.l.b16 %v790
    %v1148 = vunpack.c.h.b16 %v790
    %v1149 = vunpack.c.l.b16 %v791
    %v1150 = vunpack.c.h.b16 %v791
    %v1151 = vunpack.c.l.b16 %v792
    %v1152 = vunpack.c.h.b16 %v792
    %v1153 = vunpack.c.l.b16 %v793
    %v1154 = vunpack.c.h.b16 %v793
    %v1155 = vunpack.c.l.b16 %v794
    %v1156 = vunpack.c.h.b16 %v794
    %v1157 = vunpack.c.l.b16 %v795
    %v1158 = vunpack.c.h.b16 %v795
    %v1159 = vunpack.c.l.b16 %v796
    %v1160 = vunpack.c.h.b16 %v796
    %v1161 = vunpack.c.l.b16 %v797
    %v1162 = vunpack.c.h.b16 %v797
    %v1163 = vunpack.c.l.b16 %v798
    %v1164 = vunpack.c.h.b16 %v798
    %v1165 = vunpack.c.l.b16 %v799
    %v1166 = vunpack.c.h.b16 %v799
    %v1167 = vunpack.c.l.b16 %v800
    %v1168 = vunpack.c.h.b16 %v800
    %v1169 = vunpack.c.l.b16 %v801
    %v1170 = vunpack.c.h.b16 %v801
    %v1171 = vunpack.c.l.b16 %v802
    %v1172 = vunpack.c.h.b16 %v802
    %v1173 = vunpack.c.l.b16 %v803
    %v1174 = vunpack.c.h.b16 %v803
    %v1175 = vunpack.c.l.b16 %v804
    %v1176 = vunpack.c.h.b16 %v804
    %v1177 = vunpack.c.l.b16 %v805
    %v1178 = vunpack.c.h.b16 %v805
    %v1179 = vunpack.c.l.b16 %v806
    %v1180 = vunpack.c.h.b16 %v806
    %v1181 = vunpack.c.l.b16 %v807
    %v1182 = vunpack.c.h.b16 %v807
    %v1183 = vunpack.c.l.b16 %v808
    %v1184 = vunpack.c.h.b16 %v808
    %v1185 = vunpack.c.l.b16 %v809
    %v1186 = vunpack.c.h.b16 %v809
    %v1187 = vunpack.c.l.b16 %v810
    %v1188 = vunpack.c.h.b16 %v810
    %v1189 = vunpack.c.l.b16 %v811
    %v1190 = vunpack.c.h.b16 %v811
    %v1191 = vunpack.c.l.b16 %v812
    %v1192 = vunpack.c.h.b16 %v812
    %v1193 = vunpack.c.l.b16 %v813
    %v1194 = vunpack.c.h.b16 %v813
    %v1195 = vunpack.c.l.b16 %v814
    %v1196 = vunpack.c.h.b16 %v814
    %v1197 = vunpack.c.l.b16 %v815
    %v1198 = vunpack.c.h.b16 %v815
    %v1199 = vunpack.c.l.b16 %v816
    %v1200 = vunpack.c.h.b16 %v816
    %v1201 = vpack.c.b16 %v953, %v945
    %v1202 = vpack.c.b16 %v954, %v946
    %v1203 = vpack.c.b16 %v955, %v947
    %v1204 = vpack.c.b16 %v956, %v948
    %v1205 = vpack.c.b16 %v957, %v949
    %v1206 = vpack.c.b16 %v958, %v950
    %v1207 = vpack.c.b16 %v959, %v951
    %v1208 = vpack.c.b16 %v960, %v952
    %v1209 = vpack.c.b16 %v969, %v961
    %v1210 = vpack.c.b16 %v970, %v962
    %v1211 = vpack.c.b16 %v971, %v963
    %v1212 = vpack.c.b16 %v972, %v964
    %v1213 = vpack.c.b16 %v973, %v965
    %v1214 = vpack.c.b16 %v974, %v966
    %v1215 = vpack.c.b16 %v975, %v967
    %v1216 = vpack.c.b16 %v976, %v968
    %v1217 = vpack.c.b16 %v985, %v977
    %v1218 = vpack.c.b16 %v986, %v978
    %v1219 = vpack.c.b16 %v987, %v979
    %v1220 = vpack.c.b16 %v988, %v980
    %v1221 = vpack.c.b16 %v989, %v981
    %v1222 = vpack.c.b16 %v990, %v982
    %v1223 = vpack.c.b16 %v991, %v983
    %v1224 = vpack.c.b16 %v992, %v984
    %v1225 = vpack.c.b16 %v1001, %v993
    %v1226 = vpack.c.b16 %v1002, %v994
    %v1227 = vpack.c.b16 %v1003, %v995
    %v1228 = vpack.c.b16 %v1004, %v996
    %v1229 = vpack.c.b16 %v1005, %v997
    %v1230 = vpack.c.b16 %v1006, %v998
    %v1231 = vpack.c.b16 %v1007, %v999
    %v1232 = vpack.c.b16 %v1008, %v1000
    %v1233 = vpack.c.b16 %v1017, %v1009
    %v1234 = vpack.c.b16 %v1018, %v1010
    %v1235 = vpack.c.b16 %v1019, %v1011
    %v1236 = vpack.c.b16 %v1020, %v1012
    %v1237 = vpack.c.b16 %v1021, %v1013
    %v1238 = vpack.c.b16 %v1022, %v1014
    %v1239 = vpack.c.b16 %v1023, %v1015
    %v1240 = vpack.c.b16 %v1024, %v1016
    %v1241 = vpack.c.b16 %v1033, %v1025
    %v1242 = vpack.c.b16 %v1034, %v1026
    %v1243 = vpack.c.b16 %v1035, %v1027
    %v1244 = vpack.c.b16 %v1036, %v1028
    %v1245 = vpack.c.b16 %v1037, %v1029
    %v1246 = vpack.c.b16 %v1038, %v1030
    %v1247 = vpack.c.b16 %v1039, %v1031
    %v1248 = vpack.c.b16 %v1040, %v1032
    %v1249 = vpack.c.b16 %v1049, %v1041
    %v1250 = vpack.c.b16 %v1050, %v1042
    %v1251 = vpack.c.b16 %v1051, %v1043
    %v1252 = vpack.c.b16 %v1052, %v1044
    %v1253 = vpack.c.b16 %v1053, %v1045
    %v1254 = vpack.c.b16 %v1054, %v1046
    %v1255 = vpack.c.b16 %v1055, %v1047
    %v1256 = vpack.c.b16 %v1056, %v1048
    %v1257 = vpack.c.b16 %v1065, %v1057
    %v1258 = vpack.c.b16 %v1066, %v1058
    %v1259 = vpack.c.b16 %v1067, %v1059
    %v1260 = vpack.c.b16 %v1068, %v1060
    %v1261 = vpack.c.b16 %v1069, %v1061
    %v1262 = vpack.c.b16 %v1070, %v1062
    %v1263 = vpack.c.b16 %v1071, %v1063
    %v1264 = vpack.c.b16 %v1072, %v1064
    %v1265 = vpack.c.b16 %v1081, %v1073
    %v1266 = vpack.c.b16 %v1082, %v1074
    %v1267 = vpack.c.b16 %v1083, %v1075
    %v1268 = vpack.c.b16 %v1084, %v1076
    %v1269 = vpack.c.b16 %v1085, %v1077
    %v1270 = vpack.c.b16 %v1086, %v1078
    %v1271 = vpack.c.b16 %v1087, %v1079
    %v1272 = vpack.c.b16 %v1088, %v1080
    %v1273 = vpack.c.b16 %v1097, %v1089
    %v1274 = vpack.c.b16 %v1098, %v1090
    %v1275 = vpack.c.b16 %v1099, %v1091
    %v1276 = vpack.c.b16 %v1100, %v1092
    %v1277 = vpack.c.b16 %v1101, %v1093
    %v1278 = vpack.c.b16 %v1102, %v1094
    %v1279 = vpack.c.b16 %v1103, %v1095
    %v1280 = vpack.c.b16 %v1104, %v1096
    %v1281 = vpack.c.b16 %v1113, %v1105
    %v1282 = vpack.c.b16 %v1114, %v1106
    %v1283 = vpack.c.b16 %v1115, %v1107
    %v1284 = vpack.c.b16 %v1116, %v1108
    %v1285 = vpack.c.b16 %v1117, %v1109
    %v1286 = vpack.c.b16 %v1118, %v1110
    %v1287 = vpack.c.b16 %v1119, %v1111
    %v1288 = vpack.c.b16 %v1120, %v1112
    %v1289 = vpack.c.b16 %v1129, %v1121
    %v1290 = vpack.c.b16 %v1130, %v1122
    %v1291 = vpack.c.b16 %v1131, %v1123
    %v1292 = vpack.c.b16 %v1132, %v1124
    %v1293 = vpack.c.b16 %v1133, %v1125
    %v1294 = vpack.c.b16 %v1134, %v1126
    %v1295 = vpack.c.b16 %v1135, %v1127
    %v1296 = vpack.c.b16 %v1136, %v1128
    %v1297 = vpack.c.b16 %v1145, %v1137
    %v1298 = vpack.c.b16 %v1146, %v1138
    %v1299 = vpack.c.b16 %v1147, %v1139
    %v1300 = vpack.c.b16 %v1148, %v1140
    %v1301 = vpack.c.b16 %v1149, %v1141
    %v1302 = vpack.c.b16 %v1150, %v1142
    %v1303 = vpack.c.b16 %v1151, %v1143
    %v1304 = vpack.c.b16 %v1152, %v1144
    %v1305 = vpack.c.b16 %v1161, %v1153
    %v1306 = vpack.c.b16 %v1162, %v1154
    %v1307 = vpack.c.b16 %v1163, %v1155
    %v1308 = vpack.c.b16 %v1164, %v1156
    %v1309 = vpack.c.b16 %v1165, %v1157
    %v1310 = vpack.c.b16 %v1166, %v1158
    %v1311 = vpack.c.b16 %v1167, %v1159
    %v1312 = vpack.c.b16 %v1168, %v1160
    %v1313 = vpack.c.b16 %v1177, %v1169
    %v1314 = vpack.c.b16 %v1178, %v1170
    %v1315 = vpack.c.b16 %v1179, %v1171
    %v1316 = vpack.c.b16 %v1180, %v1172
    %v1317 = vpack.c.b16 %v1181, %v1173
    %v1318 = vpack.c.b16 %v1182, %v1174
    %v1319 = vpack.c.b16 %v1183, %v1175
    %v1320 = vpack.c.b16 %v1184, %v1176
    %v1321 = vpack.c.b16 %v1193, %v1185
    %v1322 = vpack.c.b16 %v1194, %v1186
    %v1323 = vpack.c.b16 %v1195, %v1187
    %v1324 = vpack.c.b16 %v1196, %v1188
    %v1325 = vpack.c.b16 %v1197, %v1189
    %v1326 = vpack.c.b16 %v1198, %v1190
    %v1327 = vpack.c.b16 %v1199, %v1191
    %v1328 = vpack.c.b16 %v1200, %v1192
    %1457 = vmatprep.subr.bf16.mxu0 %v1258
    %1458 = vmatpush1.bf16.msra.mxu0 %v1257
    %1459 = vmatprep.subr.bf16.mxu0 %v1250
    %1460 = vmatpush1.bf16.msra.mxu0 %v1249
    %1461 = vmatprep.subr.bf16.mxu0 %v1242
    %1462 = vmatpush1.bf16.msra.mxu0 %v1241
    %1463 = vmatprep.subr.bf16.mxu0 %v1234
    %1464 = vmatpush1.bf16.msra.mxu0 %v1233
    %1465 = vmatprep.subr.bf16.mxu0 %v1226
    %1466 = vmatpush1.bf16.msra.mxu0 %v1225
    %1467 = vmatprep.subr.bf16.mxu0 %v1218
    %1468 = vmatpush1.bf16.msra.mxu0 %v1217
    %1469 = vmatprep.subr.bf16.mxu0 %v1210
    %1470 = vmatpush1.bf16.msra.mxu0 %v1209
    %1471 = vmatprep.subr.bf16.mxu0 %v1202
    %1472 = vmatpush1.bf16.msra.mxu0 %v1201
    %1473 = vmatprep.subr.bf16.mxu0 %v1322
    %1474 = vmatpush2.bf16.msra.mxu0 %v1321
    %1475 = vmatprep.subr.bf16.mxu0 %v1314
    %1476 = vmatpush2.bf16.msra.mxu0 %v1313
    %1477 = vmatprep.subr.bf16.mxu0 %v1306
    %1478 = vmatpush2.bf16.msra.mxu0 %v1305
    %1479 = vmatprep.subr.bf16.mxu0 %v1298
    %1480 = vmatpush2.bf16.msra.mxu0 %v1297
    %1481 = vmatprep.subr.bf16.mxu0 %v1290
    %1482 = vmatpush2.bf16.msra.mxu0 %v1289
    %1483 = vmatprep.subr.bf16.mxu0 %v1282
    %1484 = vmatpush2.bf16.msra.mxu0 %v1281
    %1485 = vmatprep.subr.bf16.mxu0 %v1274
    %1486 = vmatpush2.bf16.msra.mxu0 %v1273
    %1487 = vmatprep.subr.bf16.mxu0 %v1266
    %1488 = vmatpush2.bf16.msra.mxu0 %v1265
    %1489 = vmatprep.mubr.bf16.mxu0 %v688
    %1490 = vmatmul.mubr.bf16.gmra.mxu0 %v687
    %v1491 = vpop.f32.mrf.mxu0
    %v1492 = vadd.f32 0.0, %v1491
    %v1493 = vpop.f32.mrf.mxu0
    %v1494 = vadd.f32 0.0, %v1493
    %v1495 = vpop.f32.mrf.mxu0
    %v1496 = vpop.f32.mrf.mxu0
    %1497 = vdwg.mxu0
    %1498 = vmatprep.subr.bf16.mxu0 %v1260
    %1499 = vmatpush1.bf16.msra.mxu0 %v1259
    %1500 = vmatprep.subr.bf16.mxu0 %v1252
    %1501 = vmatpush1.bf16.msra.mxu0 %v1251
    %1502 = vmatprep.subr.bf16.mxu0 %v1244
    %1503 = vmatpush1.bf16.msra.mxu0 %v1243
    %1504 = vmatprep.subr.bf16.mxu0 %v1236
    %1505 = vmatpush1.bf16.msra.mxu0 %v1235
    %1506 = vmatprep.subr.bf16.mxu0 %v1228
    %1507 = vmatpush1.bf16.msra.mxu0 %v1227
    %1508 = vmatprep.subr.bf16.mxu0 %v1220
    %1509 = vmatpush1.bf16.msra.mxu0 %v1219
    %1510 = vmatprep.subr.bf16.mxu0 %v1212
    %1511 = vmatpush1.bf16.msra.mxu0 %v1211
    %1512 = vmatprep.subr.bf16.mxu0 %v1204
    %1513 = vmatpush1.bf16.msra.mxu0 %v1203
    %1514 = vmatprep.subr.bf16.mxu0 %v1324
    %1515 = vmatpush2.bf16.msra.mxu0 %v1323
    %1516 = vmatprep.subr.bf16.mxu0 %v1316
    %1517 = vmatpush2.bf16.msra.mxu0 %v1315
    %1518 = vmatprep.subr.bf16.mxu0 %v1308
    %1519 = vmatpush2.bf16.msra.mxu0 %v1307
    %1520 = vmatprep.subr.bf16.mxu0 %v1300
    %1521 = vmatpush2.bf16.msra.mxu0 %v1299
    %1522 = vmatprep.subr.bf16.mxu0 %v1292
    %1523 = vmatpush2.bf16.msra.mxu0 %v1291
    %1524 = vmatprep.subr.bf16.mxu0 %v1284
    %1525 = vmatpush2.bf16.msra.mxu0 %v1283
    %1526 = vmatprep.subr.bf16.mxu0 %v1276
    %1527 = vmatpush2.bf16.msra.mxu0 %v1275
    %1528 = vmatprep.subr.bf16.mxu0 %v1268
    %1529 = vmatpush2.bf16.msra.mxu0 %v1267
    %1530 = vmatprep.mubr.bf16.mxu0 %v688
    %1531 = vmatmul.mubr.bf16.gmra.mxu0 %v687
    %v1532 = vpop.f32.mrf.mxu0
    %v1533 = vadd.f32 0.0, %v1532
    %v1534 = vpop.f32.mrf.mxu0
    %v1535 = vadd.f32 0.0, %v1534
    %v1536 = vpop.f32.mrf.mxu0
    %v1537 = vpop.f32.mrf.mxu0
    %1538 = vdwg.mxu0
    %1539 = vmatprep.subr.bf16.mxu0 %v1262
    %1540 = vmatpush1.bf16.msra.mxu0 %v1261
    %1541 = vmatprep.subr.bf16.mxu0 %v1254
    %1542 = vmatpush1.bf16.msra.mxu0 %v1253
    %1543 = vmatprep.subr.bf16.mxu0 %v1246
    %1544 = vmatpush1.bf16.msra.mxu0 %v1245
    %1545 = vmatprep.subr.bf16.mxu0 %v1238
    %1546 = vmatpush1.bf16.msra.mxu0 %v1237
    %1547 = vmatprep.subr.bf16.mxu0 %v1230
    %1548 = vmatpush1.bf16.msra.mxu0 %v1229
    %1549 = vmatprep.subr.bf16.mxu0 %v1222
    %1550 = vmatpush1.bf16.msra.mxu0 %v1221
    %1551 = vmatprep.subr.bf16.mxu0 %v1214
    %1552 = vmatpush1.bf16.msra.mxu0 %v1213
    %1553 = vmatprep.subr.bf16.mxu0 %v1206
    %1554 = vmatpush1.bf16.msra.mxu0 %v1205
    %1555 = vmatprep.subr.bf16.mxu0 %v1326
    %1556 = vmatpush2.bf16.msra.mxu0 %v1325
    %1557 = vmatprep.subr.bf16.mxu0 %v1318
    %1558 = vmatpush2.bf16.msra.mxu0 %v1317
    %1559 = vmatprep.subr.bf16.mxu0 %v1310
    %1560 = vmatpush2.bf16.msra.mxu0 %v1309
    %1561 = vmatprep.subr.bf16.mxu0 %v1302
    %1562 = vmatpush2.bf16.msra.mxu0 %v1301
    %1563 = vmatprep.subr.bf16.mxu0 %v1294
    %1564 = vmatpush2.bf16.msra.mxu0 %v1293
    %1565 = vmatprep.subr.bf16.mxu0 %v1286
    %1566 = vmatpush2.bf16.msra.mxu0 %v1285
    %1567 = vmatprep.subr.bf16.mxu0 %v1278
    %1568 = vmatpush2.bf16.msra.mxu0 %v1277
    %1569 = vmatprep.subr.bf16.mxu0 %v1270
    %1570 = vmatpush2.bf16.msra.mxu0 %v1269
    %1571 = vmatprep.mubr.bf16.mxu0 %v688
    %1572 = vmatmul.mubr.bf16.gmra.mxu0 %v687
    %v1573 = vpop.f32.mrf.mxu0
    %v1574 = vadd.f32 0.0, %v1573
    %v1575 = vpop.f32.mrf.mxu0
    %v1576 = vadd.f32 0.0, %v1575
    %v1577 = vpop.f32.mrf.mxu0
    %v1578 = vpop.f32.mrf.mxu0
    %1579 = vdwg.mxu0
    %1580 = vmatprep.subr.bf16.mxu0 %v1264
    %1581 = vmatpush1.bf16.msra.mxu0 %v1263
    %1582 = vmatprep.subr.bf16.mxu0 %v1256
    %1583 = vmatpush1.bf16.msra.mxu0 %v1255
    %1584 = vmatprep.subr.bf16.mxu0 %v1248
    %1585 = vmatpush1.bf16.msra.mxu0 %v1247
    %1586 = vmatprep.subr.bf16.mxu0 %v1240
    %1587 = vmatpush1.bf16.msra.mxu0 %v1239
    %1588 = vmatprep.subr.bf16.mxu0 %v1232
    %1589 = vmatpush1.bf16.msra.mxu0 %v1231
    %1590 = vmatprep.subr.bf16.mxu0 %v1224
    %1591 = vmatpush1.bf16.msra.mxu0 %v1223
    %1592 = vmatprep.subr.bf16.mxu0 %v1216
    %1593 = vmatpush1.bf16.msra.mxu0 %v1215
    %1594 = vmatprep.subr.bf16.mxu0 %v1208
    %1595 = vmatpush1.bf16.msra.mxu0 %v1207
    %1596 = vmatprep.subr.bf16.mxu0 %v1328
    %1597 = vmatpush2.bf16.msra.mxu0 %v1327
    %1598 = vmatprep.subr.bf16.mxu0 %v1320
    %1599 = vmatpush2.bf16.msra.mxu0 %v1319
    %1600 = vmatprep.subr.bf16.mxu0 %v1312
    %1601 = vmatpush2.bf16.msra.mxu0 %v1311
    %1602 = vmatprep.subr.bf16.mxu0 %v1304
    %1603 = vmatpush2.bf16.msra.mxu0 %v1303
    %1604 = vmatprep.subr.bf16.mxu0 %v1296
    %1605 = vmatpush2.bf16.msra.mxu0 %v1295
    %1606 = vmatprep.subr.bf16.mxu0 %v1288
    %1607 = vmatpush2.bf16.msra.mxu0 %v1287
    %1608 = vmatprep.subr.bf16.mxu0 %v1280
    %1609 = vmatpush2.bf16.msra.mxu0 %v1279
    %1610 = vmatprep.subr.bf16.mxu0 %v1272
    %1611 = vmatpush2.bf16.msra.mxu0 %v1271
    %1612 = vmatprep.mubr.bf16.mxu0 %v688
    %1613 = vmatmul.mubr.bf16.gmra.mxu0 %v687
    %v1614 = vpop.f32.mrf.mxu0
    %v1615 = vadd.f32 0.0, %v1614
    %v1616 = vpop.f32.mrf.mxu0
    %v1617 = vadd.f32 0.0, %v1616
    %v1618 = vpop.f32.mrf.mxu0
    %v1619 = vpop.f32.mrf.mxu0
    %1620 = vdwg.mxu0
    %v1629 = vcombine.low %v1492, %v1494
    %v1630 = vcombine.low %v1533, %v1535
    %v1631 = vcombine.low %v1574, %v1576
    %v1632 = vcombine.low %v1615, %v1617
    %v1634 = vunpack.c.l.s4 1966171168
    %v1635 = vunpack.c.0.s8 %v1634
    %v1636 = vlaneseq
    %v1637 = vshrl.u32 %v1636, 7
    %v1638 = vsub.s32 %v1635, %v1637
    %v1639 = vrot.slane %v1629, %v1638
    %v1641 = vunpack.c.l.s4 1966171168
    %v1642 = vunpack.c.0.s8 %v1641
    %v1643 = vlaneseq
    %v1644 = vshrl.u32 %v1643, 7
    %v1645 = vsub.s32 %v1642, %v1644
    %v1646 = vrot.slane %v1630, %v1645
    %v1648 = vunpack.c.l.s4 1966171168
    %v1649 = vunpack.c.0.s8 %v1648
    %v1650 = vlaneseq
    %v1651 = vshrl.u32 %v1650, 7
    %v1652 = vsub.s32 %v1649, %v1651
    %v1653 = vrot.slane %v1631, %v1652
    %v1655 = vunpack.c.l.s4 1966171168
    %v1656 = vunpack.c.0.s8 %v1655
    %v1657 = vlaneseq
    %v1658 = vshrl.u32 %v1657, 7
    %v1659 = vsub.s32 %v1656, %v1658
    %v1660 = vrot.slane %v1632, %v1659
    %v1661 = vcombine.low %v1639, %v1646
    %v1662 = vcombine.low %v1653, %v1660
    %v1664 = vunpack.c.l.s4 1966171168
    %v1665 = vunpack.c.0.s8 %v1664
    %v1666 = vlaneseq
    %v1667 = vshrl.u32 %v1666, 7
    %v1668 = vsub.s32 %v1665, %v1667
    %v1669 = vrot.slane %v1661, %v1668
    %v1671 = vunpack.c.l.s4 1966171168
    %v1672 = vunpack.c.0.s8 %v1671
    %v1673 = vlaneseq
    %v1674 = vshrl.u32 %v1673, 7
    %v1675 = vsub.s32 %v1672, %v1674
    %v1676 = vrot.slane %v1662, %v1675
    %v1677 = vcombine.low %v1669, %v1676
    %v1679 = vadd.f32 %v674, %v1677
    %v1680 = vxor.u32 %v1679, 2147483648
    %v1681 = vmul.f32 %v1680, 1.442695
    %v1682 = vpow.pop %v1681
    %v1683 = vadd.f32 %v1682, 1.0
    %v1684 = vrcp.pop %v1683
    %v1685 = vmul.f32 1.0, %v1684
    %v1687 = vrot.slane %v1679, 2
    %v1689 = vxor.u32 %v1687, 2147483648
    %v1690 = vmul.f32 %v1689, 1.442695
    %v1691 = vpow.pop %v1690
    %v1692 = vadd.f32 %v1691, 1.0
    %v1693 = vrcp.pop %v1692
    %v1694 = vmul.f32 1.0, %v1693
    %v1695 = vrot.slane %v1679, 4
    %v1697 = vtanh.pop %v1695
    %v1698 = vrot.slane %v1679, 6
    %v1700 = vxor.u32 %v1698, 2147483648
    %v1701 = vmul.f32 %v1700, 1.442695
    %v1702 = vpow.pop %v1701
    %v1703 = vadd.f32 %v1702, 1.0
    %v1704 = vrcp.pop %v1703
    %v1705 = vmul.f32 1.0, %v1704
    %v1706 = vld [vmem:[#allocation5] sm:$0x3]
    %v1707 = vmul.f32 %v1694, %v1706
    %v1708 = vmul.f32 %v1685, %v1697
    %v1709 = vadd.f32 %v1707, %v1708
    %v1710 = vtanh.pop %v1709
    %v1711 = vmul.f32 %v1705, %v1710
    %1712 = vst.msk [vmem:[#allocation5] sm:$0x3] %vm669, %v1709
    %1713 = vst.msk [vmem:[#allocation4] sm:$0x3] %vm669, %v1711
    %1714 = vst.msk [vmem:[#allocation3] ss:$8 sm:$0x3] %vm669, %v1711
    %1715 = vst.msk [vmem:[#allocation3] ss:$8 sm:$0x0] %vm669, %v1711
    %s1716 = scalar_lea.vmem [#allocation2], 1
    %v1717 = vld [vmem:[%s1716] ss:$8 sm:$0xf]
    %v1718 = vld [vmem:[%s1716] ss:$8 sm:$0xf0]
    %v1719 = vor.u32 %v1717, %v1718
    %v1720 = vld [vmem:[#allocation4] sm:$0x3]
    %v1722 = vlaneseq
    %v1723 = vshrl.u32 %v1722, 7
    %v1724 = vsub.s32 0, %v1723
    %v1725 = vrot.slane %v1720, %v1724
    %v1726 = vlaneseq
    %v1727 = vshrl.u32 %v1726, 7
    %v1728 = vsub.s32 1, %v1727
    %v1729 = vrot.slane %v1720, %v1728
    %v1732 = vpack.c.bf16 %v1725, %v1725
    %v1733 = vpack.c.bf16 %v1729, %v1729
    %v1734 = vld [vmem:[#allocation8] sm:$0xff]
    %v1735 = vld [vmem:[#allocation8 + $0x8] sm:$0xff]
    %v1736 = vld [vmem:[#allocation8 + $0x10] sm:$0xff]
    %v1737 = vld [vmem:[#allocation8 + $0x18] sm:$0xff]
    %v1738 = vld [vmem:[#allocation8 + $0x20] sm:$0xff]
    %v1739 = vld [vmem:[#allocation8 + $0x28] sm:$0xff]
    %v1740 = vld [vmem:[#allocation8 + $0x30] sm:$0xff]
    %v1741 = vld [vmem:[#allocation8 + $0x38] sm:$0xff]
    %v1742 = vld [vmem:[#allocation8 + $0x40] sm:$0xff]
    %v1743 = vld [vmem:[#allocation8 + $0x48] sm:$0xff]
    %v1744 = vld [vmem:[#allocation8 + $0x50] sm:$0xff]
    %v1745 = vld [vmem:[#allocation8 + $0x58] sm:$0xff]
    %v1746 = vld [vmem:[#allocation8 + $0x60] sm:$0xff]
    %v1747 = vld [vmem:[#allocation8 + $0x68] sm:$0xff]
    %v1748 = vld [vmem:[#allocation8 + $0x70] sm:$0xff]
    %v1749 = vld [vmem:[#allocation8 + $0x78] sm:$0xff]
    %v1750 = vld [vmem:[#allocation8 + $0x80] sm:$0xff]
    %v1751 = vld [vmem:[#allocation8 + $0x88] sm:$0xff]
    %v1752 = vld [vmem:[#allocation8 + $0x90] sm:$0xff]
    %v1753 = vld [vmem:[#allocation8 + $0x98] sm:$0xff]
    %v1754 = vld [vmem:[#allocation8 + $0xa0] sm:$0xff]
    %v1755 = vld [vmem:[#allocation8 + $0xa8] sm:$0xff]
    %v1756 = vld [vmem:[#allocation8 + $0xb0] sm:$0xff]
    %v1757 = vld [vmem:[#allocation8 + $0xb8] sm:$0xff]
    %v1758 = vld [vmem:[#allocation8 + $0xc0] sm:$0xff]
    %v1759 = vld [vmem:[#allocation8 + $0xc8] sm:$0xff]
    %v1760 = vld [vmem:[#allocation8 + $0xd0] sm:$0xff]
    %v1761 = vld [vmem:[#allocation8 + $0xd8] sm:$0xff]
    %v1762 = vld [vmem:[#allocation8 + $0xe0] sm:$0xff]
    %v1763 = vld [vmem:[#allocation8 + $0xe8] sm:$0xff]
    %v1764 = vld [vmem:[#allocation8 + $0xf0] sm:$0xff]
    %v1765 = vld [vmem:[#allocation8 + $0xf8] sm:$0xff]
    %v1766 = vld [vmem:[#allocation8 + $0x100] sm:$0xff]
    %v1767 = vld [vmem:[#allocation8 + $0x108] sm:$0xff]
    %v1768 = vld [vmem:[#allocation8 + $0x110] sm:$0xff]
    %v1769 = vld [vmem:[#allocation8 + $0x118] sm:$0xff]
    %v1770 = vld [vmem:[#allocation8 + $0x120] sm:$0xff]
    %v1771 = vld [vmem:[#allocation8 + $0x128] sm:$0xff]
    %v1772 = vld [vmem:[#allocation8 + $0x130] sm:$0xff]
    %v1773 = vld [vmem:[#allocation8 + $0x138] sm:$0xff]
    %v1774 = vld [vmem:[#allocation8 + $0x140] sm:$0xff]
    %v1775 = vld [vmem:[#allocation8 + $0x148] sm:$0xff]
    %v1776 = vld [vmem:[#allocation8 + $0x150] sm:$0xff]
    %v1777 = vld [vmem:[#allocation8 + $0x158] sm:$0xff]
    %v1778 = vld [vmem:[#allocation8 + $0x160] sm:$0xff]
    %v1779 = vld [vmem:[#allocation8 + $0x168] sm:$0xff]
    %v1780 = vld [vmem:[#allocation8 + $0x170] sm:$0xff]
    %v1781 = vld [vmem:[#allocation8 + $0x178] sm:$0xff]
    %v1782 = vld [vmem:[#allocation8 + $0x180] sm:$0xff]
    %v1783 = vld [vmem:[#allocation8 + $0x188] sm:$0xff]
    %v1784 = vld [vmem:[#allocation8 + $0x190] sm:$0xff]
    %v1785 = vld [vmem:[#allocation8 + $0x198] sm:$0xff]
    %v1786 = vld [vmem:[#allocation8 + $0x1a0] sm:$0xff]
    %v1787 = vld [vmem:[#allocation8 + $0x1a8] sm:$0xff]
    %v1788 = vld [vmem:[#allocation8 + $0x1b0] sm:$0xff]
    %v1789 = vld [vmem:[#allocation8 + $0x1b8] sm:$0xff]
    %v1790 = vld [vmem:[#allocation8 + $0x1c0] sm:$0xff]
    %v1791 = vld [vmem:[#allocation8 + $0x1c8] sm:$0xff]
    %v1792 = vld [vmem:[#allocation8 + $0x1d0] sm:$0xff]
    %v1793 = vld [vmem:[#allocation8 + $0x1d8] sm:$0xff]
    %v1794 = vld [vmem:[#allocation8 + $0x1e0] sm:$0xff]
    %v1795 = vld [vmem:[#allocation8 + $0x1e8] sm:$0xff]
    %v1796 = vld [vmem:[#allocation8 + $0x1f0] sm:$0xff]
    %v1797 = vld [vmem:[#allocation8 + $0x1f8] sm:$0xff]
    %v1798 = vld [vmem:[#allocation8 + $0x200] sm:$0xff]
    %v1799 = vld [vmem:[#allocation8 + $0x208] sm:$0xff]
    %v1800 = vld [vmem:[#allocation8 + $0x210] sm:$0xff]
    %v1801 = vld [vmem:[#allocation8 + $0x218] sm:$0xff]
    %v1802 = vld [vmem:[#allocation8 + $0x220] sm:$0xff]
    %v1803 = vld [vmem:[#allocation8 + $0x228] sm:$0xff]
    %v1804 = vld [vmem:[#allocation8 + $0x230] sm:$0xff]
    %v1805 = vld [vmem:[#allocation8 + $0x238] sm:$0xff]
    %v1806 = vld [vmem:[#allocation8 + $0x240] sm:$0xff]
    %v1807 = vld [vmem:[#allocation8 + $0x248] sm:$0xff]
    %v1808 = vld [vmem:[#allocation8 + $0x250] sm:$0xff]
    %v1809 = vld [vmem:[#allocation8 + $0x258] sm:$0xff]
    %v1810 = vld [vmem:[#allocation8 + $0x260] sm:$0xff]
    %v1811 = vld [vmem:[#allocation8 + $0x268] sm:$0xff]
    %v1812 = vld [vmem:[#allocation8 + $0x270] sm:$0xff]
    %v1813 = vld [vmem:[#allocation8 + $0x278] sm:$0xff]
    %v1814 = vld [vmem:[#allocation8 + $0x280] sm:$0xff]
    %v1815 = vld [vmem:[#allocation8 + $0x288] sm:$0xff]
    %v1816 = vld [vmem:[#allocation8 + $0x290] sm:$0xff]
    %v1817 = vld [vmem:[#allocation8 + $0x298] sm:$0xff]
    %v1818 = vld [vmem:[#allocation8 + $0x2a0] sm:$0xff]
    %v1819 = vld [vmem:[#allocation8 + $0x2a8] sm:$0xff]
    %v1820 = vld [vmem:[#allocation8 + $0x2b0] sm:$0xff]
    %v1821 = vld [vmem:[#allocation8 + $0x2b8] sm:$0xff]
    %v1822 = vld [vmem:[#allocation8 + $0x2c0] sm:$0xff]
    %v1823 = vld [vmem:[#allocation8 + $0x2c8] sm:$0xff]
    %v1824 = vld [vmem:[#allocation8 + $0x2d0] sm:$0xff]
    %v1825 = vld [vmem:[#allocation8 + $0x2d8] sm:$0xff]
    %v1826 = vld [vmem:[#allocation8 + $0x2e0] sm:$0xff]
    %v1827 = vld [vmem:[#allocation8 + $0x2e8] sm:$0xff]
    %v1828 = vld [vmem:[#allocation8 + $0x2f0] sm:$0xff]
    %v1829 = vld [vmem:[#allocation8 + $0x2f8] sm:$0xff]
    %v1830 = vld [vmem:[#allocation8 + $0x300] sm:$0xff]
    %v1831 = vld [vmem:[#allocation8 + $0x308] sm:$0xff]
    %v1832 = vld [vmem:[#allocation8 + $0x310] sm:$0xff]
    %v1833 = vld [vmem:[#allocation8 + $0x318] sm:$0xff]
    %v1834 = vld [vmem:[#allocation8 + $0x320] sm:$0xff]
    %v1835 = vld [vmem:[#allocation8 + $0x328] sm:$0xff]
    %v1836 = vld [vmem:[#allocation8 + $0x330] sm:$0xff]
    %v1837 = vld [vmem:[#allocation8 + $0x338] sm:$0xff]
    %v1838 = vld [vmem:[#allocation8 + $0x340] sm:$0xff]
    %v1839 = vld [vmem:[#allocation8 + $0x348] sm:$0xff]
    %v1840 = vld [vmem:[#allocation8 + $0x350] sm:$0xff]
    %v1841 = vld [vmem:[#allocation8 + $0x358] sm:$0xff]
    %v1842 = vld [vmem:[#allocation8 + $0x360] sm:$0xff]
    %v1843 = vld [vmem:[#allocation8 + $0x368] sm:$0xff]
    %v1844 = vld [vmem:[#allocation8 + $0x370] sm:$0xff]
    %v1845 = vld [vmem:[#allocation8 + $0x378] sm:$0xff]
    %v1846 = vld [vmem:[#allocation8 + $0x380] sm:$0xff]
    %v1847 = vld [vmem:[#allocation8 + $0x388] sm:$0xff]
    %v1848 = vld [vmem:[#allocation8 + $0x390] sm:$0xff]
    %v1849 = vld [vmem:[#allocation8 + $0x398] sm:$0xff]
    %v1850 = vld [vmem:[#allocation8 + $0x3a0] sm:$0xff]
    %v1851 = vld [vmem:[#allocation8 + $0x3a8] sm:$0xff]
    %v1852 = vld [vmem:[#allocation8 + $0x3b0] sm:$0xff]
    %v1853 = vld [vmem:[#allocation8 + $0x3b8] sm:$0xff]
    %v1854 = vld [vmem:[#allocation8 + $0x3c0] sm:$0xff]
    %v1855 = vld [vmem:[#allocation8 + $0x3c8] sm:$0xff]
    %v1856 = vld [vmem:[#allocation8 + $0x3d0] sm:$0xff]
    %v1857 = vld [vmem:[#allocation8 + $0x3d8] sm:$0xff]
    %v1858 = vld [vmem:[#allocation8 + $0x3e0] sm:$0xff]
    %v1859 = vld [vmem:[#allocation8 + $0x3e8] sm:$0xff]
    %v1860 = vld [vmem:[#allocation8 + $0x3f0] sm:$0xff]
    %v1861 = vld [vmem:[#allocation8 + $0x3f8] sm:$0xff]
    %v1990 = vunpack.c.l.b16 %v1734
    %v1991 = vunpack.c.h.b16 %v1734
    %v1992 = vunpack.c.l.b16 %v1735
    %v1993 = vunpack.c.h.b16 %v1735
    %v1994 = vunpack.c.l.b16 %v1736
    %v1995 = vunpack.c.h.b16 %v1736
    %v1996 = vunpack.c.l.b16 %v1737
    %v1997 = vunpack.c.h.b16 %v1737
    %v1998 = vunpack.c.l.b16 %v1738
    %v1999 = vunpack.c.h.b16 %v1738
    %v2000 = vunpack.c.l.b16 %v1739
    %v2001 = vunpack.c.h.b16 %v1739
    %v2002 = vunpack.c.l.b16 %v1740
    %v2003 = vunpack.c.h.b16 %v1740
    %v2004 = vunpack.c.l.b16 %v1741
    %v2005 = vunpack.c.h.b16 %v1741
    %v2006 = vunpack.c.l.b16 %v1742
    %v2007 = vunpack.c.h.b16 %v1742
    %v2008 = vunpack.c.l.b16 %v1743
    %v2009 = vunpack.c.h.b16 %v1743
    %v2010 = vunpack.c.l.b16 %v1744
    %v2011 = vunpack.c.h.b16 %v1744
    %v2012 = vunpack.c.l.b16 %v1745
    %v2013 = vunpack.c.h.b16 %v1745
    %v2014 = vunpack.c.l.b16 %v1746
    %v2015 = vunpack.c.h.b16 %v1746
    %v2016 = vunpack.c.l.b16 %v1747
    %v2017 = vunpack.c.h.b16 %v1747
    %v2018 = vunpack.c.l.b16 %v1748
    %v2019 = vunpack.c.h.b16 %v1748
    %v2020 = vunpack.c.l.b16 %v1749
    %v2021 = vunpack.c.h.b16 %v1749
    %v2022 = vunpack.c.l.b16 %v1750
    %v2023 = vunpack.c.h.b16 %v1750
    %v2024 = vunpack.c.l.b16 %v1751
    %v2025 = vunpack.c.h.b16 %v1751
    %v2026 = vunpack.c.l.b16 %v1752
    %v2027 = vunpack.c.h.b16 %v1752
    %v2028 = vunpack.c.l.b16 %v1753
    %v2029 = vunpack.c.h.b16 %v1753
    %v2030 = vunpack.c.l.b16 %v1754
    %v2031 = vunpack.c.h.b16 %v1754
    %v2032 = vunpack.c.l.b16 %v1755
    %v2033 = vunpack.c.h.b16 %v1755
    %v2034 = vunpack.c.l.b16 %v1756
    %v2035 = vunpack.c.h.b16 %v1756
    %v2036 = vunpack.c.l.b16 %v1757
    %v2037 = vunpack.c.h.b16 %v1757
    %v2038 = vunpack.c.l.b16 %v1758
    %v2039 = vunpack.c.h.b16 %v1758
    %v2040 = vunpack.c.l.b16 %v1759
    %v2041 = vunpack.c.h.b16 %v1759
    %v2042 = vunpack.c.l.b16 %v1760
    %v2043 = vunpack.c.h.b16 %v1760
    %v2044 = vunpack.c.l.b16 %v1761
    %v2045 = vunpack.c.h.b16 %v1761
    %v2046 = vunpack.c.l.b16 %v1762
    %v2047 = vunpack.c.h.b16 %v1762
    %v2048 = vunpack.c.l.b16 %v1763
    %v2049 = vunpack.c.h.b16 %v1763
    %v2050 = vunpack.c.l.b16 %v1764
    %v2051 = vunpack.c.h.b16 %v1764
    %v2052 = vunpack.c.l.b16 %v1765
    %v2053 = vunpack.c.h.b16 %v1765
    %v2054 = vunpack.c.l.b16 %v1766
    %v2055 = vunpack.c.h.b16 %v1766
    %v2056 = vunpack.c.l.b16 %v1767
    %v2057 = vunpack.c.h.b16 %v1767
    %v2058 = vunpack.c.l.b16 %v1768
    %v2059 = vunpack.c.h.b16 %v1768
    %v2060 = vunpack.c.l.b16 %v1769
    %v2061 = vunpack.c.h.b16 %v1769
    %v2062 = vunpack.c.l.b16 %v1770
    %v2063 = vunpack.c.h.b16 %v1770
    %v2064 = vunpack.c.l.b16 %v1771
    %v2065 = vunpack.c.h.b16 %v1771
    %v2066 = vunpack.c.l.b16 %v1772
    %v2067 = vunpack.c.h.b16 %v1772
    %v2068 = vunpack.c.l.b16 %v1773
    %v2069 = vunpack.c.h.b16 %v1773
    %v2070 = vunpack.c.l.b16 %v1774
    %v2071 = vunpack.c.h.b16 %v1774
    %v2072 = vunpack.c.l.b16 %v1775
    %v2073 = vunpack.c.h.b16 %v1775
    %v2074 = vunpack.c.l.b16 %v1776
    %v2075 = vunpack.c.h.b16 %v1776
    %v2076 = vunpack.c.l.b16 %v1777
    %v2077 = vunpack.c.h.b16 %v1777
    %v2078 = vunpack.c.l.b16 %v1778
    %v2079 = vunpack.c.h.b16 %v1778
    %v2080 = vunpack.c.l.b16 %v1779
    %v2081 = vunpack.c.h.b16 %v1779
    %v2082 = vunpack.c.l.b16 %v1780
    %v2083 = vunpack.c.h.b16 %v1780
    %v2084 = vunpack.c.l.b16 %v1781
    %v2085 = vunpack.c.h.b16 %v1781
    %v2086 = vunpack.c.l.b16 %v1782
    %v2087 = vunpack.c.h.b16 %v1782
    %v2088 = vunpack.c.l.b16 %v1783
    %v2089 = vunpack.c.h.b16 %v1783
    %v2090 = vunpack.c.l.b16 %v1784
    %v2091 = vunpack.c.h.b16 %v1784
    %v2092 = vunpack.c.l.b16 %v1785
    %v2093 = vunpack.c.h.b16 %v1785
    %v2094 = vunpack.c.l.b16 %v1786
    %v2095 = vunpack.c.h.b16 %v1786
    %v2096 = vunpack.c.l.b16 %v1787
    %v2097 = vunpack.c.h.b16 %v1787
    %v2098 = vunpack.c.l.b16 %v1788
    %v2099 = vunpack.c.h.b16 %v1788
    %v2100 = vunpack.c.l.b16 %v1789
    %v2101 = vunpack.c.h.b16 %v1789
    %v2102 = vunpack.c.l.b16 %v1790
    %v2103 = vunpack.c.h.b16 %v1790
    %v2104 = vunpack.c.l.b16 %v1791
    %v2105 = vunpack.c.h.b16 %v1791
    %v2106 = vunpack.c.l.b16 %v1792
    %v2107 = vunpack.c.h.b16 %v1792
    %v2108 = vunpack.c.l.b16 %v1793
    %v2109 = vunpack.c.h.b16 %v1793
    %v2110 = vunpack.c.l.b16 %v1794
    %v2111 = vunpack.c.h.b16 %v1794
    %v2112 = vunpack.c.l.b16 %v1795
    %v2113 = vunpack.c.h.b16 %v1795
    %v2114 = vunpack.c.l.b16 %v1796
    %v2115 = vunpack.c.h.b16 %v1796
    %v2116 = vunpack.c.l.b16 %v1797
    %v2117 = vunpack.c.h.b16 %v1797
    %v2118 = vunpack.c.l.b16 %v1798
    %v2119 = vunpack.c.h.b16 %v1798
    %v2120 = vunpack.c.l.b16 %v1799
    %v2121 = vunpack.c.h.b16 %v1799
    %v2122 = vunpack.c.l.b16 %v1800
    %v2123 = vunpack.c.h.b16 %v1800
    %v2124 = vunpack.c.l.b16 %v1801
    %v2125 = vunpack.c.h.b16 %v1801
    %v2126 = vunpack.c.l.b16 %v1802
    %v2127 = vunpack.c.h.b16 %v1802
    %v2128 = vunpack.c.l.b16 %v1803
    %v2129 = vunpack.c.h.b16 %v1803
    %v2130 = vunpack.c.l.b16 %v1804
    %v2131 = vunpack.c.h.b16 %v1804
    %v2132 = vunpack.c.l.b16 %v1805
    %v2133 = vunpack.c.h.b16 %v1805
    %v2134 = vunpack.c.l.b16 %v1806
    %v2135 = vunpack.c.h.b16 %v1806
    %v2136 = vunpack.c.l.b16 %v1807
    %v2137 = vunpack.c.h.b16 %v1807
    %v2138 = vunpack.c.l.b16 %v1808
    %v2139 = vunpack.c.h.b16 %v1808
    %v2140 = vunpack.c.l.b16 %v1809
    %v2141 = vunpack.c.h.b16 %v1809
    %v2142 = vunpack.c.l.b16 %v1810
    %v2143 = vunpack.c.h.b16 %v1810
    %v2144 = vunpack.c.l.b16 %v1811
    %v2145 = vunpack.c.h.b16 %v1811
    %v2146 = vunpack.c.l.b16 %v1812
    %v2147 = vunpack.c.h.b16 %v1812
    %v2148 = vunpack.c.l.b16 %v1813
    %v2149 = vunpack.c.h.b16 %v1813
    %v2150 = vunpack.c.l.b16 %v1814
    %v2151 = vunpack.c.h.b16 %v1814
    %v2152 = vunpack.c.l.b16 %v1815
    %v2153 = vunpack.c.h.b16 %v1815
    %v2154 = vunpack.c.l.b16 %v1816
    %v2155 = vunpack.c.h.b16 %v1816
    %v2156 = vunpack.c.l.b16 %v1817
    %v2157 = vunpack.c.h.b16 %v1817
    %v2158 = vunpack.c.l.b16 %v1818
    %v2159 = vunpack.c.h.b16 %v1818
    %v2160 = vunpack.c.l.b16 %v1819
    %v2161 = vunpack.c.h.b16 %v1819
    %v2162 = vunpack.c.l.b16 %v1820
    %v2163 = vunpack.c.h.b16 %v1820
    %v2164 = vunpack.c.l.b16 %v1821
    %v2165 = vunpack.c.h.b16 %v1821
    %v2166 = vunpack.c.l.b16 %v1822
    %v2167 = vunpack.c.h.b16 %v1822
    %v2168 = vunpack.c.l.b16 %v1823
    %v2169 = vunpack.c.h.b16 %v1823
    %v2170 = vunpack.c.l.b16 %v1824
    %v2171 = vunpack.c.h.b16 %v1824
    %v2172 = vunpack.c.l.b16 %v1825
    %v2173 = vunpack.c.h.b16 %v1825
    %v2174 = vunpack.c.l.b16 %v1826
    %v2175 = vunpack.c.h.b16 %v1826
    %v2176 = vunpack.c.l.b16 %v1827
    %v2177 = vunpack.c.h.b16 %v1827
    %v2178 = vunpack.c.l.b16 %v1828
    %v2179 = vunpack.c.h.b16 %v1828
    %v2180 = vunpack.c.l.b16 %v1829
    %v2181 = vunpack.c.h.b16 %v1829
    %v2182 = vunpack.c.l.b16 %v1830
    %v2183 = vunpack.c.h.b16 %v1830
    %v2184 = vunpack.c.l.b16 %v1831
    %v2185 = vunpack.c.h.b16 %v1831
    %v2186 = vunpack.c.l.b16 %v1832
    %v2187 = vunpack.c.h.b16 %v1832
    %v2188 = vunpack.c.l.b16 %v1833
    %v2189 = vunpack.c.h.b16 %v1833
    %v2190 = vunpack.c.l.b16 %v1834
    %v2191 = vunpack.c.h.b16 %v1834
    %v2192 = vunpack.c.l.b16 %v1835
    %v2193 = vunpack.c.h.b16 %v1835
    %v2194 = vunpack.c.l.b16 %v1836
    %v2195 = vunpack.c.h.b16 %v1836
    %v2196 = vunpack.c.l.b16 %v1837
    %v2197 = vunpack.c.h.b16 %v1837
    %v2198 = vunpack.c.l.b16 %v1838
    %v2199 = vunpack.c.h.b16 %v1838
    %v2200 = vunpack.c.l.b16 %v1839
    %v2201 = vunpack.c.h.b16 %v1839
    %v2202 = vunpack.c.l.b16 %v1840
    %v2203 = vunpack.c.h.b16 %v1840
    %v2204 = vunpack.c.l.b16 %v1841
    %v2205 = vunpack.c.h.b16 %v1841
    %v2206 = vunpack.c.l.b16 %v1842
    %v2207 = vunpack.c.h.b16 %v1842
    %v2208 = vunpack.c.l.b16 %v1843
    %v2209 = vunpack.c.h.b16 %v1843
    %v2210 = vunpack.c.l.b16 %v1844
    %v2211 = vunpack.c.h.b16 %v1844
    %v2212 = vunpack.c.l.b16 %v1845
    %v2213 = vunpack.c.h.b16 %v1845
    %v2214 = vunpack.c.l.b16 %v1846
    %v2215 = vunpack.c.h.b16 %v1846
    %v2216 = vunpack.c.l.b16 %v1847
    %v2217 = vunpack.c.h.b16 %v1847
    %v2218 = vunpack.c.l.b16 %v1848
    %v2219 = vunpack.c.h.b16 %v1848
    %v2220 = vunpack.c.l.b16 %v1849
    %v2221 = vunpack.c.h.b16 %v1849
    %v2222 = vunpack.c.l.b16 %v1850
    %v2223 = vunpack.c.h.b16 %v1850
    %v2224 = vunpack.c.l.b16 %v1851
    %v2225 = vunpack.c.h.b16 %v1851
    %v2226 = vunpack.c.l.b16 %v1852
    %v2227 = vunpack.c.h.b16 %v1852
    %v2228 = vunpack.c.l.b16 %v1853
    %v2229 = vunpack.c.h.b16 %v1853
    %v2230 = vunpack.c.l.b16 %v1854
    %v2231 = vunpack.c.h.b16 %v1854
    %v2232 = vunpack.c.l.b16 %v1855
    %v2233 = vunpack.c.h.b16 %v1855
    %v2234 = vunpack.c.l.b16 %v1856
    %v2235 = vunpack.c.h.b16 %v1856
    %v2236 = vunpack.c.l.b16 %v1857
    %v2237 = vunpack.c.h.b16 %v1857
    %v2238 = vunpack.c.l.b16 %v1858
    %v2239 = vunpack.c.h.b16 %v1858
    %v2240 = vunpack.c.l.b16 %v1859
    %v2241 = vunpack.c.h.b16 %v1859
    %v2242 = vunpack.c.l.b16 %v1860
    %v2243 = vunpack.c.h.b16 %v1860
    %v2244 = vunpack.c.l.b16 %v1861
    %v2245 = vunpack.c.h.b16 %v1861
    %v2246 = vpack.c.b16 %v1998, %v1990
    %v2247 = vpack.c.b16 %v1999, %v1991
    %v2248 = vpack.c.b16 %v2000, %v1992
    %v2249 = vpack.c.b16 %v2001, %v1993
    %v2250 = vpack.c.b16 %v2002, %v1994
    %v2251 = vpack.c.b16 %v2003, %v1995
    %v2252 = vpack.c.b16 %v2004, %v1996
    %v2253 = vpack.c.b16 %v2005, %v1997
    %v2254 = vpack.c.b16 %v2014, %v2006
    %v2255 = vpack.c.b16 %v2015, %v2007
    %v2256 = vpack.c.b16 %v2016, %v2008
    %v2257 = vpack.c.b16 %v2017, %v2009
    %v2258 = vpack.c.b16 %v2018, %v2010
    %v2259 = vpack.c.b16 %v2019, %v2011
    %v2260 = vpack.c.b16 %v2020, %v2012
    %v2261 = vpack.c.b16 %v2021, %v2013
    %v2262 = vpack.c.b16 %v2030, %v2022
    %v2263 = vpack.c.b16 %v2031, %v2023
    %v2264 = vpack.c.b16 %v2032, %v2024
    %v2265 = vpack.c.b16 %v2033, %v2025
    %v2266 = vpack.c.b16 %v2034, %v2026
    %v2267 = vpack.c.b16 %v2035, %v2027
    %v2268 = vpack.c.b16 %v2036, %v2028
    %v2269 = vpack.c.b16 %v2037, %v2029
    %v2270 = vpack.c.b16 %v2046, %v2038
    %v2271 = vpack.c.b16 %v2047, %v2039
    %v2272 = vpack.c.b16 %v2048, %v2040
    %v2273 = vpack.c.b16 %v2049, %v2041
    %v2274 = vpack.c.b16 %v2050, %v2042
    %v2275 = vpack.c.b16 %v2051, %v2043
    %v2276 = vpack.c.b16 %v2052, %v2044
    %v2277 = vpack.c.b16 %v2053, %v2045
    %v2278 = vpack.c.b16 %v2062, %v2054
    %v2279 = vpack.c.b16 %v2063, %v2055
    %v2280 = vpack.c.b16 %v2064, %v2056
    %v2281 = vpack.c.b16 %v2065, %v2057
    %v2282 = vpack.c.b16 %v2066, %v2058
    %v2283 = vpack.c.b16 %v2067, %v2059
    %v2284 = vpack.c.b16 %v2068, %v2060
    %v2285 = vpack.c.b16 %v2069, %v2061
    %v2286 = vpack.c.b16 %v2078, %v2070
    %v2287 = vpack.c.b16 %v2079, %v2071
    %v2288 = vpack.c.b16 %v2080, %v2072
    %v2289 = vpack.c.b16 %v2081, %v2073
    %v2290 = vpack.c.b16 %v2082, %v2074
    %v2291 = vpack.c.b16 %v2083, %v2075
    %v2292 = vpack.c.b16 %v2084, %v2076
    %v2293 = vpack.c.b16 %v2085, %v2077
    %v2294 = vpack.c.b16 %v2094, %v2086
    %v2295 = vpack.c.b16 %v2095, %v2087
    %v2296 = vpack.c.b16 %v2096, %v2088
    %v2297 = vpack.c.b16 %v2097, %v2089
    %v2298 = vpack.c.b16 %v2098, %v2090
    %v2299 = vpack.c.b16 %v2099, %v2091
    %v2300 = vpack.c.b16 %v2100, %v2092
    %v2301 = vpack.c.b16 %v2101, %v2093
    %v2302 = vpack.c.b16 %v2110, %v2102
    %v2303 = vpack.c.b16 %v2111, %v2103
    %v2304 = vpack.c.b16 %v2112, %v2104
    %v2305 = vpack.c.b16 %v2113, %v2105
    %v2306 = vpack.c.b16 %v2114, %v2106
    %v2307 = vpack.c.b16 %v2115, %v2107
    %v2308 = vpack.c.b16 %v2116, %v2108
    %v2309 = vpack.c.b16 %v2117, %v2109
    %v2310 = vpack.c.b16 %v2126, %v2118
    %v2311 = vpack.c.b16 %v2127, %v2119
    %v2312 = vpack.c.b16 %v2128, %v2120
    %v2313 = vpack.c.b16 %v2129, %v2121
    %v2314 = vpack.c.b16 %v2130, %v2122
    %v2315 = vpack.c.b16 %v2131, %v2123
    %v2316 = vpack.c.b16 %v2132, %v2124
    %v2317 = vpack.c.b16 %v2133, %v2125
    %v2318 = vpack.c.b16 %v2142, %v2134
    %v2319 = vpack.c.b16 %v2143, %v2135
    %v2320 = vpack.c.b16 %v2144, %v2136
    %v2321 = vpack.c.b16 %v2145, %v2137
    %v2322 = vpack.c.b16 %v2146, %v2138
    %v2323 = vpack.c.b16 %v2147, %v2139
    %v2324 = vpack.c.b16 %v2148, %v2140
    %v2325 = vpack.c.b16 %v2149, %v2141
    %v2326 = vpack.c.b16 %v2158, %v2150
    %v2327 = vpack.c.b16 %v2159, %v2151
    %v2328 = vpack.c.b16 %v2160, %v2152
    %v2329 = vpack.c.b16 %v2161, %v2153
    %v2330 = vpack.c.b16 %v2162, %v2154
    %v2331 = vpack.c.b16 %v2163, %v2155
    %v2332 = vpack.c.b16 %v2164, %v2156
    %v2333 = vpack.c.b16 %v2165, %v2157
    %v2334 = vpack.c.b16 %v2174, %v2166
    %v2335 = vpack.c.b16 %v2175, %v2167
    %v2336 = vpack.c.b16 %v2176, %v2168
    %v2337 = vpack.c.b16 %v2177, %v2169
    %v2338 = vpack.c.b16 %v2178, %v2170
    %v2339 = vpack.c.b16 %v2179, %v2171
    %v2340 = vpack.c.b16 %v2180, %v2172
    %v2341 = vpack.c.b16 %v2181, %v2173
    %v2342 = vpack.c.b16 %v2190, %v2182
    %v2343 = vpack.c.b16 %v2191, %v2183
    %v2344 = vpack.c.b16 %v2192, %v2184
    %v2345 = vpack.c.b16 %v2193, %v2185
    %v2346 = vpack.c.b16 %v2194, %v2186
    %v2347 = vpack.c.b16 %v2195, %v2187
    %v2348 = vpack.c.b16 %v2196, %v2188
    %v2349 = vpack.c.b16 %v2197, %v2189
    %v2350 = vpack.c.b16 %v2206, %v2198
    %v2351 = vpack.c.b16 %v2207, %v2199
    %v2352 = vpack.c.b16 %v2208, %v2200
    %v2353 = vpack.c.b16 %v2209, %v2201
    %v2354 = vpack.c.b16 %v2210, %v2202
    %v2355 = vpack.c.b16 %v2211, %v2203
    %v2356 = vpack.c.b16 %v2212, %v2204
    %v2357 = vpack.c.b16 %v2213, %v2205
    %v2358 = vpack.c.b16 %v2222, %v2214
    %v2359 = vpack.c.b16 %v2223, %v2215
    %v2360 = vpack.c.b16 %v2224, %v2216
    %v2361 = vpack.c.b16 %v2225, %v2217
    %v2362 = vpack.c.b16 %v2226, %v2218
    %v2363 = vpack.c.b16 %v2227, %v2219
    %v2364 = vpack.c.b16 %v2228, %v2220
    %v2365 = vpack.c.b16 %v2229, %v2221
    %v2366 = vpack.c.b16 %v2238, %v2230
    %v2367 = vpack.c.b16 %v2239, %v2231
    %v2368 = vpack.c.b16 %v2240, %v2232
    %v2369 = vpack.c.b16 %v2241, %v2233
    %v2370 = vpack.c.b16 %v2242, %v2234
    %v2371 = vpack.c.b16 %v2243, %v2235
    %v2372 = vpack.c.b16 %v2244, %v2236
    %v2373 = vpack.c.b16 %v2245, %v2237
    %2502 = vmatprep.subr.bf16.mxu0 %v2303
    %2503 = vmatpush1.bf16.msra.mxu0 %v2302
    %2504 = vmatprep.subr.bf16.mxu0 %v2295
    %2505 = vmatpush1.bf16.msra.mxu0 %v2294
    %2506 = vmatprep.subr.bf16.mxu0 %v2287
    %2507 = vmatpush1.bf16.msra.mxu0 %v2286
    %2508 = vmatprep.subr.bf16.mxu0 %v2279
    %2509 = vmatpush1.bf16.msra.mxu0 %v2278
    %2510 = vmatprep.subr.bf16.mxu0 %v2271
    %2511 = vmatpush1.bf16.msra.mxu0 %v2270
    %2512 = vmatprep.subr.bf16.mxu0 %v2263
    %2513 = vmatpush1.bf16.msra.mxu0 %v2262
    %2514 = vmatprep.subr.bf16.mxu0 %v2255
    %2515 = vmatpush1.bf16.msra.mxu0 %v2254
    %2516 = vmatprep.subr.bf16.mxu0 %v2247
    %2517 = vmatpush1.bf16.msra.mxu0 %v2246
    %2518 = vmatprep.subr.bf16.mxu0 %v2367
    %2519 = vmatpush2.bf16.msra.mxu0 %v2366
    %2520 = vmatprep.subr.bf16.mxu0 %v2359
    %2521 = vmatpush2.bf16.msra.mxu0 %v2358
    %2522 = vmatprep.subr.bf16.mxu0 %v2351
    %2523 = vmatpush2.bf16.msra.mxu0 %v2350
    %2524 = vmatprep.subr.bf16.mxu0 %v2343
    %2525 = vmatpush2.bf16.msra.mxu0 %v2342
    %2526 = vmatprep.subr.bf16.mxu0 %v2335
    %2527 = vmatpush2.bf16.msra.mxu0 %v2334
    %2528 = vmatprep.subr.bf16.mxu0 %v2327
    %2529 = vmatpush2.bf16.msra.mxu0 %v2326
    %2530 = vmatprep.subr.bf16.mxu0 %v2319
    %2531 = vmatpush2.bf16.msra.mxu0 %v2318
    %2532 = vmatprep.subr.bf16.mxu0 %v2311
    %2533 = vmatpush2.bf16.msra.mxu0 %v2310
    %2534 = vmatprep.mubr.bf16.mxu0 %v1733
    %2535 = vmatmul.mubr.bf16.gmra.mxu0 %v1732
    %v2536 = vpop.f32.mrf.mxu0
    %v2537 = vadd.f32 0.0, %v2536
    %v2538 = vpop.f32.mrf.mxu0
    %v2539 = vadd.f32 0.0, %v2538
    %v2540 = vpop.f32.mrf.mxu0
    %v2541 = vpop.f32.mrf.mxu0
    %2542 = vdwg.mxu0
    %2543 = vmatprep.subr.bf16.mxu0 %v2305
    %2544 = vmatpush1.bf16.msra.mxu0 %v2304
    %2545 = vmatprep.subr.bf16.mxu0 %v2297
    %2546 = vmatpush1.bf16.msra.mxu0 %v2296
    %2547 = vmatprep.subr.bf16.mxu0 %v2289
    %2548 = vmatpush1.bf16.msra.mxu0 %v2288
    %2549 = vmatprep.subr.bf16.mxu0 %v2281
    %2550 = vmatpush1.bf16.msra.mxu0 %v2280
    %2551 = vmatprep.subr.bf16.mxu0 %v2273
    %2552 = vmatpush1.bf16.msra.mxu0 %v2272
    %2553 = vmatprep.subr.bf16.mxu0 %v2265
    %2554 = vmatpush1.bf16.msra.mxu0 %v2264
    %2555 = vmatprep.subr.bf16.mxu0 %v2257
    %2556 = vmatpush1.bf16.msra.mxu0 %v2256
    %2557 = vmatprep.subr.bf16.mxu0 %v2249
    %2558 = vmatpush1.bf16.msra.mxu0 %v2248
    %2559 = vmatprep.subr.bf16.mxu0 %v2369
    %2560 = vmatpush2.bf16.msra.mxu0 %v2368
    %2561 = vmatprep.subr.bf16.mxu0 %v2361
    %2562 = vmatpush2.bf16.msra.mxu0 %v2360
    %2563 = vmatprep.subr.bf16.mxu0 %v2353
    %2564 = vmatpush2.bf16.msra.mxu0 %v2352
    %2565 = vmatprep.subr.bf16.mxu0 %v2345
    %2566 = vmatpush2.bf16.msra.mxu0 %v2344
    %2567 = vmatprep.subr.bf16.mxu0 %v2337
    %2568 = vmatpush2.bf16.msra.mxu0 %v2336
    %2569 = vmatprep.subr.bf16.mxu0 %v2329
    %2570 = vmatpush2.bf16.msra.mxu0 %v2328
    %2571 = vmatprep.subr.bf16.mxu0 %v2321
    %2572 = vmatpush2.bf16.msra.mxu0 %v2320
    %2573 = vmatprep.subr.bf16.mxu0 %v2313
    %2574 = vmatpush2.bf16.msra.mxu0 %v2312
    %2575 = vmatprep.mubr.bf16.mxu0 %v1733
    %2576 = vmatmul.mubr.bf16.gmra.mxu0 %v1732
    %v2577 = vpop.f32.mrf.mxu0
    %v2578 = vadd.f32 0.0, %v2577
    %v2579 = vpop.f32.mrf.mxu0
    %v2580 = vadd.f32 0.0, %v2579
    %v2581 = vpop.f32.mrf.mxu0
    %v2582 = vpop.f32.mrf.mxu0
    %2583 = vdwg.mxu0
    %2584 = vmatprep.subr.bf16.mxu0 %v2307
    %2585 = vmatpush1.bf16.msra.mxu0 %v2306
    %2586 = vmatprep.subr.bf16.mxu0 %v2299
    %2587 = vmatpush1.bf16.msra.mxu0 %v2298
    %2588 = vmatprep.subr.bf16.mxu0 %v2291
    %2589 = vmatpush1.bf16.msra.mxu0 %v2290
    %2590 = vmatprep.subr.bf16.mxu0 %v2283
    %2591 = vmatpush1.bf16.msra.mxu0 %v2282
    %2592 = vmatprep.subr.bf16.mxu0 %v2275
    %2593 = vmatpush1.bf16.msra.mxu0 %v2274
    %2594 = vmatprep.subr.bf16.mxu0 %v2267
    %2595 = vmatpush1.bf16.msra.mxu0 %v2266
    %2596 = vmatprep.subr.bf16.mxu0 %v2259
    %2597 = vmatpush1.bf16.msra.mxu0 %v2258
    %2598 = vmatprep.subr.bf16.mxu0 %v2251
    %2599 = vmatpush1.bf16.msra.mxu0 %v2250
    %2600 = vmatprep.subr.bf16.mxu0 %v2371
    %2601 = vmatpush2.bf16.msra.mxu0 %v2370
    %2602 = vmatprep.subr.bf16.mxu0 %v2363
    %2603 = vmatpush2.bf16.msra.mxu0 %v2362
    %2604 = vmatprep.subr.bf16.mxu0 %v2355
    %2605 = vmatpush2.bf16.msra.mxu0 %v2354
    %2606 = vmatprep.subr.bf16.mxu0 %v2347
    %2607 = vmatpush2.bf16.msra.mxu0 %v2346
    %2608 = vmatprep.subr.bf16.mxu0 %v2339
    %2609 = vmatpush2.bf16.msra.mxu0 %v2338
    %2610 = vmatprep.subr.bf16.mxu0 %v2331
    %2611 = vmatpush2.bf16.msra.mxu0 %v2330
    %2612 = vmatprep.subr.bf16.mxu0 %v2323
    %2613 = vmatpush2.bf16.msra.mxu0 %v2322
    %2614 = vmatprep.subr.bf16.mxu0 %v2315
    %2615 = vmatpush2.bf16.msra.mxu0 %v2314
    %2616 = vmatprep.mubr.bf16.mxu0 %v1733
    %2617 = vmatmul.mubr.bf16.gmra.mxu0 %v1732
    %v2618 = vpop.f32.mrf.mxu0
    %v2619 = vadd.f32 0.0, %v2618
    %v2620 = vpop.f32.mrf.mxu0
    %v2621 = vadd.f32 0.0, %v2620
    %v2622 = vpop.f32.mrf.mxu0
    %v2623 = vpop.f32.mrf.mxu0
    %2624 = vdwg.mxu0
    %2625 = vmatprep.subr.bf16.mxu0 %v2309
    %2626 = vmatpush1.bf16.msra.mxu0 %v2308
    %2627 = vmatprep.subr.bf16.mxu0 %v2301
    %2628 = vmatpush1.bf16.msra.mxu0 %v2300
    %2629 = vmatprep.subr.bf16.mxu0 %v2293
    %2630 = vmatpush1.bf16.msra.mxu0 %v2292
    %2631 = vmatprep.subr.bf16.mxu0 %v2285
    %2632 = vmatpush1.bf16.msra.mxu0 %v2284
    %2633 = vmatprep.subr.bf16.mxu0 %v2277
    %2634 = vmatpush1.bf16.msra.mxu0 %v2276
    %2635 = vmatprep.subr.bf16.mxu0 %v2269
    %2636 = vmatpush1.bf16.msra.mxu0 %v2268
    %2637 = vmatprep.subr.bf16.mxu0 %v2261
    %2638 = vmatpush1.bf16.msra.mxu0 %v2260
    %2639 = vmatprep.subr.bf16.mxu0 %v2253
    %2640 = vmatpush1.bf16.msra.mxu0 %v2252
    %2641 = vmatprep.subr.bf16.mxu0 %v2373
    %2642 = vmatpush2.bf16.msra.mxu0 %v2372
    %2643 = vmatprep.subr.bf16.mxu0 %v2365
    %2644 = vmatpush2.bf16.msra.mxu0 %v2364
    %2645 = vmatprep.subr.bf16.mxu0 %v2357
    %2646 = vmatpush2.bf16.msra.mxu0 %v2356
    %2647 = vmatprep.subr.bf16.mxu0 %v2349
    %2648 = vmatpush2.bf16.msra.mxu0 %v2348
    %2649 = vmatprep.subr.bf16.mxu0 %v2341
    %2650 = vmatpush2.bf16.msra.mxu0 %v2340
    %2651 = vmatprep.subr.bf16.mxu0 %v2333
    %2652 = vmatpush2.bf16.msra.mxu0 %v2332
    %2653 = vmatprep.subr.bf16.mxu0 %v2325
    %2654 = vmatpush2.bf16.msra.mxu0 %v2324
    %2655 = vmatprep.subr.bf16.mxu0 %v2317
    %2656 = vmatpush2.bf16.msra.mxu0 %v2316
    %2657 = vmatprep.mubr.bf16.mxu0 %v1733
    %2658 = vmatmul.mubr.bf16.gmra.mxu0 %v1732
    %v2659 = vpop.f32.mrf.mxu0
    %v2660 = vadd.f32 0.0, %v2659
    %v2661 = vpop.f32.mrf.mxu0
    %v2662 = vadd.f32 0.0, %v2661
    %v2663 = vpop.f32.mrf.mxu0
    %v2664 = vpop.f32.mrf.mxu0
    %2665 = vdwg.mxu0
    %v2674 = vcombine.low %v2537, %v2539
    %v2675 = vcombine.low %v2578, %v2580
    %v2676 = vcombine.low %v2619, %v2621
    %v2677 = vcombine.low %v2660, %v2662
    %v2679 = vunpack.c.l.s4 1966171168
    %v2680 = vunpack.c.0.s8 %v2679
    %v2681 = vlaneseq
    %v2682 = vshrl.u32 %v2681, 7
    %v2683 = vsub.s32 %v2680, %v2682
    %v2684 = vrot.slane %v2674, %v2683
    %v2686 = vunpack.c.l.s4 1966171168
    %v2687 = vunpack.c.0.s8 %v2686
    %v2688 = vlaneseq
    %v2689 = vshrl.u32 %v2688, 7
    %v2690 = vsub.s32 %v2687, %v2689
    %v2691 = vrot.slane %v2675, %v2690
    %v2693 = vunpack.c.l.s4 1966171168
    %v2694 = vunpack.c.0.s8 %v2693
    %v2695 = vlaneseq
    %v2696 = vshrl.u32 %v2695, 7
    %v2697 = vsub.s32 %v2694, %v2696
    %v2698 = vrot.slane %v2676, %v2697
    %v2700 = vunpack.c.l.s4 1966171168
    %v2701 = vunpack.c.0.s8 %v2700
    %v2702 = vlaneseq
    %v2703 = vshrl.u32 %v2702, 7
    %v2704 = vsub.s32 %v2701, %v2703
    %v2705 = vrot.slane %v2677, %v2704
    %v2706 = vcombine.low %v2684, %v2691
    %v2707 = vcombine.low %v2698, %v2705
    %v2709 = vunpack.c.l.s4 1966171168
    %v2710 = vunpack.c.0.s8 %v2709
    %v2711 = vlaneseq
    %v2712 = vshrl.u32 %v2711, 7
    %v2713 = vsub.s32 %v2710, %v2712
    %v2714 = vrot.slane %v2706, %v2713
    %v2716 = vunpack.c.l.s4 1966171168
    %v2717 = vunpack.c.0.s8 %v2716
    %v2718 = vlaneseq
    %v2719 = vshrl.u32 %v2718, 7
    %v2720 = vsub.s32 %v2717, %v2719
    %v2721 = vrot.slane %v2707, %v2720
    %v2722 = vcombine.low %v2714, %v2721
    %v2724 = vadd.f32 %v1719, %v2722
    %v2725 = vxor.u32 %v2724, 2147483648
    %v2726 = vmul.f32 %v2725, 1.442695
    %v2727 = vpow.pop %v2726
    %v2728 = vadd.f32 %v2727, 1.0
    %v2729 = vrcp.pop %v2728
    %v2730 = vmul.f32 1.0, %v2729
    %v2732 = vrot.slane %v2724, 2
    %v2734 = vxor.u32 %v2732, 2147483648
    %v2735 = vmul.f32 %v2734, 1.442695
    %v2736 = vpow.pop %v2735
    %v2737 = vadd.f32 %v2736, 1.0
    %v2738 = vrcp.pop %v2737
    %v2739 = vmul.f32 1.0, %v2738
    %v2740 = vrot.slane %v2724, 4
    %v2742 = vtanh.pop %v2740
    %v2743 = vrot.slane %v2724, 6
    %v2745 = vxor.u32 %v2743, 2147483648
    %v2746 = vmul.f32 %v2745, 1.442695
    %v2747 = vpow.pop %v2746
    %v2748 = vadd.f32 %v2747, 1.0
    %v2749 = vrcp.pop %v2748
    %v2750 = vmul.f32 1.0, %v2749
    %v2751 = vld [vmem:[#allocation5] sm:$0x3]
    %v2752 = vmul.f32 %v2739, %v2751
    %v2753 = vmul.f32 %v2730, %v2742
    %v2754 = vadd.f32 %v2752, %v2753
    %v2755 = vtanh.pop %v2754
    %v2756 = vmul.f32 %v2750, %v2755
    %2757 = vst.msk [vmem:[#allocation5] sm:$0x3] %vm669, %v2754
    %2758 = vst.msk [vmem:[#allocation4] sm:$0x3] %vm669, %v2756
    %s2759 = scalar_lea.vmem [#allocation3], 1
    %2760 = vst.msk [vmem:[%s2759] ss:$8 sm:$0x3] %vm669, %v2756
    %2761 = vst.msk [vmem:[%s2759] ss:$8 sm:$0x0] %vm669, %v2756
    %s2762 = scalar_lea.vmem [#allocation2], 2
    %v2763 = vld [vmem:[%s2762] ss:$8 sm:$0xf]
    %v2764 = vld [vmem:[%s2762] ss:$8 sm:$0xf0]
    %v2765 = vor.u32 %v2763, %v2764
    %v2766 = vld [vmem:[#allocation4] sm:$0x3]
    %v2768 = vlaneseq
    %v2769 = vshrl.u32 %v2768, 7
    %v2770 = vsub.s32 0, %v2769
    %v2771 = vrot.slane %v2766, %v2770
    %v2772 = vlaneseq
    %v2773 = vshrl.u32 %v2772, 7
    %v2774 = vsub.s32 1, %v2773
    %v2775 = vrot.slane %v2766, %v2774
    %v2778 = vpack.c.bf16 %v2771, %v2771
    %v2779 = vpack.c.bf16 %v2775, %v2775
    %v2780 = vld [vmem:[#allocation8] sm:$0xff]
    %v2781 = vld [vmem:[#allocation8 + $0x8] sm:$0xff]
    %v2782 = vld [vmem:[#allocation8 + $0x10] sm:$0xff]
    %v2783 = vld [vmem:[#allocation8 + $0x18] sm:$0xff]
    %v2784 = vld [vmem:[#allocation8 + $0x20] sm:$0xff]
    %v2785 = vld [vmem:[#allocation8 + $0x28] sm:$0xff]
    %v2786 = vld [vmem:[#allocation8 + $0x30] sm:$0xff]
    %v2787 = vld [vmem:[#allocation8 + $0x38] sm:$0xff]
    %v2788 = vld [vmem:[#allocation8 + $0x40] sm:$0xff]
    %v2789 = vld [vmem:[#allocation8 + $0x48] sm:$0xff]
    %v2790 = vld [vmem:[#allocation8 + $0x50] sm:$0xff]
    %v2791 = vld [vmem:[#allocation8 + $0x58] sm:$0xff]
    %v2792 = vld [vmem:[#allocation8 + $0x60] sm:$0xff]
    %v2793 = vld [vmem:[#allocation8 + $0x68] sm:$0xff]
    %v2794 = vld [vmem:[#allocation8 + $0x70] sm:$0xff]
    %v2795 = vld [vmem:[#allocation8 + $0x78] sm:$0xff]
    %v2796 = vld [vmem:[#allocation8 + $0x80] sm:$0xff]
    %v2797 = vld [vmem:[#allocation8 + $0x88] sm:$0xff]
    %v2798 = vld [vmem:[#allocation8 + $0x90] sm:$0xff]
    %v2799 = vld [vmem:[#allocation8 + $0x98] sm:$0xff]
    %v2800 = vld [vmem:[#allocation8 + $0xa0] sm:$0xff]
    %v2801 = vld [vmem:[#allocation8 + $0xa8] sm:$0xff]
    %v2802 = vld [vmem:[#allocation8 + $0xb0] sm:$0xff]
    %v2803 = vld [vmem:[#allocation8 + $0xb8] sm:$0xff]
    %v2804 = vld [vmem:[#allocation8 + $0xc0] sm:$0xff]
    %v2805 = vld [vmem:[#allocation8 + $0xc8] sm:$0xff]
    %v2806 = vld [vmem:[#allocation8 + $0xd0] sm:$0xff]
    %v2807 = vld [vmem:[#allocation8 + $0xd8] sm:$0xff]
    %v2808 = vld [vmem:[#allocation8 + $0xe0] sm:$0xff]
    %v2809 = vld [vmem:[#allocation8 + $0xe8] sm:$0xff]
    %v2810 = vld [vmem:[#allocation8 + $0xf0] sm:$0xff]
    %v2811 = vld [vmem:[#allocation8 + $0xf8] sm:$0xff]
    %v2812 = vld [vmem:[#allocation8 + $0x100] sm:$0xff]
    %v2813 = vld [vmem:[#allocation8 + $0x108] sm:$0xff]
    %v2814 = vld [vmem:[#allocation8 + $0x110] sm:$0xff]
    %v2815 = vld [vmem:[#allocation8 + $0x118] sm:$0xff]
    %v2816 = vld [vmem:[#allocation8 + $0x120] sm:$0xff]
    %v2817 = vld [vmem:[#allocation8 + $0x128] sm:$0xff]
    %v2818 = vld [vmem:[#allocation8 + $0x130] sm:$0xff]
    %v2819 = vld [vmem:[#allocation8 + $0x138] sm:$0xff]
    %v2820 = vld [vmem:[#allocation8 + $0x140] sm:$0xff]
    %v2821 = vld [vmem:[#allocation8 + $0x148] sm:$0xff]
    %v2822 = vld [vmem:[#allocation8 + $0x150] sm:$0xff]
    %v2823 = vld [vmem:[#allocation8 + $0x158] sm:$0xff]
    %v2824 = vld [vmem:[#allocation8 + $0x160] sm:$0xff]
    %v2825 = vld [vmem:[#allocation8 + $0x168] sm:$0xff]
    %v2826 = vld [vmem:[#allocation8 + $0x170] sm:$0xff]
    %v2827 = vld [vmem:[#allocation8 + $0x178] sm:$0xff]
    %v2828 = vld [vmem:[#allocation8 + $0x180] sm:$0xff]
    %v2829 = vld [vmem:[#allocation8 + $0x188] sm:$0xff]
    %v2830 = vld [vmem:[#allocation8 + $0x190] sm:$0xff]
    %v2831 = vld [vmem:[#allocation8 + $0x198] sm:$0xff]
    %v2832 = vld [vmem:[#allocation8 + $0x1a0] sm:$0xff]
    %v2833 = vld [vmem:[#allocation8 + $0x1a8] sm:$0xff]
    %v2834 = vld [vmem:[#allocation8 + $0x1b0] sm:$0xff]
    %v2835 = vld [vmem:[#allocation8 + $0x1b8] sm:$0xff]
    %v2836 = vld [vmem:[#allocation8 + $0x1c0] sm:$0xff]
    %v2837 = vld [vmem:[#allocation8 + $0x1c8] sm:$0xff]
    %v2838 = vld [vmem:[#allocation8 + $0x1d0] sm:$0xff]
    %v2839 = vld [vmem:[#allocation8 + $0x1d8] sm:$0xff]
    %v2840 = vld [vmem:[#allocation8 + $0x1e0] sm:$0xff]
    %v2841 = vld [vmem:[#allocation8 + $0x1e8] sm:$0xff]
    %v2842 = vld [vmem:[#allocation8 + $0x1f0] sm:$0xff]
    %v2843 = vld [vmem:[#allocation8 + $0x1f8] sm:$0xff]
    %v2844 = vld [vmem:[#allocation8 + $0x200] sm:$0xff]
    %v2845 = vld [vmem:[#allocation8 + $0x208] sm:$0xff]
    %v2846 = vld [vmem:[#allocation8 + $0x210] sm:$0xff]
    %v2847 = vld [vmem:[#allocation8 + $0x218] sm:$0xff]
    %v2848 = vld [vmem:[#allocation8 + $0x220] sm:$0xff]
    %v2849 = vld [vmem:[#allocation8 + $0x228] sm:$0xff]
    %v2850 = vld [vmem:[#allocation8 + $0x230] sm:$0xff]
    %v2851 = vld [vmem:[#allocation8 + $0x238] sm:$0xff]
    %v2852 = vld [vmem:[#allocation8 + $0x240] sm:$0xff]
    %v2853 = vld [vmem:[#allocation8 + $0x248] sm:$0xff]
    %v2854 = vld [vmem:[#allocation8 + $0x250] sm:$0xff]
    %v2855 = vld [vmem:[#allocation8 + $0x258] sm:$0xff]
    %v2856 = vld [vmem:[#allocation8 + $0x260] sm:$0xff]
    %v2857 = vld [vmem:[#allocation8 + $0x268] sm:$0xff]
    %v2858 = vld [vmem:[#allocation8 + $0x270] sm:$0xff]
    %v2859 = vld [vmem:[#allocation8 + $0x278] sm:$0xff]
    %v2860 = vld [vmem:[#allocation8 + $0x280] sm:$0xff]
    %v2861 = vld [vmem:[#allocation8 + $0x288] sm:$0xff]
    %v2862 = vld [vmem:[#allocation8 + $0x290] sm:$0xff]
    %v2863 = vld [vmem:[#allocation8 + $0x298] sm:$0xff]
    %v2864 = vld [vmem:[#allocation8 + $0x2a0] sm:$0xff]
    %v2865 = vld [vmem:[#allocation8 + $0x2a8] sm:$0xff]
    %v2866 = vld [vmem:[#allocation8 + $0x2b0] sm:$0xff]
    %v2867 = vld [vmem:[#allocation8 + $0x2b8] sm:$0xff]
    %v2868 = vld [vmem:[#allocation8 + $0x2c0] sm:$0xff]
    %v2869 = vld [vmem:[#allocation8 + $0x2c8] sm:$0xff]
    %v2870 = vld [vmem:[#allocation8 + $0x2d0] sm:$0xff]
    %v2871 = vld [vmem:[#allocation8 + $0x2d8] sm:$0xff]
    %v2872 = vld [vmem:[#allocation8 + $0x2e0] sm:$0xff]
    %v2873 = vld [vmem:[#allocation8 + $0x2e8] sm:$0xff]
    %v2874 = vld [vmem:[#allocation8 + $0x2f0] sm:$0xff]
    %v2875 = vld [vmem:[#allocation8 + $0x2f8] sm:$0xff]
    %v2876 = vld [vmem:[#allocation8 + $0x300] sm:$0xff]
    %v2877 = vld [vmem:[#allocation8 + $0x308] sm:$0xff]
    %v2878 = vld [vmem:[#allocation8 + $0x310] sm:$0xff]
    %v2879 = vld [vmem:[#allocation8 + $0x318] sm:$0xff]
    %v2880 = vld [vmem:[#allocation8 + $0x320] sm:$0xff]
    %v2881 = vld [vmem:[#allocation8 + $0x328] sm:$0xff]
    %v2882 = vld [vmem:[#allocation8 + $0x330] sm:$0xff]
    %v2883 = vld [vmem:[#allocation8 + $0x338] sm:$0xff]
    %v2884 = vld [vmem:[#allocation8 + $0x340] sm:$0xff]
    %v2885 = vld [vmem:[#allocation8 + $0x348] sm:$0xff]
    %v2886 = vld [vmem:[#allocation8 + $0x350] sm:$0xff]
    %v2887 = vld [vmem:[#allocation8 + $0x358] sm:$0xff]
    %v2888 = vld [vmem:[#allocation8 + $0x360] sm:$0xff]
    %v2889 = vld [vmem:[#allocation8 + $0x368] sm:$0xff]
    %v2890 = vld [vmem:[#allocation8 + $0x370] sm:$0xff]
    %v2891 = vld [vmem:[#allocation8 + $0x378] sm:$0xff]
    %v2892 = vld [vmem:[#allocation8 + $0x380] sm:$0xff]
    %v2893 = vld [vmem:[#allocation8 + $0x388] sm:$0xff]
    %v2894 = vld [vmem:[#allocation8 + $0x390] sm:$0xff]
    %v2895 = vld [vmem:[#allocation8 + $0x398] sm:$0xff]
    %v2896 = vld [vmem:[#allocation8 + $0x3a0] sm:$0xff]
    %v2897 = vld [vmem:[#allocation8 + $0x3a8] sm:$0xff]
    %v2898 = vld [vmem:[#allocation8 + $0x3b0] sm:$0xff]
    %v2899 = vld [vmem:[#allocation8 + $0x3b8] sm:$0xff]
    %v2900 = vld [vmem:[#allocation8 + $0x3c0] sm:$0xff]
    %v2901 = vld [vmem:[#allocation8 + $0x3c8] sm:$0xff]
    %v2902 = vld [vmem:[#allocation8 + $0x3d0] sm:$0xff]
    %v2903 = vld [vmem:[#allocation8 + $0x3d8] sm:$0xff]
    %v2904 = vld [vmem:[#allocation8 + $0x3e0] sm:$0xff]
    %v2905 = vld [vmem:[#allocation8 + $0x3e8] sm:$0xff]
    %v2906 = vld [vmem:[#allocation8 + $0x3f0] sm:$0xff]
    %v2907 = vld [vmem:[#allocation8 + $0x3f8] sm:$0xff]
    %v3036 = vunpack.c.l.b16 %v2780
    %v3037 = vunpack.c.h.b16 %v2780
    %v3038 = vunpack.c.l.b16 %v2781
    %v3039 = vunpack.c.h.b16 %v2781
    %v3040 = vunpack.c.l.b16 %v2782
    %v3041 = vunpack.c.h.b16 %v2782
    %v3042 = vunpack.c.l.b16 %v2783
    %v3043 = vunpack.c.h.b16 %v2783
    %v3044 = vunpack.c.l.b16 %v2784
    %v3045 = vunpack.c.h.b16 %v2784
    %v3046 = vunpack.c.l.b16 %v2785
    %v3047 = vunpack.c.h.b16 %v2785
    %v3048 = vunpack.c.l.b16 %v2786
    %v3049 = vunpack.c.h.b16 %v2786
    %v3050 = vunpack.c.l.b16 %v2787
    %v3051 = vunpack.c.h.b16 %v2787
    %v3052 = vunpack.c.l.b16 %v2788
    %v3053 = vunpack.c.h.b16 %v2788
    %v3054 = vunpack.c.l.b16 %v2789
    %v3055 = vunpack.c.h.b16 %v2789
    %v3056 = vunpack.c.l.b16 %v2790
    %v3057 = vunpack.c.h.b16 %v2790
    %v3058 = vunpack.c.l.b16 %v2791
    %v3059 = vunpack.c.h.b16 %v2791
    %v3060 = vunpack.c.l.b16 %v2792
    %v3061 = vunpack.c.h.b16 %v2792
    %v3062 = vunpack.c.l.b16 %v2793
    %v3063 = vunpack.c.h.b16 %v2793
    %v3064 = vunpack.c.l.b16 %v2794
    %v3065 = vunpack.c.h.b16 %v2794
    %v3066 = vunpack.c.l.b16 %v2795
    %v3067 = vunpack.c.h.b16 %v2795
    %v3068 = vunpack.c.l.b16 %v2796
    %v3069 = vunpack.c.h.b16 %v2796
    %v3070 = vunpack.c.l.b16 %v2797
    %v3071 = vunpack.c.h.b16 %v2797
    %v3072 = vunpack.c.l.b16 %v2798
    %v3073 = vunpack.c.h.b16 %v2798
    %v3074 = vunpack.c.l.b16 %v2799
    %v3075 = vunpack.c.h.b16 %v2799
    %v3076 = vunpack.c.l.b16 %v2800
    %v3077 = vunpack.c.h.b16 %v2800
    %v3078 = vunpack.c.l.b16 %v2801
    %v3079 = vunpack.c.h.b16 %v2801
    %v3080 = vunpack.c.l.b16 %v2802
    %v3081 = vunpack.c.h.b16 %v2802
    %v3082 = vunpack.c.l.b16 %v2803
    %v3083 = vunpack.c.h.b16 %v2803
    %v3084 = vunpack.c.l.b16 %v2804
    %v3085 = vunpack.c.h.b16 %v2804
    %v3086 = vunpack.c.l.b16 %v2805
    %v3087 = vunpack.c.h.b16 %v2805
    %v3088 = vunpack.c.l.b16 %v2806
    %v3089 = vunpack.c.h.b16 %v2806
    %v3090 = vunpack.c.l.b16 %v2807
    %v3091 = vunpack.c.h.b16 %v2807
    %v3092 = vunpack.c.l.b16 %v2808
    %v3093 = vunpack.c.h.b16 %v2808
    %v3094 = vunpack.c.l.b16 %v2809
    %v3095 = vunpack.c.h.b16 %v2809
    %v3096 = vunpack.c.l.b16 %v2810
    %v3097 = vunpack.c.h.b16 %v2810
    %v3098 = vunpack.c.l.b16 %v2811
    %v3099 = vunpack.c.h.b16 %v2811
    %v3100 = vunpack.c.l.b16 %v2812
    %v3101 = vunpack.c.h.b16 %v2812
    %v3102 = vunpack.c.l.b16 %v2813
    %v3103 = vunpack.c.h.b16 %v2813
    %v3104 = vunpack.c.l.b16 %v2814
    %v3105 = vunpack.c.h.b16 %v2814
    %v3106 = vunpack.c.l.b16 %v2815
    %v3107 = vunpack.c.h.b16 %v2815
    %v3108 = vunpack.c.l.b16 %v2816
    %v3109 = vunpack.c.h.b16 %v2816
    %v3110 = vunpack.c.l.b16 %v2817
    %v3111 = vunpack.c.h.b16 %v2817
    %v3112 = vunpack.c.l.b16 %v2818
    %v3113 = vunpack.c.h.b16 %v2818
    %v3114 = vunpack.c.l.b16 %v2819
    %v3115 = vunpack.c.h.b16 %v2819
    %v3116 = vunpack.c.l.b16 %v2820
    %v3117 = vunpack.c.h.b16 %v2820
    %v3118 = vunpack.c.l.b16 %v2821
    %v3119 = vunpack.c.h.b16 %v2821
    %v3120 = vunpack.c.l.b16 %v2822
    %v3121 = vunpack.c.h.b16 %v2822
    %v3122 = vunpack.c.l.b16 %v2823
    %v3123 = vunpack.c.h.b16 %v2823
    %v3124 = vunpack.c.l.b16 %v2824
    %v3125 = vunpack.c.h.b16 %v2824
    %v3126 = vunpack.c.l.b16 %v2825
    %v3127 = vunpack.c.h.b16 %v2825
    %v3128 = vunpack.c.l.b16 %v2826
    %v3129 = vunpack.c.h.b16 %v2826
    %v3130 = vunpack.c.l.b16 %v2827
    %v3131 = vunpack.c.h.b16 %v2827
    %v3132 = vunpack.c.l.b16 %v2828
    %v3133 = vunpack.c.h.b16 %v2828
    %v3134 = vunpack.c.l.b16 %v2829
    %v3135 = vunpack.c.h.b16 %v2829
    %v3136 = vunpack.c.l.b16 %v2830
    %v3137 = vunpack.c.h.b16 %v2830
    %v3138 = vunpack.c.l.b16 %v2831
    %v3139 = vunpack.c.h.b16 %v2831
    %v3140 = vunpack.c.l.b16 %v2832
    %v3141 = vunpack.c.h.b16 %v2832
    %v3142 = vunpack.c.l.b16 %v2833
    %v3143 = vunpack.c.h.b16 %v2833
    %v3144 = vunpack.c.l.b16 %v2834
    %v3145 = vunpack.c.h.b16 %v2834
    %v3146 = vunpack.c.l.b16 %v2835
    %v3147 = vunpack.c.h.b16 %v2835
    %v3148 = vunpack.c.l.b16 %v2836
    %v3149 = vunpack.c.h.b16 %v2836
    %v3150 = vunpack.c.l.b16 %v2837
    %v3151 = vunpack.c.h.b16 %v2837
    %v3152 = vunpack.c.l.b16 %v2838
    %v3153 = vunpack.c.h.b16 %v2838
    %v3154 = vunpack.c.l.b16 %v2839
    %v3155 = vunpack.c.h.b16 %v2839
    %v3156 = vunpack.c.l.b16 %v2840
    %v3157 = vunpack.c.h.b16 %v2840
    %v3158 = vunpack.c.l.b16 %v2841
    %v3159 = vunpack.c.h.b16 %v2841
    %v3160 = vunpack.c.l.b16 %v2842
    %v3161 = vunpack.c.h.b16 %v2842
    %v3162 = vunpack.c.l.b16 %v2843
    %v3163 = vunpack.c.h.b16 %v2843
    %v3164 = vunpack.c.l.b16 %v2844
    %v3165 = vunpack.c.h.b16 %v2844
    %v3166 = vunpack.c.l.b16 %v2845
    %v3167 = vunpack.c.h.b16 %v2845
    %v3168 = vunpack.c.l.b16 %v2846
    %v3169 = vunpack.c.h.b16 %v2846
    %v3170 = vunpack.c.l.b16 %v2847
    %v3171 = vunpack.c.h.b16 %v2847
    %v3172 = vunpack.c.l.b16 %v2848
    %v3173 = vunpack.c.h.b16 %v2848
    %v3174 = vunpack.c.l.b16 %v2849
    %v3175 = vunpack.c.h.b16 %v2849
    %v3176 = vunpack.c.l.b16 %v2850
    %v3177 = vunpack.c.h.b16 %v2850
    %v3178 = vunpack.c.l.b16 %v2851
    %v3179 = vunpack.c.h.b16 %v2851
    %v3180 = vunpack.c.l.b16 %v2852
    %v3181 = vunpack.c.h.b16 %v2852
    %v3182 = vunpack.c.l.b16 %v2853
    %v3183 = vunpack.c.h.b16 %v2853
    %v3184 = vunpack.c.l.b16 %v2854
    %v3185 = vunpack.c.h.b16 %v2854
    %v3186 = vunpack.c.l.b16 %v2855
    %v3187 = vunpack.c.h.b16 %v2855
    %v3188 = vunpack.c.l.b16 %v2856
    %v3189 = vunpack.c.h.b16 %v2856
    %v3190 = vunpack.c.l.b16 %v2857
    %v3191 = vunpack.c.h.b16 %v2857
    %v3192 = vunpack.c.l.b16 %v2858
    %v3193 = vunpack.c.h.b16 %v2858
    %v3194 = vunpack.c.l.b16 %v2859
    %v3195 = vunpack.c.h.b16 %v2859
    %v3196 = vunpack.c.l.b16 %v2860
    %v3197 = vunpack.c.h.b16 %v2860
    %v3198 = vunpack.c.l.b16 %v2861
    %v3199 = vunpack.c.h.b16 %v2861
    %v3200 = vunpack.c.l.b16 %v2862
    %v3201 = vunpack.c.h.b16 %v2862
    %v3202 = vunpack.c.l.b16 %v2863
    %v3203 = vunpack.c.h.b16 %v2863
    %v3204 = vunpack.c.l.b16 %v2864
    %v3205 = vunpack.c.h.b16 %v2864
    %v3206 = vunpack.c.l.b16 %v2865
    %v3207 = vunpack.c.h.b16 %v2865
    %v3208 = vunpack.c.l.b16 %v2866
    %v3209 = vunpack.c.h.b16 %v2866
    %v3210 = vunpack.c.l.b16 %v2867
    %v3211 = vunpack.c.h.b16 %v2867
    %v3212 = vunpack.c.l.b16 %v2868
    %v3213 = vunpack.c.h.b16 %v2868
    %v3214 = vunpack.c.l.b16 %v2869
    %v3215 = vunpack.c.h.b16 %v2869
    %v3216 = vunpack.c.l.b16 %v2870
    %v3217 = vunpack.c.h.b16 %v2870
    %v3218 = vunpack.c.l.b16 %v2871
    %v3219 = vunpack.c.h.b16 %v2871
    %v3220 = vunpack.c.l.b16 %v2872
    %v3221 = vunpack.c.h.b16 %v2872
    %v3222 = vunpack.c.l.b16 %v2873
    %v3223 = vunpack.c.h.b16 %v2873
    %v3224 = vunpack.c.l.b16 %v2874
    %v3225 = vunpack.c.h.b16 %v2874
    %v3226 = vunpack.c.l.b16 %v2875
    %v3227 = vunpack.c.h.b16 %v2875
    %v3228 = vunpack.c.l.b16 %v2876
    %v3229 = vunpack.c.h.b16 %v2876
    %v3230 = vunpack.c.l.b16 %v2877
    %v3231 = vunpack.c.h.b16 %v2877
    %v3232 = vunpack.c.l.b16 %v2878
    %v3233 = vunpack.c.h.b16 %v2878
    %v3234 = vunpack.c.l.b16 %v2879
    %v3235 = vunpack.c.h.b16 %v2879
    %v3236 = vunpack.c.l.b16 %v2880
    %v3237 = vunpack.c.h.b16 %v2880
    %v3238 = vunpack.c.l.b16 %v2881
    %v3239 = vunpack.c.h.b16 %v2881
    %v3240 = vunpack.c.l.b16 %v2882
    %v3241 = vunpack.c.h.b16 %v2882
    %v3242 = vunpack.c.l.b16 %v2883
    %v3243 = vunpack.c.h.b16 %v2883
    %v3244 = vunpack.c.l.b16 %v2884
    %v3245 = vunpack.c.h.b16 %v2884
    %v3246 = vunpack.c.l.b16 %v2885
    %v3247 = vunpack.c.h.b16 %v2885
    %v3248 = vunpack.c.l.b16 %v2886
    %v3249 = vunpack.c.h.b16 %v2886
    %v3250 = vunpack.c.l.b16 %v2887
    %v3251 = vunpack.c.h.b16 %v2887
    %v3252 = vunpack.c.l.b16 %v2888
    %v3253 = vunpack.c.h.b16 %v2888
    %v3254 = vunpack.c.l.b16 %v2889
    %v3255 = vunpack.c.h.b16 %v2889
    %v3256 = vunpack.c.l.b16 %v2890
    %v3257 = vunpack.c.h.b16 %v2890
    %v3258 = vunpack.c.l.b16 %v2891
    %v3259 = vunpack.c.h.b16 %v2891
    %v3260 = vunpack.c.l.b16 %v2892
    %v3261 = vunpack.c.h.b16 %v2892
    %v3262 = vunpack.c.l.b16 %v2893
    %v3263 = vunpack.c.h.b16 %v2893
    %v3264 = vunpack.c.l.b16 %v2894
    %v3265 = vunpack.c.h.b16 %v2894
    %v3266 = vunpack.c.l.b16 %v2895
    %v3267 = vunpack.c.h.b16 %v2895
    %v3268 = vunpack.c.l.b16 %v2896
    %v3269 = vunpack.c.h.b16 %v2896
    %v3270 = vunpack.c.l.b16 %v2897
    %v3271 = vunpack.c.h.b16 %v2897
    %v3272 = vunpack.c.l.b16 %v2898
    %v3273 = vunpack.c.h.b16 %v2898
    %v3274 = vunpack.c.l.b16 %v2899
    %v3275 = vunpack.c.h.b16 %v2899
    %v3276 = vunpack.c.l.b16 %v2900
    %v3277 = vunpack.c.h.b16 %v2900
    %v3278 = vunpack.c.l.b16 %v2901
    %v3279 = vunpack.c.h.b16 %v2901
    %v3280 = vunpack.c.l.b16 %v2902
    %v3281 = vunpack.c.h.b16 %v2902
    %v3282 = vunpack.c.l.b16 %v2903
    %v3283 = vunpack.c.h.b16 %v2903
    %v3284 = vunpack.c.l.b16 %v2904
    %v3285 = vunpack.c.h.b16 %v2904
    %v3286 = vunpack.c.l.b16 %v2905
    %v3287 = vunpack.c.h.b16 %v2905
    %v3288 = vunpack.c.l.b16 %v2906
    %v3289 = vunpack.c.h.b16 %v2906
    %v3290 = vunpack.c.l.b16 %v2907
    %v3291 = vunpack.c.h.b16 %v2907
    %v3292 = vpack.c.b16 %v3044, %v3036
    %v3293 = vpack.c.b16 %v3045, %v3037
    %v3294 = vpack.c.b16 %v3046, %v3038
    %v3295 = vpack.c.b16 %v3047, %v3039
    %v3296 = vpack.c.b16 %v3048, %v3040
    %v3297 = vpack.c.b16 %v3049, %v3041
    %v3298 = vpack.c.b16 %v3050, %v3042
    %v3299 = vpack.c.b16 %v3051, %v3043
    %v3300 = vpack.c.b16 %v3060, %v3052
    %v3301 = vpack.c.b16 %v3061, %v3053
    %v3302 = vpack.c.b16 %v3062, %v3054
    %v3303 = vpack.c.b16 %v3063, %v3055
    %v3304 = vpack.c.b16 %v3064, %v3056
    %v3305 = vpack.c.b16 %v3065, %v3057
    %v3306 = vpack.c.b16 %v3066, %v3058
    %v3307 = vpack.c.b16 %v3067, %v3059
    %v3308 = vpack.c.b16 %v3076, %v3068
    %v3309 = vpack.c.b16 %v3077, %v3069
    %v3310 = vpack.c.b16 %v3078, %v3070
    %v3311 = vpack.c.b16 %v3079, %v3071
    %v3312 = vpack.c.b16 %v3080, %v3072
    %v3313 = vpack.c.b16 %v3081, %v3073
    %v3314 = vpack.c.b16 %v3082, %v3074
    %v3315 = vpack.c.b16 %v3083, %v3075
    %v3316 = vpack.c.b16 %v3092, %v3084
    %v3317 = vpack.c.b16 %v3093, %v3085
    %v3318 = vpack.c.b16 %v3094, %v3086
    %v3319 = vpack.c.b16 %v3095, %v3087
    %v3320 = vpack.c.b16 %v3096, %v3088
    %v3321 = vpack.c.b16 %v3097, %v3089
    %v3322 = vpack.c.b16 %v3098, %v3090
    %v3323 = vpack.c.b16 %v3099, %v3091
    %v3324 = vpack.c.b16 %v3108, %v3100
    %v3325 = vpack.c.b16 %v3109, %v3101
    %v3326 = vpack.c.b16 %v3110, %v3102
    %v3327 = vpack.c.b16 %v3111, %v3103
    %v3328 = vpack.c.b16 %v3112, %v3104
    %v3329 = vpack.c.b16 %v3113, %v3105
    %v3330 = vpack.c.b16 %v3114, %v3106
    %v3331 = vpack.c.b16 %v3115, %v3107
    %v3332 = vpack.c.b16 %v3124, %v3116
    %v3333 = vpack.c.b16 %v3125, %v3117
    %v3334 = vpack.c.b16 %v3126, %v3118
    %v3335 = vpack.c.b16 %v3127, %v3119
    %v3336 = vpack.c.b16 %v3128, %v3120
    %v3337 = vpack.c.b16 %v3129, %v3121
    %v3338 = vpack.c.b16 %v3130, %v3122
    %v3339 = vpack.c.b16 %v3131, %v3123
    %v3340 = vpack.c.b16 %v3140, %v3132
    %v3341 = vpack.c.b16 %v3141, %v3133
    %v3342 = vpack.c.b16 %v3142, %v3134
    %v3343 = vpack.c.b16 %v3143, %v3135
    %v3344 = vpack.c.b16 %v3144, %v3136
    %v3345 = vpack.c.b16 %v3145, %v3137
    %v3346 = vpack.c.b16 %v3146, %v3138
    %v3347 = vpack.c.b16 %v3147, %v3139
    %v3348 = vpack.c.b16 %v3156, %v3148
    %v3349 = vpack.c.b16 %v3157, %v3149
    %v3350 = vpack.c.b16 %v3158, %v3150
    %v3351 = vpack.c.b16 %v3159, %v3151
    %v3352 = vpack.c.b16 %v3160, %v3152
    %v3353 = vpack.c.b16 %v3161, %v3153
    %v3354 = vpack.c.b16 %v3162, %v3154
    %v3355 = vpack.c.b16 %v3163, %v3155
    %v3356 = vpack.c.b16 %v3172, %v3164
    %v3357 = vpack.c.b16 %v3173, %v3165
    %v3358 = vpack.c.b16 %v3174, %v3166
    %v3359 = vpack.c.b16 %v3175, %v3167
    %v3360 = vpack.c.b16 %v3176, %v3168
    %v3361 = vpack.c.b16 %v3177, %v3169
    %v3362 = vpack.c.b16 %v3178, %v3170
    %v3363 = vpack.c.b16 %v3179, %v3171
    %v3364 = vpack.c.b16 %v3188, %v3180
    %v3365 = vpack.c.b16 %v3189, %v3181
    %v3366 = vpack.c.b16 %v3190, %v3182
    %v3367 = vpack.c.b16 %v3191, %v3183
    %v3368 = vpack.c.b16 %v3192, %v3184
    %v3369 = vpack.c.b16 %v3193, %v3185
    %v3370 = vpack.c.b16 %v3194, %v3186
    %v3371 = vpack.c.b16 %v3195, %v3187
    %v3372 = vpack.c.b16 %v3204, %v3196
    %v3373 = vpack.c.b16 %v3205, %v3197
    %v3374 = vpack.c.b16 %v3206, %v3198
    %v3375 = vpack.c.b16 %v3207, %v3199
    %v3376 = vpack.c.b16 %v3208, %v3200
    %v3377 = vpack.c.b16 %v3209, %v3201
    %v3378 = vpack.c.b16 %v3210, %v3202
    %v3379 = vpack.c.b16 %v3211, %v3203
    %v3380 = vpack.c.b16 %v3220, %v3212
    %v3381 = vpack.c.b16 %v3221, %v3213
    %v3382 = vpack.c.b16 %v3222, %v3214
    %v3383 = vpack.c.b16 %v3223, %v3215
    %v3384 = vpack.c.b16 %v3224, %v3216
    %v3385 = vpack.c.b16 %v3225, %v3217
    %v3386 = vpack.c.b16 %v3226, %v3218
    %v3387 = vpack.c.b16 %v3227, %v3219
    %v3388 = vpack.c.b16 %v3236, %v3228
    %v3389 = vpack.c.b16 %v3237, %v3229
    %v3390 = vpack.c.b16 %v3238, %v3230
    %v3391 = vpack.c.b16 %v3239, %v3231
    %v3392 = vpack.c.b16 %v3240, %v3232
    %v3393 = vpack.c.b16 %v3241, %v3233
    %v3394 = vpack.c.b16 %v3242, %v3234
    %v3395 = vpack.c.b16 %v3243, %v3235
    %v3396 = vpack.c.b16 %v3252, %v3244
    %v3397 = vpack.c.b16 %v3253, %v3245
    %v3398 = vpack.c.b16 %v3254, %v3246
    %v3399 = vpack.c.b16 %v3255, %v3247
    %v3400 = vpack.c.b16 %v3256, %v3248
    %v3401 = vpack.c.b16 %v3257, %v3249
    %v3402 = vpack.c.b16 %v3258, %v3250
    %v3403 = vpack.c.b16 %v3259, %v3251
    %v3404 = vpack.c.b16 %v3268, %v3260
    %v3405 = vpack.c.b16 %v3269, %v3261
    %v3406 = vpack.c.b16 %v3270, %v3262
    %v3407 = vpack.c.b16 %v3271, %v3263
    %v3408 = vpack.c.b16 %v3272, %v3264
    %v3409 = vpack.c.b16 %v3273, %v3265
    %v3410 = vpack.c.b16 %v3274, %v3266
    %v3411 = vpack.c.b16 %v3275, %v3267
    %v3412 = vpack.c.b16 %v3284, %v3276
    %v3413 = vpack.c.b16 %v3285, %v3277
    %v3414 = vpack.c.b16 %v3286, %v3278
    %v3415 = vpack.c.b16 %v3287, %v3279
    %v3416 = vpack.c.b16 %v3288, %v3280
    %v3417 = vpack.c.b16 %v3289, %v3281
    %v3418 = vpack.c.b16 %v3290, %v3282
    %v3419 = vpack.c.b16 %v3291, %v3283
    %3548 = vmatprep.subr.bf16.mxu0 %v3349
    %3549 = vmatpush1.bf16.msra.mxu0 %v3348
    %3550 = vmatprep.subr.bf16.mxu0 %v3341
    %3551 = vmatpush1.bf16.msra.mxu0 %v3340
    %3552 = vmatprep.subr.bf16.mxu0 %v3333
    %3553 = vmatpush1.bf16.msra.mxu0 %v3332
    %3554 = vmatprep.subr.bf16.mxu0 %v3325
    %3555 = vmatpush1.bf16.msra.mxu0 %v3324
    %3556 = vmatprep.subr.bf16.mxu0 %v3317
    %3557 = vmatpush1.bf16.msra.mxu0 %v3316
    %3558 = vmatprep.subr.bf16.mxu0 %v3309
    %3559 = vmatpush1.bf16.msra.mxu0 %v3308
    %3560 = vmatprep.subr.bf16.mxu0 %v3301
    %3561 = vmatpush1.bf16.msra.mxu0 %v3300
    %3562 = vmatprep.subr.bf16.mxu0 %v3293
    %3563 = vmatpush1.bf16.msra.mxu0 %v3292
    %3564 = vmatprep.subr.bf16.mxu0 %v3413
    %3565 = vmatpush2.bf16.msra.mxu0 %v3412
    %3566 = vmatprep.subr.bf16.mxu0 %v3405
    %3567 = vmatpush2.bf16.msra.mxu0 %v3404
    %3568 = vmatprep.subr.bf16.mxu0 %v3397
    %3569 = vmatpush2.bf16.msra.mxu0 %v3396
    %3570 = vmatprep.subr.bf16.mxu0 %v3389
    %3571 = vmatpush2.bf16.msra.mxu0 %v3388
    %3572 = vmatprep.subr.bf16.mxu0 %v3381
    %3573 = vmatpush2.bf16.msra.mxu0 %v3380
    %3574 = vmatprep.subr.bf16.mxu0 %v3373
    %3575 = vmatpush2.bf16.msra.mxu0 %v3372
    %3576 = vmatprep.subr.bf16.mxu0 %v3365
    %3577 = vmatpush2.bf16.msra.mxu0 %v3364
    %3578 = vmatprep.subr.bf16.mxu0 %v3357
    %3579 = vmatpush2.bf16.msra.mxu0 %v3356
    %3580 = vmatprep.mubr.bf16.mxu0 %v2779
    %3581 = vmatmul.mubr.bf16.gmra.mxu0 %v2778
    %v3582 = vpop.f32.mrf.mxu0
    %v3583 = vadd.f32 0.0, %v3582
    %v3584 = vpop.f32.mrf.mxu0
    %v3585 = vadd.f32 0.0, %v3584
    %v3586 = vpop.f32.mrf.mxu0
    %v3587 = vpop.f32.mrf.mxu0
    %3588 = vdwg.mxu0
    %3589 = vmatprep.subr.bf16.mxu0 %v3351
    %3590 = vmatpush1.bf16.msra.mxu0 %v3350
    %3591 = vmatprep.subr.bf16.mxu0 %v3343
    %3592 = vmatpush1.bf16.msra.mxu0 %v3342
    %3593 = vmatprep.subr.bf16.mxu0 %v3335
    %3594 = vmatpush1.bf16.msra.mxu0 %v3334
    %3595 = vmatprep.subr.bf16.mxu0 %v3327
    %3596 = vmatpush1.bf16.msra.mxu0 %v3326
    %3597 = vmatprep.subr.bf16.mxu0 %v3319
    %3598 = vmatpush1.bf16.msra.mxu0 %v3318
    %3599 = vmatprep.subr.bf16.mxu0 %v3311
    %3600 = vmatpush1.bf16.msra.mxu0 %v3310
    %3601 = vmatprep.subr.bf16.mxu0 %v3303
    %3602 = vmatpush1.bf16.msra.mxu0 %v3302
    %3603 = vmatprep.subr.bf16.mxu0 %v3295
    %3604 = vmatpush1.bf16.msra.mxu0 %v3294
    %3605 = vmatprep.subr.bf16.mxu0 %v3415
    %3606 = vmatpush2.bf16.msra.mxu0 %v3414
    %3607 = vmatprep.subr.bf16.mxu0 %v3407
    %3608 = vmatpush2.bf16.msra.mxu0 %v3406
    %3609 = vmatprep.subr.bf16.mxu0 %v3399
    %3610 = vmatpush2.bf16.msra.mxu0 %v3398
    %3611 = vmatprep.subr.bf16.mxu0 %v3391
    %3612 = vmatpush2.bf16.msra.mxu0 %v3390
    %3613 = vmatprep.subr.bf16.mxu0 %v3383
    %3614 = vmatpush2.bf16.msra.mxu0 %v3382
    %3615 = vmatprep.subr.bf16.mxu0 %v3375
    %3616 = vmatpush2.bf16.msra.mxu0 %v3374
    %3617 = vmatprep.subr.bf16.mxu0 %v3367
    %3618 = vmatpush2.bf16.msra.mxu0 %v3366
    %3619 = vmatprep.subr.bf16.mxu0 %v3359
    %3620 = vmatpush2.bf16.msra.mxu0 %v3358
    %3621 = vmatprep.mubr.bf16.mxu0 %v2779
    %3622 = vmatmul.mubr.bf16.gmra.mxu0 %v2778
    %v3623 = vpop.f32.mrf.mxu0
    %v3624 = vadd.f32 0.0, %v3623
    %v3625 = vpop.f32.mrf.mxu0
    %v3626 = vadd.f32 0.0, %v3625
    %v3627 = vpop.f32.mrf.mxu0
    %v3628 = vpop.f32.mrf.mxu0
    %3629 = vdwg.mxu0
    %3630 = vmatprep.subr.bf16.mxu0 %v3353
    %3631 = vmatpush1.bf16.msra.mxu0 %v3352
    %3632 = vmatprep.subr.bf16.mxu0 %v3345
    %3633 = vmatpush1.bf16.msra.mxu0 %v3344
    %3634 = vmatprep.subr.bf16.mxu0 %v3337
    %3635 = vmatpush1.bf16.msra.mxu0 %v3336
    %3636 = vmatprep.subr.bf16.mxu0 %v3329
    %3637 = vmatpush1.bf16.msra.mxu0 %v3328
    %3638 = vmatprep.subr.bf16.mxu0 %v3321
    %3639 = vmatpush1.bf16.msra.mxu0 %v3320
    %3640 = vmatprep.subr.bf16.mxu0 %v3313
    %3641 = vmatpush1.bf16.msra.mxu0 %v3312
    %3642 = vmatprep.subr.bf16.mxu0 %v3305
    %3643 = vmatpush1.bf16.msra.mxu0 %v3304
    %3644 = vmatprep.subr.bf16.mxu0 %v3297
    %3645 = vmatpush1.bf16.msra.mxu0 %v3296
    %3646 = vmatprep.subr.bf16.mxu0 %v3417
    %3647 = vmatpush2.bf16.msra.mxu0 %v3416
    %3648 = vmatprep.subr.bf16.mxu0 %v3409
    %3649 = vmatpush2.bf16.msra.mxu0 %v3408
    %3650 = vmatprep.subr.bf16.mxu0 %v3401
    %3651 = vmatpush2.bf16.msra.mxu0 %v3400
    %3652 = vmatprep.subr.bf16.mxu0 %v3393
    %3653 = vmatpush2.bf16.msra.mxu0 %v3392
    %3654 = vmatprep.subr.bf16.mxu0 %v3385
    %3655 = vmatpush2.bf16.msra.mxu0 %v3384
    %3656 = vmatprep.subr.bf16.mxu0 %v3377
    %3657 = vmatpush2.bf16.msra.mxu0 %v3376
    %3658 = vmatprep.subr.bf16.mxu0 %v3369
    %3659 = vmatpush2.bf16.msra.mxu0 %v3368
    %3660 = vmatprep.subr.bf16.mxu0 %v3361
    %3661 = vmatpush2.bf16.msra.mxu0 %v3360
    %3662 = vmatprep.mubr.bf16.mxu0 %v2779
    %3663 = vmatmul.mubr.bf16.gmra.mxu0 %v2778
    %v3664 = vpop.f32.mrf.mxu0
    %v3665 = vadd.f32 0.0, %v3664
    %v3666 = vpop.f32.mrf.mxu0
    %v3667 = vadd.f32 0.0, %v3666
    %v3668 = vpop.f32.mrf.mxu0
    %v3669 = vpop.f32.mrf.mxu0
    %3670 = vdwg.mxu0
    %3671 = vmatprep.subr.bf16.mxu0 %v3355
    %3672 = vmatpush1.bf16.msra.mxu0 %v3354
    %3673 = vmatprep.subr.bf16.mxu0 %v3347
    %3674 = vmatpush1.bf16.msra.mxu0 %v3346
    %3675 = vmatprep.subr.bf16.mxu0 %v3339
    %3676 = vmatpush1.bf16.msra.mxu0 %v3338
    %3677 = vmatprep.subr.bf16.mxu0 %v3331
    %3678 = vmatpush1.bf16.msra.mxu0 %v3330
    %3679 = vmatprep.subr.bf16.mxu0 %v3323
    %3680 = vmatpush1.bf16.msra.mxu0 %v3322
    %3681 = vmatprep.subr.bf16.mxu0 %v3315
    %3682 = vmatpush1.bf16.msra.mxu0 %v3314
    %3683 = vmatprep.subr.bf16.mxu0 %v3307
    %3684 = vmatpush1.bf16.msra.mxu0 %v3306
    %3685 = vmatprep.subr.bf16.mxu0 %v3299
    %3686 = vmatpush1.bf16.msra.mxu0 %v3298
    %3687 = vmatprep.subr.bf16.mxu0 %v3419
    %3688 = vmatpush2.bf16.msra.mxu0 %v3418
    %3689 = vmatprep.subr.bf16.mxu0 %v3411
    %3690 = vmatpush2.bf16.msra.mxu0 %v3410
    %3691 = vmatprep.subr.bf16.mxu0 %v3403
    %3692 = vmatpush2.bf16.msra.mxu0 %v3402
    %3693 = vmatprep.subr.bf16.mxu0 %v3395
    %3694 = vmatpush2.bf16.msra.mxu0 %v3394
    %3695 = vmatprep.subr.bf16.mxu0 %v3387
    %3696 = vmatpush2.bf16.msra.mxu0 %v3386
    %3697 = vmatprep.subr.bf16.mxu0 %v3379
    %3698 = vmatpush2.bf16.msra.mxu0 %v3378
    %3699 = vmatprep.subr.bf16.mxu0 %v3371
    %3700 = vmatpush2.bf16.msra.mxu0 %v3370
    %3701 = vmatprep.subr.bf16.mxu0 %v3363
    %3702 = vmatpush2.bf16.msra.mxu0 %v3362
    %3703 = vmatprep.mubr.bf16.mxu0 %v2779
    %3704 = vmatmul.mubr.bf16.gmra.mxu0 %v2778
    %v3705 = vpop.f32.mrf.mxu0
    %v3706 = vadd.f32 0.0, %v3705
    %v3707 = vpop.f32.mrf.mxu0
    %v3708 = vadd.f32 0.0, %v3707
    %v3709 = vpop.f32.mrf.mxu0
    %v3710 = vpop.f32.mrf.mxu0
    %3711 = vdwg.mxu0
    %v3720 = vcombine.low %v3583, %v3585
    %v3721 = vcombine.low %v3624, %v3626
    %v3722 = vcombine.low %v3665, %v3667
    %v3723 = vcombine.low %v3706, %v3708
    %v3725 = vunpack.c.l.s4 1966171168
    %v3726 = vunpack.c.0.s8 %v3725
    %v3727 = vlaneseq
    %v3728 = vshrl.u32 %v3727, 7
    %v3729 = vsub.s32 %v3726, %v3728
    %v3730 = vrot.slane %v3720, %v3729
    %v3732 = vunpack.c.l.s4 1966171168
    %v3733 = vunpack.c.0.s8 %v3732
    %v3734 = vlaneseq
    %v3735 = vshrl.u32 %v3734, 7
    %v3736 = vsub.s32 %v3733, %v3735
    %v3737 = vrot.slane %v3721, %v3736
    %v3739 = vunpack.c.l.s4 1966171168
    %v3740 = vunpack.c.0.s8 %v3739
    %v3741 = vlaneseq
    %v3742 = vshrl.u32 %v3741, 7
    %v3743 = vsub.s32 %v3740, %v3742
    %v3744 = vrot.slane %v3722, %v3743
    %v3746 = vunpack.c.l.s4 1966171168
    %v3747 = vunpack.c.0.s8 %v3746
    %v3748 = vlaneseq
    %v3749 = vshrl.u32 %v3748, 7
    %v3750 = vsub.s32 %v3747, %v3749
    %v3751 = vrot.slane %v3723, %v3750
    %v3752 = vcombine.low %v3730, %v3737
    %v3753 = vcombine.low %v3744, %v3751
    %v3755 = vunpack.c.l.s4 1966171168
    %v3756 = vunpack.c.0.s8 %v3755
    %v3757 = vlaneseq
    %v3758 = vshrl.u32 %v3757, 7
    %v3759 = vsub.s32 %v3756, %v3758
    %v3760 = vrot.slane %v3752, %v3759
    %v3762 = vunpack.c.l.s4 1966171168
    %v3763 = vunpack.c.0.s8 %v3762
    %v3764 = vlaneseq
    %v3765 = vshrl.u32 %v3764, 7
    %v3766 = vsub.s32 %v3763, %v3765
    %v3767 = vrot.slane %v3753, %v3766
    %v3768 = vcombine.low %v3760, %v3767
    %v3770 = vadd.f32 %v2765, %v3768
    %v3771 = vxor.u32 %v3770, 2147483648
    %v3772 = vmul.f32 %v3771, 1.442695
    %v3773 = vpow.pop %v3772
    %v3774 = vadd.f32 %v3773, 1.0
    %v3775 = vrcp.pop %v3774
    %v3776 = vmul.f32 1.0, %v3775
    %v3778 = vrot.slane %v3770, 2
    %v3780 = vxor.u32 %v3778, 2147483648
    %v3781 = vmul.f32 %v3780, 1.442695
    %v3782 = vpow.pop %v3781
    %v3783 = vadd.f32 %v3782, 1.0
    %v3784 = vrcp.pop %v3783
    %v3785 = vmul.f32 1.0, %v3784
    %v3786 = vrot.slane %v3770, 4
    %v3788 = vtanh.pop %v3786
    %v3789 = vrot.slane %v3770, 6
    %v3791 = vxor.u32 %v3789, 2147483648
    %v3792 = vmul.f32 %v3791, 1.442695
    %v3793 = vpow.pop %v3792
    %v3794 = vadd.f32 %v3793, 1.0
    %v3795 = vrcp.pop %v3794
    %v3796 = vmul.f32 1.0, %v3795
    %v3797 = vld [vmem:[#allocation5] sm:$0x3]
    %v3798 = vmul.f32 %v3785, %v3797
    %v3799 = vmul.f32 %v3776, %v3788
    %v3800 = vadd.f32 %v3798, %v3799
    %v3801 = vtanh.pop %v3800
    %v3802 = vmul.f32 %v3796, %v3801
    %3803 = vst.msk [vmem:[#allocation5] sm:$0x3] %vm669, %v3800
    %3804 = vst.msk [vmem:[#allocation4] sm:$0x3] %vm669, %v3802
    %s3805 = scalar_lea.vmem [#allocation3], 2
    %3806 = vst.msk [vmem:[%s3805] ss:$8 sm:$0x3] %vm669, %v3802
    %3807 = vst.msk [vmem:[%s3805] ss:$8 sm:$0x0] %vm669, %v3802
    %s3808 = scalar_lea.vmem [#allocation2], 3
    %v3809 = vld [vmem:[%s3808] ss:$8 sm:$0xf]
    %v3810 = vld [vmem:[%s3808] ss:$8 sm:$0xf0]
    %v3811 = vor.u32 %v3809, %v3810
    %v3812 = vld [vmem:[#allocation4] sm:$0x3]
    %v3814 = vlaneseq
    %v3815 = vshrl.u32 %v3814, 7
    %v3816 = vsub.s32 0, %v3815
    %v3817 = vrot.slane %v3812, %v3816
    %v3818 = vlaneseq
    %v3819 = vshrl.u32 %v3818, 7
    %v3820 = vsub.s32 1, %v3819
    %v3821 = vrot.slane %v3812, %v3820
    %v3824 = vpack.c.bf16 %v3817, %v3817
    %v3825 = vpack.c.bf16 %v3821, %v3821
    %v3826 = vld [vmem:[#allocation8] sm:$0xff]
    %v3827 = vld [vmem:[#allocation8 + $0x8] sm:$0xff]
    %v3828 = vld [vmem:[#allocation8 + $0x10] sm:$0xff]
    %v3829 = vld [vmem:[#allocation8 + $0x18] sm:$0xff]
    %v3830 = vld [vmem:[#allocation8 + $0x20] sm:$0xff]
    %v3831 = vld [vmem:[#allocation8 + $0x28] sm:$0xff]
    %v3832 = vld [vmem:[#allocation8 + $0x30] sm:$0xff]
    %v3833 = vld [vmem:[#allocation8 + $0x38] sm:$0xff]
    %v3834 = vld [vmem:[#allocation8 + $0x40] sm:$0xff]
    %v3835 = vld [vmem:[#allocation8 + $0x48] sm:$0xff]
    %v3836 = vld [vmem:[#allocation8 + $0x50] sm:$0xff]
    %v3837 = vld [vmem:[#allocation8 + $0x58] sm:$0xff]
    %v3838 = vld [vmem:[#allocation8 + $0x60] sm:$0xff]
    %v3839 = vld [vmem:[#allocation8 + $0x68] sm:$0xff]
    %v3840 = vld [vmem:[#allocation8 + $0x70] sm:$0xff]
    %v3841 = vld [vmem:[#allocation8 + $0x78] sm:$0xff]
    %v3842 = vld [vmem:[#allocation8 + $0x80] sm:$0xff]
    %v3843 = vld [vmem:[#allocation8 + $0x88] sm:$0xff]
    %v3844 = vld [vmem:[#allocation8 + $0x90] sm:$0xff]
    %v3845 = vld [vmem:[#allocation8 + $0x98] sm:$0xff]
    %v3846 = vld [vmem:[#allocation8 + $0xa0] sm:$0xff]
    %v3847 = vld [vmem:[#allocation8 + $0xa8] sm:$0xff]
    %v3848 = vld [vmem:[#allocation8 + $0xb0] sm:$0xff]
    %v3849 = vld [vmem:[#allocation8 + $0xb8] sm:$0xff]
    %v3850 = vld [vmem:[#allocation8 + $0xc0] sm:$0xff]
    %v3851 = vld [vmem:[#allocation8 + $0xc8] sm:$0xff]
    %v3852 = vld [vmem:[#allocation8 + $0xd0] sm:$0xff]
    %v3853 = vld [vmem:[#allocation8 + $0xd8] sm:$0xff]
    %v3854 = vld [vmem:[#allocation8 + $0xe0] sm:$0xff]
    %v3855 = vld [vmem:[#allocation8 + $0xe8] sm:$0xff]
    %v3856 = vld [vmem:[#allocation8 + $0xf0] sm:$0xff]
    %v3857 = vld [vmem:[#allocation8 + $0xf8] sm:$0xff]
    %v3858 = vld [vmem:[#allocation8 + $0x100] sm:$0xff]
    %v3859 = vld [vmem:[#allocation8 + $0x108] sm:$0xff]
    %v3860 = vld [vmem:[#allocation8 + $0x110] sm:$0xff]
    %v3861 = vld [vmem:[#allocation8 + $0x118] sm:$0xff]
    %v3862 = vld [vmem:[#allocation8 + $0x120] sm:$0xff]
    %v3863 = vld [vmem:[#allocation8 + $0x128] sm:$0xff]
    %v3864 = vld [vmem:[#allocation8 + $0x130] sm:$0xff]
    %v3865 = vld [vmem:[#allocation8 + $0x138] sm:$0xff]
    %v3866 = vld [vmem:[#allocation8 + $0x140] sm:$0xff]
    %v3867 = vld [vmem:[#allocation8 + $0x148] sm:$0xff]
    %v3868 = vld [vmem:[#allocation8 + $0x150] sm:$0xff]
    %v3869 = vld [vmem:[#allocation8 + $0x158] sm:$0xff]
    %v3870 = vld [vmem:[#allocation8 + $0x160] sm:$0xff]
    %v3871 = vld [vmem:[#allocation8 + $0x168] sm:$0xff]
    %v3872 = vld [vmem:[#allocation8 + $0x170] sm:$0xff]
    %v3873 = vld [vmem:[#allocation8 + $0x178] sm:$0xff]
    %v3874 = vld [vmem:[#allocation8 + $0x180] sm:$0xff]
    %v3875 = vld [vmem:[#allocation8 + $0x188] sm:$0xff]
    %v3876 = vld [vmem:[#allocation8 + $0x190] sm:$0xff]
    %v3877 = vld [vmem:[#allocation8 + $0x198] sm:$0xff]
    %v3878 = vld [vmem:[#allocation8 + $0x1a0] sm:$0xff]
    %v3879 = vld [vmem:[#allocation8 + $0x1a8] sm:$0xff]
    %v3880 = vld [vmem:[#allocation8 + $0x1b0] sm:$0xff]
    %v3881 = vld [vmem:[#allocation8 + $0x1b8] sm:$0xff]
    %v3882 = vld [vmem:[#allocation8 + $0x1c0] sm:$0xff]
    %v3883 = vld [vmem:[#allocation8 + $0x1c8] sm:$0xff]
    %v3884 = vld [vmem:[#allocation8 + $0x1d0] sm:$0xff]
    %v3885 = vld [vmem:[#allocation8 + $0x1d8] sm:$0xff]
    %v3886 = vld [vmem:[#allocation8 + $0x1e0] sm:$0xff]
    %v3887 = vld [vmem:[#allocation8 + $0x1e8] sm:$0xff]
    %v3888 = vld [vmem:[#allocation8 + $0x1f0] sm:$0xff]
    %v3889 = vld [vmem:[#allocation8 + $0x1f8] sm:$0xff]
    %v3890 = vld [vmem:[#allocation8 + $0x200] sm:$0xff]
    %v3891 = vld [vmem:[#allocation8 + $0x208] sm:$0xff]
    %v3892 = vld [vmem:[#allocation8 + $0x210] sm:$0xff]
    %v3893 = vld [vmem:[#allocation8 + $0x218] sm:$0xff]
    %v3894 = vld [vmem:[#allocation8 + $0x220] sm:$0xff]
    %v3895 = vld [vmem:[#allocation8 + $0x228] sm:$0xff]
    %v3896 = vld [vmem:[#allocation8 + $0x230] sm:$0xff]
    %v3897 = vld [vmem:[#allocation8 + $0x238] sm:$0xff]
    %v3898 = vld [vmem:[#allocation8 + $0x240] sm:$0xff]
    %v3899 = vld [vmem:[#allocation8 + $0x248] sm:$0xff]
    %v3900 = vld [vmem:[#allocation8 + $0x250] sm:$0xff]
    %v3901 = vld [vmem:[#allocation8 + $0x258] sm:$0xff]
    %v3902 = vld [vmem:[#allocation8 + $0x260] sm:$0xff]
    %v3903 = vld [vmem:[#allocation8 + $0x268] sm:$0xff]
    %v3904 = vld [vmem:[#allocation8 + $0x270] sm:$0xff]
    %v3905 = vld [vmem:[#allocation8 + $0x278] sm:$0xff]
    %v3906 = vld [vmem:[#allocation8 + $0x280] sm:$0xff]
    %v3907 = vld [vmem:[#allocation8 + $0x288] sm:$0xff]
    %v3908 = vld [vmem:[#allocation8 + $0x290] sm:$0xff]
    %v3909 = vld [vmem:[#allocation8 + $0x298] sm:$0xff]
    %v3910 = vld [vmem:[#allocation8 + $0x2a0] sm:$0xff]
    %v3911 = vld [vmem:[#allocation8 + $0x2a8] sm:$0xff]
    %v3912 = vld [vmem:[#allocation8 + $0x2b0] sm:$0xff]
    %v3913 = vld [vmem:[#allocation8 + $0x2b8] sm:$0xff]
    %v3914 = vld [vmem:[#allocation8 + $0x2c0] sm:$0xff]
    %v3915 = vld [vmem:[#allocation8 + $0x2c8] sm:$0xff]
    %v3916 = vld [vmem:[#allocation8 + $0x2d0] sm:$0xff]
    %v3917 = vld [vmem:[#allocation8 + $0x2d8] sm:$0xff]
    %v3918 = vld [vmem:[#allocation8 + $0x2e0] sm:$0xff]
    %v3919 = vld [vmem:[#allocation8 + $0x2e8] sm:$0xff]
    %v3920 = vld [vmem:[#allocation8 + $0x2f0] sm:$0xff]
    %v3921 = vld [vmem:[#allocation8 + $0x2f8] sm:$0xff]
    %v3922 = vld [vmem:[#allocation8 + $0x300] sm:$0xff]
    %v3923 = vld [vmem:[#allocation8 + $0x308] sm:$0xff]
    %v3924 = vld [vmem:[#allocation8 + $0x310] sm:$0xff]
    %v3925 = vld [vmem:[#allocation8 + $0x318] sm:$0xff]
    %v3926 = vld [vmem:[#allocation8 + $0x320] sm:$0xff]
    %v3927 = vld [vmem:[#allocation8 + $0x328] sm:$0xff]
    %v3928 = vld [vmem:[#allocation8 + $0x330] sm:$0xff]
    %v3929 = vld [vmem:[#allocation8 + $0x338] sm:$0xff]
    %v3930 = vld [vmem:[#allocation8 + $0x340] sm:$0xff]
    %v3931 = vld [vmem:[#allocation8 + $0x348] sm:$0xff]
    %v3932 = vld [vmem:[#allocation8 + $0x350] sm:$0xff]
    %v3933 = vld [vmem:[#allocation8 + $0x358] sm:$0xff]
    %v3934 = vld [vmem:[#allocation8 + $0x360] sm:$0xff]
    %v3935 = vld [vmem:[#allocation8 + $0x368] sm:$0xff]
    %v3936 = vld [vmem:[#allocation8 + $0x370] sm:$0xff]
    %v3937 = vld [vmem:[#allocation8 + $0x378] sm:$0xff]
    %v3938 = vld [vmem:[#allocation8 + $0x380] sm:$0xff]
    %v3939 = vld [vmem:[#allocation8 + $0x388] sm:$0xff]
    %v3940 = vld [vmem:[#allocation8 + $0x390] sm:$0xff]
    %v3941 = vld [vmem:[#allocation8 + $0x398] sm:$0xff]
    %v3942 = vld [vmem:[#allocation8 + $0x3a0] sm:$0xff]
    %v3943 = vld [vmem:[#allocation8 + $0x3a8] sm:$0xff]
    %v3944 = vld [vmem:[#allocation8 + $0x3b0] sm:$0xff]
    %v3945 = vld [vmem:[#allocation8 + $0x3b8] sm:$0xff]
    %v3946 = vld [vmem:[#allocation8 + $0x3c0] sm:$0xff]
    %v3947 = vld [vmem:[#allocation8 + $0x3c8] sm:$0xff]
    %v3948 = vld [vmem:[#allocation8 + $0x3d0] sm:$0xff]
    %v3949 = vld [vmem:[#allocation8 + $0x3d8] sm:$0xff]
    %v3950 = vld [vmem:[#allocation8 + $0x3e0] sm:$0xff]
    %v3951 = vld [vmem:[#allocation8 + $0x3e8] sm:$0xff]
    %v3952 = vld [vmem:[#allocation8 + $0x3f0] sm:$0xff]
    %v3953 = vld [vmem:[#allocation8 + $0x3f8] sm:$0xff]
    %v4082 = vunpack.c.l.b16 %v3826
    %v4083 = vunpack.c.h.b16 %v3826
    %v4084 = vunpack.c.l.b16 %v3827
    %v4085 = vunpack.c.h.b16 %v3827
    %v4086 = vunpack.c.l.b16 %v3828
    %v4087 = vunpack.c.h.b16 %v3828
    %v4088 = vunpack.c.l.b16 %v3829
    %v4089 = vunpack.c.h.b16 %v3829
    %v4090 = vunpack.c.l.b16 %v3830
    %v4091 = vunpack.c.h.b16 %v3830
    %v4092 = vunpack.c.l.b16 %v3831
    %v4093 = vunpack.c.h.b16 %v3831
    %v4094 = vunpack.c.l.b16 %v3832
    %v4095 = vunpack.c.h.b16 %v3832
    %v4096 = vunpack.c.l.b16 %v3833
    %v4097 = vunpack.c.h.b16 %v3833
    %v4098 = vunpack.c.l.b16 %v3834
    %v4099 = vunpack.c.h.b16 %v3834
    %v4100 = vunpack.c.l.b16 %v3835
    %v4101 = vunpack.c.h.b16 %v3835
    %v4102 = vunpack.c.l.b16 %v3836
    %v4103 = vunpack.c.h.b16 %v3836
    %v4104 = vunpack.c.l.b16 %v3837
    %v4105 = vunpack.c.h.b16 %v3837
    %v4106 = vunpack.c.l.b16 %v3838
    %v4107 = vunpack.c.h.b16 %v3838
    %v4108 = vunpack.c.l.b16 %v3839
    %v4109 = vunpack.c.h.b16 %v3839
    %v4110 = vunpack.c.l.b16 %v3840
    %v4111 = vunpack.c.h.b16 %v3840
    %v4112 = vunpack.c.l.b16 %v3841
    %v4113 = vunpack.c.h.b16 %v3841
    %v4114 = vunpack.c.l.b16 %v3842
    %v4115 = vunpack.c.h.b16 %v3842
    %v4116 = vunpack.c.l.b16 %v3843
    %v4117 = vunpack.c.h.b16 %v3843
    %v4118 = vunpack.c.l.b16 %v3844
    %v4119 = vunpack.c.h.b16 %v3844
    %v4120 = vunpack.c.l.b16 %v3845
    %v4121 = vunpack.c.h.b16 %v3845
    %v4122 = vunpack.c.l.b16 %v3846
    %v4123 = vunpack.c.h.b16 %v3846
    %v4124 = vunpack.c.l.b16 %v3847
    %v4125 = vunpack.c.h.b16 %v3847
    %v4126 = vunpack.c.l.b16 %v3848
    %v4127 = vunpack.c.h.b16 %v3848
    %v4128 = vunpack.c.l.b16 %v3849
    %v4129 = vunpack.c.h.b16 %v3849
    %v4130 = vunpack.c.l.b16 %v3850
    %v4131 = vunpack.c.h.b16 %v3850
    %v4132 = vunpack.c.l.b16 %v3851
    %v4133 = vunpack.c.h.b16 %v3851
    %v4134 = vunpack.c.l.b16 %v3852
    %v4135 = vunpack.c.h.b16 %v3852
    %v4136 = vunpack.c.l.b16 %v3853
    %v4137 = vunpack.c.h.b16 %v3853
    %v4138 = vunpack.c.l.b16 %v3854
    %v4139 = vunpack.c.h.b16 %v3854
    %v4140 = vunpack.c.l.b16 %v3855
    %v4141 = vunpack.c.h.b16 %v3855
    %v4142 = vunpack.c.l.b16 %v3856
    %v4143 = vunpack.c.h.b16 %v3856
    %v4144 = vunpack.c.l.b16 %v3857
    %v4145 = vunpack.c.h.b16 %v3857
    %v4146 = vunpack.c.l.b16 %v3858
    %v4147 = vunpack.c.h.b16 %v3858
    %v4148 = vunpack.c.l.b16 %v3859
    %v4149 = vunpack.c.h.b16 %v3859
    %v4150 = vunpack.c.l.b16 %v3860
    %v4151 = vunpack.c.h.b16 %v3860
    %v4152 = vunpack.c.l.b16 %v3861
    %v4153 = vunpack.c.h.b16 %v3861
    %v4154 = vunpack.c.l.b16 %v3862
    %v4155 = vunpack.c.h.b16 %v3862
    %v4156 = vunpack.c.l.b16 %v3863
    %v4157 = vunpack.c.h.b16 %v3863
    %v4158 = vunpack.c.l.b16 %v3864
    %v4159 = vunpack.c.h.b16 %v3864
    %v4160 = vunpack.c.l.b16 %v3865
    %v4161 = vunpack.c.h.b16 %v3865
    %v4162 = vunpack.c.l.b16 %v3866
    %v4163 = vunpack.c.h.b16 %v3866
    %v4164 = vunpack.c.l.b16 %v3867
    %v4165 = vunpack.c.h.b16 %v3867
    %v4166 = vunpack.c.l.b16 %v3868
    %v4167 = vunpack.c.h.b16 %v3868
    %v4168 = vunpack.c.l.b16 %v3869
    %v4169 = vunpack.c.h.b16 %v3869
    %v4170 = vunpack.c.l.b16 %v3870
    %v4171 = vunpack.c.h.b16 %v3870
    %v4172 = vunpack.c.l.b16 %v3871
    %v4173 = vunpack.c.h.b16 %v3871
    %v4174 = vunpack.c.l.b16 %v3872
    %v4175 = vunpack.c.h.b16 %v3872
    %v4176 = vunpack.c.l.b16 %v3873
    %v4177 = vunpack.c.h.b16 %v3873
    %v4178 = vunpack.c.l.b16 %v3874
    %v4179 = vunpack.c.h.b16 %v3874
    %v4180 = vunpack.c.l.b16 %v3875
    %v4181 = vunpack.c.h.b16 %v3875
    %v4182 = vunpack.c.l.b16 %v3876
    %v4183 = vunpack.c.h.b16 %v3876
    %v4184 = vunpack.c.l.b16 %v3877
    %v4185 = vunpack.c.h.b16 %v3877
    %v4186 = vunpack.c.l.b16 %v3878
    %v4187 = vunpack.c.h.b16 %v3878
    %v4188 = vunpack.c.l.b16 %v3879
    %v4189 = vunpack.c.h.b16 %v3879
    %v4190 = vunpack.c.l.b16 %v3880
    %v4191 = vunpack.c.h.b16 %v3880
    %v4192 = vunpack.c.l.b16 %v3881
    %v4193 = vunpack.c.h.b16 %v3881
    %v4194 = vunpack.c.l.b16 %v3882
    %v4195 = vunpack.c.h.b16 %v3882
    %v4196 = vunpack.c.l.b16 %v3883
    %v4197 = vunpack.c.h.b16 %v3883
    %v4198 = vunpack.c.l.b16 %v3884
    %v4199 = vunpack.c.h.b16 %v3884
    %v4200 = vunpack.c.l.b16 %v3885
    %v4201 = vunpack.c.h.b16 %v3885
    %v4202 = vunpack.c.l.b16 %v3886
    %v4203 = vunpack.c.h.b16 %v3886
    %v4204 = vunpack.c.l.b16 %v3887
    %v4205 = vunpack.c.h.b16 %v3887
    %v4206 = vunpack.c.l.b16 %v3888
    %v4207 = vunpack.c.h.b16 %v3888
    %v4208 = vunpack.c.l.b16 %v3889
    %v4209 = vunpack.c.h.b16 %v3889
    %v4210 = vunpack.c.l.b16 %v3890
    %v4211 = vunpack.c.h.b16 %v3890
    %v4212 = vunpack.c.l.b16 %v3891
    %v4213 = vunpack.c.h.b16 %v3891
    %v4214 = vunpack.c.l.b16 %v3892
    %v4215 = vunpack.c.h.b16 %v3892
    %v4216 = vunpack.c.l.b16 %v3893
    %v4217 = vunpack.c.h.b16 %v3893
    %v4218 = vunpack.c.l.b16 %v3894
    %v4219 = vunpack.c.h.b16 %v3894
    %v4220 = vunpack.c.l.b16 %v3895
    %v4221 = vunpack.c.h.b16 %v3895
    %v4222 = vunpack.c.l.b16 %v3896
    %v4223 = vunpack.c.h.b16 %v3896
    %v4224 = vunpack.c.l.b16 %v3897
    %v4225 = vunpack.c.h.b16 %v3897
    %v4226 = vunpack.c.l.b16 %v3898
    %v4227 = vunpack.c.h.b16 %v3898
    %v4228 = vunpack.c.l.b16 %v3899
    %v4229 = vunpack.c.h.b16 %v3899
    %v4230 = vunpack.c.l.b16 %v3900
    %v4231 = vunpack.c.h.b16 %v3900
    %v4232 = vunpack.c.l.b16 %v3901
    %v4233 = vunpack.c.h.b16 %v3901
    %v4234 = vunpack.c.l.b16 %v3902
    %v4235 = vunpack.c.h.b16 %v3902
    %v4236 = vunpack.c.l.b16 %v3903
    %v4237 = vunpack.c.h.b16 %v3903
    %v4238 = vunpack.c.l.b16 %v3904
    %v4239 = vunpack.c.h.b16 %v3904
    %v4240 = vunpack.c.l.b16 %v3905
    %v4241 = vunpack.c.h.b16 %v3905
    %v4242 = vunpack.c.l.b16 %v3906
    %v4243 = vunpack.c.h.b16 %v3906
    %v4244 = vunpack.c.l.b16 %v3907
    %v4245 = vunpack.c.h.b16 %v3907
    %v4246 = vunpack.c.l.b16 %v3908
    %v4247 = vunpack.c.h.b16 %v3908
    %v4248 = vunpack.c.l.b16 %v3909
    %v4249 = vunpack.c.h.b16 %v3909
    %v4250 = vunpack.c.l.b16 %v3910
    %v4251 = vunpack.c.h.b16 %v3910
    %v4252 = vunpack.c.l.b16 %v3911
    %v4253 = vunpack.c.h.b16 %v3911
    %v4254 = vunpack.c.l.b16 %v3912
    %v4255 = vunpack.c.h.b16 %v3912
    %v4256 = vunpack.c.l.b16 %v3913
    %v4257 = vunpack.c.h.b16 %v3913
    %v4258 = vunpack.c.l.b16 %v3914
    %v4259 = vunpack.c.h.b16 %v3914
    %v4260 = vunpack.c.l.b16 %v3915
    %v4261 = vunpack.c.h.b16 %v3915
    %v4262 = vunpack.c.l.b16 %v3916
    %v4263 = vunpack.c.h.b16 %v3916
    %v4264 = vunpack.c.l.b16 %v3917
    %v4265 = vunpack.c.h.b16 %v3917
    %v4266 = vunpack.c.l.b16 %v3918
    %v4267 = vunpack.c.h.b16 %v3918
    %v4268 = vunpack.c.l.b16 %v3919
    %v4269 = vunpack.c.h.b16 %v3919
    %v4270 = vunpack.c.l.b16 %v3920
    %v4271 = vunpack.c.h.b16 %v3920
    %v4272 = vunpack.c.l.b16 %v3921
    %v4273 = vunpack.c.h.b16 %v3921
    %v4274 = vunpack.c.l.b16 %v3922
    %v4275 = vunpack.c.h.b16 %v3922
    %v4276 = vunpack.c.l.b16 %v3923
    %v4277 = vunpack.c.h.b16 %v3923
    %v4278 = vunpack.c.l.b16 %v3924
    %v4279 = vunpack.c.h.b16 %v3924
    %v4280 = vunpack.c.l.b16 %v3925
    %v4281 = vunpack.c.h.b16 %v3925
    %v4282 = vunpack.c.l.b16 %v3926
    %v4283 = vunpack.c.h.b16 %v3926
    %v4284 = vunpack.c.l.b16 %v3927
    %v4285 = vunpack.c.h.b16 %v3927
    %v4286 = vunpack.c.l.b16 %v3928
    %v4287 = vunpack.c.h.b16 %v3928
    %v4288 = vunpack.c.l.b16 %v3929
    %v4289 = vunpack.c.h.b16 %v3929
    %v4290 = vunpack.c.l.b16 %v3930
    %v4291 = vunpack.c.h.b16 %v3930
    %v4292 = vunpack.c.l.b16 %v3931
    %v4293 = vunpack.c.h.b16 %v3931
    %v4294 = vunpack.c.l.b16 %v3932
    %v4295 = vunpack.c.h.b16 %v3932
    %v4296 = vunpack.c.l.b16 %v3933
    %v4297 = vunpack.c.h.b16 %v3933
    %v4298 = vunpack.c.l.b16 %v3934
    %v4299 = vunpack.c.h.b16 %v3934
    %v4300 = vunpack.c.l.b16 %v3935
    %v4301 = vunpack.c.h.b16 %v3935
    %v4302 = vunpack.c.l.b16 %v3936
    %v4303 = vunpack.c.h.b16 %v3936
    %v4304 = vunpack.c.l.b16 %v3937
    %v4305 = vunpack.c.h.b16 %v3937
    %v4306 = vunpack.c.l.b16 %v3938
    %v4307 = vunpack.c.h.b16 %v3938
    %v4308 = vunpack.c.l.b16 %v3939
    %v4309 = vunpack.c.h.b16 %v3939
    %v4310 = vunpack.c.l.b16 %v3940
    %v4311 = vunpack.c.h.b16 %v3940
    %v4312 = vunpack.c.l.b16 %v3941
    %v4313 = vunpack.c.h.b16 %v3941
    %v4314 = vunpack.c.l.b16 %v3942
    %v4315 = vunpack.c.h.b16 %v3942
    %v4316 = vunpack.c.l.b16 %v3943
    %v4317 = vunpack.c.h.b16 %v3943
    %v4318 = vunpack.c.l.b16 %v3944
    %v4319 = vunpack.c.h.b16 %v3944
    %v4320 = vunpack.c.l.b16 %v3945
    %v4321 = vunpack.c.h.b16 %v3945
    %v4322 = vunpack.c.l.b16 %v3946
    %v4323 = vunpack.c.h.b16 %v3946
    %v4324 = vunpack.c.l.b16 %v3947
    %v4325 = vunpack.c.h.b16 %v3947
    %v4326 = vunpack.c.l.b16 %v3948
    %v4327 = vunpack.c.h.b16 %v3948
    %v4328 = vunpack.c.l.b16 %v3949
    %v4329 = vunpack.c.h.b16 %v3949
    %v4330 = vunpack.c.l.b16 %v3950
    %v4331 = vunpack.c.h.b16 %v3950
    %v4332 = vunpack.c.l.b16 %v3951
    %v4333 = vunpack.c.h.b16 %v3951
    %v4334 = vunpack.c.l.b16 %v3952
    %v4335 = vunpack.c.h.b16 %v3952
    %v4336 = vunpack.c.l.b16 %v3953
    %v4337 = vunpack.c.h.b16 %v3953
    %v4338 = vpack.c.b16 %v4090, %v4082
    %v4339 = vpack.c.b16 %v4091, %v4083
    %v4340 = vpack.c.b16 %v4092, %v4084
    %v4341 = vpack.c.b16 %v4093, %v4085
    %v4342 = vpack.c.b16 %v4094, %v4086
    %v4343 = vpack.c.b16 %v4095, %v4087
    %v4344 = vpack.c.b16 %v4096, %v4088
    %v4345 = vpack.c.b16 %v4097, %v4089
    %v4346 = vpack.c.b16 %v4106, %v4098
    %v4347 = vpack.c.b16 %v4107, %v4099
    %v4348 = vpack.c.b16 %v4108, %v4100
    %v4349 = vpack.c.b16 %v4109, %v4101
    %v4350 = vpack.c.b16 %v4110, %v4102
    %v4351 = vpack.c.b16 %v4111, %v4103
    %v4352 = vpack.c.b16 %v4112, %v4104
    %v4353 = vpack.c.b16 %v4113, %v4105
    %v4354 = vpack.c.b16 %v4122, %v4114
    %v4355 = vpack.c.b16 %v4123, %v4115
    %v4356 = vpack.c.b16 %v4124, %v4116
    %v4357 = vpack.c.b16 %v4125, %v4117
    %v4358 = vpack.c.b16 %v4126, %v4118
    %v4359 = vpack.c.b16 %v4127, %v4119
    %v4360 = vpack.c.b16 %v4128, %v4120
    %v4361 = vpack.c.b16 %v4129, %v4121
    %v4362 = vpack.c.b16 %v4138, %v4130
    %v4363 = vpack.c.b16 %v4139, %v4131
    %v4364 = vpack.c.b16 %v4140, %v4132
    %v4365 = vpack.c.b16 %v4141, %v4133
    %v4366 = vpack.c.b16 %v4142, %v4134
    %v4367 = vpack.c.b16 %v4143, %v4135
    %v4368 = vpack.c.b16 %v4144, %v4136
    %v4369 = vpack.c.b16 %v4145, %v4137
    %v4370 = vpack.c.b16 %v4154, %v4146
    %v4371 = vpack.c.b16 %v4155, %v4147
    %v4372 = vpack.c.b16 %v4156, %v4148
    %v4373 = vpack.c.b16 %v4157, %v4149
    %v4374 = vpack.c.b16 %v4158, %v4150
    %v4375 = vpack.c.b16 %v4159, %v4151
    %v4376 = vpack.c.b16 %v4160, %v4152
    %v4377 = vpack.c.b16 %v4161, %v4153
    %v4378 = vpack.c.b16 %v4170, %v4162
    %v4379 = vpack.c.b16 %v4171, %v4163
    %v4380 = vpack.c.b16 %v4172, %v4164
    %v4381 = vpack.c.b16 %v4173, %v4165
    %v4382 = vpack.c.b16 %v4174, %v4166
    %v4383 = vpack.c.b16 %v4175, %v4167
    %v4384 = vpack.c.b16 %v4176, %v4168
    %v4385 = vpack.c.b16 %v4177, %v4169
    %v4386 = vpack.c.b16 %v4186, %v4178
    %v4387 = vpack.c.b16 %v4187, %v4179
    %v4388 = vpack.c.b16 %v4188, %v4180
    %v4389 = vpack.c.b16 %v4189, %v4181
    %v4390 = vpack.c.b16 %v4190, %v4182
    %v4391 = vpack.c.b16 %v4191, %v4183
    %v4392 = vpack.c.b16 %v4192, %v4184
    %v4393 = vpack.c.b16 %v4193, %v4185
    %v4394 = vpack.c.b16 %v4202, %v4194
    %v4395 = vpack.c.b16 %v4203, %v4195
    %v4396 = vpack.c.b16 %v4204, %v4196
    %v4397 = vpack.c.b16 %v4205, %v4197
    %v4398 = vpack.c.b16 %v4206, %v4198
    %v4399 = vpack.c.b16 %v4207, %v4199
    %v4400 = vpack.c.b16 %v4208, %v4200
    %v4401 = vpack.c.b16 %v4209, %v4201
    %v4402 = vpack.c.b16 %v4218, %v4210
    %v4403 = vpack.c.b16 %v4219, %v4211
    %v4404 = vpack.c.b16 %v4220, %v4212
    %v4405 = vpack.c.b16 %v4221, %v4213
    %v4406 = vpack.c.b16 %v4222, %v4214
    %v4407 = vpack.c.b16 %v4223, %v4215
    %v4408 = vpack.c.b16 %v4224, %v4216
    %v4409 = vpack.c.b16 %v4225, %v4217
    %v4410 = vpack.c.b16 %v4234, %v4226
    %v4411 = vpack.c.b16 %v4235, %v4227
    %v4412 = vpack.c.b16 %v4236, %v4228
    %v4413 = vpack.c.b16 %v4237, %v4229
    %v4414 = vpack.c.b16 %v4238, %v4230
    %v4415 = vpack.c.b16 %v4239, %v4231
    %v4416 = vpack.c.b16 %v4240, %v4232
    %v4417 = vpack.c.b16 %v4241, %v4233
    %v4418 = vpack.c.b16 %v4250, %v4242
    %v4419 = vpack.c.b16 %v4251, %v4243
    %v4420 = vpack.c.b16 %v4252, %v4244
    %v4421 = vpack.c.b16 %v4253, %v4245
    %v4422 = vpack.c.b16 %v4254, %v4246
    %v4423 = vpack.c.b16 %v4255, %v4247
    %v4424 = vpack.c.b16 %v4256, %v4248
    %v4425 = vpack.c.b16 %v4257, %v4249
    %v4426 = vpack.c.b16 %v4266, %v4258
    %v4427 = vpack.c.b16 %v4267, %v4259
    %v4428 = vpack.c.b16 %v4268, %v4260
    %v4429 = vpack.c.b16 %v4269, %v4261
    %v4430 = vpack.c.b16 %v4270, %v4262
    %v4431 = vpack.c.b16 %v4271, %v4263
    %v4432 = vpack.c.b16 %v4272, %v4264
    %v4433 = vpack.c.b16 %v4273, %v4265
    %v4434 = vpack.c.b16 %v4282, %v4274
    %v4435 = vpack.c.b16 %v4283, %v4275
    %v4436 = vpack.c.b16 %v4284, %v4276
    %v4437 = vpack.c.b16 %v4285, %v4277
    %v4438 = vpack.c.b16 %v4286, %v4278
    %v4439 = vpack.c.b16 %v4287, %v4279
    %v4440 = vpack.c.b16 %v4288, %v4280
    %v4441 = vpack.c.b16 %v4289, %v4281
    %v4442 = vpack.c.b16 %v4298, %v4290
    %v4443 = vpack.c.b16 %v4299, %v4291
    %v4444 = vpack.c.b16 %v4300, %v4292
    %v4445 = vpack.c.b16 %v4301, %v4293
    %v4446 = vpack.c.b16 %v4302, %v4294
    %v4447 = vpack.c.b16 %v4303, %v4295
    %v4448 = vpack.c.b16 %v4304, %v4296
    %v4449 = vpack.c.b16 %v4305, %v4297
    %v4450 = vpack.c.b16 %v4314, %v4306
    %v4451 = vpack.c.b16 %v4315, %v4307
    %v4452 = vpack.c.b16 %v4316, %v4308
    %v4453 = vpack.c.b16 %v4317, %v4309
    %v4454 = vpack.c.b16 %v4318, %v4310
    %v4455 = vpack.c.b16 %v4319, %v4311
    %v4456 = vpack.c.b16 %v4320, %v4312
    %v4457 = vpack.c.b16 %v4321, %v4313
    %v4458 = vpack.c.b16 %v4330, %v4322
    %v4459 = vpack.c.b16 %v4331, %v4323
    %v4460 = vpack.c.b16 %v4332, %v4324
    %v4461 = vpack.c.b16 %v4333, %v4325
    %v4462 = vpack.c.b16 %v4334, %v4326
    %v4463 = vpack.c.b16 %v4335, %v4327
    %v4464 = vpack.c.b16 %v4336, %v4328
    %v4465 = vpack.c.b16 %v4337, %v4329
    %4594 = vmatprep.subr.bf16.mxu0 %v4395
    %4595 = vmatpush1.bf16.msra.mxu0 %v4394
    %4596 = vmatprep.subr.bf16.mxu0 %v4387
    %4597 = vmatpush1.bf16.msra.mxu0 %v4386
    %4598 = vmatprep.subr.bf16.mxu0 %v4379
    %4599 = vmatpush1.bf16.msra.mxu0 %v4378
    %4600 = vmatprep.subr.bf16.mxu0 %v4371
    %4601 = vmatpush1.bf16.msra.mxu0 %v4370
    %4602 = vmatprep.subr.bf16.mxu0 %v4363
    %4603 = vmatpush1.bf16.msra.mxu0 %v4362
    %4604 = vmatprep.subr.bf16.mxu0 %v4355
    %4605 = vmatpush1.bf16.msra.mxu0 %v4354
    %4606 = vmatprep.subr.bf16.mxu0 %v4347
    %4607 = vmatpush1.bf16.msra.mxu0 %v4346
    %4608 = vmatprep.subr.bf16.mxu0 %v4339
    %4609 = vmatpush1.bf16.msra.mxu0 %v4338
    %4610 = vmatprep.subr.bf16.mxu0 %v4459
    %4611 = vmatpush2.bf16.msra.mxu0 %v4458
    %4612 = vmatprep.subr.bf16.mxu0 %v4451
    %4613 = vmatpush2.bf16.msra.mxu0 %v4450
    %4614 = vmatprep.subr.bf16.mxu0 %v4443
    %4615 = vmatpush2.bf16.msra.mxu0 %v4442
    %4616 = vmatprep.subr.bf16.mxu0 %v4435
    %4617 = vmatpush2.bf16.msra.mxu0 %v4434
    %4618 = vmatprep.subr.bf16.mxu0 %v4427
    %4619 = vmatpush2.bf16.msra.mxu0 %v4426
    %4620 = vmatprep.subr.bf16.mxu0 %v4419
    %4621 = vmatpush2.bf16.msra.mxu0 %v4418
    %4622 = vmatprep.subr.bf16.mxu0 %v4411
    %4623 = vmatpush2.bf16.msra.mxu0 %v4410
    %4624 = vmatprep.subr.bf16.mxu0 %v4403
    %4625 = vmatpush2.bf16.msra.mxu0 %v4402
    %4626 = vmatprep.mubr.bf16.mxu0 %v3825
    %4627 = vmatmul.mubr.bf16.gmra.mxu0 %v3824
    %v4628 = vpop.f32.mrf.mxu0
    %v4629 = vadd.f32 0.0, %v4628
    %v4630 = vpop.f32.mrf.mxu0
    %v4631 = vadd.f32 0.0, %v4630
    %v4632 = vpop.f32.mrf.mxu0
    %v4633 = vpop.f32.mrf.mxu0
    %4634 = vdwg.mxu0
    %4635 = vmatprep.subr.bf16.mxu0 %v4397
    %4636 = vmatpush1.bf16.msra.mxu0 %v4396
    %4637 = vmatprep.subr.bf16.mxu0 %v4389
    %4638 = vmatpush1.bf16.msra.mxu0 %v4388
    %4639 = vmatprep.subr.bf16.mxu0 %v4381
    %4640 = vmatpush1.bf16.msra.mxu0 %v4380
    %4641 = vmatprep.subr.bf16.mxu0 %v4373
    %4642 = vmatpush1.bf16.msra.mxu0 %v4372
    %4643 = vmatprep.subr.bf16.mxu0 %v4365
    %4644 = vmatpush1.bf16.msra.mxu0 %v4364
    %4645 = vmatprep.subr.bf16.mxu0 %v4357
    %4646 = vmatpush1.bf16.msra.mxu0 %v4356
    %4647 = vmatprep.subr.bf16.mxu0 %v4349
    %4648 = vmatpush1.bf16.msra.mxu0 %v4348
    %4649 = vmatprep.subr.bf16.mxu0 %v4341
    %4650 = vmatpush1.bf16.msra.mxu0 %v4340
    %4651 = vmatprep.subr.bf16.mxu0 %v4461
    %4652 = vmatpush2.bf16.msra.mxu0 %v4460
    %4653 = vmatprep.subr.bf16.mxu0 %v4453
    %4654 = vmatpush2.bf16.msra.mxu0 %v4452
    %4655 = vmatprep.subr.bf16.mxu0 %v4445
    %4656 = vmatpush2.bf16.msra.mxu0 %v4444
    %4657 = vmatprep.subr.bf16.mxu0 %v4437
    %4658 = vmatpush2.bf16.msra.mxu0 %v4436
    %4659 = vmatprep.subr.bf16.mxu0 %v4429
    %4660 = vmatpush2.bf16.msra.mxu0 %v4428
    %4661 = vmatprep.subr.bf16.mxu0 %v4421
    %4662 = vmatpush2.bf16.msra.mxu0 %v4420
    %4663 = vmatprep.subr.bf16.mxu0 %v4413
    %4664 = vmatpush2.bf16.msra.mxu0 %v4412
    %4665 = vmatprep.subr.bf16.mxu0 %v4405
    %4666 = vmatpush2.bf16.msra.mxu0 %v4404
    %4667 = vmatprep.mubr.bf16.mxu0 %v3825
    %4668 = vmatmul.mubr.bf16.gmra.mxu0 %v3824
    %v4669 = vpop.f32.mrf.mxu0
    %v4670 = vadd.f32 0.0, %v4669
    %v4671 = vpop.f32.mrf.mxu0
    %v4672 = vadd.f32 0.0, %v4671
    %v4673 = vpop.f32.mrf.mxu0
    %v4674 = vpop.f32.mrf.mxu0
    %4675 = vdwg.mxu0
    %4676 = vmatprep.subr.bf16.mxu0 %v4399
    %4677 = vmatpush1.bf16.msra.mxu0 %v4398
    %4678 = vmatprep.subr.bf16.mxu0 %v4391
    %4679 = vmatpush1.bf16.msra.mxu0 %v4390
    %4680 = vmatprep.subr.bf16.mxu0 %v4383
    %4681 = vmatpush1.bf16.msra.mxu0 %v4382
    %4682 = vmatprep.subr.bf16.mxu0 %v4375
    %4683 = vmatpush1.bf16.msra.mxu0 %v4374
    %4684 = vmatprep.subr.bf16.mxu0 %v4367
    %4685 = vmatpush1.bf16.msra.mxu0 %v4366
    %4686 = vmatprep.subr.bf16.mxu0 %v4359
    %4687 = vmatpush1.bf16.msra.mxu0 %v4358
    %4688 = vmatprep.subr.bf16.mxu0 %v4351
    %4689 = vmatpush1.bf16.msra.mxu0 %v4350
    %4690 = vmatprep.subr.bf16.mxu0 %v4343
    %4691 = vmatpush1.bf16.msra.mxu0 %v4342
    %4692 = vmatprep.subr.bf16.mxu0 %v4463
    %4693 = vmatpush2.bf16.msra.mxu0 %v4462
    %4694 = vmatprep.subr.bf16.mxu0 %v4455
    %4695 = vmatpush2.bf16.msra.mxu0 %v4454
    %4696 = vmatprep.subr.bf16.mxu0 %v4447
    %4697 = vmatpush2.bf16.msra.mxu0 %v4446
    %4698 = vmatprep.subr.bf16.mxu0 %v4439
    %4699 = vmatpush2.bf16.msra.mxu0 %v4438
    %4700 = vmatprep.subr.bf16.mxu0 %v4431
    %4701 = vmatpush2.bf16.msra.mxu0 %v4430
    %4702 = vmatprep.subr.bf16.mxu0 %v4423
    %4703 = vmatpush2.bf16.msra.mxu0 %v4422
    %4704 = vmatprep.subr.bf16.mxu0 %v4415
    %4705 = vmatpush2.bf16.msra.mxu0 %v4414
    %4706 = vmatprep.subr.bf16.mxu0 %v4407
    %4707 = vmatpush2.bf16.msra.mxu0 %v4406
    %4708 = vmatprep.mubr.bf16.mxu0 %v3825
    %4709 = vmatmul.mubr.bf16.gmra.mxu0 %v3824
    %v4710 = vpop.f32.mrf.mxu0
    %v4711 = vadd.f32 0.0, %v4710
    %v4712 = vpop.f32.mrf.mxu0
    %v4713 = vadd.f32 0.0, %v4712
    %v4714 = vpop.f32.mrf.mxu0
    %v4715 = vpop.f32.mrf.mxu0
    %4716 = vdwg.mxu0
    %4717 = vmatprep.subr.bf16.mxu0 %v4401
    %4718 = vmatpush1.bf16.msra.mxu0 %v4400
    %4719 = vmatprep.subr.bf16.mxu0 %v4393
    %4720 = vmatpush1.bf16.msra.mxu0 %v4392
    %4721 = vmatprep.subr.bf16.mxu0 %v4385
    %4722 = vmatpush1.bf16.msra.mxu0 %v4384
    %4723 = vmatprep.subr.bf16.mxu0 %v4377
    %4724 = vmatpush1.bf16.msra.mxu0 %v4376
    %4725 = vmatprep.subr.bf16.mxu0 %v4369
    %4726 = vmatpush1.bf16.msra.mxu0 %v4368
    %4727 = vmatprep.subr.bf16.mxu0 %v4361
    %4728 = vmatpush1.bf16.msra.mxu0 %v4360
    %4729 = vmatprep.subr.bf16.mxu0 %v4353
    %4730 = vmatpush1.bf16.msra.mxu0 %v4352
    %4731 = vmatprep.subr.bf16.mxu0 %v4345
    %4732 = vmatpush1.bf16.msra.mxu0 %v4344
    %4733 = vmatprep.subr.bf16.mxu0 %v4465
    %4734 = vmatpush2.bf16.msra.mxu0 %v4464
    %4735 = vmatprep.subr.bf16.mxu0 %v4457
    %4736 = vmatpush2.bf16.msra.mxu0 %v4456
    %4737 = vmatprep.subr.bf16.mxu0 %v4449
    %4738 = vmatpush2.bf16.msra.mxu0 %v4448
    %4739 = vmatprep.subr.bf16.mxu0 %v4441
    %4740 = vmatpush2.bf16.msra.mxu0 %v4440
    %4741 = vmatprep.subr.bf16.mxu0 %v4433
    %4742 = vmatpush2.bf16.msra.mxu0 %v4432
    %4743 = vmatprep.subr.bf16.mxu0 %v4425
    %4744 = vmatpush2.bf16.msra.mxu0 %v4424
    %4745 = vmatprep.subr.bf16.mxu0 %v4417
    %4746 = vmatpush2.bf16.msra.mxu0 %v4416
    %4747 = vmatprep.subr.bf16.mxu0 %v4409
    %4748 = vmatpush2.bf16.msra.mxu0 %v4408
    %4749 = vmatprep.mubr.bf16.mxu0 %v3825
    %4750 = vmatmul.mubr.bf16.gmra.mxu0 %v3824
    %v4751 = vpop.f32.mrf.mxu0
    %v4752 = vadd.f32 0.0, %v4751
    %v4753 = vpop.f32.mrf.mxu0
    %v4754 = vadd.f32 0.0, %v4753
    %v4755 = vpop.f32.mrf.mxu0
    %v4756 = vpop.f32.mrf.mxu0
    %4757 = vdwg.mxu0
    %v4766 = vcombine.low %v4629, %v4631
    %v4767 = vcombine.low %v4670, %v4672
    %v4768 = vcombine.low %v4711, %v4713
    %v4769 = vcombine.low %v4752, %v4754
    %v4771 = vunpack.c.l.s4 1966171168
    %v4772 = vunpack.c.0.s8 %v4771
    %v4773 = vlaneseq
    %v4774 = vshrl.u32 %v4773, 7
    %v4775 = vsub.s32 %v4772, %v4774
    %v4776 = vrot.slane %v4766, %v4775
    %v4778 = vunpack.c.l.s4 1966171168
    %v4779 = vunpack.c.0.s8 %v4778
    %v4780 = vlaneseq
    %v4781 = vshrl.u32 %v4780, 7
    %v4782 = vsub.s32 %v4779, %v4781
    %v4783 = vrot.slane %v4767, %v4782
    %v4785 = vunpack.c.l.s4 1966171168
    %v4786 = vunpack.c.0.s8 %v4785
    %v4787 = vlaneseq
    %v4788 = vshrl.u32 %v4787, 7
    %v4789 = vsub.s32 %v4786, %v4788
    %v4790 = vrot.slane %v4768, %v4789
    %v4792 = vunpack.c.l.s4 1966171168
    %v4793 = vunpack.c.0.s8 %v4792
    %v4794 = vlaneseq
    %v4795 = vshrl.u32 %v4794, 7
    %v4796 = vsub.s32 %v4793, %v4795
    %v4797 = vrot.slane %v4769, %v4796
    %v4798 = vcombine.low %v4776, %v4783
    %v4799 = vcombine.low %v4790, %v4797
    %v4801 = vunpack.c.l.s4 1966171168
    %v4802 = vunpack.c.0.s8 %v4801
    %v4803 = vlaneseq
    %v4804 = vshrl.u32 %v4803, 7
    %v4805 = vsub.s32 %v4802, %v4804
    %v4806 = vrot.slane %v4798, %v4805
    %v4808 = vunpack.c.l.s4 1966171168
    %v4809 = vunpack.c.0.s8 %v4808
    %v4810 = vlaneseq
    %v4811 = vshrl.u32 %v4810, 7
    %v4812 = vsub.s32 %v4809, %v4811
    %v4813 = vrot.slane %v4799, %v4812
    %v4814 = vcombine.low %v4806, %v4813
    %v4816 = vadd.f32 %v3811, %v4814
    %v4817 = vxor.u32 %v4816, 2147483648
    %v4818 = vmul.f32 %v4817, 1.442695
    %v4819 = vpow.pop %v4818
    %v4820 = vadd.f32 %v4819, 1.0
    %v4821 = vrcp.pop %v4820
    %v4822 = vmul.f32 1.0, %v4821
    %v4824 = vrot.slane %v4816, 2
    %v4826 = vxor.u32 %v4824, 2147483648
    %v4827 = vmul.f32 %v4826, 1.442695
    %v4828 = vpow.pop %v4827
    %v4829 = vadd.f32 %v4828, 1.0
    %v4830 = vrcp.pop %v4829
    %v4831 = vmul.f32 1.0, %v4830
    %v4832 = vrot.slane %v4816, 4
    %v4834 = vtanh.pop %v4832
    %v4835 = vrot.slane %v4816, 6
    %v4837 = vxor.u32 %v4835, 2147483648
    %v4838 = vmul.f32 %v4837, 1.442695
    %v4839 = vpow.pop %v4838
    %v4840 = vadd.f32 %v4839, 1.0
    %v4841 = vrcp.pop %v4840
    %v4842 = vmul.f32 1.0, %v4841
    %v4843 = vld [vmem:[#allocation5] sm:$0x3]
    %v4844 = vmul.f32 %v4831, %v4843
    %v4845 = vmul.f32 %v4822, %v4834
    %v4846 = vadd.f32 %v4844, %v4845
    %v4847 = vtanh.pop %v4846
    %v4848 = vmul.f32 %v4842, %v4847
    %4849 = vst.msk [vmem:[#allocation5] sm:$0x3] %vm669, %v4846
    %4850 = vst.msk [vmem:[#allocation4] sm:$0x3] %vm669, %v4848
    %s4851 = scalar_lea.vmem [#allocation3], 3
    %4852 = vst.msk [vmem:[%s4851] ss:$8 sm:$0x3] %vm669, %v4848
    %4853 = vst.msk [vmem:[%s4851] ss:$8 sm:$0x0] %vm669, %v4848
    %s4854 = scalar_lea.vmem [#allocation2], 4
    %v4855 = vld [vmem:[%s4854] ss:$8 sm:$0xf]
    %v4856 = vld [vmem:[%s4854] ss:$8 sm:$0xf0]
    %v4857 = vor.u32 %v4855, %v4856
    %v4858 = vld [vmem:[#allocation4] sm:$0x3]
    %v4860 = vlaneseq
    %v4861 = vshrl.u32 %v4860, 7
    %v4862 = vsub.s32 0, %v4861
    %v4863 = vrot.slane %v4858, %v4862
    %v4864 = vlaneseq
    %v4865 = vshrl.u32 %v4864, 7
    %v4866 = vsub.s32 1, %v4865
    %v4867 = vrot.slane %v4858, %v4866
    %v4870 = vpack.c.bf16 %v4863, %v4863
    %v4871 = vpack.c.bf16 %v4867, %v4867
    %v4872 = vld [vmem:[#allocation8] sm:$0xff]
    %v4873 = vld [vmem:[#allocation8 + $0x8] sm:$0xff]
    %v4874 = vld [vmem:[#allocation8 + $0x10] sm:$0xff]
    %v4875 = vld [vmem:[#allocation8 + $0x18] sm:$0xff]
    %v4876 = vld [vmem:[#allocation8 + $0x20] sm:$0xff]
    %v4877 = vld [vmem:[#allocation8 + $0x28] sm:$0xff]
    %v4878 = vld [vmem:[#allocation8 + $0x30] sm:$0xff]
    %v4879 = vld [vmem:[#allocation8 + $0x38] sm:$0xff]
    %v4880 = vld [vmem:[#allocation8 + $0x40] sm:$0xff]
    %v4881 = vld [vmem:[#allocation8 + $0x48] sm:$0xff]
    %v4882 = vld [vmem:[#allocation8 + $0x50] sm:$0xff]
    %v4883 = vld [vmem:[#allocation8 + $0x58] sm:$0xff]
    %v4884 = vld [vmem:[#allocation8 + $0x60] sm:$0xff]
    %v4885 = vld [vmem:[#allocation8 + $0x68] sm:$0xff]
    %v4886 = vld [vmem:[#allocation8 + $0x70] sm:$0xff]
    %v4887 = vld [vmem:[#allocation8 + $0x78] sm:$0xff]
    %v4888 = vld [vmem:[#allocation8 + $0x80] sm:$0xff]
    %v4889 = vld [vmem:[#allocation8 + $0x88] sm:$0xff]
    %v4890 = vld [vmem:[#allocation8 + $0x90] sm:$0xff]
    %v4891 = vld [vmem:[#allocation8 + $0x98] sm:$0xff]
    %v4892 = vld [vmem:[#allocation8 + $0xa0] sm:$0xff]
    %v4893 = vld [vmem:[#allocation8 + $0xa8] sm:$0xff]
    %v4894 = vld [vmem:[#allocation8 + $0xb0] sm:$0xff]
    %v4895 = vld [vmem:[#allocation8 + $0xb8] sm:$0xff]
    %v4896 = vld [vmem:[#allocation8 + $0xc0] sm:$0xff]
    %v4897 = vld [vmem:[#allocation8 + $0xc8] sm:$0xff]
    %v4898 = vld [vmem:[#allocation8 + $0xd0] sm:$0xff]
    %v4899 = vld [vmem:[#allocation8 + $0xd8] sm:$0xff]
    %v4900 = vld [vmem:[#allocation8 + $0xe0] sm:$0xff]
    %v4901 = vld [vmem:[#allocation8 + $0xe8] sm:$0xff]
    %v4902 = vld [vmem:[#allocation8 + $0xf0] sm:$0xff]
    %v4903 = vld [vmem:[#allocation8 + $0xf8] sm:$0xff]
    %v4904 = vld [vmem:[#allocation8 + $0x100] sm:$0xff]
    %v4905 = vld [vmem:[#allocation8 + $0x108] sm:$0xff]
    %v4906 = vld [vmem:[#allocation8 + $0x110] sm:$0xff]
    %v4907 = vld [vmem:[#allocation8 + $0x118] sm:$0xff]
    %v4908 = vld [vmem:[#allocation8 + $0x120] sm:$0xff]
    %v4909 = vld [vmem:[#allocation8 + $0x128] sm:$0xff]
    %v4910 = vld [vmem:[#allocation8 + $0x130] sm:$0xff]
    %v4911 = vld [vmem:[#allocation8 + $0x138] sm:$0xff]
    %v4912 = vld [vmem:[#allocation8 + $0x140] sm:$0xff]
    %v4913 = vld [vmem:[#allocation8 + $0x148] sm:$0xff]
    %v4914 = vld [vmem:[#allocation8 + $0x150] sm:$0xff]
    %v4915 = vld [vmem:[#allocation8 + $0x158] sm:$0xff]
    %v4916 = vld [vmem:[#allocation8 + $0x160] sm:$0xff]
    %v4917 = vld [vmem:[#allocation8 + $0x168] sm:$0xff]
    %v4918 = vld [vmem:[#allocation8 + $0x170] sm:$0xff]
    %v4919 = vld [vmem:[#allocation8 + $0x178] sm:$0xff]
    %v4920 = vld [vmem:[#allocation8 + $0x180] sm:$0xff]
    %v4921 = vld [vmem:[#allocation8 + $0x188] sm:$0xff]
    %v4922 = vld [vmem:[#allocation8 + $0x190] sm:$0xff]
    %v4923 = vld [vmem:[#allocation8 + $0x198] sm:$0xff]
    %v4924 = vld [vmem:[#allocation8 + $0x1a0] sm:$0xff]
    %v4925 = vld [vmem:[#allocation8 + $0x1a8] sm:$0xff]
    %v4926 = vld [vmem:[#allocation8 + $0x1b0] sm:$0xff]
    %v4927 = vld [vmem:[#allocation8 + $0x1b8] sm:$0xff]
    %v4928 = vld [vmem:[#allocation8 + $0x1c0] sm:$0xff]
    %v4929 = vld [vmem:[#allocation8 + $0x1c8] sm:$0xff]
    %v4930 = vld [vmem:[#allocation8 + $0x1d0] sm:$0xff]
    %v4931 = vld [vmem:[#allocation8 + $0x1d8] sm:$0xff]
    %v4932 = vld [vmem:[#allocation8 + $0x1e0] sm:$0xff]
    %v4933 = vld [vmem:[#allocation8 + $0x1e8] sm:$0xff]
    %v4934 = vld [vmem:[#allocation8 + $0x1f0] sm:$0xff]
    %v4935 = vld [vmem:[#allocation8 + $0x1f8] sm:$0xff]
    %v4936 = vld [vmem:[#allocation8 + $0x200] sm:$0xff]
    %v4937 = vld [vmem:[#allocation8 + $0x208] sm:$0xff]
    %v4938 = vld [vmem:[#allocation8 + $0x210] sm:$0xff]
    %v4939 = vld [vmem:[#allocation8 + $0x218] sm:$0xff]
    %v4940 = vld [vmem:[#allocation8 + $0x220] sm:$0xff]
    %v4941 = vld [vmem:[#allocation8 + $0x228] sm:$0xff]
    %v4942 = vld [vmem:[#allocation8 + $0x230] sm:$0xff]
    %v4943 = vld [vmem:[#allocation8 + $0x238] sm:$0xff]
    %v4944 = vld [vmem:[#allocation8 + $0x240] sm:$0xff]
    %v4945 = vld [vmem:[#allocation8 + $0x248] sm:$0xff]
    %v4946 = vld [vmem:[#allocation8 + $0x250] sm:$0xff]
    %v4947 = vld [vmem:[#allocation8 + $0x258] sm:$0xff]
    %v4948 = vld [vmem:[#allocation8 + $0x260] sm:$0xff]
    %v4949 = vld [vmem:[#allocation8 + $0x268] sm:$0xff]
    %v4950 = vld [vmem:[#allocation8 + $0x270] sm:$0xff]
    %v4951 = vld [vmem:[#allocation8 + $0x278] sm:$0xff]
    %v4952 = vld [vmem:[#allocation8 + $0x280] sm:$0xff]
    %v4953 = vld [vmem:[#allocation8 + $0x288] sm:$0xff]
    %v4954 = vld [vmem:[#allocation8 + $0x290] sm:$0xff]
    %v4955 = vld [vmem:[#allocation8 + $0x298] sm:$0xff]
    %v4956 = vld [vmem:[#allocation8 + $0x2a0] sm:$0xff]
    %v4957 = vld [vmem:[#allocation8 + $0x2a8] sm:$0xff]
    %v4958 = vld [vmem:[#allocation8 + $0x2b0] sm:$0xff]
    %v4959 = vld [vmem:[#allocation8 + $0x2b8] sm:$0xff]
    %v4960 = vld [vmem:[#allocation8 + $0x2c0] sm:$0xff]
    %v4961 = vld [vmem:[#allocation8 + $0x2c8] sm:$0xff]
    %v4962 = vld [vmem:[#allocation8 + $0x2d0] sm:$0xff]
    %v4963 = vld [vmem:[#allocation8 + $0x2d8] sm:$0xff]
    %v4964 = vld [vmem:[#allocation8 + $0x2e0] sm:$0xff]
    %v4965 = vld [vmem:[#allocation8 + $0x2e8] sm:$0xff]
    %v4966 = vld [vmem:[#allocation8 + $0x2f0] sm:$0xff]
    %v4967 = vld [vmem:[#allocation8 + $0x2f8] sm:$0xff]
    %v4968 = vld [vmem:[#allocation8 + $0x300] sm:$0xff]
    %v4969 = vld [vmem:[#allocation8 + $0x308] sm:$0xff]
    %v4970 = vld [vmem:[#allocation8 + $0x310] sm:$0xff]
    %v4971 = vld [vmem:[#allocation8 + $0x318] sm:$0xff]
    %v4972 = vld [vmem:[#allocation8 + $0x320] sm:$0xff]
    %v4973 = vld [vmem:[#allocation8 + $0x328] sm:$0xff]
    %v4974 = vld [vmem:[#allocation8 + $0x330] sm:$0xff]
    %v4975 = vld [vmem:[#allocation8 + $0x338] sm:$0xff]
    %v4976 = vld [vmem:[#allocation8 + $0x340] sm:$0xff]
    %v4977 = vld [vmem:[#allocation8 + $0x348] sm:$0xff]
    %v4978 = vld [vmem:[#allocation8 + $0x350] sm:$0xff]
    %v4979 = vld [vmem:[#allocation8 + $0x358] sm:$0xff]
    %v4980 = vld [vmem:[#allocation8 + $0x360] sm:$0xff]
    %v4981 = vld [vmem:[#allocation8 + $0x368] sm:$0xff]
    %v4982 = vld [vmem:[#allocation8 + $0x370] sm:$0xff]
    %v4983 = vld [vmem:[#allocation8 + $0x378] sm:$0xff]
    %v4984 = vld [vmem:[#allocation8 + $0x380] sm:$0xff]
    %v4985 = vld [vmem:[#allocation8 + $0x388] sm:$0xff]
    %v4986 = vld [vmem:[#allocation8 + $0x390] sm:$0xff]
    %v4987 = vld [vmem:[#allocation8 + $0x398] sm:$0xff]
    %v4988 = vld [vmem:[#allocation8 + $0x3a0] sm:$0xff]
    %v4989 = vld [vmem:[#allocation8 + $0x3a8] sm:$0xff]
    %v4990 = vld [vmem:[#allocation8 + $0x3b0] sm:$0xff]
    %v4991 = vld [vmem:[#allocation8 + $0x3b8] sm:$0xff]
    %v4992 = vld [vmem:[#allocation8 + $0x3c0] sm:$0xff]
    %v4993 = vld [vmem:[#allocation8 + $0x3c8] sm:$0xff]
    %v4994 = vld [vmem:[#allocation8 + $0x3d0] sm:$0xff]
    %v4995 = vld [vmem:[#allocation8 + $0x3d8] sm:$0xff]
    %v4996 = vld [vmem:[#allocation8 + $0x3e0] sm:$0xff]
    %v4997 = vld [vmem:[#allocation8 + $0x3e8] sm:$0xff]
    %v4998 = vld [vmem:[#allocation8 + $0x3f0] sm:$0xff]
    %v4999 = vld [vmem:[#allocation8 + $0x3f8] sm:$0xff]
    %v5128 = vunpack.c.l.b16 %v4872
    %v5129 = vunpack.c.h.b16 %v4872
    %v5130 = vunpack.c.l.b16 %v4873
    %v5131 = vunpack.c.h.b16 %v4873
    %v5132 = vunpack.c.l.b16 %v4874
    %v5133 = vunpack.c.h.b16 %v4874
    %v5134 = vunpack.c.l.b16 %v4875
    %v5135 = vunpack.c.h.b16 %v4875
    %v5136 = vunpack.c.l.b16 %v4876
    %v5137 = vunpack.c.h.b16 %v4876
    %v5138 = vunpack.c.l.b16 %v4877
    %v5139 = vunpack.c.h.b16 %v4877
    %v5140 = vunpack.c.l.b16 %v4878
    %v5141 = vunpack.c.h.b16 %v4878
    %v5142 = vunpack.c.l.b16 %v4879
    %v5143 = vunpack.c.h.b16 %v4879
    %v5144 = vunpack.c.l.b16 %v4880
    %v5145 = vunpack.c.h.b16 %v4880
    %v5146 = vunpack.c.l.b16 %v4881
    %v5147 = vunpack.c.h.b16 %v4881
    %v5148 = vunpack.c.l.b16 %v4882
    %v5149 = vunpack.c.h.b16 %v4882
    %v5150 = vunpack.c.l.b16 %v4883
    %v5151 = vunpack.c.h.b16 %v4883
    %v5152 = vunpack.c.l.b16 %v4884
    %v5153 = vunpack.c.h.b16 %v4884
    %v5154 = vunpack.c.l.b16 %v4885
    %v5155 = vunpack.c.h.b16 %v4885
    %v5156 = vunpack.c.l.b16 %v4886
    %v5157 = vunpack.c.h.b16 %v4886
    %v5158 = vunpack.c.l.b16 %v4887
    %v5159 = vunpack.c.h.b16 %v4887
    %v5160 = vunpack.c.l.b16 %v4888
    %v5161 = vunpack.c.h.b16 %v4888
    %v5162 = vunpack.c.l.b16 %v4889
    %v5163 = vunpack.c.h.b16 %v4889
    %v5164 = vunpack.c.l.b16 %v4890
    %v5165 = vunpack.c.h.b16 %v4890
    %v5166 = vunpack.c.l.b16 %v4891
    %v5167 = vunpack.c.h.b16 %v4891
    %v5168 = vunpack.c.l.b16 %v4892
    %v5169 = vunpack.c.h.b16 %v4892
    %v5170 = vunpack.c.l.b16 %v4893
    %v5171 = vunpack.c.h.b16 %v4893
    %v5172 = vunpack.c.l.b16 %v4894
    %v5173 = vunpack.c.h.b16 %v4894
    %v5174 = vunpack.c.l.b16 %v4895
    %v5175 = vunpack.c.h.b16 %v4895
    %v5176 = vunpack.c.l.b16 %v4896
    %v5177 = vunpack.c.h.b16 %v4896
    %v5178 = vunpack.c.l.b16 %v4897
    %v5179 = vunpack.c.h.b16 %v4897
    %v5180 = vunpack.c.l.b16 %v4898
    %v5181 = vunpack.c.h.b16 %v4898
    %v5182 = vunpack.c.l.b16 %v4899
    %v5183 = vunpack.c.h.b16 %v4899
    %v5184 = vunpack.c.l.b16 %v4900
    %v5185 = vunpack.c.h.b16 %v4900
    %v5186 = vunpack.c.l.b16 %v4901
    %v5187 = vunpack.c.h.b16 %v4901
    %v5188 = vunpack.c.l.b16 %v4902
    %v5189 = vunpack.c.h.b16 %v4902
    %v5190 = vunpack.c.l.b16 %v4903
    %v5191 = vunpack.c.h.b16 %v4903
    %v5192 = vunpack.c.l.b16 %v4904
    %v5193 = vunpack.c.h.b16 %v4904
    %v5194 = vunpack.c.l.b16 %v4905
    %v5195 = vunpack.c.h.b16 %v4905
    %v5196 = vunpack.c.l.b16 %v4906
    %v5197 = vunpack.c.h.b16 %v4906
    %v5198 = vunpack.c.l.b16 %v4907
    %v5199 = vunpack.c.h.b16 %v4907
    %v5200 = vunpack.c.l.b16 %v4908
    %v5201 = vunpack.c.h.b16 %v4908
    %v5202 = vunpack.c.l.b16 %v4909
    %v5203 = vunpack.c.h.b16 %v4909
    %v5204 = vunpack.c.l.b16 %v4910
    %v5205 = vunpack.c.h.b16 %v4910
    %v5206 = vunpack.c.l.b16 %v4911
    %v5207 = vunpack.c.h.b16 %v4911
    %v5208 = vunpack.c.l.b16 %v4912
    %v5209 = vunpack.c.h.b16 %v4912
    %v5210 = vunpack.c.l.b16 %v4913
    %v5211 = vunpack.c.h.b16 %v4913
    %v5212 = vunpack.c.l.b16 %v4914
    %v5213 = vunpack.c.h.b16 %v4914
    %v5214 = vunpack.c.l.b16 %v4915
    %v5215 = vunpack.c.h.b16 %v4915
    %v5216 = vunpack.c.l.b16 %v4916
    %v5217 = vunpack.c.h.b16 %v4916
    %v5218 = vunpack.c.l.b16 %v4917
    %v5219 = vunpack.c.h.b16 %v4917
    %v5220 = vunpack.c.l.b16 %v4918
    %v5221 = vunpack.c.h.b16 %v4918
    %v5222 = vunpack.c.l.b16 %v4919
    %v5223 = vunpack.c.h.b16 %v4919
    %v5224 = vunpack.c.l.b16 %v4920
    %v5225 = vunpack.c.h.b16 %v4920
    %v5226 = vunpack.c.l.b16 %v4921
    %v5227 = vunpack.c.h.b16 %v4921
    %v5228 = vunpack.c.l.b16 %v4922
    %v5229 = vunpack.c.h.b16 %v4922
    %v5230 = vunpack.c.l.b16 %v4923
    %v5231 = vunpack.c.h.b16 %v4923
    %v5232 = vunpack.c.l.b16 %v4924
    %v5233 = vunpack.c.h.b16 %v4924
    %v5234 = vunpack.c.l.b16 %v4925
    %v5235 = vunpack.c.h.b16 %v4925
    %v5236 = vunpack.c.l.b16 %v4926
    %v5237 = vunpack.c.h.b16 %v4926
    %v5238 = vunpack.c.l.b16 %v4927
    %v5239 = vunpack.c.h.b16 %v4927
    %v5240 = vunpack.c.l.b16 %v4928
    %v5241 = vunpack.c.h.b16 %v4928
    %v5242 = vunpack.c.l.b16 %v4929
    %v5243 = vunpack.c.h.b16 %v4929
    %v5244 = vunpack.c.l.b16 %v4930
    %v5245 = vunpack.c.h.b16 %v4930
    %v5246 = vunpack.c.l.b16 %v4931
    %v5247 = vunpack.c.h.b16 %v4931
    %v5248 = vunpack.c.l.b16 %v4932
    %v5249 = vunpack.c.h.b16 %v4932
    %v5250 = vunpack.c.l.b16 %v4933
    %v5251 = vunpack.c.h.b16 %v4933
    %v5252 = vunpack.c.l.b16 %v4934
    %v5253 = vunpack.c.h.b16 %v4934
    %v5254 = vunpack.c.l.b16 %v4935
    %v5255 = vunpack.c.h.b16 %v4935
    %v5256 = vunpack.c.l.b16 %v4936
    %v5257 = vunpack.c.h.b16 %v4936
    %v5258 = vunpack.c.l.b16 %v4937
    %v5259 = vunpack.c.h.b16 %v4937
    %v5260 = vunpack.c.l.b16 %v4938
    %v5261 = vunpack.c.h.b16 %v4938
    %v5262 = vunpack.c.l.b16 %v4939
    %v5263 = vunpack.c.h.b16 %v4939
    %v5264 = vunpack.c.l.b16 %v4940
    %v5265 = vunpack.c.h.b16 %v4940
    %v5266 = vunpack.c.l.b16 %v4941
    %v5267 = vunpack.c.h.b16 %v4941
    %v5268 = vunpack.c.l.b16 %v4942
    %v5269 = vunpack.c.h.b16 %v4942
    %v5270 = vunpack.c.l.b16 %v4943
    %v5271 = vunpack.c.h.b16 %v4943
    %v5272 = vunpack.c.l.b16 %v4944
    %v5273 = vunpack.c.h.b16 %v4944
    %v5274 = vunpack.c.l.b16 %v4945
    %v5275 = vunpack.c.h.b16 %v4945
    %v5276 = vunpack.c.l.b16 %v4946
    %v5277 = vunpack.c.h.b16 %v4946
    %v5278 = vunpack.c.l.b16 %v4947
    %v5279 = vunpack.c.h.b16 %v4947
    %v5280 = vunpack.c.l.b16 %v4948
    %v5281 = vunpack.c.h.b16 %v4948
    %v5282 = vunpack.c.l.b16 %v4949
    %v5283 = vunpack.c.h.b16 %v4949
    %v5284 = vunpack.c.l.b16 %v4950
    %v5285 = vunpack.c.h.b16 %v4950
    %v5286 = vunpack.c.l.b16 %v4951
    %v5287 = vunpack.c.h.b16 %v4951
    %v5288 = vunpack.c.l.b16 %v4952
    %v5289 = vunpack.c.h.b16 %v4952
    %v5290 = vunpack.c.l.b16 %v4953
    %v5291 = vunpack.c.h.b16 %v4953
    %v5292 = vunpack.c.l.b16 %v4954
    %v5293 = vunpack.c.h.b16 %v4954
    %v5294 = vunpack.c.l.b16 %v4955
    %v5295 = vunpack.c.h.b16 %v4955
    %v5296 = vunpack.c.l.b16 %v4956
    %v5297 = vunpack.c.h.b16 %v4956
    %v5298 = vunpack.c.l.b16 %v4957
    %v5299 = vunpack.c.h.b16 %v4957
    %v5300 = vunpack.c.l.b16 %v4958
    %v5301 = vunpack.c.h.b16 %v4958
    %v5302 = vunpack.c.l.b16 %v4959
    %v5303 = vunpack.c.h.b16 %v4959
    %v5304 = vunpack.c.l.b16 %v4960
    %v5305 = vunpack.c.h.b16 %v4960
    %v5306 = vunpack.c.l.b16 %v4961
    %v5307 = vunpack.c.h.b16 %v4961
    %v5308 = vunpack.c.l.b16 %v4962
    %v5309 = vunpack.c.h.b16 %v4962
    %v5310 = vunpack.c.l.b16 %v4963
    %v5311 = vunpack.c.h.b16 %v4963
    %v5312 = vunpack.c.l.b16 %v4964
    %v5313 = vunpack.c.h.b16 %v4964
    %v5314 = vunpack.c.l.b16 %v4965
    %v5315 = vunpack.c.h.b16 %v4965
    %v5316 = vunpack.c.l.b16 %v4966
    %v5317 = vunpack.c.h.b16 %v4966
    %v5318 = vunpack.c.l.b16 %v4967
    %v5319 = vunpack.c.h.b16 %v4967
    %v5320 = vunpack.c.l.b16 %v4968
    %v5321 = vunpack.c.h.b16 %v4968
    %v5322 = vunpack.c.l.b16 %v4969
    %v5323 = vunpack.c.h.b16 %v4969
    %v5324 = vunpack.c.l.b16 %v4970
    %v5325 = vunpack.c.h.b16 %v4970
    %v5326 = vunpack.c.l.b16 %v4971
    %v5327 = vunpack.c.h.b16 %v4971
    %v5328 = vunpack.c.l.b16 %v4972
    %v5329 = vunpack.c.h.b16 %v4972
    %v5330 = vunpack.c.l.b16 %v4973
    %v5331 = vunpack.c.h.b16 %v4973
    %v5332 = vunpack.c.l.b16 %v4974
    %v5333 = vunpack.c.h.b16 %v4974
    %v5334 = vunpack.c.l.b16 %v4975
    %v5335 = vunpack.c.h.b16 %v4975
    %v5336 = vunpack.c.l.b16 %v4976
    %v5337 = vunpack.c.h.b16 %v4976
    %v5338 = vunpack.c.l.b16 %v4977
    %v5339 = vunpack.c.h.b16 %v4977
    %v5340 = vunpack.c.l.b16 %v4978
    %v5341 = vunpack.c.h.b16 %v4978
    %v5342 = vunpack.c.l.b16 %v4979
    %v5343 = vunpack.c.h.b16 %v4979
    %v5344 = vunpack.c.l.b16 %v4980
    %v5345 = vunpack.c.h.b16 %v4980
    %v5346 = vunpack.c.l.b16 %v4981
    %v5347 = vunpack.c.h.b16 %v4981
    %v5348 = vunpack.c.l.b16 %v4982
    %v5349 = vunpack.c.h.b16 %v4982
    %v5350 = vunpack.c.l.b16 %v4983
    %v5351 = vunpack.c.h.b16 %v4983
    %v5352 = vunpack.c.l.b16 %v4984
    %v5353 = vunpack.c.h.b16 %v4984
    %v5354 = vunpack.c.l.b16 %v4985
    %v5355 = vunpack.c.h.b16 %v4985
    %v5356 = vunpack.c.l.b16 %v4986
    %v5357 = vunpack.c.h.b16 %v4986
    %v5358 = vunpack.c.l.b16 %v4987
    %v5359 = vunpack.c.h.b16 %v4987
    %v5360 = vunpack.c.l.b16 %v4988
    %v5361 = vunpack.c.h.b16 %v4988
    %v5362 = vunpack.c.l.b16 %v4989
    %v5363 = vunpack.c.h.b16 %v4989
    %v5364 = vunpack.c.l.b16 %v4990
    %v5365 = vunpack.c.h.b16 %v4990
    %v5366 = vunpack.c.l.b16 %v4991
    %v5367 = vunpack.c.h.b16 %v4991
    %v5368 = vunpack.c.l.b16 %v4992
    %v5369 = vunpack.c.h.b16 %v4992
    %v5370 = vunpack.c.l.b16 %v4993
    %v5371 = vunpack.c.h.b16 %v4993
    %v5372 = vunpack.c.l.b16 %v4994
    %v5373 = vunpack.c.h.b16 %v4994
    %v5374 = vunpack.c.l.b16 %v4995
    %v5375 = vunpack.c.h.b16 %v4995
    %v5376 = vunpack.c.l.b16 %v4996
    %v5377 = vunpack.c.h.b16 %v4996
    %v5378 = vunpack.c.l.b16 %v4997
    %v5379 = vunpack.c.h.b16 %v4997
    %v5380 = vunpack.c.l.b16 %v4998
    %v5381 = vunpack.c.h.b16 %v4998
    %v5382 = vunpack.c.l.b16 %v4999
    %v5383 = vunpack.c.h.b16 %v4999
    %v5384 = vpack.c.b16 %v5136, %v5128
    %v5385 = vpack.c.b16 %v5137, %v5129
    %v5386 = vpack.c.b16 %v5138, %v5130
    %v5387 = vpack.c.b16 %v5139, %v5131
    %v5388 = vpack.c.b16 %v5140, %v5132
    %v5389 = vpack.c.b16 %v5141, %v5133
    %v5390 = vpack.c.b16 %v5142, %v5134
    %v5391 = vpack.c.b16 %v5143, %v5135
    %v5392 = vpack.c.b16 %v5152, %v5144
    %v5393 = vpack.c.b16 %v5153, %v5145
    %v5394 = vpack.c.b16 %v5154, %v5146
    %v5395 = vpack.c.b16 %v5155, %v5147
    %v5396 = vpack.c.b16 %v5156, %v5148
    %v5397 = vpack.c.b16 %v5157, %v5149
    %v5398 = vpack.c.b16 %v5158, %v5150
    %v5399 = vpack.c.b16 %v5159, %v5151
    %v5400 = vpack.c.b16 %v5168, %v5160
    %v5401 = vpack.c.b16 %v5169, %v5161
    %v5402 = vpack.c.b16 %v5170, %v5162
    %v5403 = vpack.c.b16 %v5171, %v5163
    %v5404 = vpack.c.b16 %v5172, %v5164
    %v5405 = vpack.c.b16 %v5173, %v5165
    %v5406 = vpack.c.b16 %v5174, %v5166
    %v5407 = vpack.c.b16 %v5175, %v5167
    %v5408 = vpack.c.b16 %v5184, %v5176
    %v5409 = vpack.c.b16 %v5185, %v5177
    %v5410 = vpack.c.b16 %v5186, %v5178
    %v5411 = vpack.c.b16 %v5187, %v5179
    %v5412 = vpack.c.b16 %v5188, %v5180
    %v5413 = vpack.c.b16 %v5189, %v5181
    %v5414 = vpack.c.b16 %v5190, %v5182
    %v5415 = vpack.c.b16 %v5191, %v5183
    %v5416 = vpack.c.b16 %v5200, %v5192
    %v5417 = vpack.c.b16 %v5201, %v5193
    %v5418 = vpack.c.b16 %v5202, %v5194
    %v5419 = vpack.c.b16 %v5203, %v5195
    %v5420 = vpack.c.b16 %v5204, %v5196
    %v5421 = vpack.c.b16 %v5205, %v5197
    %v5422 = vpack.c.b16 %v5206, %v5198
    %v5423 = vpack.c.b16 %v5207, %v5199
    %v5424 = vpack.c.b16 %v5216, %v5208
    %v5425 = vpack.c.b16 %v5217, %v5209
    %v5426 = vpack.c.b16 %v5218, %v5210
    %v5427 = vpack.c.b16 %v5219, %v5211
    %v5428 = vpack.c.b16 %v5220, %v5212
    %v5429 = vpack.c.b16 %v5221, %v5213
    %v5430 = vpack.c.b16 %v5222, %v5214
    %v5431 = vpack.c.b16 %v5223, %v5215
    %v5432 = vpack.c.b16 %v5232, %v5224
    %v5433 = vpack.c.b16 %v5233, %v5225
    %v5434 = vpack.c.b16 %v5234, %v5226
    %v5435 = vpack.c.b16 %v5235, %v5227
    %v5436 = vpack.c.b16 %v5236, %v5228
    %v5437 = vpack.c.b16 %v5237, %v5229
    %v5438 = vpack.c.b16 %v5238, %v5230
    %v5439 = vpack.c.b16 %v5239, %v5231
    %v5440 = vpack.c.b16 %v5248, %v5240
    %v5441 = vpack.c.b16 %v5249, %v5241
    %v5442 = vpack.c.b16 %v5250, %v5242
    %v5443 = vpack.c.b16 %v5251, %v5243
    %v5444 = vpack.c.b16 %v5252, %v5244
    %v5445 = vpack.c.b16 %v5253, %v5245
    %v5446 = vpack.c.b16 %v5254, %v5246
    %v5447 = vpack.c.b16 %v5255, %v5247
    %v5448 = vpack.c.b16 %v5264, %v5256
    %v5449 = vpack.c.b16 %v5265, %v5257
    %v5450 = vpack.c.b16 %v5266, %v5258
    %v5451 = vpack.c.b16 %v5267, %v5259
    %v5452 = vpack.c.b16 %v5268, %v5260
    %v5453 = vpack.c.b16 %v5269, %v5261
    %v5454 = vpack.c.b16 %v5270, %v5262
    %v5455 = vpack.c.b16 %v5271, %v5263
    %v5456 = vpack.c.b16 %v5280, %v5272
    %v5457 = vpack.c.b16 %v5281, %v5273
    %v5458 = vpack.c.b16 %v5282, %v5274
    %v5459 = vpack.c.b16 %v5283, %v5275
    %v5460 = vpack.c.b16 %v5284, %v5276
    %v5461 = vpack.c.b16 %v5285, %v5277
    %v5462 = vpack.c.b16 %v5286, %v5278
    %v5463 = vpack.c.b16 %v5287, %v5279
    %v5464 = vpack.c.b16 %v5296, %v5288
    %v5465 = vpack.c.b16 %v5297, %v5289
    %v5466 = vpack.c.b16 %v5298, %v5290
    %v5467 = vpack.c.b16 %v5299, %v5291
    %v5468 = vpack.c.b16 %v5300, %v5292
    %v5469 = vpack.c.b16 %v5301, %v5293
    %v5470 = vpack.c.b16 %v5302, %v5294
    %v5471 = vpack.c.b16 %v5303, %v5295
    %v5472 = vpack.c.b16 %v5312, %v5304
    %v5473 = vpack.c.b16 %v5313, %v5305
    %v5474 = vpack.c.b16 %v5314, %v5306
    %v5475 = vpack.c.b16 %v5315, %v5307
    %v5476 = vpack.c.b16 %v5316, %v5308
    %v5477 = vpack.c.b16 %v5317, %v5309
    %v5478 = vpack.c.b16 %v5318, %v5310
    %v5479 = vpack.c.b16 %v5319, %v5311
    %v5480 = vpack.c.b16 %v5328, %v5320
    %v5481 = vpack.c.b16 %v5329, %v5321
    %v5482 = vpack.c.b16 %v5330, %v5322
    %v5483 = vpack.c.b16 %v5331, %v5323
    %v5484 = vpack.c.b16 %v5332, %v5324
    %v5485 = vpack.c.b16 %v5333, %v5325
    %v5486 = vpack.c.b16 %v5334, %v5326
    %v5487 = vpack.c.b16 %v5335, %v5327
    %v5488 = vpack.c.b16 %v5344, %v5336
    %v5489 = vpack.c.b16 %v5345, %v5337
    %v5490 = vpack.c.b16 %v5346, %v5338
    %v5491 = vpack.c.b16 %v5347, %v5339
    %v5492 = vpack.c.b16 %v5348, %v5340
    %v5493 = vpack.c.b16 %v5349, %v5341
    %v5494 = vpack.c.b16 %v5350, %v5342
    %v5495 = vpack.c.b16 %v5351, %v5343
    %v5496 = vpack.c.b16 %v5360, %v5352
    %v5497 = vpack.c.b16 %v5361, %v5353
    %v5498 = vpack.c.b16 %v5362, %v5354
    %v5499 = vpack.c.b16 %v5363, %v5355
    %v5500 = vpack.c.b16 %v5364, %v5356
    %v5501 = vpack.c.b16 %v5365, %v5357
    %v5502 = vpack.c.b16 %v5366, %v5358
    %v5503 = vpack.c.b16 %v5367, %v5359
    %v5504 = vpack.c.b16 %v5376, %v5368
    %v5505 = vpack.c.b16 %v5377, %v5369
    %v5506 = vpack.c.b16 %v5378, %v5370
    %v5507 = vpack.c.b16 %v5379, %v5371
    %v5508 = vpack.c.b16 %v5380, %v5372
    %v5509 = vpack.c.b16 %v5381, %v5373
    %v5510 = vpack.c.b16 %v5382, %v5374
    %v5511 = vpack.c.b16 %v5383, %v5375
    %5640 = vmatprep.subr.bf16.mxu0 %v5441
    %5641 = vmatpush1.bf16.msra.mxu0 %v5440
    %5642 = vmatprep.subr.bf16.mxu0 %v5433
    %5643 = vmatpush1.bf16.msra.mxu0 %v5432
    %5644 = vmatprep.subr.bf16.mxu0 %v5425
    %5645 = vmatpush1.bf16.msra.mxu0 %v5424
    %5646 = vmatprep.subr.bf16.mxu0 %v5417
    %5647 = vmatpush1.bf16.msra.mxu0 %v5416
    %5648 = vmatprep.subr.bf16.mxu0 %v5409
    %5649 = vmatpush1.bf16.msra.mxu0 %v5408
    %5650 = vmatprep.subr.bf16.mxu0 %v5401
    %5651 = vmatpush1.bf16.msra.mxu0 %v5400
    %5652 = vmatprep.subr.bf16.mxu0 %v5393
    %5653 = vmatpush1.bf16.msra.mxu0 %v5392
    %5654 = vmatprep.subr.bf16.mxu0 %v5385
    %5655 = vmatpush1.bf16.msra.mxu0 %v5384
    %5656 = vmatprep.subr.bf16.mxu0 %v5505
    %5657 = vmatpush2.bf16.msra.mxu0 %v5504
    %5658 = vmatprep.subr.bf16.mxu0 %v5497
    %5659 = vmatpush2.bf16.msra.mxu0 %v5496
    %5660 = vmatprep.subr.bf16.mxu0 %v5489
    %5661 = vmatpush2.bf16.msra.mxu0 %v5488
    %5662 = vmatprep.subr.bf16.mxu0 %v5481
    %5663 = vmatpush2.bf16.msra.mxu0 %v5480
    %5664 = vmatprep.subr.bf16.mxu0 %v5473
    %5665 = vmatpush2.bf16.msra.mxu0 %v5472
    %5666 = vmatprep.subr.bf16.mxu0 %v5465
    %5667 = vmatpush2.bf16.msra.mxu0 %v5464
    %5668 = vmatprep.subr.bf16.mxu0 %v5457
    %5669 = vmatpush2.bf16.msra.mxu0 %v5456
    %5670 = vmatprep.subr.bf16.mxu0 %v5449
    %5671 = vmatpush2.bf16.msra.mxu0 %v5448
    %5672 = vmatprep.mubr.bf16.mxu0 %v4871
    %5673 = vmatmul.mubr.bf16.gmra.mxu0 %v4870
    %v5674 = vpop.f32.mrf.mxu0
    %v5675 = vadd.f32 0.0, %v5674
    %v5676 = vpop.f32.mrf.mxu0
    %v5677 = vadd.f32 0.0, %v5676
    %v5678 = vpop.f32.mrf.mxu0
    %v5679 = vpop.f32.mrf.mxu0
    %5680 = vdwg.mxu0
    %5681 = vmatprep.subr.bf16.mxu0 %v5443
    %5682 = vmatpush1.bf16.msra.mxu0 %v5442
    %5683 = vmatprep.subr.bf16.mxu0 %v5435
    %5684 = vmatpush1.bf16.msra.mxu0 %v5434
    %5685 = vmatprep.subr.bf16.mxu0 %v5427
    %5686 = vmatpush1.bf16.msra.mxu0 %v5426
    %5687 = vmatprep.subr.bf16.mxu0 %v5419
    %5688 = vmatpush1.bf16.msra.mxu0 %v5418
    %5689 = vmatprep.subr.bf16.mxu0 %v5411
    %5690 = vmatpush1.bf16.msra.mxu0 %v5410
    %5691 = vmatprep.subr.bf16.mxu0 %v5403
    %5692 = vmatpush1.bf16.msra.mxu0 %v5402
    %5693 = vmatprep.subr.bf16.mxu0 %v5395
    %5694 = vmatpush1.bf16.msra.mxu0 %v5394
    %5695 = vmatprep.subr.bf16.mxu0 %v5387
    %5696 = vmatpush1.bf16.msra.mxu0 %v5386
    %5697 = vmatprep.subr.bf16.mxu0 %v5507
    %5698 = vmatpush2.bf16.msra.mxu0 %v5506
    %5699 = vmatprep.subr.bf16.mxu0 %v5499
    %5700 = vmatpush2.bf16.msra.mxu0 %v5498
    %5701 = vmatprep.subr.bf16.mxu0 %v5491
    %5702 = vmatpush2.bf16.msra.mxu0 %v5490
    %5703 = vmatprep.subr.bf16.mxu0 %v5483
    %5704 = vmatpush2.bf16.msra.mxu0 %v5482
    %5705 = vmatprep.subr.bf16.mxu0 %v5475
    %5706 = vmatpush2.bf16.msra.mxu0 %v5474
    %5707 = vmatprep.subr.bf16.mxu0 %v5467
    %5708 = vmatpush2.bf16.msra.mxu0 %v5466
    %5709 = vmatprep.subr.bf16.mxu0 %v5459
    %5710 = vmatpush2.bf16.msra.mxu0 %v5458
    %5711 = vmatprep.subr.bf16.mxu0 %v5451
    %5712 = vmatpush2.bf16.msra.mxu0 %v5450
    %5713 = vmatprep.mubr.bf16.mxu0 %v4871
    %5714 = vmatmul.mubr.bf16.gmra.mxu0 %v4870
    %v5715 = vpop.f32.mrf.mxu0
    %v5716 = vadd.f32 0.0, %v5715
    %v5717 = vpop.f32.mrf.mxu0
    %v5718 = vadd.f32 0.0, %v5717
    %v5719 = vpop.f32.mrf.mxu0
    %v5720 = vpop.f32.mrf.mxu0
    %5721 = vdwg.mxu0
    %5722 = vmatprep.subr.bf16.mxu0 %v5445
    %5723 = vmatpush1.bf16.msra.mxu0 %v5444
    %5724 = vmatprep.subr.bf16.mxu0 %v5437
    %5725 = vmatpush1.bf16.msra.mxu0 %v5436
    %5726 = vmatprep.subr.bf16.mxu0 %v5429
    %5727 = vmatpush1.bf16.msra.mxu0 %v5428
    %5728 = vmatprep.subr.bf16.mxu0 %v5421
    %5729 = vmatpush1.bf16.msra.mxu0 %v5420
    %5730 = vmatprep.subr.bf16.mxu0 %v5413
    %5731 = vmatpush1.bf16.msra.mxu0 %v5412
    %5732 = vmatprep.subr.bf16.mxu0 %v5405
    %5733 = vmatpush1.bf16.msra.mxu0 %v5404
    %5734 = vmatprep.subr.bf16.mxu0 %v5397
    %5735 = vmatpush1.bf16.msra.mxu0 %v5396
    %5736 = vmatprep.subr.bf16.mxu0 %v5389
    %5737 = vmatpush1.bf16.msra.mxu0 %v5388
    %5738 = vmatprep.subr.bf16.mxu0 %v5509
    %5739 = vmatpush2.bf16.msra.mxu0 %v5508
    %5740 = vmatprep.subr.bf16.mxu0 %v5501
    %5741 = vmatpush2.bf16.msra.mxu0 %v5500
    %5742 = vmatprep.subr.bf16.mxu0 %v5493
    %5743 = vmatpush2.bf16.msra.mxu0 %v5492
    %5744 = vmatprep.subr.bf16.mxu0 %v5485
    %5745 = vmatpush2.bf16.msra.mxu0 %v5484
    %5746 = vmatprep.subr.bf16.mxu0 %v5477
    %5747 = vmatpush2.bf16.msra.mxu0 %v5476
    %5748 = vmatprep.subr.bf16.mxu0 %v5469
    %5749 = vmatpush2.bf16.msra.mxu0 %v5468
    %5750 = vmatprep.subr.bf16.mxu0 %v5461
    %5751 = vmatpush2.bf16.msra.mxu0 %v5460
    %5752 = vmatprep.subr.bf16.mxu0 %v5453
    %5753 = vmatpush2.bf16.msra.mxu0 %v5452
    %5754 = vmatprep.mubr.bf16.mxu0 %v4871
    %5755 = vmatmul.mubr.bf16.gmra.mxu0 %v4870
    %v5756 = vpop.f32.mrf.mxu0
    %v5757 = vadd.f32 0.0, %v5756
    %v5758 = vpop.f32.mrf.mxu0
    %v5759 = vadd.f32 0.0, %v5758
    %v5760 = vpop.f32.mrf.mxu0
    %v5761 = vpop.f32.mrf.mxu0
    %5762 = vdwg.mxu0
    %5763 = vmatprep.subr.bf16.mxu0 %v5447
    %5764 = vmatpush1.bf16.msra.mxu0 %v5446
    %5765 = vmatprep.subr.bf16.mxu0 %v5439
    %5766 = vmatpush1.bf16.msra.mxu0 %v5438
    %5767 = vmatprep.subr.bf16.mxu0 %v5431
    %5768 = vmatpush1.bf16.msra.mxu0 %v5430
    %5769 = vmatprep.subr.bf16.mxu0 %v5423
    %5770 = vmatpush1.bf16.msra.mxu0 %v5422
    %5771 = vmatprep.subr.bf16.mxu0 %v5415
    %5772 = vmatpush1.bf16.msra.mxu0 %v5414
    %5773 = vmatprep.subr.bf16.mxu0 %v5407
    %5774 = vmatpush1.bf16.msra.mxu0 %v5406
    %5775 = vmatprep.subr.bf16.mxu0 %v5399
    %5776 = vmatpush1.bf16.msra.mxu0 %v5398
    %5777 = vmatprep.subr.bf16.mxu0 %v5391
    %5778 = vmatpush1.bf16.msra.mxu0 %v5390
    %5779 = vmatprep.subr.bf16.mxu0 %v5511
    %5780 = vmatpush2.bf16.msra.mxu0 %v5510
    %5781 = vmatprep.subr.bf16.mxu0 %v5503
    %5782 = vmatpush2.bf16.msra.mxu0 %v5502
    %5783 = vmatprep.subr.bf16.mxu0 %v5495
    %5784 = vmatpush2.bf16.msra.mxu0 %v5494
    %5785 = vmatprep.subr.bf16.mxu0 %v5487
    %5786 = vmatpush2.bf16.msra.mxu0 %v5486
    %5787 = vmatprep.subr.bf16.mxu0 %v5479
    %5788 = vmatpush2.bf16.msra.mxu0 %v5478
    %5789 = vmatprep.subr.bf16.mxu0 %v5471
    %5790 = vmatpush2.bf16.msra.mxu0 %v5470
    %5791 = vmatprep.subr.bf16.mxu0 %v5463
    %5792 = vmatpush2.bf16.msra.mxu0 %v5462
    %5793 = vmatprep.subr.bf16.mxu0 %v5455
    %5794 = vmatpush2.bf16.msra.mxu0 %v5454
    %5795 = vmatprep.mubr.bf16.mxu0 %v4871
    %5796 = vmatmul.mubr.bf16.gmra.mxu0 %v4870
    %v5797 = vpop.f32.mrf.mxu0
    %v5798 = vadd.f32 0.0, %v5797
    %v5799 = vpop.f32.mrf.mxu0
    %v5800 = vadd.f32 0.0, %v5799
    %v5801 = vpop.f32.mrf.mxu0
    %v5802 = vpop.f32.mrf.mxu0
    %5803 = vdwg.mxu0
    %v5812 = vcombine.low %v5675, %v5677
    %v5813 = vcombine.low %v5716, %v5718
    %v5814 = vcombine.low %v5757, %v5759
    %v5815 = vcombine.low %v5798, %v5800
    %v5817 = vunpack.c.l.s4 1966171168
    %v5818 = vunpack.c.0.s8 %v5817
    %v5819 = vlaneseq
    %v5820 = vshrl.u32 %v5819, 7
    %v5821 = vsub.s32 %v5818, %v5820
    %v5822 = vrot.slane %v5812, %v5821
    %v5824 = vunpack.c.l.s4 1966171168
    %v5825 = vunpack.c.0.s8 %v5824
    %v5826 = vlaneseq
    %v5827 = vshrl.u32 %v5826, 7
    %v5828 = vsub.s32 %v5825, %v5827
    %v5829 = vrot.slane %v5813, %v5828
    %v5831 = vunpack.c.l.s4 1966171168
    %v5832 = vunpack.c.0.s8 %v5831
    %v5833 = vlaneseq
    %v5834 = vshrl.u32 %v5833, 7
    %v5835 = vsub.s32 %v5832, %v5834
    %v5836 = vrot.slane %v5814, %v5835
    %v5838 = vunpack.c.l.s4 1966171168
    %v5839 = vunpack.c.0.s8 %v5838
    %v5840 = vlaneseq
    %v5841 = vshrl.u32 %v5840, 7
    %v5842 = vsub.s32 %v5839, %v5841
    %v5843 = vrot.slane %v5815, %v5842
    %v5844 = vcombine.low %v5822, %v5829
    %v5845 = vcombine.low %v5836, %v5843
    %v5847 = vunpack.c.l.s4 1966171168
    %v5848 = vunpack.c.0.s8 %v5847
    %v5849 = vlaneseq
    %v5850 = vshrl.u32 %v5849, 7
    %v5851 = vsub.s32 %v5848, %v5850
    %v5852 = vrot.slane %v5844, %v5851
    %v5854 = vunpack.c.l.s4 1966171168
    %v5855 = vunpack.c.0.s8 %v5854
    %v5856 = vlaneseq
    %v5857 = vshrl.u32 %v5856, 7
    %v5858 = vsub.s32 %v5855, %v5857
    %v5859 = vrot.slane %v5845, %v5858
    %v5860 = vcombine.low %v5852, %v5859
    %v5862 = vadd.f32 %v4857, %v5860
    %v5863 = vxor.u32 %v5862, 2147483648
    %v5864 = vmul.f32 %v5863, 1.442695
    %v5865 = vpow.pop %v5864
    %v5866 = vadd.f32 %v5865, 1.0
    %v5867 = vrcp.pop %v5866
    %v5868 = vmul.f32 1.0, %v5867
    %v5870 = vrot.slane %v5862, 2
    %v5872 = vxor.u32 %v5870, 2147483648
    %v5873 = vmul.f32 %v5872, 1.442695
    %v5874 = vpow.pop %v5873
    %v5875 = vadd.f32 %v5874, 1.0
    %v5876 = vrcp.pop %v5875
    %v5877 = vmul.f32 1.0, %v5876
    %v5878 = vrot.slane %v5862, 4
    %v5880 = vtanh.pop %v5878
    %v5881 = vrot.slane %v5862, 6
    %v5883 = vxor.u32 %v5881, 2147483648
    %v5884 = vmul.f32 %v5883, 1.442695
    %v5885 = vpow.pop %v5884
    %v5886 = vadd.f32 %v5885, 1.0
    %v5887 = vrcp.pop %v5886
    %v5888 = vmul.f32 1.0, %v5887
    %v5889 = vld [vmem:[#allocation5] sm:$0x3]
    %v5890 = vmul.f32 %v5877, %v5889
    %v5891 = vmul.f32 %v5868, %v5880
    %v5892 = vadd.f32 %v5890, %v5891
    %v5893 = vtanh.pop %v5892
    %v5894 = vmul.f32 %v5888, %v5893
    %5895 = vst.msk [vmem:[#allocation5] sm:$0x3] %vm669, %v5892
    %5896 = vst.msk [vmem:[#allocation4] sm:$0x3] %vm669, %v5894
    %s5897 = scalar_lea.vmem [#allocation3], 4
    %5898 = vst.msk [vmem:[%s5897] ss:$8 sm:$0x3] %vm669, %v5894
    %5899 = vst.msk [vmem:[%s5897] ss:$8 sm:$0x0] %vm669, %v5894
    %s5900 = scalar_lea.vmem [#allocation2], 5
    %v5901 = vld [vmem:[%s5900] ss:$8 sm:$0xf]
    %v5902 = vld [vmem:[%s5900] ss:$8 sm:$0xf0]
    %v5903 = vor.u32 %v5901, %v5902
    %v5904 = vld [vmem:[#allocation4] sm:$0x3]
    %v5906 = vlaneseq
    %v5907 = vshrl.u32 %v5906, 7
    %v5908 = vsub.s32 0, %v5907
    %v5909 = vrot.slane %v5904, %v5908
    %v5910 = vlaneseq
    %v5911 = vshrl.u32 %v5910, 7
    %v5912 = vsub.s32 1, %v5911
    %v5913 = vrot.slane %v5904, %v5912
    %v5916 = vpack.c.bf16 %v5909, %v5909
    %v5917 = vpack.c.bf16 %v5913, %v5913
    %v5918 = vld [vmem:[#allocation8] sm:$0xff]
    %v5919 = vld [vmem:[#allocation8 + $0x8] sm:$0xff]
    %v5920 = vld [vmem:[#allocation8 + $0x10] sm:$0xff]
    %v5921 = vld [vmem:[#allocation8 + $0x18] sm:$0xff]
    %v5922 = vld [vmem:[#allocation8 + $0x20] sm:$0xff]
    %v5923 = vld [vmem:[#allocation8 + $0x28] sm:$0xff]
    %v5924 = vld [vmem:[#allocation8 + $0x30] sm:$0xff]
    %v5925 = vld [vmem:[#allocation8 + $0x38] sm:$0xff]
    %v5926 = vld [vmem:[#allocation8 + $0x40] sm:$0xff]
    %v5927 = vld [vmem:[#allocation8 + $0x48] sm:$0xff]
    %v5928 = vld [vmem:[#allocation8 + $0x50] sm:$0xff]
    %v5929 = vld [vmem:[#allocation8 + $0x58] sm:$0xff]
    %v5930 = vld [vmem:[#allocation8 + $0x60] sm:$0xff]
    %v5931 = vld [vmem:[#allocation8 + $0x68] sm:$0xff]
    %v5932 = vld [vmem:[#allocation8 + $0x70] sm:$0xff]
    %v5933 = vld [vmem:[#allocation8 + $0x78] sm:$0xff]
    %v5934 = vld [vmem:[#allocation8 + $0x80] sm:$0xff]
    %v5935 = vld [vmem:[#allocation8 + $0x88] sm:$0xff]
    %v5936 = vld [vmem:[#allocation8 + $0x90] sm:$0xff]
    %v5937 = vld [vmem:[#allocation8 + $0x98] sm:$0xff]
    %v5938 = vld [vmem:[#allocation8 + $0xa0] sm:$0xff]
    %v5939 = vld [vmem:[#allocation8 + $0xa8] sm:$0xff]
    %v5940 = vld [vmem:[#allocation8 + $0xb0] sm:$0xff]
    %v5941 = vld [vmem:[#allocation8 + $0xb8] sm:$0xff]
    %v5942 = vld [vmem:[#allocation8 + $0xc0] sm:$0xff]
    %v5943 = vld [vmem:[#allocation8 + $0xc8] sm:$0xff]
    %v5944 = vld [vmem:[#allocation8 + $0xd0] sm:$0xff]
    %v5945 = vld [vmem:[#allocation8 + $0xd8] sm:$0xff]
    %v5946 = vld [vmem:[#allocation8 + $0xe0] sm:$0xff]
    %v5947 = vld [vmem:[#allocation8 + $0xe8] sm:$0xff]
    %v5948 = vld [vmem:[#allocation8 + $0xf0] sm:$0xff]
    %v5949 = vld [vmem:[#allocation8 + $0xf8] sm:$0xff]
    %v5950 = vld [vmem:[#allocation8 + $0x100] sm:$0xff]
    %v5951 = vld [vmem:[#allocation8 + $0x108] sm:$0xff]
    %v5952 = vld [vmem:[#allocation8 + $0x110] sm:$0xff]
    %v5953 = vld [vmem:[#allocation8 + $0x118] sm:$0xff]
    %v5954 = vld [vmem:[#allocation8 + $0x120] sm:$0xff]
    %v5955 = vld [vmem:[#allocation8 + $0x128] sm:$0xff]
    %v5956 = vld [vmem:[#allocation8 + $0x130] sm:$0xff]
    %v5957 = vld [vmem:[#allocation8 + $0x138] sm:$0xff]
    %v5958 = vld [vmem:[#allocation8 + $0x140] sm:$0xff]
    %v5959 = vld [vmem:[#allocation8 + $0x148] sm:$0xff]
    %v5960 = vld [vmem:[#allocation8 + $0x150] sm:$0xff]
    %v5961 = vld [vmem:[#allocation8 + $0x158] sm:$0xff]
    %v5962 = vld [vmem:[#allocation8 + $0x160] sm:$0xff]
    %v5963 = vld [vmem:[#allocation8 + $0x168] sm:$0xff]
    %v5964 = vld [vmem:[#allocation8 + $0x170] sm:$0xff]
    %v5965 = vld [vmem:[#allocation8 + $0x178] sm:$0xff]
    %v5966 = vld [vmem:[#allocation8 + $0x180] sm:$0xff]
    %v5967 = vld [vmem:[#allocation8 + $0x188] sm:$0xff]
    %v5968 = vld [vmem:[#allocation8 + $0x190] sm:$0xff]
    %v5969 = vld [vmem:[#allocation8 + $0x198] sm:$0xff]
    %v5970 = vld [vmem:[#allocation8 + $0x1a0] sm:$0xff]
    %v5971 = vld [vmem:[#allocation8 + $0x1a8] sm:$0xff]
    %v5972 = vld [vmem:[#allocation8 + $0x1b0] sm:$0xff]
    %v5973 = vld [vmem:[#allocation8 + $0x1b8] sm:$0xff]
    %v5974 = vld [vmem:[#allocation8 + $0x1c0] sm:$0xff]
    %v5975 = vld [vmem:[#allocation8 + $0x1c8] sm:$0xff]
    %v5976 = vld [vmem:[#allocation8 + $0x1d0] sm:$0xff]
    %v5977 = vld [vmem:[#allocation8 + $0x1d8] sm:$0xff]
    %v5978 = vld [vmem:[#allocation8 + $0x1e0] sm:$0xff]
    %v5979 = vld [vmem:[#allocation8 + $0x1e8] sm:$0xff]
    %v5980 = vld [vmem:[#allocation8 + $0x1f0] sm:$0xff]
    %v5981 = vld [vmem:[#allocation8 + $0x1f8] sm:$0xff]
    %v5982 = vld [vmem:[#allocation8 + $0x200] sm:$0xff]
    %v5983 = vld [vmem:[#allocation8 + $0x208] sm:$0xff]
    %v5984 = vld [vmem:[#allocation8 + $0x210] sm:$0xff]
    %v5985 = vld [vmem:[#allocation8 + $0x218] sm:$0xff]
    %v5986 = vld [vmem:[#allocation8 + $0x220] sm:$0xff]
    %v5987 = vld [vmem:[#allocation8 + $0x228] sm:$0xff]
    %v5988 = vld [vmem:[#allocation8 + $0x230] sm:$0xff]
    %v5989 = vld [vmem:[#allocation8 + $0x238] sm:$0xff]
    %v5990 = vld [vmem:[#allocation8 + $0x240] sm:$0xff]
    %v5991 = vld [vmem:[#allocation8 + $0x248] sm:$0xff]
    %v5992 = vld [vmem:[#allocation8 + $0x250] sm:$0xff]
    %v5993 = vld [vmem:[#allocation8 + $0x258] sm:$0xff]
    %v5994 = vld [vmem:[#allocation8 + $0x260] sm:$0xff]
    %v5995 = vld [vmem:[#allocation8 + $0x268] sm:$0xff]
    %v5996 = vld [vmem:[#allocation8 + $0x270] sm:$0xff]
    %v5997 = vld [vmem:[#allocation8 + $0x278] sm:$0xff]
    %v5998 = vld [vmem:[#allocation8 + $0x280] sm:$0xff]
    %v5999 = vld [vmem:[#allocation8 + $0x288] sm:$0xff]
    %v6000 = vld [vmem:[#allocation8 + $0x290] sm:$0xff]
    %v6001 = vld [vmem:[#allocation8 + $0x298] sm:$0xff]
    %v6002 = vld [vmem:[#allocation8 + $0x2a0] sm:$0xff]
    %v6003 = vld [vmem:[#allocation8 + $0x2a8] sm:$0xff]
    %v6004 = vld [vmem:[#allocation8 + $0x2b0] sm:$0xff]
    %v6005 = vld [vmem:[#allocation8 + $0x2b8] sm:$0xff]
    %v6006 = vld [vmem:[#allocation8 + $0x2c0] sm:$0xff]
    %v6007 = vld [vmem:[#allocation8 + $0x2c8] sm:$0xff]
    %v6008 = vld [vmem:[#allocation8 + $0x2d0] sm:$0xff]
    %v6009 = vld [vmem:[#allocation8 + $0x2d8] sm:$0xff]
    %v6010 = vld [vmem:[#allocation8 + $0x2e0] sm:$0xff]
    %v6011 = vld [vmem:[#allocation8 + $0x2e8] sm:$0xff]
    %v6012 = vld [vmem:[#allocation8 + $0x2f0] sm:$0xff]
    %v6013 = vld [vmem:[#allocation8 + $0x2f8] sm:$0xff]
    %v6014 = vld [vmem:[#allocation8 + $0x300] sm:$0xff]
    %v6015 = vld [vmem:[#allocation8 + $0x308] sm:$0xff]
    %v6016 = vld [vmem:[#allocation8 + $0x310] sm:$0xff]
    %v6017 = vld [vmem:[#allocation8 + $0x318] sm:$0xff]
    %v6018 = vld [vmem:[#allocation8 + $0x320] sm:$0xff]
    %v6019 = vld [vmem:[#allocation8 + $0x328] sm:$0xff]
    %v6020 = vld [vmem:[#allocation8 + $0x330] sm:$0xff]
    %v6021 = vld [vmem:[#allocation8 + $0x338] sm:$0xff]
    %v6022 = vld [vmem:[#allocation8 + $0x340] sm:$0xff]
    %v6023 = vld [vmem:[#allocation8 + $0x348] sm:$0xff]
    %v6024 = vld [vmem:[#allocation8 + $0x350] sm:$0xff]
    %v6025 = vld [vmem:[#allocation8 + $0x358] sm:$0xff]
    %v6026 = vld [vmem:[#allocation8 + $0x360] sm:$0xff]
    %v6027 = vld [vmem:[#allocation8 + $0x368] sm:$0xff]
    %v6028 = vld [vmem:[#allocation8 + $0x370] sm:$0xff]
    %v6029 = vld [vmem:[#allocation8 + $0x378] sm:$0xff]
    %v6030 = vld [vmem:[#allocation8 + $0x380] sm:$0xff]
    %v6031 = vld [vmem:[#allocation8 + $0x388] sm:$0xff]
    %v6032 = vld [vmem:[#allocation8 + $0x390] sm:$0xff]
    %v6033 = vld [vmem:[#allocation8 + $0x398] sm:$0xff]
    %v6034 = vld [vmem:[#allocation8 + $0x3a0] sm:$0xff]
    %v6035 = vld [vmem:[#allocation8 + $0x3a8] sm:$0xff]
    %v6036 = vld [vmem:[#allocation8 + $0x3b0] sm:$0xff]
    %v6037 = vld [vmem:[#allocation8 + $0x3b8] sm:$0xff]
    %v6038 = vld [vmem:[#allocation8 + $0x3c0] sm:$0xff]
    %v6039 = vld [vmem:[#allocation8 + $0x3c8] sm:$0xff]
    %v6040 = vld [vmem:[#allocation8 + $0x3d0] sm:$0xff]
    %v6041 = vld [vmem:[#allocation8 + $0x3d8] sm:$0xff]
    %v6042 = vld [vmem:[#allocation8 + $0x3e0] sm:$0xff]
    %v6043 = vld [vmem:[#allocation8 + $0x3e8] sm:$0xff]
    %v6044 = vld [vmem:[#allocation8 + $0x3f0] sm:$0xff]
    %v6045 = vld [vmem:[#allocation8 + $0x3f8] sm:$0xff]
    %v6174 = vunpack.c.l.b16 %v5918
    %v6175 = vunpack.c.h.b16 %v5918
    %v6176 = vunpack.c.l.b16 %v5919
    %v6177 = vunpack.c.h.b16 %v5919
    %v6178 = vunpack.c.l.b16 %v5920
    %v6179 = vunpack.c.h.b16 %v5920
    %v6180 = vunpack.c.l.b16 %v5921
    %v6181 = vunpack.c.h.b16 %v5921
    %v6182 = vunpack.c.l.b16 %v5922
    %v6183 = vunpack.c.h.b16 %v5922
    %v6184 = vunpack.c.l.b16 %v5923
    %v6185 = vunpack.c.h.b16 %v5923
    %v6186 = vunpack.c.l.b16 %v5924
    %v6187 = vunpack.c.h.b16 %v5924
    %v6188 = vunpack.c.l.b16 %v5925
    %v6189 = vunpack.c.h.b16 %v5925
    %v6190 = vunpack.c.l.b16 %v5926
    %v6191 = vunpack.c.h.b16 %v5926
    %v6192 = vunpack.c.l.b16 %v5927
    %v6193 = vunpack.c.h.b16 %v5927
    %v6194 = vunpack.c.l.b16 %v5928
    %v6195 = vunpack.c.h.b16 %v5928
    %v6196 = vunpack.c.l.b16 %v5929
    %v6197 = vunpack.c.h.b16 %v5929
    %v6198 = vunpack.c.l.b16 %v5930
    %v6199 = vunpack.c.h.b16 %v5930
    %v6200 = vunpack.c.l.b16 %v5931
    %v6201 = vunpack.c.h.b16 %v5931
    %v6202 = vunpack.c.l.b16 %v5932
    %v6203 = vunpack.c.h.b16 %v5932
    %v6204 = vunpack.c.l.b16 %v5933
    %v6205 = vunpack.c.h.b16 %v5933
    %v6206 = vunpack.c.l.b16 %v5934
    %v6207 = vunpack.c.h.b16 %v5934
    %v6208 = vunpack.c.l.b16 %v5935
    %v6209 = vunpack.c.h.b16 %v5935
    %v6210 = vunpack.c.l.b16 %v5936
    %v6211 = vunpack.c.h.b16 %v5936
    %v6212 = vunpack.c.l.b16 %v5937
    %v6213 = vunpack.c.h.b16 %v5937
    %v6214 = vunpack.c.l.b16 %v5938
    %v6215 = vunpack.c.h.b16 %v5938
    %v6216 = vunpack.c.l.b16 %v5939
    %v6217 = vunpack.c.h.b16 %v5939
    %v6218 = vunpack.c.l.b16 %v5940
    %v6219 = vunpack.c.h.b16 %v5940
    %v6220 = vunpack.c.l.b16 %v5941
    %v6221 = vunpack.c.h.b16 %v5941
    %v6222 = vunpack.c.l.b16 %v5942
    %v6223 = vunpack.c.h.b16 %v5942
    %v6224 = vunpack.c.l.b16 %v5943
    %v6225 = vunpack.c.h.b16 %v5943
    %v6226 = vunpack.c.l.b16 %v5944
    %v6227 = vunpack.c.h.b16 %v5944
    %v6228 = vunpack.c.l.b16 %v5945
    %v6229 = vunpack.c.h.b16 %v5945
    %v6230 = vunpack.c.l.b16 %v5946
    %v6231 = vunpack.c.h.b16 %v5946
    %v6232 = vunpack.c.l.b16 %v5947
    %v6233 = vunpack.c.h.b16 %v5947
    %v6234 = vunpack.c.l.b16 %v5948
    %v6235 = vunpack.c.h.b16 %v5948
    %v6236 = vunpack.c.l.b16 %v5949
    %v6237 = vunpack.c.h.b16 %v5949
    %v6238 = vunpack.c.l.b16 %v5950
    %v6239 = vunpack.c.h.b16 %v5950
    %v6240 = vunpack.c.l.b16 %v5951
    %v6241 = vunpack.c.h.b16 %v5951
    %v6242 = vunpack.c.l.b16 %v5952
    %v6243 = vunpack.c.h.b16 %v5952
    %v6244 = vunpack.c.l.b16 %v5953
    %v6245 = vunpack.c.h.b16 %v5953
    %v6246 = vunpack.c.l.b16 %v5954
    %v6247 = vunpack.c.h.b16 %v5954
    %v6248 = vunpack.c.l.b16 %v5955
    %v6249 = vunpack.c.h.b16 %v5955
    %v6250 = vunpack.c.l.b16 %v5956
    %v6251 = vunpack.c.h.b16 %v5956
    %v6252 = vunpack.c.l.b16 %v5957
    %v6253 = vunpack.c.h.b16 %v5957
    %v6254 = vunpack.c.l.b16 %v5958
    %v6255 = vunpack.c.h.b16 %v5958
    %v6256 = vunpack.c.l.b16 %v5959
    %v6257 = vunpack.c.h.b16 %v5959
    %v6258 = vunpack.c.l.b16 %v5960
    %v6259 = vunpack.c.h.b16 %v5960
    %v6260 = vunpack.c.l.b16 %v5961
    %v6261 = vunpack.c.h.b16 %v5961
    %v6262 = vunpack.c.l.b16 %v5962
    %v6263 = vunpack.c.h.b16 %v5962
    %v6264 = vunpack.c.l.b16 %v5963
    %v6265 = vunpack.c.h.b16 %v5963
    %v6266 = vunpack.c.l.b16 %v5964
    %v6267 = vunpack.c.h.b16 %v5964
    %v6268 = vunpack.c.l.b16 %v5965
    %v6269 = vunpack.c.h.b16 %v5965
    %v6270 = vunpack.c.l.b16 %v5966
    %v6271 = vunpack.c.h.b16 %v5966
    %v6272 = vunpack.c.l.b16 %v5967
    %v6273 = vunpack.c.h.b16 %v5967
    %v6274 = vunpack.c.l.b16 %v5968
    %v6275 = vunpack.c.h.b16 %v5968
    %v6276 = vunpack.c.l.b16 %v5969
    %v6277 = vunpack.c.h.b16 %v5969
    %v6278 = vunpack.c.l.b16 %v5970
    %v6279 = vunpack.c.h.b16 %v5970
    %v6280 = vunpack.c.l.b16 %v5971
    %v6281 = vunpack.c.h.b16 %v5971
    %v6282 = vunpack.c.l.b16 %v5972
    %v6283 = vunpack.c.h.b16 %v5972
    %v6284 = vunpack.c.l.b16 %v5973
    %v6285 = vunpack.c.h.b16 %v5973
    %v6286 = vunpack.c.l.b16 %v5974
    %v6287 = vunpack.c.h.b16 %v5974
    %v6288 = vunpack.c.l.b16 %v5975
    %v6289 = vunpack.c.h.b16 %v5975
    %v6290 = vunpack.c.l.b16 %v5976
    %v6291 = vunpack.c.h.b16 %v5976
    %v6292 = vunpack.c.l.b16 %v5977
    %v6293 = vunpack.c.h.b16 %v5977
    %v6294 = vunpack.c.l.b16 %v5978
    %v6295 = vunpack.c.h.b16 %v5978
    %v6296 = vunpack.c.l.b16 %v5979
    %v6297 = vunpack.c.h.b16 %v5979
    %v6298 = vunpack.c.l.b16 %v5980
    %v6299 = vunpack.c.h.b16 %v5980
    %v6300 = vunpack.c.l.b16 %v5981
    %v6301 = vunpack.c.h.b16 %v5981
    %v6302 = vunpack.c.l.b16 %v5982
    %v6303 = vunpack.c.h.b16 %v5982
    %v6304 = vunpack.c.l.b16 %v5983
    %v6305 = vunpack.c.h.b16 %v5983
    %v6306 = vunpack.c.l.b16 %v5984
    %v6307 = vunpack.c.h.b16 %v5984
    %v6308 = vunpack.c.l.b16 %v5985
    %v6309 = vunpack.c.h.b16 %v5985
    %v6310 = vunpack.c.l.b16 %v5986
    %v6311 = vunpack.c.h.b16 %v5986
    %v6312 = vunpack.c.l.b16 %v5987
    %v6313 = vunpack.c.h.b16 %v5987
    %v6314 = vunpack.c.l.b16 %v5988
    %v6315 = vunpack.c.h.b16 %v5988
    %v6316 = vunpack.c.l.b16 %v5989
    %v6317 = vunpack.c.h.b16 %v5989
    %v6318 = vunpack.c.l.b16 %v5990
    %v6319 = vunpack.c.h.b16 %v5990
    %v6320 = vunpack.c.l.b16 %v5991
    %v6321 = vunpack.c.h.b16 %v5991
    %v6322 = vunpack.c.l.b16 %v5992
    %v6323 = vunpack.c.h.b16 %v5992
    %v6324 = vunpack.c.l.b16 %v5993
    %v6325 = vunpack.c.h.b16 %v5993
    %v6326 = vunpack.c.l.b16 %v5994
    %v6327 = vunpack.c.h.b16 %v5994
    %v6328 = vunpack.c.l.b16 %v5995
    %v6329 = vunpack.c.h.b16 %v5995
    %v6330 = vunpack.c.l.b16 %v5996
    %v6331 = vunpack.c.h.b16 %v5996
    %v6332 = vunpack.c.l.b16 %v5997
    %v6333 = vunpack.c.h.b16 %v5997
    %v6334 = vunpack.c.l.b16 %v5998
    %v6335 = vunpack.c.h.b16 %v5998
    %v6336 = vunpack.c.l.b16 %v5999
    %v6337 = vunpack.c.h.b16 %v5999
    %v6338 = vunpack.c.l.b16 %v6000
    %v6339 = vunpack.c.h.b16 %v6000
    %v6340 = vunpack.c.l.b16 %v6001
    %v6341 = vunpack.c.h.b16 %v6001
    %v6342 = vunpack.c.l.b16 %v6002
    %v6343 = vunpack.c.h.b16 %v6002
    %v6344 = vunpack.c.l.b16 %v6003
    %v6345 = vunpack.c.h.b16 %v6003
    %v6346 = vunpack.c.l.b16 %v6004
    %v6347 = vunpack.c.h.b16 %v6004
    %v6348 = vunpack.c.l.b16 %v6005
    %v6349 = vunpack.c.h.b16 %v6005
    %v6350 = vunpack.c.l.b16 %v6006
    %v6351 = vunpack.c.h.b16 %v6006
    %v6352 = vunpack.c.l.b16 %v6007
    %v6353 = vunpack.c.h.b16 %v6007
    %v6354 = vunpack.c.l.b16 %v6008
    %v6355 = vunpack.c.h.b16 %v6008
    %v6356 = vunpack.c.l.b16 %v6009
    %v6357 = vunpack.c.h.b16 %v6009
    %v6358 = vunpack.c.l.b16 %v6010
    %v6359 = vunpack.c.h.b16 %v6010
    %v6360 = vunpack.c.l.b16 %v6011
    %v6361 = vunpack.c.h.b16 %v6011
    %v6362 = vunpack.c.l.b16 %v6012
    %v6363 = vunpack.c.h.b16 %v6012
    %v6364 = vunpack.c.l.b16 %v6013
    %v6365 = vunpack.c.h.b16 %v6013
    %v6366 = vunpack.c.l.b16 %v6014
    %v6367 = vunpack.c.h.b16 %v6014
    %v6368 = vunpack.c.l.b16 %v6015
    %v6369 = vunpack.c.h.b16 %v6015
    %v6370 = vunpack.c.l.b16 %v6016
    %v6371 = vunpack.c.h.b16 %v6016
    %v6372 = vunpack.c.l.b16 %v6017
    %v6373 = vunpack.c.h.b16 %v6017
    %v6374 = vunpack.c.l.b16 %v6018
    %v6375 = vunpack.c.h.b16 %v6018
    %v6376 = vunpack.c.l.b16 %v6019
    %v6377 = vunpack.c.h.b16 %v6019
    %v6378 = vunpack.c.l.b16 %v6020
    %v6379 = vunpack.c.h.b16 %v6020
    %v6380 = vunpack.c.l.b16 %v6021
    %v6381 = vunpack.c.h.b16 %v6021
    %v6382 = vunpack.c.l.b16 %v6022
    %v6383 = vunpack.c.h.b16 %v6022
    %v6384 = vunpack.c.l.b16 %v6023
    %v6385 = vunpack.c.h.b16 %v6023
    %v6386 = vunpack.c.l.b16 %v6024
    %v6387 = vunpack.c.h.b16 %v6024
    %v6388 = vunpack.c.l.b16 %v6025
    %v6389 = vunpack.c.h.b16 %v6025
    %v6390 = vunpack.c.l.b16 %v6026
    %v6391 = vunpack.c.h.b16 %v6026
    %v6392 = vunpack.c.l.b16 %v6027
    %v6393 = vunpack.c.h.b16 %v6027
    %v6394 = vunpack.c.l.b16 %v6028
    %v6395 = vunpack.c.h.b16 %v6028
    %v6396 = vunpack.c.l.b16 %v6029
    %v6397 = vunpack.c.h.b16 %v6029
    %v6398 = vunpack.c.l.b16 %v6030
    %v6399 = vunpack.c.h.b16 %v6030
    %v6400 = vunpack.c.l.b16 %v6031
    %v6401 = vunpack.c.h.b16 %v6031
    %v6402 = vunpack.c.l.b16 %v6032
    %v6403 = vunpack.c.h.b16 %v6032
    %v6404 = vunpack.c.l.b16 %v6033
    %v6405 = vunpack.c.h.b16 %v6033
    %v6406 = vunpack.c.l.b16 %v6034
    %v6407 = vunpack.c.h.b16 %v6034
    %v6408 = vunpack.c.l.b16 %v6035
    %v6409 = vunpack.c.h.b16 %v6035
    %v6410 = vunpack.c.l.b16 %v6036
    %v6411 = vunpack.c.h.b16 %v6036
    %v6412 = vunpack.c.l.b16 %v6037
    %v6413 = vunpack.c.h.b16 %v6037
    %v6414 = vunpack.c.l.b16 %v6038
    %v6415 = vunpack.c.h.b16 %v6038
    %v6416 = vunpack.c.l.b16 %v6039
    %v6417 = vunpack.c.h.b16 %v6039
    %v6418 = vunpack.c.l.b16 %v6040
    %v6419 = vunpack.c.h.b16 %v6040
    %v6420 = vunpack.c.l.b16 %v6041
    %v6421 = vunpack.c.h.b16 %v6041
    %v6422 = vunpack.c.l.b16 %v6042
    %v6423 = vunpack.c.h.b16 %v6042
    %v6424 = vunpack.c.l.b16 %v6043
    %v6425 = vunpack.c.h.b16 %v6043
    %v6426 = vunpack.c.l.b16 %v6044
    %v6427 = vunpack.c.h.b16 %v6044
    %v6428 = vunpack.c.l.b16 %v6045
    %v6429 = vunpack.c.h.b16 %v6045
    %v6430 = vpack.c.b16 %v6182, %v6174
    %v6431 = vpack.c.b16 %v6183, %v6175
    %v6432 = vpack.c.b16 %v6184, %v6176
    %v6433 = vpack.c.b16 %v6185, %v6177
    %v6434 = vpack.c.b16 %v6186, %v6178
    %v6435 = vpack.c.b16 %v6187, %v6179
    %v6436 = vpack.c.b16 %v6188, %v6180
    %v6437 = vpack.c.b16 %v6189, %v6181
    %v6438 = vpack.c.b16 %v6198, %v6190
    %v6439 = vpack.c.b16 %v6199, %v6191
    %v6440 = vpack.c.b16 %v6200, %v6192
    %v6441 = vpack.c.b16 %v6201, %v6193
    %v6442 = vpack.c.b16 %v6202, %v6194
    %v6443 = vpack.c.b16 %v6203, %v6195
    %v6444 = vpack.c.b16 %v6204, %v6196
    %v6445 = vpack.c.b16 %v6205, %v6197
    %v6446 = vpack.c.b16 %v6214, %v6206
    %v6447 = vpack.c.b16 %v6215, %v6207
    %v6448 = vpack.c.b16 %v6216, %v6208
    %v6449 = vpack.c.b16 %v6217, %v6209
    %v6450 = vpack.c.b16 %v6218, %v6210
    %v6451 = vpack.c.b16 %v6219, %v6211
    %v6452 = vpack.c.b16 %v6220, %v6212
    %v6453 = vpack.c.b16 %v6221, %v6213
    %v6454 = vpack.c.b16 %v6230, %v6222
    %v6455 = vpack.c.b16 %v6231, %v6223
    %v6456 = vpack.c.b16 %v6232, %v6224
    %v6457 = vpack.c.b16 %v6233, %v6225
    %v6458 = vpack.c.b16 %v6234, %v6226
    %v6459 = vpack.c.b16 %v6235, %v6227
    %v6460 = vpack.c.b16 %v6236, %v6228
    %v6461 = vpack.c.b16 %v6237, %v6229
    %v6462 = vpack.c.b16 %v6246, %v6238
    %v6463 = vpack.c.b16 %v6247, %v6239
    %v6464 = vpack.c.b16 %v6248, %v6240
    %v6465 = vpack.c.b16 %v6249, %v6241
    %v6466 = vpack.c.b16 %v6250, %v6242
    %v6467 = vpack.c.b16 %v6251, %v6243
    %v6468 = vpack.c.b16 %v6252, %v6244
    %v6469 = vpack.c.b16 %v6253, %v6245
    %v6470 = vpack.c.b16 %v6262, %v6254
    %v6471 = vpack.c.b16 %v6263, %v6255
    %v6472 = vpack.c.b16 %v6264, %v6256
    %v6473 = vpack.c.b16 %v6265, %v6257
    %v6474 = vpack.c.b16 %v6266, %v6258
    %v6475 = vpack.c.b16 %v6267, %v6259
    %v6476 = vpack.c.b16 %v6268, %v6260
    %v6477 = vpack.c.b16 %v6269, %v6261
    %v6478 = vpack.c.b16 %v6278, %v6270
    %v6479 = vpack.c.b16 %v6279, %v6271
    %v6480 = vpack.c.b16 %v6280, %v6272
    %v6481 = vpack.c.b16 %v6281, %v6273
    %v6482 = vpack.c.b16 %v6282, %v6274
    %v6483 = vpack.c.b16 %v6283, %v6275
    %v6484 = vpack.c.b16 %v6284, %v6276
    %v6485 = vpack.c.b16 %v6285, %v6277
    %v6486 = vpack.c.b16 %v6294, %v6286
    %v6487 = vpack.c.b16 %v6295, %v6287
    %v6488 = vpack.c.b16 %v6296, %v6288
    %v6489 = vpack.c.b16 %v6297, %v6289
    %v6490 = vpack.c.b16 %v6298, %v6290
    %v6491 = vpack.c.b16 %v6299, %v6291
    %v6492 = vpack.c.b16 %v6300, %v6292
    %v6493 = vpack.c.b16 %v6301, %v6293
    %v6494 = vpack.c.b16 %v6310, %v6302
    %v6495 = vpack.c.b16 %v6311, %v6303
    %v6496 = vpack.c.b16 %v6312, %v6304
    %v6497 = vpack.c.b16 %v6313, %v6305
    %v6498 = vpack.c.b16 %v6314, %v6306
    %v6499 = vpack.c.b16 %v6315, %v6307
    %v6500 = vpack.c.b16 %v6316, %v6308
    %v6501 = vpack.c.b16 %v6317, %v6309
    %v6502 = vpack.c.b16 %v6326, %v6318
    %v6503 = vpack.c.b16 %v6327, %v6319
    %v6504 = vpack.c.b16 %v6328, %v6320
    %v6505 = vpack.c.b16 %v6329, %v6321
    %v6506 = vpack.c.b16 %v6330, %v6322
    %v6507 = vpack.c.b16 %v6331, %v6323
    %v6508 = vpack.c.b16 %v6332, %v6324
    %v6509 = vpack.c.b16 %v6333, %v6325
    %v6510 = vpack.c.b16 %v6342, %v6334
    %v6511 = vpack.c.b16 %v6343, %v6335
    %v6512 = vpack.c.b16 %v6344, %v6336
    %v6513 = vpack.c.b16 %v6345, %v6337
    %v6514 = vpack.c.b16 %v6346, %v6338
    %v6515 = vpack.c.b16 %v6347, %v6339
    %v6516 = vpack.c.b16 %v6348, %v6340
    %v6517 = vpack.c.b16 %v6349, %v6341
    %v6518 = vpack.c.b16 %v6358, %v6350
    %v6519 = vpack.c.b16 %v6359, %v6351
    %v6520 = vpack.c.b16 %v6360, %v6352
    %v6521 = vpack.c.b16 %v6361, %v6353
    %v6522 = vpack.c.b16 %v6362, %v6354
    %v6523 = vpack.c.b16 %v6363, %v6355
    %v6524 = vpack.c.b16 %v6364, %v6356
    %v6525 = vpack.c.b16 %v6365, %v6357
    %v6526 = vpack.c.b16 %v6374, %v6366
    %v6527 = vpack.c.b16 %v6375, %v6367
    %v6528 = vpack.c.b16 %v6376, %v6368
    %v6529 = vpack.c.b16 %v6377, %v6369
    %v6530 = vpack.c.b16 %v6378, %v6370
    %v6531 = vpack.c.b16 %v6379, %v6371
    %v6532 = vpack.c.b16 %v6380, %v6372
    %v6533 = vpack.c.b16 %v6381, %v6373
    %v6534 = vpack.c.b16 %v6390, %v6382
    %v6535 = vpack.c.b16 %v6391, %v6383
    %v6536 = vpack.c.b16 %v6392, %v6384
    %v6537 = vpack.c.b16 %v6393, %v6385
    %v6538 = vpack.c.b16 %v6394, %v6386
    %v6539 = vpack.c.b16 %v6395, %v6387
    %v6540 = vpack.c.b16 %v6396, %v6388
    %v6541 = vpack.c.b16 %v6397, %v6389
    %v6542 = vpack.c.b16 %v6406, %v6398
    %v6543 = vpack.c.b16 %v6407, %v6399
    %v6544 = vpack.c.b16 %v6408, %v6400
    %v6545 = vpack.c.b16 %v6409, %v6401
    %v6546 = vpack.c.b16 %v6410, %v6402
    %v6547 = vpack.c.b16 %v6411, %v6403
    %v6548 = vpack.c.b16 %v6412, %v6404
    %v6549 = vpack.c.b16 %v6413, %v6405
    %v6550 = vpack.c.b16 %v6422, %v6414
    %v6551 = vpack.c.b16 %v6423, %v6415
    %v6552 = vpack.c.b16 %v6424, %v6416
    %v6553 = vpack.c.b16 %v6425, %v6417
    %v6554 = vpack.c.b16 %v6426, %v6418
    %v6555 = vpack.c.b16 %v6427, %v6419
    %v6556 = vpack.c.b16 %v6428, %v6420
    %v6557 = vpack.c.b16 %v6429, %v6421
    %6686 = vmatprep.subr.bf16.mxu0 %v6487
    %6687 = vmatpush1.bf16.msra.mxu0 %v6486
    %6688 = vmatprep.subr.bf16.mxu0 %v6479
    %6689 = vmatpush1.bf16.msra.mxu0 %v6478
    %6690 = vmatprep.subr.bf16.mxu0 %v6471
    %6691 = vmatpush1.bf16.msra.mxu0 %v6470
    %6692 = vmatprep.subr.bf16.mxu0 %v6463
    %6693 = vmatpush1.bf16.msra.mxu0 %v6462
    %6694 = vmatprep.subr.bf16.mxu0 %v6455
    %6695 = vmatpush1.bf16.msra.mxu0 %v6454
    %6696 = vmatprep.subr.bf16.mxu0 %v6447
    %6697 = vmatpush1.bf16.msra.mxu0 %v6446
    %6698 = vmatprep.subr.bf16.mxu0 %v6439
    %6699 = vmatpush1.bf16.msra.mxu0 %v6438
    %6700 = vmatprep.subr.bf16.mxu0 %v6431
    %6701 = vmatpush1.bf16.msra.mxu0 %v6430
    %6702 = vmatprep.subr.bf16.mxu0 %v6551
    %6703 = vmatpush2.bf16.msra.mxu0 %v6550
    %6704 = vmatprep.subr.bf16.mxu0 %v6543
    %6705 = vmatpush2.bf16.msra.mxu0 %v6542
    %6706 = vmatprep.subr.bf16.mxu0 %v6535
    %6707 = vmatpush2.bf16.msra.mxu0 %v6534
    %6708 = vmatprep.subr.bf16.mxu0 %v6527
    %6709 = vmatpush2.bf16.msra.mxu0 %v6526
    %6710 = vmatprep.subr.bf16.mxu0 %v6519
    %6711 = vmatpush2.bf16.msra.mxu0 %v6518
    %6712 = vmatprep.subr.bf16.mxu0 %v6511
    %6713 = vmatpush2.bf16.msra.mxu0 %v6510
    %6714 = vmatprep.subr.bf16.mxu0 %v6503
    %6715 = vmatpush2.bf16.msra.mxu0 %v6502
    %6716 = vmatprep.subr.bf16.mxu0 %v6495
    %6717 = vmatpush2.bf16.msra.mxu0 %v6494
    %6718 = vmatprep.mubr.bf16.mxu0 %v5917
    %6719 = vmatmul.mubr.bf16.gmra.mxu0 %v5916
    %v6720 = vpop.f32.mrf.mxu0
    %v6721 = vadd.f32 0.0, %v6720
    %v6722 = vpop.f32.mrf.mxu0
    %v6723 = vadd.f32 0.0, %v6722
    %v6724 = vpop.f32.mrf.mxu0
    %v6725 = vpop.f32.mrf.mxu0
    %6726 = vdwg.mxu0
    %6727 = vmatprep.subr.bf16.mxu0 %v6489
    %6728 = vmatpush1.bf16.msra.mxu0 %v6488
    %6729 = vmatprep.subr.bf16.mxu0 %v6481
    %6730 = vmatpush1.bf16.msra.mxu0 %v6480
    %6731 = vmatprep.subr.bf16.mxu0 %v6473
    %6732 = vmatpush1.bf16.msra.mxu0 %v6472
    %6733 = vmatprep.subr.bf16.mxu0 %v6465
    %6734 = vmatpush1.bf16.msra.mxu0 %v6464
    %6735 = vmatprep.subr.bf16.mxu0 %v6457
    %6736 = vmatpush1.bf16.msra.mxu0 %v6456
    %6737 = vmatprep.subr.bf16.mxu0 %v6449
    %6738 = vmatpush1.bf16.msra.mxu0 %v6448
    %6739 = vmatprep.subr.bf16.mxu0 %v6441
    %6740 = vmatpush1.bf16.msra.mxu0 %v6440
    %6741 = vmatprep.subr.bf16.mxu0 %v6433
    %6742 = vmatpush1.bf16.msra.mxu0 %v6432
    %6743 = vmatprep.subr.bf16.mxu0 %v6553
    %6744 = vmatpush2.bf16.msra.mxu0 %v6552
    %6745 = vmatprep.subr.bf16.mxu0 %v6545
    %6746 = vmatpush2.bf16.msra.mxu0 %v6544
    %6747 = vmatprep.subr.bf16.mxu0 %v6537
    %6748 = vmatpush2.bf16.msra.mxu0 %v6536
    %6749 = vmatprep.subr.bf16.mxu0 %v6529
    %6750 = vmatpush2.bf16.msra.mxu0 %v6528
    %6751 = vmatprep.subr.bf16.mxu0 %v6521
    %6752 = vmatpush2.bf16.msra.mxu0 %v6520
    %6753 = vmatprep.subr.bf16.mxu0 %v6513
    %6754 = vmatpush2.bf16.msra.mxu0 %v6512
    %6755 = vmatprep.subr.bf16.mxu0 %v6505
    %6756 = vmatpush2.bf16.msra.mxu0 %v6504
    %6757 = vmatprep.subr.bf16.mxu0 %v6497
    %6758 = vmatpush2.bf16.msra.mxu0 %v6496
    %6759 = vmatprep.mubr.bf16.mxu0 %v5917
    %6760 = vmatmul.mubr.bf16.gmra.mxu0 %v5916
    %v6761 = vpop.f32.mrf.mxu0
    %v6762 = vadd.f32 0.0, %v6761
    %v6763 = vpop.f32.mrf.mxu0
    %v6764 = vadd.f32 0.0, %v6763
    %v6765 = vpop.f32.mrf.mxu0
    %v6766 = vpop.f32.mrf.mxu0
    %6767 = vdwg.mxu0
    %6768 = vmatprep.subr.bf16.mxu0 %v6491
    %6769 = vmatpush1.bf16.msra.mxu0 %v6490
    %6770 = vmatprep.subr.bf16.mxu0 %v6483
    %6771 = vmatpush1.bf16.msra.mxu0 %v6482
    %6772 = vmatprep.subr.bf16.mxu0 %v6475
    %6773 = vmatpush1.bf16.msra.mxu0 %v6474
    %6774 = vmatprep.subr.bf16.mxu0 %v6467
    %6775 = vmatpush1.bf16.msra.mxu0 %v6466
    %6776 = vmatprep.subr.bf16.mxu0 %v6459
    %6777 = vmatpush1.bf16.msra.mxu0 %v6458
    %6778 = vmatprep.subr.bf16.mxu0 %v6451
    %6779 = vmatpush1.bf16.msra.mxu0 %v6450
    %6780 = vmatprep.subr.bf16.mxu0 %v6443
    %6781 = vmatpush1.bf16.msra.mxu0 %v6442
    %6782 = vmatprep.subr.bf16.mxu0 %v6435
    %6783 = vmatpush1.bf16.msra.mxu0 %v6434
    %6784 = vmatprep.subr.bf16.mxu0 %v6555
    %6785 = vmatpush2.bf16.msra.mxu0 %v6554
    %6786 = vmatprep.subr.bf16.mxu0 %v6547
    %6787 = vmatpush2.bf16.msra.mxu0 %v6546
    %6788 = vmatprep.subr.bf16.mxu0 %v6539
    %6789 = vmatpush2.bf16.msra.mxu0 %v6538
    %6790 = vmatprep.subr.bf16.mxu0 %v6531
    %6791 = vmatpush2.bf16.msra.mxu0 %v6530
    %6792 = vmatprep.subr.bf16.mxu0 %v6523
    %6793 = vmatpush2.bf16.msra.mxu0 %v6522
    %6794 = vmatprep.subr.bf16.mxu0 %v6515
    %6795 = vmatpush2.bf16.msra.mxu0 %v6514
    %6796 = vmatprep.subr.bf16.mxu0 %v6507
    %6797 = vmatpush2.bf16.msra.mxu0 %v6506
    %6798 = vmatprep.subr.bf16.mxu0 %v6499
    %6799 = vmatpush2.bf16.msra.mxu0 %v6498
    %6800 = vmatprep.mubr.bf16.mxu0 %v5917
    %6801 = vmatmul.mubr.bf16.gmra.mxu0 %v5916
    %v6802 = vpop.f32.mrf.mxu0
    %v6803 = vadd.f32 0.0, %v6802
    %v6804 = vpop.f32.mrf.mxu0
    %v6805 = vadd.f32 0.0, %v6804
    %v6806 = vpop.f32.mrf.mxu0
    %v6807 = vpop.f32.mrf.mxu0
    %6808 = vdwg.mxu0
    %6809 = vmatprep.subr.bf16.mxu0 %v6493
    %6810 = vmatpush1.bf16.msra.mxu0 %v6492
    %6811 = vmatprep.subr.bf16.mxu0 %v6485
    %6812 = vmatpush1.bf16.msra.mxu0 %v6484
    %6813 = vmatprep.subr.bf16.mxu0 %v6477
    %6814 = vmatpush1.bf16.msra.mxu0 %v6476
    %6815 = vmatprep.subr.bf16.mxu0 %v6469
    %6816 = vmatpush1.bf16.msra.mxu0 %v6468
    %6817 = vmatprep.subr.bf16.mxu0 %v6461
    %6818 = vmatpush1.bf16.msra.mxu0 %v6460
    %6819 = vmatprep.subr.bf16.mxu0 %v6453
    %6820 = vmatpush1.bf16.msra.mxu0 %v6452
    %6821 = vmatprep.subr.bf16.mxu0 %v6445
    %6822 = vmatpush1.bf16.msra.mxu0 %v6444
    %6823 = vmatprep.subr.bf16.mxu0 %v6437
    %6824 = vmatpush1.bf16.msra.mxu0 %v6436
    %6825 = vmatprep.subr.bf16.mxu0 %v6557
    %6826 = vmatpush2.bf16.msra.mxu0 %v6556
    %6827 = vmatprep.subr.bf16.mxu0 %v6549
    %6828 = vmatpush2.bf16.msra.mxu0 %v6548
    %6829 = vmatprep.subr.bf16.mxu0 %v6541
    %6830 = vmatpush2.bf16.msra.mxu0 %v6540
    %6831 = vmatprep.subr.bf16.mxu0 %v6533
    %6832 = vmatpush2.bf16.msra.mxu0 %v6532
    %6833 = vmatprep.subr.bf16.mxu0 %v6525
    %6834 = vmatpush2.bf16.msra.mxu0 %v6524
    %6835 = vmatprep.subr.bf16.mxu0 %v6517
    %6836 = vmatpush2.bf16.msra.mxu0 %v6516
    %6837 = vmatprep.subr.bf16.mxu0 %v6509
    %6838 = vmatpush2.bf16.msra.mxu0 %v6508
    %6839 = vmatprep.subr.bf16.mxu0 %v6501
    %6840 = vmatpush2.bf16.msra.mxu0 %v6500
    %6841 = vmatprep.mubr.bf16.mxu0 %v5917
    %6842 = vmatmul.mubr.bf16.gmra.mxu0 %v5916
    %v6843 = vpop.f32.mrf.mxu0
    %v6844 = vadd.f32 0.0, %v6843
    %v6845 = vpop.f32.mrf.mxu0
    %v6846 = vadd.f32 0.0, %v6845
    %v6847 = vpop.f32.mrf.mxu0
    %v6848 = vpop.f32.mrf.mxu0
    %6849 = vdwg.mxu0
    %v6858 = vcombine.low %v6721, %v6723
    %v6859 = vcombine.low %v6762, %v6764
    %v6860 = vcombine.low %v6803, %v6805
    %v6861 = vcombine.low %v6844, %v6846
    %v6863 = vunpack.c.l.s4 1966171168
    %v6864 = vunpack.c.0.s8 %v6863
    %v6865 = vlaneseq
    %v6866 = vshrl.u32 %v6865, 7
    %v6867 = vsub.s32 %v6864, %v6866
    %v6868 = vrot.slane %v6858, %v6867
    %v6870 = vunpack.c.l.s4 1966171168
    %v6871 = vunpack.c.0.s8 %v6870
    %v6872 = vlaneseq
    %v6873 = vshrl.u32 %v6872, 7
    %v6874 = vsub.s32 %v6871, %v6873
    %v6875 = vrot.slane %v6859, %v6874
    %v6877 = vunpack.c.l.s4 1966171168
    %v6878 = vunpack.c.0.s8 %v6877
    %v6879 = vlaneseq
    %v6880 = vshrl.u32 %v6879, 7
    %v6881 = vsub.s32 %v6878, %v6880
    %v6882 = vrot.slane %v6860, %v6881
    %v6884 = vunpack.c.l.s4 1966171168
    %v6885 = vunpack.c.0.s8 %v6884
    %v6886 = vlaneseq
    %v6887 = vshrl.u32 %v6886, 7
    %v6888 = vsub.s32 %v6885, %v6887
    %v6889 = vrot.slane %v6861, %v6888
    %v6890 = vcombine.low %v6868, %v6875
    %v6891 = vcombine.low %v6882, %v6889
    %v6893 = vunpack.c.l.s4 1966171168
    %v6894 = vunpack.c.0.s8 %v6893
    %v6895 = vlaneseq
    %v6896 = vshrl.u32 %v6895, 7
    %v6897 = vsub.s32 %v6894, %v6896
    %v6898 = vrot.slane %v6890, %v6897
    %v6900 = vunpack.c.l.s4 1966171168
    %v6901 = vunpack.c.0.s8 %v6900
    %v6902 = vlaneseq
    %v6903 = vshrl.u32 %v6902, 7
    %v6904 = vsub.s32 %v6901, %v6903
    %v6905 = vrot.slane %v6891, %v6904
    %v6906 = vcombine.low %v6898, %v6905
    %v6908 = vadd.f32 %v5903, %v6906
    %v6909 = vxor.u32 %v6908, 2147483648
    %v6910 = vmul.f32 %v6909, 1.442695
    %v6911 = vpow.pop %v6910
    %v6912 = vadd.f32 %v6911, 1.0
    %v6913 = vrcp.pop %v6912
    %v6914 = vmul.f32 1.0, %v6913
    %v6916 = vrot.slane %v6908, 2
    %v6918 = vxor.u32 %v6916, 2147483648
    %v6919 = vmul.f32 %v6918, 1.442695
    %v6920 = vpow.pop %v6919
    %v6921 = vadd.f32 %v6920, 1.0
    %v6922 = vrcp.pop %v6921
    %v6923 = vmul.f32 1.0, %v6922
    %v6924 = vrot.slane %v6908, 4
    %v6926 = vtanh.pop %v6924
    %v6927 = vrot.slane %v6908, 6
    %v6929 = vxor.u32 %v6927, 2147483648
    %v6930 = vmul.f32 %v6929, 1.442695
    %v6931 = vpow.pop %v6930
    %v6932 = vadd.f32 %v6931, 1.0
    %v6933 = vrcp.pop %v6932
    %v6934 = vmul.f32 1.0, %v6933
    %v6935 = vld [vmem:[#allocation5] sm:$0x3]
    %v6936 = vmul.f32 %v6923, %v6935
    %v6937 = vmul.f32 %v6914, %v6926
    %v6938 = vadd.f32 %v6936, %v6937
    %v6939 = vtanh.pop %v6938
    %v6940 = vmul.f32 %v6934, %v6939
    %6941 = vst.msk [vmem:[#allocation5] sm:$0x3] %vm669, %v6938
    %6942 = vst.msk [vmem:[#allocation4] sm:$0x3] %vm669, %v6940
    %s6943 = scalar_lea.vmem [#allocation3], 5
    %6944 = vst.msk [vmem:[%s6943] ss:$8 sm:$0x3] %vm669, %v6940
    %6945 = vst.msk [vmem:[%s6943] ss:$8 sm:$0x0] %vm669, %v6940
    %s6946 = scalar_lea.vmem [#allocation2], 6
    %v6947 = vld [vmem:[%s6946] ss:$8 sm:$0xf]
    %v6948 = vld [vmem:[%s6946] ss:$8 sm:$0xf0]
    %v6949 = vor.u32 %v6947, %v6948
    %v6950 = vld [vmem:[#allocation4] sm:$0x3]
    %v6952 = vlaneseq
    %v6953 = vshrl.u32 %v6952, 7
    %v6954 = vsub.s32 0, %v6953
    %v6955 = vrot.slane %v6950, %v6954
    %v6956 = vlaneseq
    %v6957 = vshrl.u32 %v6956, 7
    %v6958 = vsub.s32 1, %v6957
    %v6959 = vrot.slane %v6950, %v6958
    %v6962 = vpack.c.bf16 %v6955, %v6955
    %v6963 = vpack.c.bf16 %v6959, %v6959
    %v6964 = vld [vmem:[#allocation8] sm:$0xff]
    %v6965 = vld [vmem:[#allocation8 + $0x8] sm:$0xff]
    %v6966 = vld [vmem:[#allocation8 + $0x10] sm:$0xff]
    %v6967 = vld [vmem:[#allocation8 + $0x18] sm:$0xff]
    %v6968 = vld [vmem:[#allocation8 + $0x20] sm:$0xff]
    %v6969 = vld [vmem:[#allocation8 + $0x28] sm:$0xff]
    %v6970 = vld [vmem:[#allocation8 + $0x30] sm:$0xff]
    %v6971 = vld [vmem:[#allocation8 + $0x38] sm:$0xff]
    %v6972 = vld [vmem:[#allocation8 + $0x40] sm:$0xff]
    %v6973 = vld [vmem:[#allocation8 + $0x48] sm:$0xff]
    %v6974 = vld [vmem:[#allocation8 + $0x50] sm:$0xff]
    %v6975 = vld [vmem:[#allocation8 + $0x58] sm:$0xff]
    %v6976 = vld [vmem:[#allocation8 + $0x60] sm:$0xff]
    %v6977 = vld [vmem:[#allocation8 + $0x68] sm:$0xff]
    %v6978 = vld [vmem:[#allocation8 + $0x70] sm:$0xff]
    %v6979 = vld [vmem:[#allocation8 + $0x78] sm:$0xff]
    %v6980 = vld [vmem:[#allocation8 + $0x80] sm:$0xff]
    %v6981 = vld [vmem:[#allocation8 + $0x88] sm:$0xff]
    %v6982 = vld [vmem:[#allocation8 + $0x90] sm:$0xff]
    %v6983 = vld [vmem:[#allocation8 + $0x98] sm:$0xff]
    %v6984 = vld [vmem:[#allocation8 + $0xa0] sm:$0xff]
    %v6985 = vld [vmem:[#allocation8 + $0xa8] sm:$0xff]
    %v6986 = vld [vmem:[#allocation8 + $0xb0] sm:$0xff]
    %v6987 = vld [vmem:[#allocation8 + $0xb8] sm:$0xff]
    %v6988 = vld [vmem:[#allocation8 + $0xc0] sm:$0xff]
    %v6989 = vld [vmem:[#allocation8 + $0xc8] sm:$0xff]
    %v6990 = vld [vmem:[#allocation8 + $0xd0] sm:$0xff]
    %v6991 = vld [vmem:[#allocation8 + $0xd8] sm:$0xff]
    %v6992 = vld [vmem:[#allocation8 + $0xe0] sm:$0xff]
    %v6993 = vld [vmem:[#allocation8 + $0xe8] sm:$0xff]
    %v6994 = vld [vmem:[#allocation8 + $0xf0] sm:$0xff]
    %v6995 = vld [vmem:[#allocation8 + $0xf8] sm:$0xff]
    %v6996 = vld [vmem:[#allocation8 + $0x100] sm:$0xff]
    %v6997 = vld [vmem:[#allocation8 + $0x108] sm:$0xff]
    %v6998 = vld [vmem:[#allocation8 + $0x110] sm:$0xff]
    %v6999 = vld [vmem:[#allocation8 + $0x118] sm:$0xff]
    %v7000 = vld [vmem:[#allocation8 + $0x120] sm:$0xff]
    %v7001 = vld [vmem:[#allocation8 + $0x128] sm:$0xff]
    %v7002 = vld [vmem:[#allocation8 + $0x130] sm:$0xff]
    %v7003 = vld [vmem:[#allocation8 + $0x138] sm:$0xff]
    %v7004 = vld [vmem:[#allocation8 + $0x140] sm:$0xff]
    %v7005 = vld [vmem:[#allocation8 + $0x148] sm:$0xff]
    %v7006 = vld [vmem:[#allocation8 + $0x150] sm:$0xff]
    %v7007 = vld [vmem:[#allocation8 + $0x158] sm:$0xff]
    %v7008 = vld [vmem:[#allocation8 + $0x160] sm:$0xff]
    %v7009 = vld [vmem:[#allocation8 + $0x168] sm:$0xff]
    %v7010 = vld [vmem:[#allocation8 + $0x170] sm:$0xff]
    %v7011 = vld [vmem:[#allocation8 + $0x178] sm:$0xff]
    %v7012 = vld [vmem:[#allocation8 + $0x180] sm:$0xff]
    %v7013 = vld [vmem:[#allocation8 + $0x188] sm:$0xff]
    %v7014 = vld [vmem:[#allocation8 + $0x190] sm:$0xff]
    %v7015 = vld [vmem:[#allocation8 + $0x198] sm:$0xff]
    %v7016 = vld [vmem:[#allocation8 + $0x1a0] sm:$0xff]
    %v7017 = vld [vmem:[#allocation8 + $0x1a8] sm:$0xff]
    %v7018 = vld [vmem:[#allocation8 + $0x1b0] sm:$0xff]
    %v7019 = vld [vmem:[#allocation8 + $0x1b8] sm:$0xff]
    %v7020 = vld [vmem:[#allocation8 + $0x1c0] sm:$0xff]
    %v7021 = vld [vmem:[#allocation8 + $0x1c8] sm:$0xff]
    %v7022 = vld [vmem:[#allocation8 + $0x1d0] sm:$0xff]
    %v7023 = vld [vmem:[#allocation8 + $0x1d8] sm:$0xff]
    %v7024 = vld [vmem:[#allocation8 + $0x1e0] sm:$0xff]
    %v7025 = vld [vmem:[#allocation8 + $0x1e8] sm:$0xff]
    %v7026 = vld [vmem:[#allocation8 + $0x1f0] sm:$0xff]
    %v7027 = vld [vmem:[#allocation8 + $0x1f8] sm:$0xff]
    %v7028 = vld [vmem:[#allocation8 + $0x200] sm:$0xff]
    %v7029 = vld [vmem:[#allocation8 + $0x208] sm:$0xff]
    %v7030 = vld [vmem:[#allocation8 + $0x210] sm:$0xff]
    %v7031 = vld [vmem:[#allocation8 + $0x218] sm:$0xff]
    %v7032 = vld [vmem:[#allocation8 + $0x220] sm:$0xff]
    %v7033 = vld [vmem:[#allocation8 + $0x228] sm:$0xff]
    %v7034 = vld [vmem:[#allocation8 + $0x230] sm:$0xff]
    %v7035 = vld [vmem:[#allocation8 + $0x238] sm:$0xff]
    %v7036 = vld [vmem:[#allocation8 + $0x240] sm:$0xff]
    %v7037 = vld [vmem:[#allocation8 + $0x248] sm:$0xff]
    %v7038 = vld [vmem:[#allocation8 + $0x250] sm:$0xff]
    %v7039 = vld [vmem:[#allocation8 + $0x258] sm:$0xff]
    %v7040 = vld [vmem:[#allocation8 + $0x260] sm:$0xff]
    %v7041 = vld [vmem:[#allocation8 + $0x268] sm:$0xff]
    %v7042 = vld [vmem:[#allocation8 + $0x270] sm:$0xff]
    %v7043 = vld [vmem:[#allocation8 + $0x278] sm:$0xff]
    %v7044 = vld [vmem:[#allocation8 + $0x280] sm:$0xff]
    %v7045 = vld [vmem:[#allocation8 + $0x288] sm:$0xff]
    %v7046 = vld [vmem:[#allocation8 + $0x290] sm:$0xff]
    %v7047 = vld [vmem:[#allocation8 + $0x298] sm:$0xff]
    %v7048 = vld [vmem:[#allocation8 + $0x2a0] sm:$0xff]
    %v7049 = vld [vmem:[#allocation8 + $0x2a8] sm:$0xff]
    %v7050 = vld [vmem:[#allocation8 + $0x2b0] sm:$0xff]
    %v7051 = vld [vmem:[#allocation8 + $0x2b8] sm:$0xff]
    %v7052 = vld [vmem:[#allocation8 + $0x2c0] sm:$0xff]
    %v7053 = vld [vmem:[#allocation8 + $0x2c8] sm:$0xff]
    %v7054 = vld [vmem:[#allocation8 + $0x2d0] sm:$0xff]
    %v7055 = vld [vmem:[#allocation8 + $0x2d8] sm:$0xff]
    %v7056 = vld [vmem:[#allocation8 + $0x2e0] sm:$0xff]
    %v7057 = vld [vmem:[#allocation8 + $0x2e8] sm:$0xff]
    %v7058 = vld [vmem:[#allocation8 + $0x2f0] sm:$0xff]
    %v7059 = vld [vmem:[#allocation8 + $0x2f8] sm:$0xff]
    %v7060 = vld [vmem:[#allocation8 + $0x300] sm:$0xff]
    %v7061 = vld [vmem:[#allocation8 + $0x308] sm:$0xff]
    %v7062 = vld [vmem:[#allocation8 + $0x310] sm:$0xff]
    %v7063 = vld [vmem:[#allocation8 + $0x318] sm:$0xff]
    %v7064 = vld [vmem:[#allocation8 + $0x320] sm:$0xff]
    %v7065 = vld [vmem:[#allocation8 + $0x328] sm:$0xff]
    %v7066 = vld [vmem:[#allocation8 + $0x330] sm:$0xff]
    %v7067 = vld [vmem:[#allocation8 + $0x338] sm:$0xff]
    %v7068 = vld [vmem:[#allocation8 + $0x340] sm:$0xff]
    %v7069 = vld [vmem:[#allocation8 + $0x348] sm:$0xff]
    %v7070 = vld [vmem:[#allocation8 + $0x350] sm:$0xff]
    %v7071 = vld [vmem:[#allocation8 + $0x358] sm:$0xff]
    %v7072 = vld [vmem:[#allocation8 + $0x360] sm:$0xff]
    %v7073 = vld [vmem:[#allocation8 + $0x368] sm:$0xff]
    %v7074 = vld [vmem:[#allocation8 + $0x370] sm:$0xff]
    %v7075 = vld [vmem:[#allocation8 + $0x378] sm:$0xff]
    %v7076 = vld [vmem:[#allocation8 + $0x380] sm:$0xff]
    %v7077 = vld [vmem:[#allocation8 + $0x388] sm:$0xff]
    %v7078 = vld [vmem:[#allocation8 + $0x390] sm:$0xff]
    %v7079 = vld [vmem:[#allocation8 + $0x398] sm:$0xff]
    %v7080 = vld [vmem:[#allocation8 + $0x3a0] sm:$0xff]
    %v7081 = vld [vmem:[#allocation8 + $0x3a8] sm:$0xff]
    %v7082 = vld [vmem:[#allocation8 + $0x3b0] sm:$0xff]
    %v7083 = vld [vmem:[#allocation8 + $0x3b8] sm:$0xff]
    %v7084 = vld [vmem:[#allocation8 + $0x3c0] sm:$0xff]
    %v7085 = vld [vmem:[#allocation8 + $0x3c8] sm:$0xff]
    %v7086 = vld [vmem:[#allocation8 + $0x3d0] sm:$0xff]
    %v7087 = vld [vmem:[#allocation8 + $0x3d8] sm:$0xff]
    %v7088 = vld [vmem:[#allocation8 + $0x3e0] sm:$0xff]
    %v7089 = vld [vmem:[#allocation8 + $0x3e8] sm:$0xff]
    %v7090 = vld [vmem:[#allocation8 + $0x3f0] sm:$0xff]
    %v7091 = vld [vmem:[#allocation8 + $0x3f8] sm:$0xff]
    %v7220 = vunpack.c.l.b16 %v6964
    %v7221 = vunpack.c.h.b16 %v6964
    %v7222 = vunpack.c.l.b16 %v6965
    %v7223 = vunpack.c.h.b16 %v6965
    %v7224 = vunpack.c.l.b16 %v6966
    %v7225 = vunpack.c.h.b16 %v6966
    %v7226 = vunpack.c.l.b16 %v6967
    %v7227 = vunpack.c.h.b16 %v6967
    %v7228 = vunpack.c.l.b16 %v6968
    %v7229 = vunpack.c.h.b16 %v6968
    %v7230 = vunpack.c.l.b16 %v6969
    %v7231 = vunpack.c.h.b16 %v6969
    %v7232 = vunpack.c.l.b16 %v6970
    %v7233 = vunpack.c.h.b16 %v6970
    %v7234 = vunpack.c.l.b16 %v6971
    %v7235 = vunpack.c.h.b16 %v6971
    %v7236 = vunpack.c.l.b16 %v6972
    %v7237 = vunpack.c.h.b16 %v6972
    %v7238 = vunpack.c.l.b16 %v6973
    %v7239 = vunpack.c.h.b16 %v6973
    %v7240 = vunpack.c.l.b16 %v6974
    %v7241 = vunpack.c.h.b16 %v6974
    %v7242 = vunpack.c.l.b16 %v6975
    %v7243 = vunpack.c.h.b16 %v6975
    %v7244 = vunpack.c.l.b16 %v6976
    %v7245 = vunpack.c.h.b16 %v6976
    %v7246 = vunpack.c.l.b16 %v6977
    %v7247 = vunpack.c.h.b16 %v6977
    %v7248 = vunpack.c.l.b16 %v6978
    %v7249 = vunpack.c.h.b16 %v6978
    %v7250 = vunpack.c.l.b16 %v6979
    %v7251 = vunpack.c.h.b16 %v6979
    %v7252 = vunpack.c.l.b16 %v6980
    %v7253 = vunpack.c.h.b16 %v6980
    %v7254 = vunpack.c.l.b16 %v6981
    %v7255 = vunpack.c.h.b16 %v6981
    %v7256 = vunpack.c.l.b16 %v6982
    %v7257 = vunpack.c.h.b16 %v6982
    %v7258 = vunpack.c.l.b16 %v6983
    %v7259 = vunpack.c.h.b16 %v6983
    %v7260 = vunpack.c.l.b16 %v6984
    %v7261 = vunpack.c.h.b16 %v6984
    %v7262 = vunpack.c.l.b16 %v6985
    %v7263 = vunpack.c.h.b16 %v6985
    %v7264 = vunpack.c.l.b16 %v6986
    %v7265 = vunpack.c.h.b16 %v6986
    %v7266 = vunpack.c.l.b16 %v6987
    %v7267 = vunpack.c.h.b16 %v6987
    %v7268 = vunpack.c.l.b16 %v6988
    %v7269 = vunpack.c.h.b16 %v6988
    %v7270 = vunpack.c.l.b16 %v6989
    %v7271 = vunpack.c.h.b16 %v6989
    %v7272 = vunpack.c.l.b16 %v6990
    %v7273 = vunpack.c.h.b16 %v6990
    %v7274 = vunpack.c.l.b16 %v6991
    %v7275 = vunpack.c.h.b16 %v6991
    %v7276 = vunpack.c.l.b16 %v6992
    %v7277 = vunpack.c.h.b16 %v6992
    %v7278 = vunpack.c.l.b16 %v6993
    %v7279 = vunpack.c.h.b16 %v6993
    %v7280 = vunpack.c.l.b16 %v6994
    %v7281 = vunpack.c.h.b16 %v6994
    %v7282 = vunpack.c.l.b16 %v6995
    %v7283 = vunpack.c.h.b16 %v6995
    %v7284 = vunpack.c.l.b16 %v6996
    %v7285 = vunpack.c.h.b16 %v6996
    %v7286 = vunpack.c.l.b16 %v6997
    %v7287 = vunpack.c.h.b16 %v6997
    %v7288 = vunpack.c.l.b16 %v6998
    %v7289 = vunpack.c.h.b16 %v6998
    %v7290 = vunpack.c.l.b16 %v6999
    %v7291 = vunpack.c.h.b16 %v6999
    %v7292 = vunpack.c.l.b16 %v7000
    %v7293 = vunpack.c.h.b16 %v7000
    %v7294 = vunpack.c.l.b16 %v7001
    %v7295 = vunpack.c.h.b16 %v7001
    %v7296 = vunpack.c.l.b16 %v7002
    %v7297 = vunpack.c.h.b16 %v7002
    %v7298 = vunpack.c.l.b16 %v7003
    %v7299 = vunpack.c.h.b16 %v7003
    %v7300 = vunpack.c.l.b16 %v7004
    %v7301 = vunpack.c.h.b16 %v7004
    %v7302 = vunpack.c.l.b16 %v7005
    %v7303 = vunpack.c.h.b16 %v7005
    %v7304 = vunpack.c.l.b16 %v7006
    %v7305 = vunpack.c.h.b16 %v7006
    %v7306 = vunpack.c.l.b16 %v7007
    %v7307 = vunpack.c.h.b16 %v7007
    %v7308 = vunpack.c.l.b16 %v7008
    %v7309 = vunpack.c.h.b16 %v7008
    %v7310 = vunpack.c.l.b16 %v7009
    %v7311 = vunpack.c.h.b16 %v7009
    %v7312 = vunpack.c.l.b16 %v7010
    %v7313 = vunpack.c.h.b16 %v7010
    %v7314 = vunpack.c.l.b16 %v7011
    %v7315 = vunpack.c.h.b16 %v7011
    %v7316 = vunpack.c.l.b16 %v7012
    %v7317 = vunpack.c.h.b16 %v7012
    %v7318 = vunpack.c.l.b16 %v7013
    %v7319 = vunpack.c.h.b16 %v7013
    %v7320 = vunpack.c.l.b16 %v7014
    %v7321 = vunpack.c.h.b16 %v7014
    %v7322 = vunpack.c.l.b16 %v7015
    %v7323 = vunpack.c.h.b16 %v7015
    %v7324 = vunpack.c.l.b16 %v7016
    %v7325 = vunpack.c.h.b16 %v7016
    %v7326 = vunpack.c.l.b16 %v7017
    %v7327 = vunpack.c.h.b16 %v7017
    %v7328 = vunpack.c.l.b16 %v7018
    %v7329 = vunpack.c.h.b16 %v7018
    %v7330 = vunpack.c.l.b16 %v7019
    %v7331 = vunpack.c.h.b16 %v7019
    %v7332 = vunpack.c.l.b16 %v7020
    %v7333 = vunpack.c.h.b16 %v7020
    %v7334 = vunpack.c.l.b16 %v7021
    %v7335 = vunpack.c.h.b16 %v7021
    %v7336 = vunpack.c.l.b16 %v7022
    %v7337 = vunpack.c.h.b16 %v7022
    %v7338 = vunpack.c.l.b16 %v7023
    %v7339 = vunpack.c.h.b16 %v7023
    %v7340 = vunpack.c.l.b16 %v7024
    %v7341 = vunpack.c.h.b16 %v7024
    %v7342 = vunpack.c.l.b16 %v7025
    %v7343 = vunpack.c.h.b16 %v7025
    %v7344 = vunpack.c.l.b16 %v7026
    %v7345 = vunpack.c.h.b16 %v7026
    %v7346 = vunpack.c.l.b16 %v7027
    %v7347 = vunpack.c.h.b16 %v7027
    %v7348 = vunpack.c.l.b16 %v7028
    %v7349 = vunpack.c.h.b16 %v7028
    %v7350 = vunpack.c.l.b16 %v7029
    %v7351 = vunpack.c.h.b16 %v7029
    %v7352 = vunpack.c.l.b16 %v7030
    %v7353 = vunpack.c.h.b16 %v7030
    %v7354 = vunpack.c.l.b16 %v7031
    %v7355 = vunpack.c.h.b16 %v7031
    %v7356 = vunpack.c.l.b16 %v7032
    %v7357 = vunpack.c.h.b16 %v7032
    %v7358 = vunpack.c.l.b16 %v7033
    %v7359 = vunpack.c.h.b16 %v7033
    %v7360 = vunpack.c.l.b16 %v7034
    %v7361 = vunpack.c.h.b16 %v7034
    %v7362 = vunpack.c.l.b16 %v7035
    %v7363 = vunpack.c.h.b16 %v7035
    %v7364 = vunpack.c.l.b16 %v7036
    %v7365 = vunpack.c.h.b16 %v7036
    %v7366 = vunpack.c.l.b16 %v7037
    %v7367 = vunpack.c.h.b16 %v7037
    %v7368 = vunpack.c.l.b16 %v7038
    %v7369 = vunpack.c.h.b16 %v7038
    %v7370 = vunpack.c.l.b16 %v7039
    %v7371 = vunpack.c.h.b16 %v7039
    %v7372 = vunpack.c.l.b16 %v7040
    %v7373 = vunpack.c.h.b16 %v7040
    %v7374 = vunpack.c.l.b16 %v7041
    %v7375 = vunpack.c.h.b16 %v7041
    %v7376 = vunpack.c.l.b16 %v7042
    %v7377 = vunpack.c.h.b16 %v7042
    %v7378 = vunpack.c.l.b16 %v7043
    %v7379 = vunpack.c.h.b16 %v7043
    %v7380 = vunpack.c.l.b16 %v7044
    %v7381 = vunpack.c.h.b16 %v7044
    %v7382 = vunpack.c.l.b16 %v7045
    %v7383 = vunpack.c.h.b16 %v7045
    %v7384 = vunpack.c.l.b16 %v7046
    %v7385 = vunpack.c.h.b16 %v7046
    %v7386 = vunpack.c.l.b16 %v7047
    %v7387 = vunpack.c.h.b16 %v7047
    %v7388 = vunpack.c.l.b16 %v7048
    %v7389 = vunpack.c.h.b16 %v7048
    %v7390 = vunpack.c.l.b16 %v7049
    %v7391 = vunpack.c.h.b16 %v7049
    %v7392 = vunpack.c.l.b16 %v7050
    %v7393 = vunpack.c.h.b16 %v7050
    %v7394 = vunpack.c.l.b16 %v7051
    %v7395 = vunpack.c.h.b16 %v7051
    %v7396 = vunpack.c.l.b16 %v7052
    %v7397 = vunpack.c.h.b16 %v7052
    %v7398 = vunpack.c.l.b16 %v7053
    %v7399 = vunpack.c.h.b16 %v7053
    %v7400 = vunpack.c.l.b16 %v7054
    %v7401 = vunpack.c.h.b16 %v7054
    %v7402 = vunpack.c.l.b16 %v7055
    %v7403 = vunpack.c.h.b16 %v7055
    %v7404 = vunpack.c.l.b16 %v7056
    %v7405 = vunpack.c.h.b16 %v7056
    %v7406 = vunpack.c.l.b16 %v7057
    %v7407 = vunpack.c.h.b16 %v7057
    %v7408 = vunpack.c.l.b16 %v7058
    %v7409 = vunpack.c.h.b16 %v7058
    %v7410 = vunpack.c.l.b16 %v7059
    %v7411 = vunpack.c.h.b16 %v7059
    %v7412 = vunpack.c.l.b16 %v7060
    %v7413 = vunpack.c.h.b16 %v7060
    %v7414 = vunpack.c.l.b16 %v7061
    %v7415 = vunpack.c.h.b16 %v7061
    %v7416 = vunpack.c.l.b16 %v7062
    %v7417 = vunpack.c.h.b16 %v7062
    %v7418 = vunpack.c.l.b16 %v7063
    %v7419 = vunpack.c.h.b16 %v7063
    %v7420 = vunpack.c.l.b16 %v7064
    %v7421 = vunpack.c.h.b16 %v7064
    %v7422 = vunpack.c.l.b16 %v7065
    %v7423 = vunpack.c.h.b16 %v7065
    %v7424 = vunpack.c.l.b16 %v7066
    %v7425 = vunpack.c.h.b16 %v7066
    %v7426 = vunpack.c.l.b16 %v7067
    %v7427 = vunpack.c.h.b16 %v7067
    %v7428 = vunpack.c.l.b16 %v7068
    %v7429 = vunpack.c.h.b16 %v7068
    %v7430 = vunpack.c.l.b16 %v7069
    %v7431 = vunpack.c.h.b16 %v7069
    %v7432 = vunpack.c.l.b16 %v7070
    %v7433 = vunpack.c.h.b16 %v7070
    %v7434 = vunpack.c.l.b16 %v7071
    %v7435 = vunpack.c.h.b16 %v7071
    %v7436 = vunpack.c.l.b16 %v7072
    %v7437 = vunpack.c.h.b16 %v7072
    %v7438 = vunpack.c.l.b16 %v7073
    %v7439 = vunpack.c.h.b16 %v7073
    %v7440 = vunpack.c.l.b16 %v7074
    %v7441 = vunpack.c.h.b16 %v7074
    %v7442 = vunpack.c.l.b16 %v7075
    %v7443 = vunpack.c.h.b16 %v7075
    %v7444 = vunpack.c.l.b16 %v7076
    %v7445 = vunpack.c.h.b16 %v7076
    %v7446 = vunpack.c.l.b16 %v7077
    %v7447 = vunpack.c.h.b16 %v7077
    %v7448 = vunpack.c.l.b16 %v7078
    %v7449 = vunpack.c.h.b16 %v7078
    %v7450 = vunpack.c.l.b16 %v7079
    %v7451 = vunpack.c.h.b16 %v7079
    %v7452 = vunpack.c.l.b16 %v7080
    %v7453 = vunpack.c.h.b16 %v7080
    %v7454 = vunpack.c.l.b16 %v7081
    %v7455 = vunpack.c.h.b16 %v7081
    %v7456 = vunpack.c.l.b16 %v7082
    %v7457 = vunpack.c.h.b16 %v7082
    %v7458 = vunpack.c.l.b16 %v7083
    %v7459 = vunpack.c.h.b16 %v7083
    %v7460 = vunpack.c.l.b16 %v7084
    %v7461 = vunpack.c.h.b16 %v7084
    %v7462 = vunpack.c.l.b16 %v7085
    %v7463 = vunpack.c.h.b16 %v7085
    %v7464 = vunpack.c.l.b16 %v7086
    %v7465 = vunpack.c.h.b16 %v7086
    %v7466 = vunpack.c.l.b16 %v7087
    %v7467 = vunpack.c.h.b16 %v7087
    %v7468 = vunpack.c.l.b16 %v7088
    %v7469 = vunpack.c.h.b16 %v7088
    %v7470 = vunpack.c.l.b16 %v7089
    %v7471 = vunpack.c.h.b16 %v7089
    %v7472 = vunpack.c.l.b16 %v7090
    %v7473 = vunpack.c.h.b16 %v7090
    %v7474 = vunpack.c.l.b16 %v7091
    %v7475 = vunpack.c.h.b16 %v7091
    %v7476 = vpack.c.b16 %v7228, %v7220
    %v7477 = vpack.c.b16 %v7229, %v7221
    %v7478 = vpack.c.b16 %v7230, %v7222
    %v7479 = vpack.c.b16 %v7231, %v7223
    %v7480 = vpack.c.b16 %v7232, %v7224
    %v7481 = vpack.c.b16 %v7233, %v7225
    %v7482 = vpack.c.b16 %v7234, %v7226
    %v7483 = vpack.c.b16 %v7235, %v7227
    %v7484 = vpack.c.b16 %v7244, %v7236
    %v7485 = vpack.c.b16 %v7245, %v7237
    %v7486 = vpack.c.b16 %v7246, %v7238
    %v7487 = vpack.c.b16 %v7247, %v7239
    %v7488 = vpack.c.b16 %v7248, %v7240
    %v7489 = vpack.c.b16 %v7249, %v7241
    %v7490 = vpack.c.b16 %v7250, %v7242
    %v7491 = vpack.c.b16 %v7251, %v7243
    %v7492 = vpack.c.b16 %v7260, %v7252
    %v7493 = vpack.c.b16 %v7261, %v7253
    %v7494 = vpack.c.b16 %v7262, %v7254
    %v7495 = vpack.c.b16 %v7263, %v7255
    %v7496 = vpack.c.b16 %v7264, %v7256
    %v7497 = vpack.c.b16 %v7265, %v7257
    %v7498 = vpack.c.b16 %v7266, %v7258
    %v7499 = vpack.c.b16 %v7267, %v7259
    %v7500 = vpack.c.b16 %v7276, %v7268
    %v7501 = vpack.c.b16 %v7277, %v7269
    %v7502 = vpack.c.b16 %v7278, %v7270
    %v7503 = vpack.c.b16 %v7279, %v7271
    %v7504 = vpack.c.b16 %v7280, %v7272
    %v7505 = vpack.c.b16 %v7281, %v7273
    %v7506 = vpack.c.b16 %v7282, %v7274
    %v7507 = vpack.c.b16 %v7283, %v7275
    %v7508 = vpack.c.b16 %v7292, %v7284
    %v7509 = vpack.c.b16 %v7293, %v7285
    %v7510 = vpack.c.b16 %v7294, %v7286
    %v7511 = vpack.c.b16 %v7295, %v7287
    %v7512 = vpack.c.b16 %v7296, %v7288
    %v7513 = vpack.c.b16 %v7297, %v7289
    %v7514 = vpack.c.b16 %v7298, %v7290
    %v7515 = vpack.c.b16 %v7299, %v7291
    %v7516 = vpack.c.b16 %v7308, %v7300
    %v7517 = vpack.c.b16 %v7309, %v7301
    %v7518 = vpack.c.b16 %v7310, %v7302
    %v7519 = vpack.c.b16 %v7311, %v7303
    %v7520 = vpack.c.b16 %v7312, %v7304
    %v7521 = vpack.c.b16 %v7313, %v7305
    %v7522 = vpack.c.b16 %v7314, %v7306
    %v7523 = vpack.c.b16 %v7315, %v7307
    %v7524 = vpack.c.b16 %v7324, %v7316
    %v7525 = vpack.c.b16 %v7325, %v7317
    %v7526 = vpack.c.b16 %v7326, %v7318
    %v7527 = vpack.c.b16 %v7327, %v7319
    %v7528 = vpack.c.b16 %v7328, %v7320
    %v7529 = vpack.c.b16 %v7329, %v7321
    %v7530 = vpack.c.b16 %v7330, %v7322
    %v7531 = vpack.c.b16 %v7331, %v7323
    %v7532 = vpack.c.b16 %v7340, %v7332
    %v7533 = vpack.c.b16 %v7341, %v7333
    %v7534 = vpack.c.b16 %v7342, %v7334
    %v7535 = vpack.c.b16 %v7343, %v7335
    %v7536 = vpack.c.b16 %v7344, %v7336
    %v7537 = vpack.c.b16 %v7345, %v7337
    %v7538 = vpack.c.b16 %v7346, %v7338
    %v7539 = vpack.c.b16 %v7347, %v7339
    %v7540 = vpack.c.b16 %v7356, %v7348
    %v7541 = vpack.c.b16 %v7357, %v7349
    %v7542 = vpack.c.b16 %v7358, %v7350
    %v7543 = vpack.c.b16 %v7359, %v7351
    %v7544 = vpack.c.b16 %v7360, %v7352
    %v7545 = vpack.c.b16 %v7361, %v7353
    %v7546 = vpack.c.b16 %v7362, %v7354
    %v7547 = vpack.c.b16 %v7363, %v7355
    %v7548 = vpack.c.b16 %v7372, %v7364
    %v7549 = vpack.c.b16 %v7373, %v7365
    %v7550 = vpack.c.b16 %v7374, %v7366
    %v7551 = vpack.c.b16 %v7375, %v7367
    %v7552 = vpack.c.b16 %v7376, %v7368
    %v7553 = vpack.c.b16 %v7377, %v7369
    %v7554 = vpack.c.b16 %v7378, %v7370
    %v7555 = vpack.c.b16 %v7379, %v7371
    %v7556 = vpack.c.b16 %v7388, %v7380
    %v7557 = vpack.c.b16 %v7389, %v7381
    %v7558 = vpack.c.b16 %v7390, %v7382
    %v7559 = vpack.c.b16 %v7391, %v7383
    %v7560 = vpack.c.b16 %v7392, %v7384
    %v7561 = vpack.c.b16 %v7393, %v7385
    %v7562 = vpack.c.b16 %v7394, %v7386
    %v7563 = vpack.c.b16 %v7395, %v7387
    %v7564 = vpack.c.b16 %v7404, %v7396
    %v7565 = vpack.c.b16 %v7405, %v7397
    %v7566 = vpack.c.b16 %v7406, %v7398
    %v7567 = vpack.c.b16 %v7407, %v7399
    %v7568 = vpack.c.b16 %v7408, %v7400
    %v7569 = vpack.c.b16 %v7409, %v7401
    %v7570 = vpack.c.b16 %v7410, %v7402
    %v7571 = vpack.c.b16 %v7411, %v7403
    %v7572 = vpack.c.b16 %v7420, %v7412
    %v7573 = vpack.c.b16 %v7421, %v7413
    %v7574 = vpack.c.b16 %v7422, %v7414
    %v7575 = vpack.c.b16 %v7423, %v7415
    %v7576 = vpack.c.b16 %v7424, %v7416
    %v7577 = vpack.c.b16 %v7425, %v7417
    %v7578 = vpack.c.b16 %v7426, %v7418
    %v7579 = vpack.c.b16 %v7427, %v7419
    %v7580 = vpack.c.b16 %v7436, %v7428
    %v7581 = vpack.c.b16 %v7437, %v7429
    %v7582 = vpack.c.b16 %v7438, %v7430
    %v7583 = vpack.c.b16 %v7439, %v7431
    %v7584 = vpack.c.b16 %v7440, %v7432
    %v7585 = vpack.c.b16 %v7441, %v7433
    %v7586 = vpack.c.b16 %v7442, %v7434
    %v7587 = vpack.c.b16 %v7443, %v7435
    %v7588 = vpack.c.b16 %v7452, %v7444
    %v7589 = vpack.c.b16 %v7453, %v7445
    %v7590 = vpack.c.b16 %v7454, %v7446
    %v7591 = vpack.c.b16 %v7455, %v7447
    %v7592 = vpack.c.b16 %v7456, %v7448
    %v7593 = vpack.c.b16 %v7457, %v7449
    %v7594 = vpack.c.b16 %v7458, %v7450
    %v7595 = vpack.c.b16 %v7459, %v7451
    %v7596 = vpack.c.b16 %v7468, %v7460
    %v7597 = vpack.c.b16 %v7469, %v7461
    %v7598 = vpack.c.b16 %v7470, %v7462
    %v7599 = vpack.c.b16 %v7471, %v7463
    %v7600 = vpack.c.b16 %v7472, %v7464
    %v7601 = vpack.c.b16 %v7473, %v7465
    %v7602 = vpack.c.b16 %v7474, %v7466
    %v7603 = vpack.c.b16 %v7475, %v7467
    %7732 = vmatprep.subr.bf16.mxu0 %v7533
    %7733 = vmatpush1.bf16.msra.mxu0 %v7532
    %7734 = vmatprep.subr.bf16.mxu0 %v7525
    %7735 = vmatpush1.bf16.msra.mxu0 %v7524
    %7736 = vmatprep.subr.bf16.mxu0 %v7517
    %7737 = vmatpush1.bf16.msra.mxu0 %v7516
    %7738 = vmatprep.subr.bf16.mxu0 %v7509
    %7739 = vmatpush1.bf16.msra.mxu0 %v7508
    %7740 = vmatprep.subr.bf16.mxu0 %v7501
    %7741 = vmatpush1.bf16.msra.mxu0 %v7500
    %7742 = vmatprep.subr.bf16.mxu0 %v7493
    %7743 = vmatpush1.bf16.msra.mxu0 %v7492
    %7744 = vmatprep.subr.bf16.mxu0 %v7485
    %7745 = vmatpush1.bf16.msra.mxu0 %v7484
    %7746 = vmatprep.subr.bf16.mxu0 %v7477
    %7747 = vmatpush1.bf16.msra.mxu0 %v7476
    %7748 = vmatprep.subr.bf16.mxu0 %v7597
    %7749 = vmatpush2.bf16.msra.mxu0 %v7596
    %7750 = vmatprep.subr.bf16.mxu0 %v7589
    %7751 = vmatpush2.bf16.msra.mxu0 %v7588
    %7752 = vmatprep.subr.bf16.mxu0 %v7581
    %7753 = vmatpush2.bf16.msra.mxu0 %v7580
    %7754 = vmatprep.subr.bf16.mxu0 %v7573
    %7755 = vmatpush2.bf16.msra.mxu0 %v7572
    %7756 = vmatprep.subr.bf16.mxu0 %v7565
    %7757 = vmatpush2.bf16.msra.mxu0 %v7564
    %7758 = vmatprep.subr.bf16.mxu0 %v7557
    %7759 = vmatpush2.bf16.msra.mxu0 %v7556
    %7760 = vmatprep.subr.bf16.mxu0 %v7549
    %7761 = vmatpush2.bf16.msra.mxu0 %v7548
    %7762 = vmatprep.subr.bf16.mxu0 %v7541
    %7763 = vmatpush2.bf16.msra.mxu0 %v7540
    %7764 = vmatprep.mubr.bf16.mxu0 %v6963
    %7765 = vmatmul.mubr.bf16.gmra.mxu0 %v6962
    %v7766 = vpop.f32.mrf.mxu0
    %v7767 = vadd.f32 0.0, %v7766
    %v7768 = vpop.f32.mrf.mxu0
    %v7769 = vadd.f32 0.0, %v7768
    %v7770 = vpop.f32.mrf.mxu0
    %v7771 = vpop.f32.mrf.mxu0
    %7772 = vdwg.mxu0
    %7773 = vmatprep.subr.bf16.mxu0 %v7535
    %7774 = vmatpush1.bf16.msra.mxu0 %v7534
    %7775 = vmatprep.subr.bf16.mxu0 %v7527
    %7776 = vmatpush1.bf16.msra.mxu0 %v7526
    %7777 = vmatprep.subr.bf16.mxu0 %v7519
    %7778 = vmatpush1.bf16.msra.mxu0 %v7518
    %7779 = vmatprep.subr.bf16.mxu0 %v7511
    %7780 = vmatpush1.bf16.msra.mxu0 %v7510
    %7781 = vmatprep.subr.bf16.mxu0 %v7503
    %7782 = vmatpush1.bf16.msra.mxu0 %v7502
    %7783 = vmatprep.subr.bf16.mxu0 %v7495
    %7784 = vmatpush1.bf16.msra.mxu0 %v7494
    %7785 = vmatprep.subr.bf16.mxu0 %v7487
    %7786 = vmatpush1.bf16.msra.mxu0 %v7486
    %7787 = vmatprep.subr.bf16.mxu0 %v7479
    %7788 = vmatpush1.bf16.msra.mxu0 %v7478
    %7789 = vmatprep.subr.bf16.mxu0 %v7599
    %7790 = vmatpush2.bf16.msra.mxu0 %v7598
    %7791 = vmatprep.subr.bf16.mxu0 %v7591
    %7792 = vmatpush2.bf16.msra.mxu0 %v7590
    %7793 = vmatprep.subr.bf16.mxu0 %v7583
    %7794 = vmatpush2.bf16.msra.mxu0 %v7582
    %7795 = vmatprep.subr.bf16.mxu0 %v7575
    %7796 = vmatpush2.bf16.msra.mxu0 %v7574
    %7797 = vmatprep.subr.bf16.mxu0 %v7567
    %7798 = vmatpush2.bf16.msra.mxu0 %v7566
    %7799 = vmatprep.subr.bf16.mxu0 %v7559
    %7800 = vmatpush2.bf16.msra.mxu0 %v7558
    %7801 = vmatprep.subr.bf16.mxu0 %v7551
    %7802 = vmatpush2.bf16.msra.mxu0 %v7550
    %7803 = vmatprep.subr.bf16.mxu0 %v7543
    %7804 = vmatpush2.bf16.msra.mxu0 %v7542
    %7805 = vmatprep.mubr.bf16.mxu0 %v6963
    %7806 = vmatmul.mubr.bf16.gmra.mxu0 %v6962
    %v7807 = vpop.f32.mrf.mxu0
    %v7808 = vadd.f32 0.0, %v7807
    %v7809 = vpop.f32.mrf.mxu0
    %v7810 = vadd.f32 0.0, %v7809
    %v7811 = vpop.f32.mrf.mxu0
    %v7812 = vpop.f32.mrf.mxu0
    %7813 = vdwg.mxu0
    %7814 = vmatprep.subr.bf16.mxu0 %v7537
    %7815 = vmatpush1.bf16.msra.mxu0 %v7536
    %7816 = vmatprep.subr.bf16.mxu0 %v7529
    %7817 = vmatpush1.bf16.msra.mxu0 %v7528
    %7818 = vmatprep.subr.bf16.mxu0 %v7521
    %7819 = vmatpush1.bf16.msra.mxu0 %v7520
    %7820 = vmatprep.subr.bf16.mxu0 %v7513
    %7821 = vmatpush1.bf16.msra.mxu0 %v7512
    %7822 = vmatprep.subr.bf16.mxu0 %v7505
    %7823 = vmatpush1.bf16.msra.mxu0 %v7504
    %7824 = vmatprep.subr.bf16.mxu0 %v7497
    %7825 = vmatpush1.bf16.msra.mxu0 %v7496
    %7826 = vmatprep.subr.bf16.mxu0 %v7489
    %7827 = vmatpush1.bf16.msra.mxu0 %v7488
    %7828 = vmatprep.subr.bf16.mxu0 %v7481
    %7829 = vmatpush1.bf16.msra.mxu0 %v7480
    %7830 = vmatprep.subr.bf16.mxu0 %v7601
    %7831 = vmatpush2.bf16.msra.mxu0 %v7600
    %7832 = vmatprep.subr.bf16.mxu0 %v7593
    %7833 = vmatpush2.bf16.msra.mxu0 %v7592
    %7834 = vmatprep.subr.bf16.mxu0 %v7585
    %7835 = vmatpush2.bf16.msra.mxu0 %v7584
    %7836 = vmatprep.subr.bf16.mxu0 %v7577
    %7837 = vmatpush2.bf16.msra.mxu0 %v7576
    %7838 = vmatprep.subr.bf16.mxu0 %v7569
    %7839 = vmatpush2.bf16.msra.mxu0 %v7568
    %7840 = vmatprep.subr.bf16.mxu0 %v7561
    %7841 = vmatpush2.bf16.msra.mxu0 %v7560
    %7842 = vmatprep.subr.bf16.mxu0 %v7553
    %7843 = vmatpush2.bf16.msra.mxu0 %v7552
    %7844 = vmatprep.subr.bf16.mxu0 %v7545
    %7845 = vmatpush2.bf16.msra.mxu0 %v7544
    %7846 = vmatprep.mubr.bf16.mxu0 %v6963
    %7847 = vmatmul.mubr.bf16.gmra.mxu0 %v6962
    %v7848 = vpop.f32.mrf.mxu0
    %v7849 = vadd.f32 0.0, %v7848
    %v7850 = vpop.f32.mrf.mxu0
    %v7851 = vadd.f32 0.0, %v7850
    %v7852 = vpop.f32.mrf.mxu0
    %v7853 = vpop.f32.mrf.mxu0
    %7854 = vdwg.mxu0
    %7855 = vmatprep.subr.bf16.mxu0 %v7539
    %7856 = vmatpush1.bf16.msra.mxu0 %v7538
    %7857 = vmatprep.subr.bf16.mxu0 %v7531
    %7858 = vmatpush1.bf16.msra.mxu0 %v7530
    %7859 = vmatprep.subr.bf16.mxu0 %v7523
    %7860 = vmatpush1.bf16.msra.mxu0 %v7522
    %7861 = vmatprep.subr.bf16.mxu0 %v7515
    %7862 = vmatpush1.bf16.msra.mxu0 %v7514
    %7863 = vmatprep.subr.bf16.mxu0 %v7507
    %7864 = vmatpush1.bf16.msra.mxu0 %v7506
    %7865 = vmatprep.subr.bf16.mxu0 %v7499
    %7866 = vmatpush1.bf16.msra.mxu0 %v7498
    %7867 = vmatprep.subr.bf16.mxu0 %v7491
    %7868 = vmatpush1.bf16.msra.mxu0 %v7490
    %7869 = vmatprep.subr.bf16.mxu0 %v7483
    %7870 = vmatpush1.bf16.msra.mxu0 %v7482
    %7871 = vmatprep.subr.bf16.mxu0 %v7603
    %7872 = vmatpush2.bf16.msra.mxu0 %v7602
    %7873 = vmatprep.subr.bf16.mxu0 %v7595
    %7874 = vmatpush2.bf16.msra.mxu0 %v7594
    %7875 = vmatprep.subr.bf16.mxu0 %v7587
    %7876 = vmatpush2.bf16.msra.mxu0 %v7586
    %7877 = vmatprep.subr.bf16.mxu0 %v7579
    %7878 = vmatpush2.bf16.msra.mxu0 %v7578
    %7879 = vmatprep.subr.bf16.mxu0 %v7571
    %7880 = vmatpush2.bf16.msra.mxu0 %v7570
    %7881 = vmatprep.subr.bf16.mxu0 %v7563
    %7882 = vmatpush2.bf16.msra.mxu0 %v7562
    %7883 = vmatprep.subr.bf16.mxu0 %v7555
    %7884 = vmatpush2.bf16.msra.mxu0 %v7554
    %7885 = vmatprep.subr.bf16.mxu0 %v7547
    %7886 = vmatpush2.bf16.msra.mxu0 %v7546
    %7887 = vmatprep.mubr.bf16.mxu0 %v6963
    %7888 = vmatmul.mubr.bf16.gmra.mxu0 %v6962
    %v7889 = vpop.f32.mrf.mxu0
    %v7890 = vadd.f32 0.0, %v7889
    %v7891 = vpop.f32.mrf.mxu0
    %v7892 = vadd.f32 0.0, %v7891
    %v7893 = vpop.f32.mrf.mxu0
    %v7894 = vpop.f32.mrf.mxu0
    %7895 = vdwg.mxu0
    %v7904 = vcombine.low %v7767, %v7769
    %v7905 = vcombine.low %v7808, %v7810
    %v7906 = vcombine.low %v7849, %v7851
    %v7907 = vcombine.low %v7890, %v7892
    %v7909 = vunpack.c.l.s4 1966171168
    %v7910 = vunpack.c.0.s8 %v7909
    %v7911 = vlaneseq
    %v7912 = vshrl.u32 %v7911, 7
    %v7913 = vsub.s32 %v7910, %v7912
    %v7914 = vrot.slane %v7904, %v7913
    %v7916 = vunpack.c.l.s4 1966171168
    %v7917 = vunpack.c.0.s8 %v7916
    %v7918 = vlaneseq
    %v7919 = vshrl.u32 %v7918, 7
    %v7920 = vsub.s32 %v7917, %v7919
    %v7921 = vrot.slane %v7905, %v7920
    %v7923 = vunpack.c.l.s4 1966171168
    %v7924 = vunpack.c.0.s8 %v7923
    %v7925 = vlaneseq
    %v7926 = vshrl.u32 %v7925, 7
    %v7927 = vsub.s32 %v7924, %v7926
    %v7928 = vrot.slane %v7906, %v7927
    %v7930 = vunpack.c.l.s4 1966171168
    %v7931 = vunpack.c.0.s8 %v7930
    %v7932 = vlaneseq
    %v7933 = vshrl.u32 %v7932, 7
    %v7934 = vsub.s32 %v7931, %v7933
    %v7935 = vrot.slane %v7907, %v7934
    %v7936 = vcombine.low %v7914, %v7921
    %v7937 = vcombine.low %v7928, %v7935
    %v7939 = vunpack.c.l.s4 1966171168
    %v7940 = vunpack.c.0.s8 %v7939
    %v7941 = vlaneseq
    %v7942 = vshrl.u32 %v7941, 7
    %v7943 = vsub.s32 %v7940, %v7942
    %v7944 = vrot.slane %v7936, %v7943
    %v7946 = vunpack.c.l.s4 1966171168
    %v7947 = vunpack.c.0.s8 %v7946
    %v7948 = vlaneseq
    %v7949 = vshrl.u32 %v7948, 7
    %v7950 = vsub.s32 %v7947, %v7949
    %v7951 = vrot.slane %v7937, %v7950
    %v7952 = vcombine.low %v7944, %v7951
    %v7954 = vadd.f32 %v6949, %v7952
    %v7955 = vxor.u32 %v7954, 2147483648
    %v7956 = vmul.f32 %v7955, 1.442695
    %v7957 = vpow.pop %v7956
    %v7958 = vadd.f32 %v7957, 1.0
    %v7959 = vrcp.pop %v7958
    %v7960 = vmul.f32 1.0, %v7959
    %v7962 = vrot.slane %v7954, 2
    %v7964 = vxor.u32 %v7962, 2147483648
    %v7965 = vmul.f32 %v7964, 1.442695
    %v7966 = vpow.pop %v7965
    %v7967 = vadd.f32 %v7966, 1.0
    %v7968 = vrcp.pop %v7967
    %v7969 = vmul.f32 1.0, %v7968
    %v7970 = vrot.slane %v7954, 4
    %v7972 = vtanh.pop %v7970
    %v7973 = vrot.slane %v7954, 6
    %v7975 = vxor.u32 %v7973, 2147483648
    %v7976 = vmul.f32 %v7975, 1.442695
    %v7977 = vpow.pop %v7976
    %v7978 = vadd.f32 %v7977, 1.0
    %v7979 = vrcp.pop %v7978
    %v7980 = vmul.f32 1.0, %v7979
    %v7981 = vld [vmem:[#allocation5] sm:$0x3]
    %v7982 = vmul.f32 %v7969, %v7981
    %v7983 = vmul.f32 %v7960, %v7972
    %v7984 = vadd.f32 %v7982, %v7983
    %v7985 = vtanh.pop %v7984
    %v7986 = vmul.f32 %v7980, %v7985
    %7987 = vst.msk [vmem:[#allocation5] sm:$0x3] %vm669, %v7984
    %7988 = vst.msk [vmem:[#allocation4] sm:$0x3] %vm669, %v7986
    %s7989 = scalar_lea.vmem [#allocation3], 6
    %7990 = vst.msk [vmem:[%s7989] ss:$8 sm:$0x3] %vm669, %v7986
    %7991 = vst.msk [vmem:[%s7989] ss:$8 sm:$0x0] %vm669, %v7986
    %s7992 = scalar_lea.vmem [#allocation2], 7
    %v7993 = vld [vmem:[%s7992] ss:$8 sm:$0xf]
    %v7994 = vld [vmem:[%s7992] ss:$8 sm:$0xf0]
    %v7995 = vor.u32 %v7993, %v7994
    %v7996 = vld [vmem:[#allocation4] sm:$0x3]
    %v7998 = vlaneseq
    %v7999 = vshrl.u32 %v7998, 7
    %v8000 = vsub.s32 0, %v7999
    %v8001 = vrot.slane %v7996, %v8000
    %v8002 = vlaneseq
    %v8003 = vshrl.u32 %v8002, 7
    %v8004 = vsub.s32 1, %v8003
    %v8005 = vrot.slane %v7996, %v8004
    %v8008 = vpack.c.bf16 %v8001, %v8001
    %v8009 = vpack.c.bf16 %v8005, %v8005
    %v8010 = vld [vmem:[#allocation8] sm:$0xff]
    %v8011 = vld [vmem:[#allocation8 + $0x8] sm:$0xff]
    %v8012 = vld [vmem:[#allocation8 + $0x10] sm:$0xff]
    %v8013 = vld [vmem:[#allocation8 + $0x18] sm:$0xff]
    %v8014 = vld [vmem:[#allocation8 + $0x20] sm:$0xff]
    %v8015 = vld [vmem:[#allocation8 + $0x28] sm:$0xff]
    %v8016 = vld [vmem:[#allocation8 + $0x30] sm:$0xff]
    %v8017 = vld [vmem:[#allocation8 + $0x38] sm:$0xff]
    %v8018 = vld [vmem:[#allocation8 + $0x40] sm:$0xff]
    %v8019 = vld [vmem:[#allocation8 + $0x48] sm:$0xff]
    %v8020 = vld [vmem:[#allocation8 + $0x50] sm:$0xff]
    %v8021 = vld [vmem:[#allocation8 + $0x58] sm:$0xff]
    %v8022 = vld [vmem:[#allocation8 + $0x60] sm:$0xff]
    %v8023 = vld [vmem:[#allocation8 + $0x68] sm:$0xff]
    %v8024 = vld [vmem:[#allocation8 + $0x70] sm:$0xff]
    %v8025 = vld [vmem:[#allocation8 + $0x78] sm:$0xff]
    %v8026 = vld [vmem:[#allocation8 + $0x80] sm:$0xff]
    %v8027 = vld [vmem:[#allocation8 + $0x88] sm:$0xff]
    %v8028 = vld [vmem:[#allocation8 + $0x90] sm:$0xff]
    %v8029 = vld [vmem:[#allocation8 + $0x98] sm:$0xff]
    %v8030 = vld [vmem:[#allocation8 + $0xa0] sm:$0xff]
    %v8031 = vld [vmem:[#allocation8 + $0xa8] sm:$0xff]
    %v8032 = vld [vmem:[#allocation8 + $0xb0] sm:$0xff]
    %v8033 = vld [vmem:[#allocation8 + $0xb8] sm:$0xff]
    %v8034 = vld [vmem:[#allocation8 + $0xc0] sm:$0xff]
    %v8035 = vld [vmem:[#allocation8 + $0xc8] sm:$0xff]
    %v8036 = vld [vmem:[#allocation8 + $0xd0] sm:$0xff]
    %v8037 = vld [vmem:[#allocation8 + $0xd8] sm:$0xff]
    %v8038 = vld [vmem:[#allocation8 + $0xe0] sm:$0xff]
    %v8039 = vld [vmem:[#allocation8 + $0xe8] sm:$0xff]
    %v8040 = vld [vmem:[#allocation8 + $0xf0] sm:$0xff]
    %v8041 = vld [vmem:[#allocation8 + $0xf8] sm:$0xff]
    %v8042 = vld [vmem:[#allocation8 + $0x100] sm:$0xff]
    %v8043 = vld [vmem:[#allocation8 + $0x108] sm:$0xff]
    %v8044 = vld [vmem:[#allocation8 + $0x110] sm:$0xff]
    %v8045 = vld [vmem:[#allocation8 + $0x118] sm:$0xff]
    %v8046 = vld [vmem:[#allocation8 + $0x120] sm:$0xff]
    %v8047 = vld [vmem:[#allocation8 + $0x128] sm:$0xff]
    %v8048 = vld [vmem:[#allocation8 + $0x130] sm:$0xff]
    %v8049 = vld [vmem:[#allocation8 + $0x138] sm:$0xff]
    %v8050 = vld [vmem:[#allocation8 + $0x140] sm:$0xff]
    %v8051 = vld [vmem:[#allocation8 + $0x148] sm:$0xff]
    %v8052 = vld [vmem:[#allocation8 + $0x150] sm:$0xff]
    %v8053 = vld [vmem:[#allocation8 + $0x158] sm:$0xff]
    %v8054 = vld [vmem:[#allocation8 + $0x160] sm:$0xff]
    %v8055 = vld [vmem:[#allocation8 + $0x168] sm:$0xff]
    %v8056 = vld [vmem:[#allocation8 + $0x170] sm:$0xff]
    %v8057 = vld [vmem:[#allocation8 + $0x178] sm:$0xff]
    %v8058 = vld [vmem:[#allocation8 + $0x180] sm:$0xff]
    %v8059 = vld [vmem:[#allocation8 + $0x188] sm:$0xff]
    %v8060 = vld [vmem:[#allocation8 + $0x190] sm:$0xff]
    %v8061 = vld [vmem:[#allocation8 + $0x198] sm:$0xff]
    %v8062 = vld [vmem:[#allocation8 + $0x1a0] sm:$0xff]
    %v8063 = vld [vmem:[#allocation8 + $0x1a8] sm:$0xff]
    %v8064 = vld [vmem:[#allocation8 + $0x1b0] sm:$0xff]
    %v8065 = vld [vmem:[#allocation8 + $0x1b8] sm:$0xff]
    %v8066 = vld [vmem:[#allocation8 + $0x1c0] sm:$0xff]
    %v8067 = vld [vmem:[#allocation8 + $0x1c8] sm:$0xff]
    %v8068 = vld [vmem:[#allocation8 + $0x1d0] sm:$0xff]
    %v8069 = vld [vmem:[#allocation8 + $0x1d8] sm:$0xff]
    %v8070 = vld [vmem:[#allocation8 + $0x1e0] sm:$0xff]
    %v8071 = vld [vmem:[#allocation8 + $0x1e8] sm:$0xff]
    %v8072 = vld [vmem:[#allocation8 + $0x1f0] sm:$0xff]
    %v8073 = vld [vmem:[#allocation8 + $0x1f8] sm:$0xff]
    %v8074 = vld [vmem:[#allocation8 + $0x200] sm:$0xff]
    %v8075 = vld [vmem:[#allocation8 + $0x208] sm:$0xff]
    %v8076 = vld [vmem:[#allocation8 + $0x210] sm:$0xff]
    %v8077 = vld [vmem:[#allocation8 + $0x218] sm:$0xff]
    %v8078 = vld [vmem:[#allocation8 + $0x220] sm:$0xff]
    %v8079 = vld [vmem:[#allocation8 + $0x228] sm:$0xff]
    %v8080 = vld [vmem:[#allocation8 + $0x230] sm:$0xff]
    %v8081 = vld [vmem:[#allocation8 + $0x238] sm:$0xff]
    %v8082 = vld [vmem:[#allocation8 + $0x240] sm:$0xff]
    %v8083 = vld [vmem:[#allocation8 + $0x248] sm:$0xff]
    %v8084 = vld [vmem:[#allocation8 + $0x250] sm:$0xff]
    %v8085 = vld [vmem:[#allocation8 + $0x258] sm:$0xff]
    %v8086 = vld [vmem:[#allocation8 + $0x260] sm:$0xff]
    %v8087 = vld [vmem:[#allocation8 + $0x268] sm:$0xff]
    %v8088 = vld [vmem:[#allocation8 + $0x270] sm:$0xff]
    %v8089 = vld [vmem:[#allocation8 + $0x278] sm:$0xff]
    %v8090 = vld [vmem:[#allocation8 + $0x280] sm:$0xff]
    %v8091 = vld [vmem:[#allocation8 + $0x288] sm:$0xff]
    %v8092 = vld [vmem:[#allocation8 + $0x290] sm:$0xff]
    %v8093 = vld [vmem:[#allocation8 + $0x298] sm:$0xff]
    %v8094 = vld [vmem:[#allocation8 + $0x2a0] sm:$0xff]
    %v8095 = vld [vmem:[#allocation8 + $0x2a8] sm:$0xff]
    %v8096 = vld [vmem:[#allocation8 + $0x2b0] sm:$0xff]
    %v8097 = vld [vmem:[#allocation8 + $0x2b8] sm:$0xff]
    %v8098 = vld [vmem:[#allocation8 + $0x2c0] sm:$0xff]
    %v8099 = vld [vmem:[#allocation8 + $0x2c8] sm:$0xff]
    %v8100 = vld [vmem:[#allocation8 + $0x2d0] sm:$0xff]
    %v8101 = vld [vmem:[#allocation8 + $0x2d8] sm:$0xff]
    %v8102 = vld [vmem:[#allocation8 + $0x2e0] sm:$0xff]
    %v8103 = vld [vmem:[#allocation8 + $0x2e8] sm:$0xff]
    %v8104 = vld [vmem:[#allocation8 + $0x2f0] sm:$0xff]
    %v8105 = vld [vmem:[#allocation8 + $0x2f8] sm:$0xff]
    %v8106 = vld [vmem:[#allocation8 + $0x300] sm:$0xff]
    %v8107 = vld [vmem:[#allocation8 + $0x308] sm:$0xff]
    %v8108 = vld [vmem:[#allocation8 + $0x310] sm:$0xff]
    %v8109 = vld [vmem:[#allocation8 + $0x318] sm:$0xff]
    %v8110 = vld [vmem:[#allocation8 + $0x320] sm:$0xff]
    %v8111 = vld [vmem:[#allocation8 + $0x328] sm:$0xff]
    %v8112 = vld [vmem:[#allocation8 + $0x330] sm:$0xff]
    %v8113 = vld [vmem:[#allocation8 + $0x338] sm:$0xff]
    %v8114 = vld [vmem:[#allocation8 + $0x340] sm:$0xff]
    %v8115 = vld [vmem:[#allocation8 + $0x348] sm:$0xff]
    %v8116 = vld [vmem:[#allocation8 + $0x350] sm:$0xff]
    %v8117 = vld [vmem:[#allocation8 + $0x358] sm:$0xff]
    %v8118 = vld [vmem:[#allocation8 + $0x360] sm:$0xff]
    %v8119 = vld [vmem:[#allocation8 + $0x368] sm:$0xff]
    %v8120 = vld [vmem:[#allocation8 + $0x370] sm:$0xff]
    %v8121 = vld [vmem:[#allocation8 + $0x378] sm:$0xff]
    %v8122 = vld [vmem:[#allocation8 + $0x380] sm:$0xff]
    %v8123 = vld [vmem:[#allocation8 + $0x388] sm:$0xff]
    %v8124 = vld [vmem:[#allocation8 + $0x390] sm:$0xff]
    %v8125 = vld [vmem:[#allocation8 + $0x398] sm:$0xff]
    %v8126 = vld [vmem:[#allocation8 + $0x3a0] sm:$0xff]
    %v8127 = vld [vmem:[#allocation8 + $0x3a8] sm:$0xff]
    %v8128 = vld [vmem:[#allocation8 + $0x3b0] sm:$0xff]
    %v8129 = vld [vmem:[#allocation8 + $0x3b8] sm:$0xff]
    %v8130 = vld [vmem:[#allocation8 + $0x3c0] sm:$0xff]
    %v8131 = vld [vmem:[#allocation8 + $0x3c8] sm:$0xff]
    %v8132 = vld [vmem:[#allocation8 + $0x3d0] sm:$0xff]
    %v8133 = vld [vmem:[#allocation8 + $0x3d8] sm:$0xff]
    %v8134 = vld [vmem:[#allocation8 + $0x3e0] sm:$0xff]
    %v8135 = vld [vmem:[#allocation8 + $0x3e8] sm:$0xff]
    %v8136 = vld [vmem:[#allocation8 + $0x3f0] sm:$0xff]
    %v8137 = vld [vmem:[#allocation8 + $0x3f8] sm:$0xff]
    %v8266 = vunpack.c.l.b16 %v8010
    %v8267 = vunpack.c.h.b16 %v8010
    %v8268 = vunpack.c.l.b16 %v8011
    %v8269 = vunpack.c.h.b16 %v8011
    %v8270 = vunpack.c.l.b16 %v8012
    %v8271 = vunpack.c.h.b16 %v8012
    %v8272 = vunpack.c.l.b16 %v8013
    %v8273 = vunpack.c.h.b16 %v8013
    %v8274 = vunpack.c.l.b16 %v8014
    %v8275 = vunpack.c.h.b16 %v8014
    %v8276 = vunpack.c.l.b16 %v8015
    %v8277 = vunpack.c.h.b16 %v8015
    %v8278 = vunpack.c.l.b16 %v8016
    %v8279 = vunpack.c.h.b16 %v8016
    %v8280 = vunpack.c.l.b16 %v8017
    %v8281 = vunpack.c.h.b16 %v8017
    %v8282 = vunpack.c.l.b16 %v8018
    %v8283 = vunpack.c.h.b16 %v8018
    %v8284 = vunpack.c.l.b16 %v8019
    %v8285 = vunpack.c.h.b16 %v8019
    %v8286 = vunpack.c.l.b16 %v8020
    %v8287 = vunpack.c.h.b16 %v8020
    %v8288 = vunpack.c.l.b16 %v8021
    %v8289 = vunpack.c.h.b16 %v8021
    %v8290 = vunpack.c.l.b16 %v8022
    %v8291 = vunpack.c.h.b16 %v8022
    %v8292 = vunpack.c.l.b16 %v8023
    %v8293 = vunpack.c.h.b16 %v8023
    %v8294 = vunpack.c.l.b16 %v8024
    %v8295 = vunpack.c.h.b16 %v8024
    %v8296 = vunpack.c.l.b16 %v8025
    %v8297 = vunpack.c.h.b16 %v8025
    %v8298 = vunpack.c.l.b16 %v8026
    %v8299 = vunpack.c.h.b16 %v8026
    %v8300 = vunpack.c.l.b16 %v8027
    %v8301 = vunpack.c.h.b16 %v8027
    %v8302 = vunpack.c.l.b16 %v8028
    %v8303 = vunpack.c.h.b16 %v8028
    %v8304 = vunpack.c.l.b16 %v8029
    %v8305 = vunpack.c.h.b16 %v8029
    %v8306 = vunpack.c.l.b16 %v8030
    %v8307 = vunpack.c.h.b16 %v8030
    %v8308 = vunpack.c.l.b16 %v8031
    %v8309 = vunpack.c.h.b16 %v8031
    %v8310 = vunpack.c.l.b16 %v8032
    %v8311 = vunpack.c.h.b16 %v8032
    %v8312 = vunpack.c.l.b16 %v8033
    %v8313 = vunpack.c.h.b16 %v8033
    %v8314 = vunpack.c.l.b16 %v8034
    %v8315 = vunpack.c.h.b16 %v8034
    %v8316 = vunpack.c.l.b16 %v8035
    %v8317 = vunpack.c.h.b16 %v8035
    %v8318 = vunpack.c.l.b16 %v8036
    %v8319 = vunpack.c.h.b16 %v8036
    %v8320 = vunpack.c.l.b16 %v8037
    %v8321 = vunpack.c.h.b16 %v8037
    %v8322 = vunpack.c.l.b16 %v8038
    %v8323 = vunpack.c.h.b16 %v8038
    %v8324 = vunpack.c.l.b16 %v8039
    %v8325 = vunpack.c.h.b16 %v8039
    %v8326 = vunpack.c.l.b16 %v8040
    %v8327 = vunpack.c.h.b16 %v8040
    %v8328 = vunpack.c.l.b16 %v8041
    %v8329 = vunpack.c.h.b16 %v8041
    %v8330 = vunpack.c.l.b16 %v8042
    %v8331 = vunpack.c.h.b16 %v8042
    %v8332 = vunpack.c.l.b16 %v8043
    %v8333 = vunpack.c.h.b16 %v8043
    %v8334 = vunpack.c.l.b16 %v8044
    %v8335 = vunpack.c.h.b16 %v8044
    %v8336 = vunpack.c.l.b16 %v8045
    %v8337 = vunpack.c.h.b16 %v8045
    %v8338 = vunpack.c.l.b16 %v8046
    %v8339 = vunpack.c.h.b16 %v8046
    %v8340 = vunpack.c.l.b16 %v8047
    %v8341 = vunpack.c.h.b16 %v8047
    %v8342 = vunpack.c.l.b16 %v8048
    %v8343 = vunpack.c.h.b16 %v8048
    %v8344 = vunpack.c.l.b16 %v8049
    %v8345 = vunpack.c.h.b16 %v8049
    %v8346 = vunpack.c.l.b16 %v8050
    %v8347 = vunpack.c.h.b16 %v8050
    %v8348 = vunpack.c.l.b16 %v8051
    %v8349 = vunpack.c.h.b16 %v8051
    %v8350 = vunpack.c.l.b16 %v8052
    %v8351 = vunpack.c.h.b16 %v8052
    %v8352 = vunpack.c.l.b16 %v8053
    %v8353 = vunpack.c.h.b16 %v8053
    %v8354 = vunpack.c.l.b16 %v8054
    %v8355 = vunpack.c.h.b16 %v8054
    %v8356 = vunpack.c.l.b16 %v8055
    %v8357 = vunpack.c.h.b16 %v8055
    %v8358 = vunpack.c.l.b16 %v8056
    %v8359 = vunpack.c.h.b16 %v8056
    %v8360 = vunpack.c.l.b16 %v8057
    %v8361 = vunpack.c.h.b16 %v8057
    %v8362 = vunpack.c.l.b16 %v8058
    %v8363 = vunpack.c.h.b16 %v8058
    %v8364 = vunpack.c.l.b16 %v8059
    %v8365 = vunpack.c.h.b16 %v8059
    %v8366 = vunpack.c.l.b16 %v8060
    %v8367 = vunpack.c.h.b16 %v8060
    %v8368 = vunpack.c.l.b16 %v8061
    %v8369 = vunpack.c.h.b16 %v8061
    %v8370 = vunpack.c.l.b16 %v8062
    %v8371 = vunpack.c.h.b16 %v8062
    %v8372 = vunpack.c.l.b16 %v8063
    %v8373 = vunpack.c.h.b16 %v8063
    %v8374 = vunpack.c.l.b16 %v8064
    %v8375 = vunpack.c.h.b16 %v8064
    %v8376 = vunpack.c.l.b16 %v8065
    %v8377 = vunpack.c.h.b16 %v8065
    %v8378 = vunpack.c.l.b16 %v8066
    %v8379 = vunpack.c.h.b16 %v8066
    %v8380 = vunpack.c.l.b16 %v8067
    %v8381 = vunpack.c.h.b16 %v8067
    %v8382 = vunpack.c.l.b16 %v8068
    %v8383 = vunpack.c.h.b16 %v8068
    %v8384 = vunpack.c.l.b16 %v8069
    %v8385 = vunpack.c.h.b16 %v8069
    %v8386 = vunpack.c.l.b16 %v8070
    %v8387 = vunpack.c.h.b16 %v8070
    %v8388 = vunpack.c.l.b16 %v8071
    %v8389 = vunpack.c.h.b16 %v8071
    %v8390 = vunpack.c.l.b16 %v8072
    %v8391 = vunpack.c.h.b16 %v8072
    %v8392 = vunpack.c.l.b16 %v8073
    %v8393 = vunpack.c.h.b16 %v8073
    %v8394 = vunpack.c.l.b16 %v8074
    %v8395 = vunpack.c.h.b16 %v8074
    %v8396 = vunpack.c.l.b16 %v8075
    %v8397 = vunpack.c.h.b16 %v8075
    %v8398 = vunpack.c.l.b16 %v8076
    %v8399 = vunpack.c.h.b16 %v8076
    %v8400 = vunpack.c.l.b16 %v8077
    %v8401 = vunpack.c.h.b16 %v8077
    %v8402 = vunpack.c.l.b16 %v8078
    %v8403 = vunpack.c.h.b16 %v8078
    %v8404 = vunpack.c.l.b16 %v8079
    %v8405 = vunpack.c.h.b16 %v8079
    %v8406 = vunpack.c.l.b16 %v8080
    %v8407 = vunpack.c.h.b16 %v8080
    %v8408 = vunpack.c.l.b16 %v8081
    %v8409 = vunpack.c.h.b16 %v8081
    %v8410 = vunpack.c.l.b16 %v8082
    %v8411 = vunpack.c.h.b16 %v8082
    %v8412 = vunpack.c.l.b16 %v8083
    %v8413 = vunpack.c.h.b16 %v8083
    %v8414 = vunpack.c.l.b16 %v8084
    %v8415 = vunpack.c.h.b16 %v8084
    %v8416 = vunpack.c.l.b16 %v8085
    %v8417 = vunpack.c.h.b16 %v8085
    %v8418 = vunpack.c.l.b16 %v8086
    %v8419 = vunpack.c.h.b16 %v8086
    %v8420 = vunpack.c.l.b16 %v8087
    %v8421 = vunpack.c.h.b16 %v8087
    %v8422 = vunpack.c.l.b16 %v8088
    %v8423 = vunpack.c.h.b16 %v8088
    %v8424 = vunpack.c.l.b16 %v8089
    %v8425 = vunpack.c.h.b16 %v8089
    %v8426 = vunpack.c.l.b16 %v8090
    %v8427 = vunpack.c.h.b16 %v8090
    %v8428 = vunpack.c.l.b16 %v8091
    %v8429 = vunpack.c.h.b16 %v8091
    %v8430 = vunpack.c.l.b16 %v8092
    %v8431 = vunpack.c.h.b16 %v8092
    %v8432 = vunpack.c.l.b16 %v8093
    %v8433 = vunpack.c.h.b16 %v8093
    %v8434 = vunpack.c.l.b16 %v8094
    %v8435 = vunpack.c.h.b16 %v8094
    %v8436 = vunpack.c.l.b16 %v8095
    %v8437 = vunpack.c.h.b16 %v8095
    %v8438 = vunpack.c.l.b16 %v8096
    %v8439 = vunpack.c.h.b16 %v8096
    %v8440 = vunpack.c.l.b16 %v8097
    %v8441 = vunpack.c.h.b16 %v8097
    %v8442 = vunpack.c.l.b16 %v8098
    %v8443 = vunpack.c.h.b16 %v8098
    %v8444 = vunpack.c.l.b16 %v8099
    %v8445 = vunpack.c.h.b16 %v8099
    %v8446 = vunpack.c.l.b16 %v8100
    %v8447 = vunpack.c.h.b16 %v8100
    %v8448 = vunpack.c.l.b16 %v8101
    %v8449 = vunpack.c.h.b16 %v8101
    %v8450 = vunpack.c.l.b16 %v8102
    %v8451 = vunpack.c.h.b16 %v8102
    %v8452 = vunpack.c.l.b16 %v8103
    %v8453 = vunpack.c.h.b16 %v8103
    %v8454 = vunpack.c.l.b16 %v8104
    %v8455 = vunpack.c.h.b16 %v8104
    %v8456 = vunpack.c.l.b16 %v8105
    %v8457 = vunpack.c.h.b16 %v8105
    %v8458 = vunpack.c.l.b16 %v8106
    %v8459 = vunpack.c.h.b16 %v8106
    %v8460 = vunpack.c.l.b16 %v8107
    %v8461 = vunpack.c.h.b16 %v8107
    %v8462 = vunpack.c.l.b16 %v8108
    %v8463 = vunpack.c.h.b16 %v8108
    %v8464 = vunpack.c.l.b16 %v8109
    %v8465 = vunpack.c.h.b16 %v8109
    %v8466 = vunpack.c.l.b16 %v8110
    %v8467 = vunpack.c.h.b16 %v8110
    %v8468 = vunpack.c.l.b16 %v8111
    %v8469 = vunpack.c.h.b16 %v8111
    %v8470 = vunpack.c.l.b16 %v8112
    %v8471 = vunpack.c.h.b16 %v8112
    %v8472 = vunpack.c.l.b16 %v8113
    %v8473 = vunpack.c.h.b16 %v8113
    %v8474 = vunpack.c.l.b16 %v8114
    %v8475 = vunpack.c.h.b16 %v8114
    %v8476 = vunpack.c.l.b16 %v8115
    %v8477 = vunpack.c.h.b16 %v8115
    %v8478 = vunpack.c.l.b16 %v8116
    %v8479 = vunpack.c.h.b16 %v8116
    %v8480 = vunpack.c.l.b16 %v8117
    %v8481 = vunpack.c.h.b16 %v8117
    %v8482 = vunpack.c.l.b16 %v8118
    %v8483 = vunpack.c.h.b16 %v8118
    %v8484 = vunpack.c.l.b16 %v8119
    %v8485 = vunpack.c.h.b16 %v8119
    %v8486 = vunpack.c.l.b16 %v8120
    %v8487 = vunpack.c.h.b16 %v8120
    %v8488 = vunpack.c.l.b16 %v8121
    %v8489 = vunpack.c.h.b16 %v8121
    %v8490 = vunpack.c.l.b16 %v8122
    %v8491 = vunpack.c.h.b16 %v8122
    %v8492 = vunpack.c.l.b16 %v8123
    %v8493 = vunpack.c.h.b16 %v8123
    %v8494 = vunpack.c.l.b16 %v8124
    %v8495 = vunpack.c.h.b16 %v8124
    %v8496 = vunpack.c.l.b16 %v8125
    %v8497 = vunpack.c.h.b16 %v8125
    %v8498 = vunpack.c.l.b16 %v8126
    %v8499 = vunpack.c.h.b16 %v8126
    %v8500 = vunpack.c.l.b16 %v8127
    %v8501 = vunpack.c.h.b16 %v8127
    %v8502 = vunpack.c.l.b16 %v8128
    %v8503 = vunpack.c.h.b16 %v8128
    %v8504 = vunpack.c.l.b16 %v8129
    %v8505 = vunpack.c.h.b16 %v8129
    %v8506 = vunpack.c.l.b16 %v8130
    %v8507 = vunpack.c.h.b16 %v8130
    %v8508 = vunpack.c.l.b16 %v8131
    %v8509 = vunpack.c.h.b16 %v8131
    %v8510 = vunpack.c.l.b16 %v8132
    %v8511 = vunpack.c.h.b16 %v8132
    %v8512 = vunpack.c.l.b16 %v8133
    %v8513 = vunpack.c.h.b16 %v8133
    %v8514 = vunpack.c.l.b16 %v8134
    %v8515 = vunpack.c.h.b16 %v8134
    %v8516 = vunpack.c.l.b16 %v8135
    %v8517 = vunpack.c.h.b16 %v8135
    %v8518 = vunpack.c.l.b16 %v8136
    %v8519 = vunpack.c.h.b16 %v8136
    %v8520 = vunpack.c.l.b16 %v8137
    %v8521 = vunpack.c.h.b16 %v8137
    %v8522 = vpack.c.b16 %v8274, %v8266
    %v8523 = vpack.c.b16 %v8275, %v8267
    %v8524 = vpack.c.b16 %v8276, %v8268
    %v8525 = vpack.c.b16 %v8277, %v8269
    %v8526 = vpack.c.b16 %v8278, %v8270
    %v8527 = vpack.c.b16 %v8279, %v8271
    %v8528 = vpack.c.b16 %v8280, %v8272
    %v8529 = vpack.c.b16 %v8281, %v8273
    %v8530 = vpack.c.b16 %v8290, %v8282
    %v8531 = vpack.c.b16 %v8291, %v8283
    %v8532 = vpack.c.b16 %v8292, %v8284
    %v8533 = vpack.c.b16 %v8293, %v8285
    %v8534 = vpack.c.b16 %v8294, %v8286
    %v8535 = vpack.c.b16 %v8295, %v8287
    %v8536 = vpack.c.b16 %v8296, %v8288
    %v8537 = vpack.c.b16 %v8297, %v8289
    %v8538 = vpack.c.b16 %v8306, %v8298
    %v8539 = vpack.c.b16 %v8307, %v8299
    %v8540 = vpack.c.b16 %v8308, %v8300
    %v8541 = vpack.c.b16 %v8309, %v8301
    %v8542 = vpack.c.b16 %v8310, %v8302
    %v8543 = vpack.c.b16 %v8311, %v8303
    %v8544 = vpack.c.b16 %v8312, %v8304
    %v8545 = vpack.c.b16 %v8313, %v8305
    %v8546 = vpack.c.b16 %v8322, %v8314
    %v8547 = vpack.c.b16 %v8323, %v8315
    %v8548 = vpack.c.b16 %v8324, %v8316
    %v8549 = vpack.c.b16 %v8325, %v8317
    %v8550 = vpack.c.b16 %v8326, %v8318
    %v8551 = vpack.c.b16 %v8327, %v8319
    %v8552 = vpack.c.b16 %v8328, %v8320
    %v8553 = vpack.c.b16 %v8329, %v8321
    %v8554 = vpack.c.b16 %v8338, %v8330
    %v8555 = vpack.c.b16 %v8339, %v8331
    %v8556 = vpack.c.b16 %v8340, %v8332
    %v8557 = vpack.c.b16 %v8341, %v8333
    %v8558 = vpack.c.b16 %v8342, %v8334
    %v8559 = vpack.c.b16 %v8343, %v8335
    %v8560 = vpack.c.b16 %v8344, %v8336
    %v8561 = vpack.c.b16 %v8345, %v8337
    %v8562 = vpack.c.b16 %v8354, %v8346
    %v8563 = vpack.c.b16 %v8355, %v8347
    %v8564 = vpack.c.b16 %v8356, %v8348
    %v8565 = vpack.c.b16 %v8357, %v8349
    %v8566 = vpack.c.b16 %v8358, %v8350
    %v8567 = vpack.c.b16 %v8359, %v8351
    %v8568 = vpack.c.b16 %v8360, %v8352
    %v8569 = vpack.c.b16 %v8361, %v8353
    %v8570 = vpack.c.b16 %v8370, %v8362
    %v8571 = vpack.c.b16 %v8371, %v8363
    %v8572 = vpack.c.b16 %v8372, %v8364
    %v8573 = vpack.c.b16 %v8373, %v8365
    %v8574 = vpack.c.b16 %v8374, %v8366
    %v8575 = vpack.c.b16 %v8375, %v8367
    %v8576 = vpack.c.b16 %v8376, %v8368
    %v8577 = vpack.c.b16 %v8377, %v8369
    %v8578 = vpack.c.b16 %v8386, %v8378
    %v8579 = vpack.c.b16 %v8387, %v8379
    %v8580 = vpack.c.b16 %v8388, %v8380
    %v8581 = vpack.c.b16 %v8389, %v8381
    %v8582 = vpack.c.b16 %v8390, %v8382
    %v8583 = vpack.c.b16 %v8391, %v8383
    %v8584 = vpack.c.b16 %v8392, %v8384
    %v8585 = vpack.c.b16 %v8393, %v8385
    %v8586 = vpack.c.b16 %v8402, %v8394
    %v8587 = vpack.c.b16 %v8403, %v8395
    %v8588 = vpack.c.b16 %v8404, %v8396
    %v8589 = vpack.c.b16 %v8405, %v8397
    %v8590 = vpack.c.b16 %v8406, %v8398
    %v8591 = vpack.c.b16 %v8407, %v8399
    %v8592 = vpack.c.b16 %v8408, %v8400
    %v8593 = vpack.c.b16 %v8409, %v8401
    %v8594 = vpack.c.b16 %v8418, %v8410
    %v8595 = vpack.c.b16 %v8419, %v8411
    %v8596 = vpack.c.b16 %v8420, %v8412
    %v8597 = vpack.c.b16 %v8421, %v8413
    %v8598 = vpack.c.b16 %v8422, %v8414
    %v8599 = vpack.c.b16 %v8423, %v8415
    %v8600 = vpack.c.b16 %v8424, %v8416
    %v8601 = vpack.c.b16 %v8425, %v8417
    %v8602 = vpack.c.b16 %v8434, %v8426
    %v8603 = vpack.c.b16 %v8435, %v8427
    %v8604 = vpack.c.b16 %v8436, %v8428
    %v8605 = vpack.c.b16 %v8437, %v8429
    %v8606 = vpack.c.b16 %v8438, %v8430
    %v8607 = vpack.c.b16 %v8439, %v8431
    %v8608 = vpack.c.b16 %v8440, %v8432
    %v8609 = vpack.c.b16 %v8441, %v8433
    %v8610 = vpack.c.b16 %v8450, %v8442
    %v8611 = vpack.c.b16 %v8451, %v8443
    %v8612 = vpack.c.b16 %v8452, %v8444
    %v8613 = vpack.c.b16 %v8453, %v8445
    %v8614 = vpack.c.b16 %v8454, %v8446
    %v8615 = vpack.c.b16 %v8455, %v8447
    %v8616 = vpack.c.b16 %v8456, %v8448
    %v8617 = vpack.c.b16 %v8457, %v8449
    %v8618 = vpack.c.b16 %v8466, %v8458
    %v8619 = vpack.c.b16 %v8467, %v8459
    %v8620 = vpack.c.b16 %v8468, %v8460
    %v8621 = vpack.c.b16 %v8469, %v8461
    %v8622 = vpack.c.b16 %v8470, %v8462
    %v8623 = vpack.c.b16 %v8471, %v8463
    %v8624 = vpack.c.b16 %v8472, %v8464
    %v8625 = vpack.c.b16 %v8473, %v8465
    %v8626 = vpack.c.b16 %v8482, %v8474
    %v8627 = vpack.c.b16 %v8483, %v8475
    %v8628 = vpack.c.b16 %v8484, %v8476
    %v8629 = vpack.c.b16 %v8485, %v8477
    %v8630 = vpack.c.b16 %v8486, %v8478
    %v8631 = vpack.c.b16 %v8487, %v8479
    %v8632 = vpack.c.b16 %v8488, %v8480
    %v8633 = vpack.c.b16 %v8489, %v8481
    %v8634 = vpack.c.b16 %v8498, %v8490
    %v8635 = vpack.c.b16 %v8499, %v8491
    %v8636 = vpack.c.b16 %v8500, %v8492
    %v8637 = vpack.c.b16 %v8501, %v8493
    %v8638 = vpack.c.b16 %v8502, %v8494
    %v8639 = vpack.c.b16 %v8503, %v8495
    %v8640 = vpack.c.b16 %v8504, %v8496
    %v8641 = vpack.c.b16 %v8505, %v8497
    %v8642 = vpack.c.b16 %v8514, %v8506
    %v8643 = vpack.c.b16 %v8515, %v8507
    %v8644 = vpack.c.b16 %v8516, %v8508
    %v8645 = vpack.c.b16 %v8517, %v8509
    %v8646 = vpack.c.b16 %v8518, %v8510
    %v8647 = vpack.c.b16 %v8519, %v8511
    %v8648 = vpack.c.b16 %v8520, %v8512
    %v8649 = vpack.c.b16 %v8521, %v8513
    %8778 = vmatprep.subr.bf16.mxu0 %v8579
    %8779 = vmatpush1.bf16.msra.mxu0 %v8578
    %8780 = vmatprep.subr.bf16.mxu0 %v8571
    %8781 = vmatpush1.bf16.msra.mxu0 %v8570
    %8782 = vmatprep.subr.bf16.mxu0 %v8563
    %8783 = vmatpush1.bf16.msra.mxu0 %v8562
    %8784 = vmatprep.subr.bf16.mxu0 %v8555
    %8785 = vmatpush1.bf16.msra.mxu0 %v8554
    %8786 = vmatprep.subr.bf16.mxu0 %v8547
    %8787 = vmatpush1.bf16.msra.mxu0 %v8546
    %8788 = vmatprep.subr.bf16.mxu0 %v8539
    %8789 = vmatpush1.bf16.msra.mxu0 %v8538
    %8790 = vmatprep.subr.bf16.mxu0 %v8531
    %8791 = vmatpush1.bf16.msra.mxu0 %v8530
    %8792 = vmatprep.subr.bf16.mxu0 %v8523
    %8793 = vmatpush1.bf16.msra.mxu0 %v8522
    %8794 = vmatprep.subr.bf16.mxu0 %v8643
    %8795 = vmatpush2.bf16.msra.mxu0 %v8642
    %8796 = vmatprep.subr.bf16.mxu0 %v8635
    %8797 = vmatpush2.bf16.msra.mxu0 %v8634
    %8798 = vmatprep.subr.bf16.mxu0 %v8627
    %8799 = vmatpush2.bf16.msra.mxu0 %v8626
    %8800 = vmatprep.subr.bf16.mxu0 %v8619
    %8801 = vmatpush2.bf16.msra.mxu0 %v8618
    %8802 = vmatprep.subr.bf16.mxu0 %v8611
    %8803 = vmatpush2.bf16.msra.mxu0 %v8610
    %8804 = vmatprep.subr.bf16.mxu0 %v8603
    %8805 = vmatpush2.bf16.msra.mxu0 %v8602
    %8806 = vmatprep.subr.bf16.mxu0 %v8595
    %8807 = vmatpush2.bf16.msra.mxu0 %v8594
    %8808 = vmatprep.subr.bf16.mxu0 %v8587
    %8809 = vmatpush2.bf16.msra.mxu0 %v8586
    %8810 = vmatprep.mubr.bf16.mxu0 %v8009
    %8811 = vmatmul.mubr.bf16.gmra.mxu0 %v8008
    %v8812 = vpop.f32.mrf.mxu0
    %v8813 = vadd.f32 0.0, %v8812
    %v8814 = vpop.f32.mrf.mxu0
    %v8815 = vadd.f32 0.0, %v8814
    %v8816 = vpop.f32.mrf.mxu0
    %v8817 = vpop.f32.mrf.mxu0
    %8818 = vdwg.mxu0
    %8819 = vmatprep.subr.bf16.mxu0 %v8581
    %8820 = vmatpush1.bf16.msra.mxu0 %v8580
    %8821 = vmatprep.subr.bf16.mxu0 %v8573
    %8822 = vmatpush1.bf16.msra.mxu0 %v8572
    %8823 = vmatprep.subr.bf16.mxu0 %v8565
    %8824 = vmatpush1.bf16.msra.mxu0 %v8564
    %8825 = vmatprep.subr.bf16.mxu0 %v8557
    %8826 = vmatpush1.bf16.msra.mxu0 %v8556
    %8827 = vmatprep.subr.bf16.mxu0 %v8549
    %8828 = vmatpush1.bf16.msra.mxu0 %v8548
    %8829 = vmatprep.subr.bf16.mxu0 %v8541
    %8830 = vmatpush1.bf16.msra.mxu0 %v8540
    %8831 = vmatprep.subr.bf16.mxu0 %v8533
    %8832 = vmatpush1.bf16.msra.mxu0 %v8532
    %8833 = vmatprep.subr.bf16.mxu0 %v8525
    %8834 = vmatpush1.bf16.msra.mxu0 %v8524
    %8835 = vmatprep.subr.bf16.mxu0 %v8645
    %8836 = vmatpush2.bf16.msra.mxu0 %v8644
    %8837 = vmatprep.subr.bf16.mxu0 %v8637
    %8838 = vmatpush2.bf16.msra.mxu0 %v8636
    %8839 = vmatprep.subr.bf16.mxu0 %v8629
    %8840 = vmatpush2.bf16.msra.mxu0 %v8628
    %8841 = vmatprep.subr.bf16.mxu0 %v8621
    %8842 = vmatpush2.bf16.msra.mxu0 %v8620
    %8843 = vmatprep.subr.bf16.mxu0 %v8613
    %8844 = vmatpush2.bf16.msra.mxu0 %v8612
    %8845 = vmatprep.subr.bf16.mxu0 %v8605
    %8846 = vmatpush2.bf16.msra.mxu0 %v8604
    %8847 = vmatprep.subr.bf16.mxu0 %v8597
    %8848 = vmatpush2.bf16.msra.mxu0 %v8596
    %8849 = vmatprep.subr.bf16.mxu0 %v8589
    %8850 = vmatpush2.bf16.msra.mxu0 %v8588
    %8851 = vmatprep.mubr.bf16.mxu0 %v8009
    %8852 = vmatmul.mubr.bf16.gmra.mxu0 %v8008
    %v8853 = vpop.f32.mrf.mxu0
    %v8854 = vadd.f32 0.0, %v8853
    %v8855 = vpop.f32.mrf.mxu0
    %v8856 = vadd.f32 0.0, %v8855
    %v8857 = vpop.f32.mrf.mxu0
    %v8858 = vpop.f32.mrf.mxu0
    %8859 = vdwg.mxu0
    %8860 = vmatprep.subr.bf16.mxu0 %v8583
    %8861 = vmatpush1.bf16.msra.mxu0 %v8582
    %8862 = vmatprep.subr.bf16.mxu0 %v8575
    %8863 = vmatpush1.bf16.msra.mxu0 %v8574
    %8864 = vmatprep.subr.bf16.mxu0 %v8567
    %8865 = vmatpush1.bf16.msra.mxu0 %v8566
    %8866 = vmatprep.subr.bf16.mxu0 %v8559
    %8867 = vmatpush1.bf16.msra.mxu0 %v8558
    %8868 = vmatprep.subr.bf16.mxu0 %v8551
    %8869 = vmatpush1.bf16.msra.mxu0 %v8550
    %8870 = vmatprep.subr.bf16.mxu0 %v8543
    %8871 = vmatpush1.bf16.msra.mxu0 %v8542
    %8872 = vmatprep.subr.bf16.mxu0 %v8535
    %8873 = vmatpush1.bf16.msra.mxu0 %v8534
    %8874 = vmatprep.subr.bf16.mxu0 %v8527
    %8875 = vmatpush1.bf16.msra.mxu0 %v8526
    %8876 = vmatprep.subr.bf16.mxu0 %v8647
    %8877 = vmatpush2.bf16.msra.mxu0 %v8646
    %8878 = vmatprep.subr.bf16.mxu0 %v8639
    %8879 = vmatpush2.bf16.msra.mxu0 %v8638
    %8880 = vmatprep.subr.bf16.mxu0 %v8631
    %8881 = vmatpush2.bf16.msra.mxu0 %v8630
    %8882 = vmatprep.subr.bf16.mxu0 %v8623
    %8883 = vmatpush2.bf16.msra.mxu0 %v8622
    %8884 = vmatprep.subr.bf16.mxu0 %v8615
    %8885 = vmatpush2.bf16.msra.mxu0 %v8614
    %8886 = vmatprep.subr.bf16.mxu0 %v8607
    %8887 = vmatpush2.bf16.msra.mxu0 %v8606
    %8888 = vmatprep.subr.bf16.mxu0 %v8599
    %8889 = vmatpush2.bf16.msra.mxu0 %v8598
    %8890 = vmatprep.subr.bf16.mxu0 %v8591
    %8891 = vmatpush2.bf16.msra.mxu0 %v8590
    %8892 = vmatprep.mubr.bf16.mxu0 %v8009
    %8893 = vmatmul.mubr.bf16.gmra.mxu0 %v8008
    %v8894 = vpop.f32.mrf.mxu0
    %v8895 = vadd.f32 0.0, %v8894
    %v8896 = vpop.f32.mrf.mxu0
    %v8897 = vadd.f32 0.0, %v8896
    %v8898 = vpop.f32.mrf.mxu0
    %v8899 = vpop.f32.mrf.mxu0
    %8900 = vdwg.mxu0
    %8901 = vmatprep.subr.bf16.mxu0 %v8585
    %8902 = vmatpush1.bf16.msra.mxu0 %v8584
    %8903 = vmatprep.subr.bf16.mxu0 %v8577
    %8904 = vmatpush1.bf16.msra.mxu0 %v8576
    %8905 = vmatprep.subr.bf16.mxu0 %v8569
    %8906 = vmatpush1.bf16.msra.mxu0 %v8568
    %8907 = vmatprep.subr.bf16.mxu0 %v8561
    %8908 = vmatpush1.bf16.msra.mxu0 %v8560
    %8909 = vmatprep.subr.bf16.mxu0 %v8553
    %8910 = vmatpush1.bf16.msra.mxu0 %v8552
    %8911 = vmatprep.subr.bf16.mxu0 %v8545
    %8912 = vmatpush1.bf16.msra.mxu0 %v8544
    %8913 = vmatprep.subr.bf16.mxu0 %v8537
    %8914 = vmatpush1.bf16.msra.mxu0 %v8536
    %8915 = vmatprep.subr.bf16.mxu0 %v8529
    %8916 = vmatpush1.bf16.msra.mxu0 %v8528
    %8917 = vmatprep.subr.bf16.mxu0 %v8649
    %8918 = vmatpush2.bf16.msra.mxu0 %v8648
    %8919 = vmatprep.subr.bf16.mxu0 %v8641
    %8920 = vmatpush2.bf16.msra.mxu0 %v8640
    %8921 = vmatprep.subr.bf16.mxu0 %v8633
    %8922 = vmatpush2.bf16.msra.mxu0 %v8632
    %8923 = vmatprep.subr.bf16.mxu0 %v8625
    %8924 = vmatpush2.bf16.msra.mxu0 %v8624
    %8925 = vmatprep.subr.bf16.mxu0 %v8617
    %8926 = vmatpush2.bf16.msra.mxu0 %v8616
    %8927 = vmatprep.subr.bf16.mxu0 %v8609
    %8928 = vmatpush2.bf16.msra.mxu0 %v8608
    %8929 = vmatprep.subr.bf16.mxu0 %v8601
    %8930 = vmatpush2.bf16.msra.mxu0 %v8600
    %8931 = vmatprep.subr.bf16.mxu0 %v8593
    %8932 = vmatpush2.bf16.msra.mxu0 %v8592
    %8933 = vmatprep.mubr.bf16.mxu0 %v8009
    %8934 = vmatmul.mubr.bf16.gmra.mxu0 %v8008
    %v8935 = vpop.f32.mrf.mxu0
    %v8936 = vadd.f32 0.0, %v8935
    %v8937 = vpop.f32.mrf.mxu0
    %v8938 = vadd.f32 0.0, %v8937
    %v8939 = vpop.f32.mrf.mxu0
    %v8940 = vpop.f32.mrf.mxu0
    %8941 = vdwg.mxu0
    %v8950 = vcombine.low %v8813, %v8815
    %v8951 = vcombine.low %v8854, %v8856
    %v8952 = vcombine.low %v8895, %v8897
    %v8953 = vcombine.low %v8936, %v8938
    %v8955 = vunpack.c.l.s4 1966171168
    %v8956 = vunpack.c.0.s8 %v8955
    %v8957 = vlaneseq
    %v8958 = vshrl.u32 %v8957, 7
    %v8959 = vsub.s32 %v8956, %v8958
    %v8960 = vrot.slane %v8950, %v8959
    %v8962 = vunpack.c.l.s4 1966171168
    %v8963 = vunpack.c.0.s8 %v8962
    %v8964 = vlaneseq
    %v8965 = vshrl.u32 %v8964, 7
    %v8966 = vsub.s32 %v8963, %v8965
    %v8967 = vrot.slane %v8951, %v8966
    %v8969 = vunpack.c.l.s4 1966171168
    %v8970 = vunpack.c.0.s8 %v8969
    %v8971 = vlaneseq
    %v8972 = vshrl.u32 %v8971, 7
    %v8973 = vsub.s32 %v8970, %v8972
    %v8974 = vrot.slane %v8952, %v8973
    %v8976 = vunpack.c.l.s4 1966171168
    %v8977 = vunpack.c.0.s8 %v8976
    %v8978 = vlaneseq
    %v8979 = vshrl.u32 %v8978, 7
    %v8980 = vsub.s32 %v8977, %v8979
    %v8981 = vrot.slane %v8953, %v8980
    %v8982 = vcombine.low %v8960, %v8967
    %v8983 = vcombine.low %v8974, %v8981
    %v8985 = vunpack.c.l.s4 1966171168
    %v8986 = vunpack.c.0.s8 %v8985
    %v8987 = vlaneseq
    %v8988 = vshrl.u32 %v8987, 7
    %v8989 = vsub.s32 %v8986, %v8988
    %v8990 = vrot.slane %v8982, %v8989
    %v8992 = vunpack.c.l.s4 1966171168
    %v8993 = vunpack.c.0.s8 %v8992
    %v8994 = vlaneseq
    %v8995 = vshrl.u32 %v8994, 7
    %v8996 = vsub.s32 %v8993, %v8995
    %v8997 = vrot.slane %v8983, %v8996
    %v8998 = vcombine.low %v8990, %v8997
    %v9000 = vadd.f32 %v7995, %v8998
    %v9001 = vxor.u32 %v9000, 2147483648
    %v9002 = vmul.f32 %v9001, 1.442695
    %v9003 = vpow.pop %v9002
    %v9004 = vadd.f32 %v9003, 1.0
    %v9005 = vrcp.pop %v9004
    %v9006 = vmul.f32 1.0, %v9005
    %v9008 = vrot.slane %v9000, 2
    %v9010 = vxor.u32 %v9008, 2147483648
    %v9011 = vmul.f32 %v9010, 1.442695
    %v9012 = vpow.pop %v9011
    %v9013 = vadd.f32 %v9012, 1.0
    %v9014 = vrcp.pop %v9013
    %v9015 = vmul.f32 1.0, %v9014
    %v9016 = vrot.slane %v9000, 4
    %v9018 = vtanh.pop %v9016
    %v9019 = vrot.slane %v9000, 6
    %v9021 = vxor.u32 %v9019, 2147483648
    %v9022 = vmul.f32 %v9021, 1.442695
    %v9023 = vpow.pop %v9022
    %v9024 = vadd.f32 %v9023, 1.0
    %v9025 = vrcp.pop %v9024
    %v9026 = vmul.f32 1.0, %v9025
    %v9027 = vld [vmem:[#allocation5] sm:$0x3]
    %v9028 = vmul.f32 %v9015, %v9027
    %v9029 = vmul.f32 %v9006, %v9018
    %v9030 = vadd.f32 %v9028, %v9029
    %v9031 = vtanh.pop %v9030
    %v9032 = vmul.f32 %v9026, %v9031
    %9033 = vst.msk [vmem:[#allocation5] sm:$0x3] %vm669, %v9030
    %9034 = vst.msk [vmem:[#allocation4] sm:$0x3] %vm669, %v9032
    %s9035 = scalar_lea.vmem [#allocation3], 7
    %9036 = vst.msk [vmem:[%s9035] ss:$8 sm:$0x3] %vm669, %v9032
    %9037 = vst.msk [vmem:[%s9035] ss:$8 sm:$0x0] %vm669, %v9032
    %v9038 = vld [vmem:[#allocation3] sm:$0xff]
    %v9039 = vld [vmem:[#allocation3 + $0x8] sm:$0xff]
    %v9040 = vpack.c.bf16 %v9038, %v9038
    %v9041 = vpack.c.bf16 %v9039, %v9039
    %v9042 = vld [vmem:[#allocation10] sm:$0xf]
    %v9043 = vld [vmem:[#allocation10 + $0x4] sm:$0xf]
    %v9044 = vld [vmem:[#allocation10 + $0x8] sm:$0xf]
    %v9045 = vld [vmem:[#allocation10 + $0xc] sm:$0xf]
    %v9046 = vld [vmem:[#allocation10 + $0x10] sm:$0xf]
    %v9047 = vld [vmem:[#allocation10 + $0x14] sm:$0xf]
    %v9048 = vld [vmem:[#allocation10 + $0x18] sm:$0xf]
    %v9049 = vld [vmem:[#allocation10 + $0x1c] sm:$0xf]
    %v9050 = vld [vmem:[#allocation10 + $0x20] sm:$0xf]
    %v9051 = vld [vmem:[#allocation10 + $0x24] sm:$0xf]
    %v9052 = vld [vmem:[#allocation10 + $0x28] sm:$0xf]
    %v9053 = vld [vmem:[#allocation10 + $0x2c] sm:$0xf]
    %v9054 = vld [vmem:[#allocation10 + $0x30] sm:$0xf]
    %v9055 = vld [vmem:[#allocation10 + $0x34] sm:$0xf]
    %v9056 = vld [vmem:[#allocation10 + $0x38] sm:$0xf]
    %v9057 = vld [vmem:[#allocation10 + $0x3c] sm:$0xf]
    %v9058 = vld [vmem:[#allocation10 + $0x40] sm:$0xf]
    %v9059 = vld [vmem:[#allocation10 + $0x44] sm:$0xf]
    %v9060 = vld [vmem:[#allocation10 + $0x48] sm:$0xf]
    %v9061 = vld [vmem:[#allocation10 + $0x4c] sm:$0xf]
    %v9062 = vld [vmem:[#allocation10 + $0x50] sm:$0xf]
    %v9063 = vld [vmem:[#allocation10 + $0x54] sm:$0xf]
    %v9064 = vld [vmem:[#allocation10 + $0x58] sm:$0xf]
    %v9065 = vld [vmem:[#allocation10 + $0x5c] sm:$0xf]
    %v9066 = vld [vmem:[#allocation10 + $0x60] sm:$0xf]
    %v9067 = vld [vmem:[#allocation10 + $0x64] sm:$0xf]
    %v9068 = vld [vmem:[#allocation10 + $0x68] sm:$0xf]
    %v9069 = vld [vmem:[#allocation10 + $0x6c] sm:$0xf]
    %v9070 = vld [vmem:[#allocation10 + $0x70] sm:$0xf]
    %v9071 = vld [vmem:[#allocation10 + $0x74] sm:$0xf]
    %v9072 = vld [vmem:[#allocation10 + $0x78] sm:$0xf]
    %v9073 = vld [vmem:[#allocation10 + $0x7c] sm:$0xf]
    %v9074 = vld [vmem:[%s5] sm:$0x1]
    %v9076 = vlaneseq
    %v9077 = vshrl.u32 %v9076, 7
    %v9078 = vsub.s32 0, %v9077
    %v9079 = vrot.slane %v9074, %v9078
    %v9113 = vunpack.c.l.b16 %v9042
    %v9114 = vunpack.c.l.b16 %v9043
    %v9115 = vunpack.c.l.b16 %v9044
    %v9116 = vunpack.c.l.b16 %v9045
    %v9117 = vunpack.c.l.b16 %v9046
    %v9118 = vunpack.c.l.b16 %v9047
    %v9119 = vunpack.c.l.b16 %v9048
    %v9120 = vunpack.c.l.b16 %v9049
    %v9121 = vunpack.c.l.b16 %v9050
    %v9122 = vunpack.c.l.b16 %v9051
    %v9123 = vunpack.c.l.b16 %v9052
    %v9124 = vunpack.c.l.b16 %v9053
    %v9125 = vunpack.c.l.b16 %v9054
    %v9126 = vunpack.c.l.b16 %v9055
    %v9127 = vunpack.c.l.b16 %v9056
    %v9128 = vunpack.c.l.b16 %v9057
    %v9129 = vunpack.c.l.b16 %v9058
    %v9130 = vunpack.c.l.b16 %v9059
    %v9131 = vunpack.c.l.b16 %v9060
    %v9132 = vunpack.c.l.b16 %v9061
    %v9133 = vunpack.c.l.b16 %v9062
    %v9134 = vunpack.c.l.b16 %v9063
    %v9135 = vunpack.c.l.b16 %v9064
    %v9136 = vunpack.c.l.b16 %v9065
    %v9137 = vunpack.c.l.b16 %v9066
    %v9138 = vunpack.c.l.b16 %v9067
    %v9139 = vunpack.c.l.b16 %v9068
    %v9140 = vunpack.c.l.b16 %v9069
    %v9141 = vunpack.c.l.b16 %v9070
    %v9142 = vunpack.c.l.b16 %v9071
    %v9143 = vunpack.c.l.b16 %v9072
    %v9144 = vunpack.c.l.b16 %v9073
    %v9145 = vpack.c.b16 %v9114, %v9113
    %v9146 = vpack.c.b16 %v9116, %v9115
    %v9147 = vpack.c.b16 %v9118, %v9117
    %v9148 = vpack.c.b16 %v9120, %v9119
    %v9149 = vpack.c.b16 %v9122, %v9121
    %v9150 = vpack.c.b16 %v9124, %v9123
    %v9151 = vpack.c.b16 %v9126, %v9125
    %v9152 = vpack.c.b16 %v9128, %v9127
    %v9153 = vpack.c.b16 %v9130, %v9129
    %v9154 = vpack.c.b16 %v9132, %v9131
    %v9155 = vpack.c.b16 %v9134, %v9133
    %v9156 = vpack.c.b16 %v9136, %v9135
    %v9157 = vpack.c.b16 %v9138, %v9137
    %v9158 = vpack.c.b16 %v9140, %v9139
    %v9159 = vpack.c.b16 %v9142, %v9141
    %v9160 = vpack.c.b16 %v9144, %v9143
    %9177 = vmatprep.subr.bf16.mxu0 0
    %9178 = vmatpush1.bf16.msra.mxu0 %v9152
    %9179 = vmatprep.subr.bf16.mxu0 0
    %9180 = vmatpush1.bf16.msra.mxu0 %v9151
    %9181 = vmatprep.subr.bf16.mxu0 0
    %9182 = vmatpush1.bf16.msra.mxu0 %v9150
    %9183 = vmatprep.subr.bf16.mxu0 0
    %9184 = vmatpush1.bf16.msra.mxu0 %v9149
    %9185 = vmatprep.subr.bf16.mxu0 0
    %9186 = vmatpush1.bf16.msra.mxu0 %v9148
    %9187 = vmatprep.subr.bf16.mxu0 0
    %9188 = vmatpush1.bf16.msra.mxu0 %v9147
    %9189 = vmatprep.subr.bf16.mxu0 0
    %9190 = vmatpush1.bf16.msra.mxu0 %v9146
    %9191 = vmatprep.subr.bf16.mxu0 0
    %9192 = vmatpush1.bf16.msra.mxu0 %v9145
    %9193 = vmatprep.subr.bf16.mxu0 0
    %9194 = vmatpush2.bf16.msra.mxu0 %v9160
    %9195 = vmatprep.subr.bf16.mxu0 0
    %9196 = vmatpush2.bf16.msra.mxu0 %v9159
    %9197 = vmatprep.subr.bf16.mxu0 0
    %9198 = vmatpush2.bf16.msra.mxu0 %v9158
    %9199 = vmatprep.subr.bf16.mxu0 0
    %9200 = vmatpush2.bf16.msra.mxu0 %v9157
    %9201 = vmatprep.subr.bf16.mxu0 0
    %9202 = vmatpush2.bf16.msra.mxu0 %v9156
    %9203 = vmatprep.subr.bf16.mxu0 0
    %9204 = vmatpush2.bf16.msra.mxu0 %v9155
    %9205 = vmatprep.subr.bf16.mxu0 0
    %9206 = vmatpush2.bf16.msra.mxu0 %v9154
    %9207 = vmatprep.subr.bf16.mxu0 0
    %9208 = vmatpush2.bf16.msra.mxu0 %v9153
    %9209 = vmatprep.mubr.bf16.mxu0 %v9041
    %9210 = vmatmul.mubr.bf16.gmra.mxu0 %v9040
    %v9211 = vpop.f32.mrf.mxu0
    %v9212 = vadd.f32 %v9079, %v9211
    %v9213 = vpop.f32.mrf.mxu0
    %v9214 = vpop.f32.mrf.mxu0
    %v9215 = vpop.f32.mrf.mxu0
    %9216 = vdwg.mxu0
    %9217 = vst [vmem:[%s6] sm:$0xff] %v9212
    // Predicated region
    $region38: #{_fused_forward_impl.1} parent=1 // pred_check
      _
    $region39: #{_fused_forward_impl.1} parent=1 // pred_check_branch
      %9219 = sbr.rel (0) target = $region41
    $region40: #{_fused_forward_impl.1} parent=1 // pred_region
      _
    $region41: #{_fused_forward_impl.1} parent=1 // pred_fallthru
      _
    // Predicated region
    $region42: #{_fused_forward_impl.1} parent=1 // pred_check
      _
    $region43: #{_fused_forward_impl.1} parent=1 // pred_check_branch
      %9221 = sbr.rel (0) target = $region45
    $region44: #{_fused_forward_impl.1} parent=1 // pred_region
      _
    $region45: #{_fused_forward_impl.1} parent=1 // pred_fallthru
      _
    %9222 = vsyncpa [#allocation7], 1
    %9223 = vsyncpa [#allocation9], 1

</llo_original>
